<compile_context>
chip_gen: v5e
topology: v5e:2x2
jax: 0.10.0
libtpu: 0.0.40
codegen_flags: <defaults>
</compile_context>

<pallas_src>
import numpy as np

import jax
import jax.numpy as jnp
from jax.experimental import pallas as pl
from jax.experimental.pallas import tpu as pltpu

EPS = 1e-5


# --------------------------------------------------------------------------- #
# Synthetic mini ResNet-18 parameters (eval-mode BN folded to scale/shift)
# --------------------------------------------------------------------------- #
def _fold_bn(gamma, beta, mean, var):
    scale = gamma / jnp.sqrt(var + EPS)
    shift = beta - mean * scale
    return scale, shift


def _init_conv_bn(key, kh, kw, cin, cout):
    k1, k2, k3, k4, k5 = jax.random.split(key, 5)
    w = jax.random.normal(k1, (kh, kw, cin, cout), jnp.float32) / jnp.sqrt(
        float(kh * kw * cin))
    gamma = 1.0 + 0.1 * jax.random.normal(k2, (cout,), jnp.float32)
    beta = 0.1 * jax.random.normal(k3, (cout,), jnp.float32)
    mean = 0.1 * jax.random.normal(k4, (cout,), jnp.float32)
    var = 1.0 + 0.1 * jnp.abs(jax.random.normal(k5, (cout,), jnp.float32))
    scale, shift = _fold_bn(gamma, beta, mean, var)
    return {'w': w, 'scale': scale, 'shift': shift}


def _init_basic_block(key, cin, cout, stride):
    k1, k2, k3 = jax.random.split(key, 3)
    p = {'conv1': _init_conv_bn(k1, 3, 3, cin, cout),
         'conv2': _init_conv_bn(k2, 3, 3, cout, cout)}
    if stride != 1 or cin != cout:
        p['down'] = _init_conv_bn(k3, 1, 1, cin, cout)
    return p


def init_feature_extractor(key, cin=3, widths=(8, 16, 32, 64), blocks_per_layer=2):
    keys = jax.random.split(key, 1 + len(widths) * blocks_per_layer)
    params = {'stem': _init_conv_bn(keys[0], 7, 7, cin, widths[0])}
    idx = 1
    in_c = widths[0]
    for li, w in enumerate(widths):
        layer = []
        for bi in range(blocks_per_layer):
            stride = 2 if (li > 0 and bi == 0) else 1
            layer.append(_init_basic_block(keys[idx], in_c, w, stride))
            in_c = w
            idx += 1
        params[f'layer{li + 1}'] = layer
    return params


# --------------------------------------------------------------------------- #
# Host-side plan: fold conv/pool spatial structure into small constant matrices
# Activation layout everywhere: X[h, (n*W + w)*C + c]  (2-D, lane dim >= 128)
# --------------------------------------------------------------------------- #
def _conv_plan(w_hwio, scale, H_in, W_in, N, stride, pad):
    """Row-selectors S_ki and Toeplitz column matrices B_ki for one conv."""
    kh, kw, Cin, Cout = w_hwio.shape
    H_out = (H_in + 2 * pad - kh) // stride + 1
    W_out = (W_in + 2 * pad - kw) // stride + 1
    D_in, D_out = N * W_in * Cin, N * W_out * Cout
    wf = w_hwio * scale[None, None, None, :]        # BN scale folded into weights
    S_list, B_list, id_list = [], [], []
    for ki in range(kh):
        S = np.zeros((H_out, H_in), np.float32)
        any_row = False
        for ho in range(H_out):
            hi = ho * stride + ki - pad
            if 0 <= hi < H_in:
                S[ho, hi] = 1.0
                any_row = True
        if not any_row:                              # tap never hits a valid row
            continue
        B = np.zeros((D_in, D_out), np.float32)
        for wo in range(W_out):
            for kj in range(kw):
                wi = wo * stride + kj - pad
                if 0 <= wi < W_in:
                    for n in range(N):
                        B[(n * W_in + wi) * Cin:(n * W_in + wi + 1) * Cin,
                          (n * W_out + wo) * Cout:(n * W_out + wo + 1) * Cout] = wf[ki, kj]
        S_list.append(S)
        B_list.append(B)
        id_list.append(H_out == H_in and bool(np.array_equal(S, np.eye(H_in))))
    return np.stack(S_list), np.stack(B_list), tuple(id_list), H_out, W_out


def _maxpool_plan(H_in, W_in, C, N, k=3, s=2, p=1):
    H_out = (H_in + 2 * p - k) // s + 1
    W_out = (W_in + 2 * p - k) // s + 1
    D_in, D_out = N * W_in * C, N * W_out * C
    eye = np.eye(C, dtype=np.float32)
    S_list, C_list = [], []
    for ki in range(k):
        S = np.zeros((H_out, H_in), np.float32)
        ok = False
        for ho in range(H_out):
            hi = ho * s + ki - p
            if 0 <= hi < H_in:
                S[ho, hi] = 1.0
                ok = True
        if ok:
            S_list.append(S)
    for kj in range(k):
        Cm = np.zeros((D_in, D_out), np.float32)
        ok = False
        for wo in range(W_out):
            wi = wo * s + kj - p
            if 0 <= wi < W_in:
                ok = True
                for n in range(N):
                    Cm[(n * W_in + wi) * C:(n * W_in + wi + 1) * C,
                       (n * W_out + wo) * C:(n * W_out + wo + 1) * C] = eye
        if ok:
            C_list.append(Cm)
    # Out-of-range taps contribute 0 instead of -inf; exact because the pooled
    # tensor is post-ReLU (all values >= 0).
    return np.stack(S_list), np.stack(C_list), H_out, W_out


def _avgpool_plan(H, W, C, N):
    row = np.full((1, H), 1.0 / H, np.float32)
    col = np.zeros((N * W * C, N * C), np.float32)
    eye = np.eye(C, dtype=np.float32) / W
    for n in range(N):
        for w in range(W):
            col[(n * W + w) * C:(n * W + w + 1) * C, n * C:(n + 1) * C] = eye
    return row, col


def build_plan(params, x_shape):
    """Flatten the whole network into (constant device arrays, static op list)."""
    N, C_in, H, W = x_shape
    consts, ops = [], []
    stats = {'flops': 0}

    def push(arr, dtype):
        consts.append(jnp.asarray(np.asarray(arr, np.float32), dtype))
        return len(consts) - 1

    def add_conv(cb, Hi, Wi, stride, pad, relu, src, res=None):
        w = np.asarray(cb['w'], np.float32)
        Cin, Co = w.shape[2], w.shape[3]
        S, B, is_id, Ho, Wo = _conv_plan(w, np.asarray(cb['scale'], np.float32),
                                         Hi, Wi, N, stride, pad)
        bias = np.tile(np.asarray(cb['shift'], np.float32), N * Wo).reshape(1, -1)
        ops.append(dict(kind='conv', S=push(S, jnp.bfloat16), B=push(B, jnp.bfloat16),
                        bias=push(bias, jnp.float32), is_id=is_id,
                        taps=int(S.shape[0]), relu=relu, src=src, res=res))
        taps, Din, Dout = int(S.shape[0]), N * Wi * Cin, N * Wo * Co
        stats['flops'] += 2 * taps * Ho * (Hi * Din + Din * Dout)
        return len(ops), Ho, Wo, Co

    # stem: 7x7/2 conv + BN + ReLU
    cur = 0
    cur, Hc, Wc, Cc = add_conv(params['stem'], H, W, 2, 3, True, cur)

    # 3x3/2 max-pool
    S, Cm, Ho, Wo = _maxpool_plan(Hc, Wc, Cc, N)
    ops.append(dict(kind='maxpool', S=push(S, jnp.bfloat16), C=push(Cm, jnp.bfloat16),
                    rt=int(S.shape[0]), ct=int(Cm.shape[0]), src=cur))
    Din, Dout = N * Wc * Cc, N * Wo * Cc
    stats['flops'] += 2 * (S.shape[0] * Ho * Hc * Din
                           + S.shape[0] * Cm.shape[0] * Ho * Din * Dout)
    cur, Hc, Wc = len(ops), Ho, Wo

    # residual stages (torchvision BasicBlock semantics)
    for li in range(4):
        for bi, blk in enumerate(params[f'layer{li + 1}']):
            stride = 2 if (li > 0 and bi == 0) else 1
            src, Hi, Wi = cur, Hc, Wc
            c1, H1, W1, _ = add_conv(blk['conv1'], Hi, Wi, stride, 1, True, src)
            if 'down' in blk:
                idn, _, _, _ = add_conv(blk['down'], Hi, Wi, stride, 0, False, src)
            else:
                idn = src
            cur, Hc, Wc, Cc = add_conv(blk['conv2'], H1, W1, 1, 1, True, c1, res=idn)

    # global average pool + flatten  -> (1, N*C) lane-dense output slab
    row, col = _avgpool_plan(Hc, Wc, Cc, N)
    ops.append(dict(kind='avgpool', row=push(row, jnp.bfloat16),
                    col=push(col, jnp.bfloat16),
                    skip_row=(Hc == 1), skip_col=(Wc == 1), src=cur))
    stats['flops'] += 2 * (Hc * N * Wc * Cc + N * Wc * Cc * N * Cc)

    return consts, ops, (1, N * Cc), stats


# --------------------------------------------------------------------------- #
# The fused Pallas kernel: the whole network, activations resident in VMEM
# --------------------------------------------------------------------------- #
def _make_fused_kernel(ops, n_consts):
    def kernel(*refs):
        x_ref = refs[0]
        cref = refs[1:1 + n_consts]
        out_ref = refs[1 + n_consts]

        def mm(a, b):  # bf16 MXU matmul, f32 accumulation
            return jnp.dot(a.astype(jnp.bfloat16), b.astype(jnp.bfloat16),
                           preferred_element_type=jnp.float32)

        acts = [x_ref[...]]                               # f32 (H, N*W*C) slabs
        for op in ops:
            x = acts[op['src']]
            if op['kind'] == 'conv':
                S, B = cref[op['S']], cref[op['B']]
                acc = cref[op['bias']][...]               # (1, D_out) f32 bias row
                for t in range(op['taps']):
                    rows = x if op['is_id'][t] else mm(S[t], x)
                    acc = acc + mm(rows, B[t])
                if op['res'] is not None:                 # fused residual add
                    acc = acc + acts[op['res']]
                if op['relu']:
                    acc = jnp.maximum(acc, 0.0)
                acts.append(acc)
            elif op['kind'] == 'maxpool':                 # unrolled max over taps
                S, Cm = cref[op['S']], cref[op['C']]
                best = None
                for i in range(op['rt']):
                    rows = mm(S[i], x)
                    for j in range(op['ct']):
                        term = mm(rows, Cm[j])
                        best = term if best is None else jnp.maximum(best, term)
                acts.append(best)
            else:                                         # avgpool + flatten
                v = x
                if not op['skip_row']:
                    v = mm(cref[op['row']][...], v)
                if not op['skip_col']:
                    v = mm(v, cref[op['col']][...])
                acts.append(v)
        out_ref[...] = acts[-1].astype(out_ref.dtype)
    return kernel


def make_feature_extractor(params, x_shape):
    N, C_in, H, W = x_shape
    consts, ops, out_shape, stats = build_plan(params, x_shape)
    kernel = _make_fused_kernel(ops, len(consts))

    def full_block(shape):
        nd = len(shape)
        return pl.BlockSpec(shape, lambda i, _n=nd: (0,) * _n)

    x_shape2d = (H, N * W * C_in)
    in_specs = [full_block(x_shape2d)] + [full_block(tuple(c.shape)) for c in consts]
    out_specs = full_block(out_shape)

    bytes_accessed = int(sum(int(np.prod(c.shape)) * c.dtype.itemsize for c in consts)
                         + int(np.prod(x_shape2d)) * 4 + int(np.prod(out_shape)) * 4)
    cost = pl.CostEstimate(flops=int(stats['flops']), transcendentals=0,
                           bytes_accessed=bytes_accessed)

    fused = pl.pallas_call(
        kernel,
        out_shape=jax.ShapeDtypeStruct(out_shape, jnp.float32),
        grid=(1,),
        in_specs=in_specs,
        out_specs=out_specs,
        compiler_params=pltpu.CompilerParams(
            dimension_semantics=("arbitrary",),
            vmem_limit_bytes=32 * 1024 * 1024),
        cost_estimate=cost,
    )
    # TODO(synk): on v7x (2 TensorCores) a leading "parallel" grid axis over the
    # batch would shard the fused net across cores; with N=2 tiny images the
    # single-program kernel is already launch/latency dominated, so grid=(1,).

    consts = tuple(consts)

    @jax.jit
    def _forward(x_nchw, consts_):
        # NCHW -> (H, N, W, C) -> lane-dense 2-D layout (H, N*W*C)
        x = jnp.transpose(x_nchw.astype(jnp.float32), (2, 0, 3, 1))
        x = x.reshape(H, N * W * C_in)
        feats = fused(x, *consts_)                        # (1, N*C_out)
        return feats.reshape(N, -1)

    def apply(x_nchw):
        return _forward(x_nchw, consts)

    return apply


# --------------------------------------------------------------------------- #
# Pure-JAX reference (same bf16-weight / f32-accumulate data path)
# --------------------------------------------------------------------------- #
@jax.jit
def reference_forward(params, x_nchw):
    def conv(x, cb, stride, pad, relu, residual=None):
        w = (cb['w'] * cb['scale'][None, None, None, :]).astype(jnp.bfloat16)
        out = jax.lax.conv_general_dilated(
            x.astype(jnp.bfloat16), w, (stride, stride),
            [(pad, pad), (pad, pad)],
            dimension_numbers=('NHWC', 'HWIO', 'NHWC'),
            preferred_element_type=jnp.float32)
        out = out + cb['shift'][None, None, None, :]
        if residual is not None:
            out = out + residual
        return jnp.maximum(out, 0.0) if relu else out

    x = jnp.transpose(x_nchw, (0, 2, 3, 1)).astype(jnp.float32)
    x = conv(x, params['stem'], 2, 3, True)
    x = x.astype(jnp.bfloat16).astype(jnp.float32)        # mirror kernel bf16 path
    x = jax.lax.reduce_window(x, -jnp.inf, jax.lax.max,
                              (1, 3, 3, 1), (1, 2, 2, 1),
                              [(0, 0), (1, 1), (1, 1), (0, 0)])
    for li in range(4):
        for bi, blk in enumerate(params[f'layer{li + 1}']):
            stride = 2 if (li > 0 and bi == 0) else 1
            identity = x
            out = conv(x, blk['conv1'], stride, 1, True)
            if 'down' in blk:
                identity = conv(x, blk['down'], stride, 0, False)
            x = conv(out, blk['conv2'], 1, 1, True, residual=identity)
    return jnp.mean(x, axis=(1, 2))                       # avgpool + flatten


if __name__ == "__main__":
    key = jax.random.PRNGKey(0)
    kx, _ = jax.random.split(key)
    x = jax.random.normal(kx, (2, 3, 32, 32), jnp.float32)   # NCHW, like PyTorch
    params = init_feature_extractor(jax.random.PRNGKey(42))

    forward = make_feature_extractor(params, x.shape)
    feats = jax.block_until_ready(forward(x))

    assert feats.shape == (2, 64), feats.shape
    assert bool(jnp.all(jnp.isfinite(feats)))

    ref = jax.block_until_ready(reference_forward(params, x))
    np.testing.assert_allclose(np.asarray(feats), np.asarray(ref),
                               rtol=5e-2, atol=5e-2)
    print("KERNEL_OK")
</pallas_src>

<mosaic_0001>
module attributes {stable_mosaic.version = 11 : i64} {
  func.func @kernel(%arg0: i32, %arg1: memref<32x192xf32, #tpu.memory_space<vmem>>, %arg2: memref<7x16x32xbf16, #tpu.memory_space<vmem>>, %arg3: memref<7x192x256xbf16, #tpu.memory_space<vmem>>, %arg4: memref<1x256xf32, #tpu.memory_space<vmem>>, %arg5: memref<3x8x16xbf16, #tpu.memory_space<vmem>>, %arg6: memref<3x256x128xbf16, #tpu.memory_space<vmem>>, %arg7: memref<3x8x8xbf16, #tpu.memory_space<vmem>>, %arg8: memref<3x128x128xbf16, #tpu.memory_space<vmem>>, %arg9: memref<1x128xf32, #tpu.memory_space<vmem>>, %arg10: memref<3x8x8xbf16, #tpu.memory_space<vmem>>, %arg11: memref<3x128x128xbf16, #tpu.memory_space<vmem>>, %arg12: memref<1x128xf32, #tpu.memory_space<vmem>>, %arg13: memref<3x8x8xbf16, #tpu.memory_space<vmem>>, %arg14: memref<3x128x128xbf16, #tpu.memory_space<vmem>>, %arg15: memref<1x128xf32, #tpu.memory_space<vmem>>, %arg16: memref<3x8x8xbf16, #tpu.memory_space<vmem>>, %arg17: memref<3x128x128xbf16, #tpu.memory_space<vmem>>, %arg18: memref<1x128xf32, #tpu.memory_space<vmem>>, %arg19: memref<3x4x8xbf16, #tpu.memory_space<vmem>>, %arg20: memref<3x128x128xbf16, #tpu.memory_space<vmem>>, %arg21: memref<1x128xf32, #tpu.memory_space<vmem>>, %arg22: memref<1x4x8xbf16, #tpu.memory_space<vmem>>, %arg23: memref<1x128x128xbf16, #tpu.memory_space<vmem>>, %arg24: memref<1x128xf32, #tpu.memory_space<vmem>>, %arg25: memref<3x4x4xbf16, #tpu.memory_space<vmem>>, %arg26: memref<3x128x128xbf16, #tpu.memory_space<vmem>>, %arg27: memref<1x128xf32, #tpu.memory_space<vmem>>, %arg28: memref<3x4x4xbf16, #tpu.memory_space<vmem>>, %arg29: memref<3x128x128xbf16, #tpu.memory_space<vmem>>, %arg30: memref<1x128xf32, #tpu.memory_space<vmem>>, %arg31: memref<3x4x4xbf16, #tpu.memory_space<vmem>>, %arg32: memref<3x128x128xbf16, #tpu.memory_space<vmem>>, %arg33: memref<1x128xf32, #tpu.memory_space<vmem>>, %arg34: memref<3x2x4xbf16, #tpu.memory_space<vmem>>, %arg35: memref<3x128x128xbf16, #tpu.memory_space<vmem>>, %arg36: memref<1x128xf32, #tpu.memory_space<vmem>>, %arg37: memref<1x2x4xbf16, #tpu.memory_space<vmem>>, %arg38: memref<1x128x128xbf16, #tpu.memory_space<vmem>>, %arg39: memref<1x128xf32, #tpu.memory_space<vmem>>, %arg40: memref<3x2x2xbf16, #tpu.memory_space<vmem>>, %arg41: memref<3x128x128xbf16, #tpu.memory_space<vmem>>, %arg42: memref<1x128xf32, #tpu.memory_space<vmem>>, %arg43: memref<3x2x2xbf16, #tpu.memory_space<vmem>>, %arg44: memref<3x128x128xbf16, #tpu.memory_space<vmem>>, %arg45: memref<1x128xf32, #tpu.memory_space<vmem>>, %arg46: memref<3x2x2xbf16, #tpu.memory_space<vmem>>, %arg47: memref<3x128x128xbf16, #tpu.memory_space<vmem>>, %arg48: memref<1x128xf32, #tpu.memory_space<vmem>>, %arg49: memref<2x1x2xbf16, #tpu.memory_space<vmem>>, %arg50: memref<2x128x128xbf16, #tpu.memory_space<vmem>>, %arg51: memref<1x128xf32, #tpu.memory_space<vmem>>, %arg52: memref<1x1x2xbf16, #tpu.memory_space<vmem>>, %arg53: memref<1x128x128xbf16, #tpu.memory_space<vmem>>, %arg54: memref<1x128xf32, #tpu.memory_space<vmem>>, %arg55: memref<1x1x1xbf16, #tpu.memory_space<vmem>>, %arg56: memref<1x128x128xbf16, #tpu.memory_space<vmem>>, %arg57: memref<1x128xf32, #tpu.memory_space<vmem>>, %arg58: memref<1x1x1xbf16, #tpu.memory_space<vmem>>, %arg59: memref<1x128x128xbf16, #tpu.memory_space<vmem>>, %arg60: memref<1x128xf32, #tpu.memory_space<vmem>>, %arg61: memref<1x1x1xbf16, #tpu.memory_space<vmem>>, %arg62: memref<1x128x128xbf16, #tpu.memory_space<vmem>>, %arg63: memref<1x128xf32, #tpu.memory_space<vmem>>, %arg64: memref<1x1xbf16, #tpu.memory_space<vmem>>, %arg65: memref<128x128xbf16, #tpu.memory_space<vmem>>, %arg66: memref<1x128xf32, #tpu.memory_space<vmem>>) attributes {dimension_semantics = [#tpu.dimension_semantics<arbitrary>], iteration_bounds = array<i64: 1>, scalar_prefetch = 0 : i64, scratch_operands = 0 : i64, tpu.core_type = #tpu.core_type<tc>, window_params = [{pipeline_mode = #tpu.pipeline_mode<synchronous>, transform_indices = @transform_0, window_bounds = array<i64: 32, 192>}, {pipeline_mode = #tpu.pipeline_mode<synchronous>, transform_indices = @transform_1, window_bounds = array<i64: 7, 16, 32>}, {pipeline_mode = #tpu.pipeline_mode<synchronous>, transform_indices = @transform_2, window_bounds = array<i64: 7, 192, 256>}, {pipeline_mode = #tpu.pipeline_mode<synchronous>, transform_indices = @transform_3, window_bounds = array<i64: 1, 256>}, {pipeline_mode = #tpu.pipeline_mode<synchronous>, transform_indices = @transform_4, window_bounds = array<i64: 3, 8, 16>}, {pipeline_mode = #tpu.pipeline_mode<synchronous>, transform_indices = @transform_5, window_bounds = array<i64: 3, 256, 128>}, {pipeline_mode = #tpu.pipeline_mode<synchronous>, transform_indices = @transform_6, window_bounds = array<i64: 3, 8, 8>}, {pipeline_mode = #tpu.pipeline_mode<synchronous>, transform_indices = @transform_7, window_bounds = array<i64: 3, 128, 128>}, {pipeline_mode = #tpu.pipeline_mode<synchronous>, transform_indices = @transform_8, window_bounds = array<i64: 1, 128>}, {pipeline_mode = #tpu.pipeline_mode<synchronous>, transform_indices = @transform_9, window_bounds = array<i64: 3, 8, 8>}, {pipeline_mode = #tpu.pipeline_mode<synchronous>, transform_indices = @transform_10, window_bounds = array<i64: 3, 128, 128>}, {pipeline_mode = #tpu.pipeline_mode<synchronous>, transform_indices = @transform_11, window_bounds = array<i64: 1, 128>}, {pipeline_mode = #tpu.pipeline_mode<synchronous>, transform_indices = @transform_12, window_bounds = array<i64: 3, 8, 8>}, {pipeline_mode = #tpu.pipeline_mode<synchronous>, transform_indices = @transform_13, window_bounds = array<i64: 3, 128, 128>}, {pipeline_mode = #tpu.pipeline_mode<synchronous>, transform_indices = @transform_14, window_bounds = array<i64: 1, 128>}, {pipeline_mode = #tpu.pipeline_mode<synchronous>, transform_indices = @transform_15, window_bounds = array<i64: 3, 8, 8>}, {pipeline_mode = #tpu.pipeline_mode<synchronous>, transform_indices = @transform_16, window_bounds = array<i64: 3, 128, 128>}, {pipeline_mode = #tpu.pipeline_mode<synchronous>, transform_indices = @transform_17, window_bounds = array<i64: 1, 128>}, {pipeline_mode = #tpu.pipeline_mode<synchronous>, transform_indices = @transform_18, window_bounds = array<i64: 3, 4, 8>}, {pipeline_mode = #tpu.pipeline_mode<synchronous>, transform_indices = @transform_19, window_bounds = array<i64: 3, 128, 128>}, {pipeline_mode = #tpu.pipeline_mode<synchronous>, transform_indices = @transform_20, window_bounds = array<i64: 1, 128>}, {pipeline_mode = #tpu.pipeline_mode<synchronous>, transform_indices = @transform_21, window_bounds = array<i64: 1, 4, 8>}, {pipeline_mode = #tpu.pipeline_mode<synchronous>, transform_indices = @transform_22, window_bounds = array<i64: 1, 128, 128>}, {pipeline_mode = #tpu.pipeline_mode<synchronous>, transform_indices = @transform_23, window_bounds = array<i64: 1, 128>}, {pipeline_mode = #tpu.pipeline_mode<synchronous>, transform_indices = @transform_24, window_bounds = array<i64: 3, 4, 4>}, {pipeline_mode = #tpu.pipeline_mode<synchronous>, transform_indices = @transform_25, window_bounds = array<i64: 3, 128, 128>}, {pipeline_mode = #tpu.pipeline_mode<synchronous>, transform_indices = @transform_26, window_bounds = array<i64: 1, 128>}, {pipeline_mode = #tpu.pipeline_mode<synchronous>, transform_indices = @transform_27, window_bounds = array<i64: 3, 4, 4>}, {pipeline_mode = #tpu.pipeline_mode<synchronous>, transform_indices = @transform_28, window_bounds = array<i64: 3, 128, 128>}, {pipeline_mode = #tpu.pipeline_mode<synchronous>, transform_indices = @transform_29, window_bounds = array<i64: 1, 128>}, {pipeline_mode = #tpu.pipeline_mode<synchronous>, transform_indices = @transform_30, window_bounds = array<i64: 3, 4, 4>}, {pipeline_mode = #tpu.pipeline_mode<synchronous>, transform_indices = @transform_31, window_bounds = array<i64: 3, 128, 128>}, {pipeline_mode = #tpu.pipeline_mode<synchronous>, transform_indices = @transform_32, window_bounds = array<i64: 1, 128>}, {pipeline_mode = #tpu.pipeline_mode<synchronous>, transform_indices = @transform_33, window_bounds = array<i64: 3, 2, 4>}, {pipeline_mode = #tpu.pipeline_mode<synchronous>, transform_indices = @transform_34, window_bounds = array<i64: 3, 128, 128>}, {pipeline_mode = #tpu.pipeline_mode<synchronous>, transform_indices = @transform_35, window_bounds = array<i64: 1, 128>}, {pipeline_mode = #tpu.pipeline_mode<synchronous>, transform_indices = @transform_36, window_bounds = array<i64: 1, 2, 4>}, {pipeline_mode = #tpu.pipeline_mode<synchronous>, transform_indices = @transform_37, window_bounds = array<i64: 1, 128, 128>}, {pipeline_mode = #tpu.pipeline_mode<synchronous>, transform_indices = @transform_38, window_bounds = array<i64: 1, 128>}, {pipeline_mode = #tpu.pipeline_mode<synchronous>, transform_indices = @transform_39, window_bounds = array<i64: 3, 2, 2>}, {pipeline_mode = #tpu.pipeline_mode<synchronous>, transform_indices = @transform_40, window_bounds = array<i64: 3, 128, 128>}, {pipeline_mode = #tpu.pipeline_mode<synchronous>, transform_indices = @transform_41, window_bounds = array<i64: 1, 128>}, {pipeline_mode = #tpu.pipeline_mode<synchronous>, transform_indices = @transform_42, window_bounds = array<i64: 3, 2, 2>}, {pipeline_mode = #tpu.pipeline_mode<synchronous>, transform_indices = @transform_43, window_bounds = array<i64: 3, 128, 128>}, {pipeline_mode = #tpu.pipeline_mode<synchronous>, transform_indices = @transform_44, window_bounds = array<i64: 1, 128>}, {pipeline_mode = #tpu.pipeline_mode<synchronous>, transform_indices = @transform_45, window_bounds = array<i64: 3, 2, 2>}, {pipeline_mode = #tpu.pipeline_mode<synchronous>, transform_indices = @transform_46, window_bounds = array<i64: 3, 128, 128>}, {pipeline_mode = #tpu.pipeline_mode<synchronous>, transform_indices = @transform_47, window_bounds = array<i64: 1, 128>}, {pipeline_mode = #tpu.pipeline_mode<synchronous>, transform_indices = @transform_48, window_bounds = array<i64: 2, 1, 2>}, {pipeline_mode = #tpu.pipeline_mode<synchronous>, transform_indices = @transform_49, window_bounds = array<i64: 2, 128, 128>}, {pipeline_mode = #tpu.pipeline_mode<synchronous>, transform_indices = @transform_50, window_bounds = array<i64: 1, 128>}, {pipeline_mode = #tpu.pipeline_mode<synchronous>, transform_indices = @transform_51, window_bounds = array<i64: 1, 1, 2>}, {pipeline_mode = #tpu.pipeline_mode<synchronous>, transform_indices = @transform_52, window_bounds = array<i64: 1, 128, 128>}, {pipeline_mode = #tpu.pipeline_mode<synchronous>, transform_indices = @transform_53, window_bounds = array<i64: 1, 128>}, {pipeline_mode = #tpu.pipeline_mode<synchronous>, transform_indices = @transform_54, window_bounds = array<i64: 1, 1, 1>}, {pipeline_mode = #tpu.pipeline_mode<synchronous>, transform_indices = @transform_55, window_bounds = array<i64: 1, 128, 128>}, {pipeline_mode = #tpu.pipeline_mode<synchronous>, transform_indices = @transform_56, window_bounds = array<i64: 1, 128>}, {pipeline_mode = #tpu.pipeline_mode<synchronous>, transform_indices = @transform_57, window_bounds = array<i64: 1, 1, 1>}, {pipeline_mode = #tpu.pipeline_mode<synchronous>, transform_indices = @transform_58, window_bounds = array<i64: 1, 128, 128>}, {pipeline_mode = #tpu.pipeline_mode<synchronous>, transform_indices = @transform_59, window_bounds = array<i64: 1, 128>}, {pipeline_mode = #tpu.pipeline_mode<synchronous>, transform_indices = @transform_60, window_bounds = array<i64: 1, 1, 1>}, {pipeline_mode = #tpu.pipeline_mode<synchronous>, transform_indices = @transform_61, window_bounds = array<i64: 1, 128, 128>}, {pipeline_mode = #tpu.pipeline_mode<synchronous>, transform_indices = @transform_62, window_bounds = array<i64: 1, 128>}, {pipeline_mode = #tpu.pipeline_mode<synchronous>, transform_indices = @transform_63, window_bounds = array<i64: 1, 1>}, {pipeline_mode = #tpu.pipeline_mode<synchronous>, transform_indices = @transform_64, window_bounds = array<i64: 128, 128>}, {pipeline_mode = #tpu.pipeline_mode<synchronous>, transform_indices = @transform_65, window_bounds = array<i64: 1, 128>}]} {
    %c0 = arith.constant 0 : index
    %c0_0 = arith.constant 0 : index
    %0 = vector.load %arg1[%c0, %c0_0] : memref<32x192xf32, #tpu.memory_space<vmem>>, vector<32x192xf32>
    %c0_1 = arith.constant 0 : index
    %c0_2 = arith.constant 0 : index
    %1 = vector.load %arg4[%c0_1, %c0_2] : memref<1x256xf32, #tpu.memory_space<vmem>>, vector<1x256xf32>
    %c0_3 = arith.constant 0 : index
    %c0_4 = arith.constant 0 : index
    %c0_5 = arith.constant 0 : index
    %2 = vector.load %arg2[%c0_3, %c0_4, %c0_5] : memref<7x16x32xbf16, #tpu.memory_space<vmem>>, vector<1x16x32xbf16>
    %3 = vector.shape_cast %2 : vector<1x16x32xbf16> to vector<16x32xbf16>
    %4 = arith.truncf %0 : vector<32x192xf32> to vector<32x192xbf16>
    %cst = arith.constant dense<0.000000e+00> : vector<16x192xf32>
    %5 = tpu.matmul %3, %4, %cst {dimension_numbers = #tpu.dot_dimension_numbers<[1], [0], [0], [1], [0, 0, 1, 1], [], []>} : vector<16x32xbf16>, vector<32x192xbf16>, vector<16x192xf32> -> vector<16x192xf32>
    %c0_6 = arith.constant 0 : index
    %c0_7 = arith.constant 0 : index
    %c0_8 = arith.constant 0 : index
    %6 = vector.load %arg3[%c0_6, %c0_7, %c0_8] : memref<7x192x256xbf16, #tpu.memory_space<vmem>>, vector<1x192x256xbf16>
    %7 = vector.shape_cast %6 : vector<1x192x256xbf16> to vector<192x256xbf16>
    %8 = arith.truncf %5 : vector<16x192xf32> to vector<16x192xbf16>
    %cst_9 = arith.constant dense<0.000000e+00> : vector<16x256xf32>
    %9 = tpu.matmul %8, %7, %cst_9 {dimension_numbers = #tpu.dot_dimension_numbers<[1], [0], [0], [1], [0, 0, 1, 1], [], []>} : vector<16x192xbf16>, vector<192x256xbf16>, vector<16x256xf32> -> vector<16x256xf32>
    %10 = vector.broadcast %1 : vector<1x256xf32> to vector<16x256xf32>
    %11 = arith.addf %10, %9 : vector<16x256xf32>
    %c1 = arith.constant 1 : index
    %c0_10 = arith.constant 0 : index
    %c0_11 = arith.constant 0 : index
    %12 = vector.load %arg2[%c1, %c0_10, %c0_11] : memref<7x16x32xbf16, #tpu.memory_space<vmem>>, vector<1x16x32xbf16>
    %13 = vector.shape_cast %12 : vector<1x16x32xbf16> to vector<16x32xbf16>
    %14 = arith.truncf %0 : vector<32x192xf32> to vector<32x192xbf16>
    %cst_12 = arith.constant dense<0.000000e+00> : vector<16x192xf32>
    %15 = tpu.matmul %13, %14, %cst_12 {dimension_numbers = #tpu.dot_dimension_numbers<[1], [0], [0], [1], [0, 0, 1, 1], [], []>} : vector<16x32xbf16>, vector<32x192xbf16>, vector<16x192xf32> -> vector<16x192xf32>
    %c1_13 = arith.constant 1 : index
    %c0_14 = arith.constant 0 : index
    %c0_15 = arith.constant 0 : index
    %16 = vector.load %arg3[%c1_13, %c0_14, %c0_15] : memref<7x192x256xbf16, #tpu.memory_space<vmem>>, vector<1x192x256xbf16>
    %17 = vector.shape_cast %16 : vector<1x192x256xbf16> to vector<192x256xbf16>
    %18 = arith.truncf %15 : vector<16x192xf32> to vector<16x192xbf16>
    %cst_16 = arith.constant dense<0.000000e+00> : vector<16x256xf32>
    %19 = tpu.matmul %18, %17, %cst_16 {dimension_numbers = #tpu.dot_dimension_numbers<[1], [0], [0], [1], [0, 0, 1, 1], [], []>} : vector<16x192xbf16>, vector<192x256xbf16>, vector<16x256xf32> -> vector<16x256xf32>
    %20 = arith.addf %11, %19 : vector<16x256xf32>
    %c2 = arith.constant 2 : index
    %c0_17 = arith.constant 0 : index
    %c0_18 = arith.constant 0 : index
    %21 = vector.load %arg2[%c2, %c0_17, %c0_18] : memref<7x16x32xbf16, #tpu.memory_space<vmem>>, vector<1x16x32xbf16>
    %22 = vector.shape_cast %21 : vector<1x16x32xbf16> to vector<16x32xbf16>
    %23 = arith.truncf %0 : vector<32x192xf32> to vector<32x192xbf16>
    %cst_19 = arith.constant dense<0.000000e+00> : vector<16x192xf32>
    %24 = tpu.matmul %22, %23, %cst_19 {dimension_numbers = #tpu.dot_dimension_numbers<[1], [0], [0], [1], [0, 0, 1, 1], [], []>} : vector<16x32xbf16>, vector<32x192xbf16>, vector<16x192xf32> -> vector<16x192xf32>
    %c2_20 = arith.constant 2 : index
    %c0_21 = arith.constant 0 : index
    %c0_22 = arith.constant 0 : index
    %25 = vector.load %arg3[%c2_20, %c0_21, %c0_22] : memref<7x192x256xbf16, #tpu.memory_space<vmem>>, vector<1x192x256xbf16>
    %26 = vector.shape_cast %25 : vector<1x192x256xbf16> to vector<192x256xbf16>
    %27 = arith.truncf %24 : vector<16x192xf32> to vector<16x192xbf16>
    %cst_23 = arith.constant dense<0.000000e+00> : vector<16x256xf32>
    %28 = tpu.matmul %27, %26, %cst_23 {dimension_numbers = #tpu.dot_dimension_numbers<[1], [0], [0], [1], [0, 0, 1, 1], [], []>} : vector<16x192xbf16>, vector<192x256xbf16>, vector<16x256xf32> -> vector<16x256xf32>
    %29 = arith.addf %20, %28 : vector<16x256xf32>
    %c3 = arith.constant 3 : index
    %c0_24 = arith.constant 0 : index
    %c0_25 = arith.constant 0 : index
    %30 = vector.load %arg2[%c3, %c0_24, %c0_25] : memref<7x16x32xbf16, #tpu.memory_space<vmem>>, vector<1x16x32xbf16>
    %31 = vector.shape_cast %30 : vector<1x16x32xbf16> to vector<16x32xbf16>
    %32 = arith.truncf %0 : vector<32x192xf32> to vector<32x192xbf16>
    %cst_26 = arith.constant dense<0.000000e+00> : vector<16x192xf32>
    %33 = tpu.matmul %31, %32, %cst_26 {dimension_numbers = #tpu.dot_dimension_numbers<[1], [0], [0], [1], [0, 0, 1, 1], [], []>} : vector<16x32xbf16>, vector<32x192xbf16>, vector<16x192xf32> -> vector<16x192xf32>
    %c3_27 = arith.constant 3 : index
    %c0_28 = arith.constant 0 : index
    %c0_29 = arith.constant 0 : index
    %34 = vector.load %arg3[%c3_27, %c0_28, %c0_29] : memref<7x192x256xbf16, #tpu.memory_space<vmem>>, vector<1x192x256xbf16>
    %35 = vector.shape_cast %34 : vector<1x192x256xbf16> to vector<192x256xbf16>
    %36 = arith.truncf %33 : vector<16x192xf32> to vector<16x192xbf16>
    %cst_30 = arith.constant dense<0.000000e+00> : vector<16x256xf32>
    %37 = tpu.matmul %36, %35, %cst_30 {dimension_numbers = #tpu.dot_dimension_numbers<[1], [0], [0], [1], [0, 0, 1, 1], [], []>} : vector<16x192xbf16>, vector<192x256xbf16>, vector<16x256xf32> -> vector<16x256xf32>
    %38 = arith.addf %29, %37 : vector<16x256xf32>
    %c4 = arith.constant 4 : index
    %c0_31 = arith.constant 0 : index
    %c0_32 = arith.constant 0 : index
    %39 = vector.load %arg2[%c4, %c0_31, %c0_32] : memref<7x16x32xbf16, #tpu.memory_space<vmem>>, vector<1x16x32xbf16>
    %40 = vector.shape_cast %39 : vector<1x16x32xbf16> to vector<16x32xbf16>
    %41 = arith.truncf %0 : vector<32x192xf32> to vector<32x192xbf16>
    %cst_33 = arith.constant dense<0.000000e+00> : vector<16x192xf32>
    %42 = tpu.matmul %40, %41, %cst_33 {dimension_numbers = #tpu.dot_dimension_numbers<[1], [0], [0], [1], [0, 0, 1, 1], [], []>} : vector<16x32xbf16>, vector<32x192xbf16>, vector<16x192xf32> -> vector<16x192xf32>
    %c4_34 = arith.constant 4 : index
    %c0_35 = arith.constant 0 : index
    %c0_36 = arith.constant 0 : index
    %43 = vector.load %arg3[%c4_34, %c0_35, %c0_36] : memref<7x192x256xbf16, #tpu.memory_space<vmem>>, vector<1x192x256xbf16>
    %44 = vector.shape_cast %43 : vector<1x192x256xbf16> to vector<192x256xbf16>
    %45 = arith.truncf %42 : vector<16x192xf32> to vector<16x192xbf16>
    %cst_37 = arith.constant dense<0.000000e+00> : vector<16x256xf32>
    %46 = tpu.matmul %45, %44, %cst_37 {dimension_numbers = #tpu.dot_dimension_numbers<[1], [0], [0], [1], [0, 0, 1, 1], [], []>} : vector<16x192xbf16>, vector<192x256xbf16>, vector<16x256xf32> -> vector<16x256xf32>
    %47 = arith.addf %38, %46 : vector<16x256xf32>
    %c5 = arith.constant 5 : index
    %c0_38 = arith.constant 0 : index
    %c0_39 = arith.constant 0 : index
    %48 = vector.load %arg2[%c5, %c0_38, %c0_39] : memref<7x16x32xbf16, #tpu.memory_space<vmem>>, vector<1x16x32xbf16>
    %49 = vector.shape_cast %48 : vector<1x16x32xbf16> to vector<16x32xbf16>
    %50 = arith.truncf %0 : vector<32x192xf32> to vector<32x192xbf16>
    %cst_40 = arith.constant dense<0.000000e+00> : vector<16x192xf32>
    %51 = tpu.matmul %49, %50, %cst_40 {dimension_numbers = #tpu.dot_dimension_numbers<[1], [0], [0], [1], [0, 0, 1, 1], [], []>} : vector<16x32xbf16>, vector<32x192xbf16>, vector<16x192xf32> -> vector<16x192xf32>
    %c5_41 = arith.constant 5 : index
    %c0_42 = arith.constant 0 : index
    %c0_43 = arith.constant 0 : index
    %52 = vector.load %arg3[%c5_41, %c0_42, %c0_43] : memref<7x192x256xbf16, #tpu.memory_space<vmem>>, vector<1x192x256xbf16>
    %53 = vector.shape_cast %52 : vector<1x192x256xbf16> to vector<192x256xbf16>
    %54 = arith.truncf %51 : vector<16x192xf32> to vector<16x192xbf16>
    %cst_44 = arith.constant dense<0.000000e+00> : vector<16x256xf32>
    %55 = tpu.matmul %54, %53, %cst_44 {dimension_numbers = #tpu.dot_dimension_numbers<[1], [0], [0], [1], [0, 0, 1, 1], [], []>} : vector<16x192xbf16>, vector<192x256xbf16>, vector<16x256xf32> -> vector<16x256xf32>
    %56 = arith.addf %47, %55 : vector<16x256xf32>
    %c6 = arith.constant 6 : index
    %c0_45 = arith.constant 0 : index
    %c0_46 = arith.constant 0 : index
    %57 = vector.load %arg2[%c6, %c0_45, %c0_46] : memref<7x16x32xbf16, #tpu.memory_space<vmem>>, vector<1x16x32xbf16>
    %58 = vector.shape_cast %57 : vector<1x16x32xbf16> to vector<16x32xbf16>
    %59 = arith.truncf %0 : vector<32x192xf32> to vector<32x192xbf16>
    %cst_47 = arith.constant dense<0.000000e+00> : vector<16x192xf32>
    %60 = tpu.matmul %58, %59, %cst_47 {dimension_numbers = #tpu.dot_dimension_numbers<[1], [0], [0], [1], [0, 0, 1, 1], [], []>} : vector<16x32xbf16>, vector<32x192xbf16>, vector<16x192xf32> -> vector<16x192xf32>
    %c6_48 = arith.constant 6 : index
    %c0_49 = arith.constant 0 : index
    %c0_50 = arith.constant 0 : index
    %61 = vector.load %arg3[%c6_48, %c0_49, %c0_50] : memref<7x192x256xbf16, #tpu.memory_space<vmem>>, vector<1x192x256xbf16>
    %62 = vector.shape_cast %61 : vector<1x192x256xbf16> to vector<192x256xbf16>
    %63 = arith.truncf %60 : vector<16x192xf32> to vector<16x192xbf16>
    %cst_51 = arith.constant dense<0.000000e+00> : vector<16x256xf32>
    %64 = tpu.matmul %63, %62, %cst_51 {dimension_numbers = #tpu.dot_dimension_numbers<[1], [0], [0], [1], [0, 0, 1, 1], [], []>} : vector<16x192xbf16>, vector<192x256xbf16>, vector<16x256xf32> -> vector<16x256xf32>
    %65 = arith.addf %56, %64 : vector<16x256xf32>
    %cst_52 = arith.constant 0.000000e+00 : f32
    %66 = vector.broadcast %cst_52 : f32 to vector<16x256xf32>
    %67 = arith.maximumf %65, %66 : vector<16x256xf32>
    %c0_53 = arith.constant 0 : index
    %c0_54 = arith.constant 0 : index
    %c0_55 = arith.constant 0 : index
    %68 = vector.load %arg5[%c0_53, %c0_54, %c0_55] : memref<3x8x16xbf16, #tpu.memory_space<vmem>>, vector<1x8x16xbf16>
    %69 = vector.shape_cast %68 : vector<1x8x16xbf16> to vector<8x16xbf16>
    %70 = arith.truncf %67 : vector<16x256xf32> to vector<16x256xbf16>
    %cst_56 = arith.constant dense<0.000000e+00> : vector<8x256xf32>
    %71 = tpu.matmul %69, %70, %cst_56 {dimension_numbers = #tpu.dot_dimension_numbers<[1], [0], [0], [1], [0, 0, 1, 1], [], []>} : vector<8x16xbf16>, vector<16x256xbf16>, vector<8x256xf32> -> vector<8x256xf32>
    %c0_57 = arith.constant 0 : index
    %c0_58 = arith.constant 0 : index
    %c0_59 = arith.constant 0 : index
    %72 = vector.load %arg6[%c0_57, %c0_58, %c0_59] : memref<3x256x128xbf16, #tpu.memory_space<vmem>>, vector<1x256x128xbf16>
    %73 = vector.shape_cast %72 : vector<1x256x128xbf16> to vector<256x128xbf16>
    %74 = arith.truncf %71 : vector<8x256xf32> to vector<8x256xbf16>
    %cst_60 = arith.constant dense<0.000000e+00> : vector<8x128xf32>
    %75 = tpu.matmul %74, %73, %cst_60 {dimension_numbers = #tpu.dot_dimension_numbers<[1], [0], [0], [1], [0, 0, 1, 1], [], []>} : vector<8x256xbf16>, vector<256x128xbf16>, vector<8x128xf32> -> vector<8x128xf32>
    %c1_61 = arith.constant 1 : index
    %c0_62 = arith.constant 0 : index
    %c0_63 = arith.constant 0 : index
    %76 = vector.load %arg6[%c1_61, %c0_62, %c0_63] : memref<3x256x128xbf16, #tpu.memory_space<vmem>>, vector<1x256x128xbf16>
    %77 = vector.shape_cast %76 : vector<1x256x128xbf16> to vector<256x128xbf16>
    %78 = arith.truncf %71 : vector<8x256xf32> to vector<8x256xbf16>
    %cst_64 = arith.constant dense<0.000000e+00> : vector<8x128xf32>
    %79 = tpu.matmul %78, %77, %cst_64 {dimension_numbers = #tpu.dot_dimension_numbers<[1], [0], [0], [1], [0, 0, 1, 1], [], []>} : vector<8x256xbf16>, vector<256x128xbf16>, vector<8x128xf32> -> vector<8x128xf32>
    %80 = arith.maximumf %75, %79 : vector<8x128xf32>
    %c2_65 = arith.constant 2 : index
    %c0_66 = arith.constant 0 : index
    %c0_67 = arith.constant 0 : index
    %81 = vector.load %arg6[%c2_65, %c0_66, %c0_67] : memref<3x256x128xbf16, #tpu.memory_space<vmem>>, vector<1x256x128xbf16>
    %82 = vector.shape_cast %81 : vector<1x256x128xbf16> to vector<256x128xbf16>
    %83 = arith.truncf %71 : vector<8x256xf32> to vector<8x256xbf16>
    %cst_68 = arith.constant dense<0.000000e+00> : vector<8x128xf32>
    %84 = tpu.matmul %83, %82, %cst_68 {dimension_numbers = #tpu.dot_dimension_numbers<[1], [0], [0], [1], [0, 0, 1, 1], [], []>} : vector<8x256xbf16>, vector<256x128xbf16>, vector<8x128xf32> -> vector<8x128xf32>
    %85 = arith.maximumf %80, %84 : vector<8x128xf32>
    %c1_69 = arith.constant 1 : index
    %c0_70 = arith.constant 0 : index
    %c0_71 = arith.constant 0 : index
    %86 = vector.load %arg5[%c1_69, %c0_70, %c0_71] : memref<3x8x16xbf16, #tpu.memory_space<vmem>>, vector<1x8x16xbf16>
    %87 = vector.shape_cast %86 : vector<1x8x16xbf16> to vector<8x16xbf16>
    %88 = arith.truncf %67 : vector<16x256xf32> to vector<16x256xbf16>
    %cst_72 = arith.constant dense<0.000000e+00> : vector<8x256xf32>
    %89 = tpu.matmul %87, %88, %cst_72 {dimension_numbers = #tpu.dot_dimension_numbers<[1], [0], [0], [1], [0, 0, 1, 1], [], []>} : vector<8x16xbf16>, vector<16x256xbf16>, vector<8x256xf32> -> vector<8x256xf32>
    %c0_73 = arith.constant 0 : index
    %c0_74 = arith.constant 0 : index
    %c0_75 = arith.constant 0 : index
    %90 = vector.load %arg6[%c0_73, %c0_74, %c0_75] : memref<3x256x128xbf16, #tpu.memory_space<vmem>>, vector<1x256x128xbf16>
    %91 = vector.shape_cast %90 : vector<1x256x128xbf16> to vector<256x128xbf16>
    %92 = arith.truncf %89 : vector<8x256xf32> to vector<8x256xbf16>
    %cst_76 = arith.constant dense<0.000000e+00> : vector<8x128xf32>
    %93 = tpu.matmul %92, %91, %cst_76 {dimension_numbers = #tpu.dot_dimension_numbers<[1], [0], [0], [1], [0, 0, 1, 1], [], []>} : vector<8x256xbf16>, vector<256x128xbf16>, vector<8x128xf32> -> vector<8x128xf32>
    %94 = arith.maximumf %85, %93 : vector<8x128xf32>
    %c1_77 = arith.constant 1 : index
    %c0_78 = arith.constant 0 : index
    %c0_79 = arith.constant 0 : index
    %95 = vector.load %arg6[%c1_77, %c0_78, %c0_79] : memref<3x256x128xbf16, #tpu.memory_space<vmem>>, vector<1x256x128xbf16>
    %96 = vector.shape_cast %95 : vector<1x256x128xbf16> to vector<256x128xbf16>
    %97 = arith.truncf %89 : vector<8x256xf32> to vector<8x256xbf16>
    %cst_80 = arith.constant dense<0.000000e+00> : vector<8x128xf32>
    %98 = tpu.matmul %97, %96, %cst_80 {dimension_numbers = #tpu.dot_dimension_numbers<[1], [0], [0], [1], [0, 0, 1, 1], [], []>} : vector<8x256xbf16>, vector<256x128xbf16>, vector<8x128xf32> -> vector<8x128xf32>
    %99 = arith.maximumf %94, %98 : vector<8x128xf32>
    %c2_81 = arith.constant 2 : index
    %c0_82 = arith.constant 0 : index
    %c0_83 = arith.constant 0 : index
    %100 = vector.load %arg6[%c2_81, %c0_82, %c0_83] : memref<3x256x128xbf16, #tpu.memory_space<vmem>>, vector<1x256x128xbf16>
    %101 = vector.shape_cast %100 : vector<1x256x128xbf16> to vector<256x128xbf16>
    %102 = arith.truncf %89 : vector<8x256xf32> to vector<8x256xbf16>
    %cst_84 = arith.constant dense<0.000000e+00> : vector<8x128xf32>
    %103 = tpu.matmul %102, %101, %cst_84 {dimension_numbers = #tpu.dot_dimension_numbers<[1], [0], [0], [1], [0, 0, 1, 1], [], []>} : vector<8x256xbf16>, vector<256x128xbf16>, vector<8x128xf32> -> vector<8x128xf32>
    %104 = arith.maximumf %99, %103 : vector<8x128xf32>
    %c2_85 = arith.constant 2 : index
    %c0_86 = arith.constant 0 : index
    %c0_87 = arith.constant 0 : index
    %105 = vector.load %arg5[%c2_85, %c0_86, %c0_87] : memref<3x8x16xbf16, #tpu.memory_space<vmem>>, vector<1x8x16xbf16>
    %106 = vector.shape_cast %105 : vector<1x8x16xbf16> to vector<8x16xbf16>
    %107 = arith.truncf %67 : vector<16x256xf32> to vector<16x256xbf16>
    %cst_88 = arith.constant dense<0.000000e+00> : vector<8x256xf32>
    %108 = tpu.matmul %106, %107, %cst_88 {dimension_numbers = #tpu.dot_dimension_numbers<[1], [0], [0], [1], [0, 0, 1, 1], [], []>} : vector<8x16xbf16>, vector<16x256xbf16>, vector<8x256xf32> -> vector<8x256xf32>
    %c0_89 = arith.constant 0 : index
    %c0_90 = arith.constant 0 : index
    %c0_91 = arith.constant 0 : index
    %109 = vector.load %arg6[%c0_89, %c0_90, %c0_91] : memref<3x256x128xbf16, #tpu.memory_space<vmem>>, vector<1x256x128xbf16>
    %110 = vector.shape_cast %109 : vector<1x256x128xbf16> to vector<256x128xbf16>
    %111 = arith.truncf %108 : vector<8x256xf32> to vector<8x256xbf16>
    %cst_92 = arith.constant dense<0.000000e+00> : vector<8x128xf32>
    %112 = tpu.matmul %111, %110, %cst_92 {dimension_numbers = #tpu.dot_dimension_numbers<[1], [0], [0], [1], [0, 0, 1, 1], [], []>} : vector<8x256xbf16>, vector<256x128xbf16>, vector<8x128xf32> -> vector<8x128xf32>
    %113 = arith.maximumf %104, %112 : vector<8x128xf32>
    %c1_93 = arith.constant 1 : index
    %c0_94 = arith.constant 0 : index
    %c0_95 = arith.constant 0 : index
    %114 = vector.load %arg6[%c1_93, %c0_94, %c0_95] : memref<3x256x128xbf16, #tpu.memory_space<vmem>>, vector<1x256x128xbf16>
    %115 = vector.shape_cast %114 : vector<1x256x128xbf16> to vector<256x128xbf16>
    %116 = arith.truncf %108 : vector<8x256xf32> to vector<8x256xbf16>
    %cst_96 = arith.constant dense<0.000000e+00> : vector<8x128xf32>
    %117 = tpu.matmul %116, %115, %cst_96 {dimension_numbers = #tpu.dot_dimension_numbers<[1], [0], [0], [1], [0, 0, 1, 1], [], []>} : vector<8x256xbf16>, vector<256x128xbf16>, vector<8x128xf32> -> vector<8x128xf32>
    %118 = arith.maximumf %113, %117 : vector<8x128xf32>
    %c2_97 = arith.constant 2 : index
    %c0_98 = arith.constant 0 : index
    %c0_99 = arith.constant 0 : index
    %119 = vector.load %arg6[%c2_97, %c0_98, %c0_99] : memref<3x256x128xbf16, #tpu.memory_space<vmem>>, vector<1x256x128xbf16>
    %120 = vector.shape_cast %119 : vector<1x256x128xbf16> to vector<256x128xbf16>
    %121 = arith.truncf %108 : vector<8x256xf32> to vector<8x256xbf16>
    %cst_100 = arith.constant dense<0.000000e+00> : vector<8x128xf32>
    %122 = tpu.matmul %121, %120, %cst_100 {dimension_numbers = #tpu.dot_dimension_numbers<[1], [0], [0], [1], [0, 0, 1, 1], [], []>} : vector<8x256xbf16>, vector<256x128xbf16>, vector<8x128xf32> -> vector<8x128xf32>
    %123 = arith.maximumf %118, %122 : vector<8x128xf32>
    %c0_101 = arith.constant 0 : index
    %c0_102 = arith.constant 0 : index
    %124 = vector.load %arg9[%c0_101, %c0_102] : memref<1x128xf32, #tpu.memory_space<vmem>>, vector<1x128xf32>
    %c0_103 = arith.constant 0 : index
    %c0_104 = arith.constant 0 : index
    %c0_105 = arith.constant 0 : index
    %125 = vector.load %arg7[%c0_103, %c0_104, %c0_105] : memref<3x8x8xbf16, #tpu.memory_space<vmem>>, vector<1x8x8xbf16>
    %126 = vector.shape_cast %125 : vector<1x8x8xbf16> to vector<8x8xbf16>
    %127 = arith.truncf %123 : vector<8x128xf32> to vector<8x128xbf16>
    %cst_106 = arith.constant dense<0.000000e+00> : vector<8x128xf32>
    %128 = tpu.matmul %126, %127, %cst_106 {dimension_numbers = #tpu.dot_dimension_numbers<[1], [0], [0], [1], [0, 0, 1, 1], [], []>} : vector<8x8xbf16>, vector<8x128xbf16>, vector<8x128xf32> -> vector<8x128xf32>
    %c0_107 = arith.constant 0 : index
    %c0_108 = arith.constant 0 : index
    %c0_109 = arith.constant 0 : index
    %129 = vector.load %arg8[%c0_107, %c0_108, %c0_109] : memref<3x128x128xbf16, #tpu.memory_space<vmem>>, vector<1x128x128xbf16>
    %130 = vector.shape_cast %129 : vector<1x128x128xbf16> to vector<128x128xbf16>
    %131 = arith.truncf %128 : vector<8x128xf32> to vector<8x128xbf16>
    %cst_110 = arith.constant dense<0.000000e+00> : vector<8x128xf32>
    %132 = tpu.matmul %131, %130, %cst_110 {dimension_numbers = #tpu.dot_dimension_numbers<[1], [0], [0], [1], [0, 0, 1, 1], [], []>} : vector<8x128xbf16>, vector<128x128xbf16>, vector<8x128xf32> -> vector<8x128xf32>
    %133 = vector.broadcast %124 : vector<1x128xf32> to vector<8x128xf32>
    %134 = arith.addf %133, %132 : vector<8x128xf32>
    %c1_111 = arith.constant 1 : index
    %c0_112 = arith.constant 0 : index
    %c0_113 = arith.constant 0 : index
    %135 = vector.load %arg8[%c1_111, %c0_112, %c0_113] : memref<3x128x128xbf16, #tpu.memory_space<vmem>>, vector<1x128x128xbf16>
    %136 = vector.shape_cast %135 : vector<1x128x128xbf16> to vector<128x128xbf16>
    %137 = arith.truncf %123 : vector<8x128xf32> to vector<8x128xbf16>
    %cst_114 = arith.constant dense<0.000000e+00> : vector<8x128xf32>
    %138 = tpu.matmul %137, %136, %cst_114 {dimension_numbers = #tpu.dot_dimension_numbers<[1], [0], [0], [1], [0, 0, 1, 1], [], []>} : vector<8x128xbf16>, vector<128x128xbf16>, vector<8x128xf32> -> vector<8x128xf32>
    %139 = arith.addf %134, %138 : vector<8x128xf32>
    %c2_115 = arith.constant 2 : index
    %c0_116 = arith.constant 0 : index
    %c0_117 = arith.constant 0 : index
    %140 = vector.load %arg7[%c2_115, %c0_116, %c0_117] : memref<3x8x8xbf16, #tpu.memory_space<vmem>>, vector<1x8x8xbf16>
    %141 = vector.shape_cast %140 : vector<1x8x8xbf16> to vector<8x8xbf16>
    %142 = arith.truncf %123 : vector<8x128xf32> to vector<8x128xbf16>
    %cst_118 = arith.constant dense<0.000000e+00> : vector<8x128xf32>
    %143 = tpu.matmul %141, %142, %cst_118 {dimension_numbers = #tpu.dot_dimension_numbers<[1], [0], [0], [1], [0, 0, 1, 1], [], []>} : vector<8x8xbf16>, vector<8x128xbf16>, vector<8x128xf32> -> vector<8x128xf32>
    %c2_119 = arith.constant 2 : index
    %c0_120 = arith.constant 0 : index
    %c0_121 = arith.constant 0 : index
    %144 = vector.load %arg8[%c2_119, %c0_120, %c0_121] : memref<3x128x128xbf16, #tpu.memory_space<vmem>>, vector<1x128x128xbf16>
    %145 = vector.shape_cast %144 : vector<1x128x128xbf16> to vector<128x128xbf16>
    %146 = arith.truncf %143 : vector<8x128xf32> to vector<8x128xbf16>
    %cst_122 = arith.constant dense<0.000000e+00> : vector<8x128xf32>
    %147 = tpu.matmul %146, %145, %cst_122 {dimension_numbers = #tpu.dot_dimension_numbers<[1], [0], [0], [1], [0, 0, 1, 1], [], []>} : vector<8x128xbf16>, vector<128x128xbf16>, vector<8x128xf32> -> vector<8x128xf32>
    %148 = arith.addf %139, %147 : vector<8x128xf32>
    %cst_123 = arith.constant 0.000000e+00 : f32
    %149 = vector.broadcast %cst_123 : f32 to vector<8x128xf32>
    %150 = arith.maximumf %148, %149 : vector<8x128xf32>
    %c0_124 = arith.constant 0 : index
    %c0_125 = arith.constant 0 : index
    %151 = vector.load %arg12[%c0_124, %c0_125] : memref<1x128xf32, #tpu.memory_space<vmem>>, vector<1x128xf32>
    %c0_126 = arith.constant 0 : index
    %c0_127 = arith.constant 0 : index
    %c0_128 = arith.constant 0 : index
    %152 = vector.load %arg10[%c0_126, %c0_127, %c0_128] : memref<3x8x8xbf16, #tpu.memory_space<vmem>>, vector<1x8x8xbf16>
    %153 = vector.shape_cast %152 : vector<1x8x8xbf16> to vector<8x8xbf16>
    %154 = arith.truncf %150 : vector<8x128xf32> to vector<8x128xbf16>
    %cst_129 = arith.constant dense<0.000000e+00> : vector<8x128xf32>
    %155 = tpu.matmul %153, %154, %cst_129 {dimension_numbers = #tpu.dot_dimension_numbers<[1], [0], [0], [1], [0, 0, 1, 1], [], []>} : vector<8x8xbf16>, vector<8x128xbf16>, vector<8x128xf32> -> vector<8x128xf32>
    %c0_130 = arith.constant 0 : index
    %c0_131 = arith.constant 0 : index
    %c0_132 = arith.constant 0 : index
    %156 = vector.load %arg11[%c0_130, %c0_131, %c0_132] : memref<3x128x128xbf16, #tpu.memory_space<vmem>>, vector<1x128x128xbf16>
    %157 = vector.shape_cast %156 : vector<1x128x128xbf16> to vector<128x128xbf16>
    %158 = arith.truncf %155 : vector<8x128xf32> to vector<8x128xbf16>
    %cst_133 = arith.constant dense<0.000000e+00> : vector<8x128xf32>
    %159 = tpu.matmul %158, %157, %cst_133 {dimension_numbers = #tpu.dot_dimension_numbers<[1], [0], [0], [1], [0, 0, 1, 1], [], []>} : vector<8x128xbf16>, vector<128x128xbf16>, vector<8x128xf32> -> vector<8x128xf32>
    %160 = vector.broadcast %151 : vector<1x128xf32> to vector<8x128xf32>
    %161 = arith.addf %160, %159 : vector<8x128xf32>
    %c1_134 = arith.constant 1 : index
    %c0_135 = arith.constant 0 : index
    %c0_136 = arith.constant 0 : index
    %162 = vector.load %arg11[%c1_134, %c0_135, %c0_136] : memref<3x128x128xbf16, #tpu.memory_space<vmem>>, vector<1x128x128xbf16>
    %163 = vector.shape_cast %162 : vector<1x128x128xbf16> to vector<128x128xbf16>
    %164 = arith.truncf %150 : vector<8x128xf32> to vector<8x128xbf16>
    %cst_137 = arith.constant dense<0.000000e+00> : vector<8x128xf32>
    %165 = tpu.matmul %164, %163, %cst_137 {dimension_numbers = #tpu.dot_dimension_numbers<[1], [0], [0], [1], [0, 0, 1, 1], [], []>} : vector<8x128xbf16>, vector<128x128xbf16>, vector<8x128xf32> -> vector<8x128xf32>
    %166 = arith.addf %161, %165 : vector<8x128xf32>
    %c2_138 = arith.constant 2 : index
    %c0_139 = arith.constant 0 : index
    %c0_140 = arith.constant 0 : index
    %167 = vector.load %arg10[%c2_138, %c0_139, %c0_140] : memref<3x8x8xbf16, #tpu.memory_space<vmem>>, vector<1x8x8xbf16>
    %168 = vector.shape_cast %167 : vector<1x8x8xbf16> to vector<8x8xbf16>
    %169 = arith.truncf %150 : vector<8x128xf32> to vector<8x128xbf16>
    %cst_141 = arith.constant dense<0.000000e+00> : vector<8x128xf32>
    %170 = tpu.matmul %168, %169, %cst_141 {dimension_numbers = #tpu.dot_dimension_numbers<[1], [0], [0], [1], [0, 0, 1, 1], [], []>} : vector<8x8xbf16>, vector<8x128xbf16>, vector<8x128xf32> -> vector<8x128xf32>
    %c2_142 = arith.constant 2 : index
    %c0_143 = arith.constant 0 : index
    %c0_144 = arith.constant 0 : index
    %171 = vector.load %arg11[%c2_142, %c0_143, %c0_144] : memref<3x128x128xbf16, #tpu.memory_space<vmem>>, vector<1x128x128xbf16>
    %172 = vector.shape_cast %171 : vector<1x128x128xbf16> to vector<128x128xbf16>
    %173 = arith.truncf %170 : vector<8x128xf32> to vector<8x128xbf16>
    %cst_145 = arith.constant dense<0.000000e+00> : vector<8x128xf32>
    %174 = tpu.matmul %173, %172, %cst_145 {dimension_numbers = #tpu.dot_dimension_numbers<[1], [0], [0], [1], [0, 0, 1, 1], [], []>} : vector<8x128xbf16>, vector<128x128xbf16>, vector<8x128xf32> -> vector<8x128xf32>
    %175 = arith.addf %166, %174 : vector<8x128xf32>
    %176 = arith.addf %175, %123 : vector<8x128xf32>
    %cst_146 = arith.constant 0.000000e+00 : f32
    %177 = vector.broadcast %cst_146 : f32 to vector<8x128xf32>
    %178 = arith.maximumf %176, %177 : vector<8x128xf32>
    %c0_147 = arith.constant 0 : index
    %c0_148 = arith.constant 0 : index
    %179 = vector.load %arg15[%c0_147, %c0_148] : memref<1x128xf32, #tpu.memory_space<vmem>>, vector<1x128xf32>
    %c0_149 = arith.constant 0 : index
    %c0_150 = arith.constant 0 : index
    %c0_151 = arith.constant 0 : index
    %180 = vector.load %arg13[%c0_149, %c0_150, %c0_151] : memref<3x8x8xbf16, #tpu.memory_space<vmem>>, vector<1x8x8xbf16>
    %181 = vector.shape_cast %180 : vector<1x8x8xbf16> to vector<8x8xbf16>
    %182 = arith.truncf %178 : vector<8x128xf32> to vector<8x128xbf16>
    %cst_152 = arith.constant dense<0.000000e+00> : vector<8x128xf32>
    %183 = tpu.matmul %181, %182, %cst_152 {dimension_numbers = #tpu.dot_dimension_numbers<[1], [0], [0], [1], [0, 0, 1, 1], [], []>} : vector<8x8xbf16>, vector<8x128xbf16>, vector<8x128xf32> -> vector<8x128xf32>
    %c0_153 = arith.constant 0 : index
    %c0_154 = arith.constant 0 : index
    %c0_155 = arith.constant 0 : index
    %184 = vector.load %arg14[%c0_153, %c0_154, %c0_155] : memref<3x128x128xbf16, #tpu.memory_space<vmem>>, vector<1x128x128xbf16>
    %185 = vector.shape_cast %184 : vector<1x128x128xbf16> to vector<128x128xbf16>
    %186 = arith.truncf %183 : vector<8x128xf32> to vector<8x128xbf16>
    %cst_156 = arith.constant dense<0.000000e+00> : vector<8x128xf32>
    %187 = tpu.matmul %186, %185, %cst_156 {dimension_numbers = #tpu.dot_dimension_numbers<[1], [0], [0], [1], [0, 0, 1, 1], [], []>} : vector<8x128xbf16>, vector<128x128xbf16>, vector<8x128xf32> -> vector<8x128xf32>
    %188 = vector.broadcast %179 : vector<1x128xf32> to vector<8x128xf32>
    %189 = arith.addf %188, %187 : vector<8x128xf32>
    %c1_157 = arith.constant 1 : index
    %c0_158 = arith.constant 0 : index
    %c0_159 = arith.constant 0 : index
    %190 = vector.load %arg14[%c1_157, %c0_158, %c0_159] : memref<3x128x128xbf16, #tpu.memory_space<vmem>>, vector<1x128x128xbf16>
    %191 = vector.shape_cast %190 : vector<1x128x128xbf16> to vector<128x128xbf16>
    %192 = arith.truncf %178 : vector<8x128xf32> to vector<8x128xbf16>
    %cst_160 = arith.constant dense<0.000000e+00> : vector<8x128xf32>
    %193 = tpu.matmul %192, %191, %cst_160 {dimension_numbers = #tpu.dot_dimension_numbers<[1], [0], [0], [1], [0, 0, 1, 1], [], []>} : vector<8x128xbf16>, vector<128x128xbf16>, vector<8x128xf32> -> vector<8x128xf32>
    %194 = arith.addf %189, %193 : vector<8x128xf32>
    %c2_161 = arith.constant 2 : index
    %c0_162 = arith.constant 0 : index
    %c0_163 = arith.constant 0 : index
    %195 = vector.load %arg13[%c2_161, %c0_162, %c0_163] : memref<3x8x8xbf16, #tpu.memory_space<vmem>>, vector<1x8x8xbf16>
    %196 = vector.shape_cast %195 : vector<1x8x8xbf16> to vector<8x8xbf16>
    %197 = arith.truncf %178 : vector<8x128xf32> to vector<8x128xbf16>
    %cst_164 = arith.constant dense<0.000000e+00> : vector<8x128xf32>
    %198 = tpu.matmul %196, %197, %cst_164 {dimension_numbers = #tpu.dot_dimension_numbers<[1], [0], [0], [1], [0, 0, 1, 1], [], []>} : vector<8x8xbf16>, vector<8x128xbf16>, vector<8x128xf32> -> vector<8x128xf32>
    %c2_165 = arith.constant 2 : index
    %c0_166 = arith.constant 0 : index
    %c0_167 = arith.constant 0 : index
    %199 = vector.load %arg14[%c2_165, %c0_166, %c0_167] : memref<3x128x128xbf16, #tpu.memory_space<vmem>>, vector<1x128x128xbf16>
    %200 = vector.shape_cast %199 : vector<1x128x128xbf16> to vector<128x128xbf16>
    %201 = arith.truncf %198 : vector<8x128xf32> to vector<8x128xbf16>
    %cst_168 = arith.constant dense<0.000000e+00> : vector<8x128xf32>
    %202 = tpu.matmul %201, %200, %cst_168 {dimension_numbers = #tpu.dot_dimension_numbers<[1], [0], [0], [1], [0, 0, 1, 1], [], []>} : vector<8x128xbf16>, vector<128x128xbf16>, vector<8x128xf32> -> vector<8x128xf32>
    %203 = arith.addf %194, %202 : vector<8x128xf32>
    %cst_169 = arith.constant 0.000000e+00 : f32
    %204 = vector.broadcast %cst_169 : f32 to vector<8x128xf32>
    %205 = arith.maximumf %203, %204 : vector<8x128xf32>
    %c0_170 = arith.constant 0 : index
    %c0_171 = arith.constant 0 : index
    %206 = vector.load %arg18[%c0_170, %c0_171] : memref<1x128xf32, #tpu.memory_space<vmem>>, vector<1x128xf32>
    %c0_172 = arith.constant 0 : index
    %c0_173 = arith.constant 0 : index
    %c0_174 = arith.constant 0 : index
    %207 = vector.load %arg16[%c0_172, %c0_173, %c0_174] : memref<3x8x8xbf16, #tpu.memory_space<vmem>>, vector<1x8x8xbf16>
    %208 = vector.shape_cast %207 : vector<1x8x8xbf16> to vector<8x8xbf16>
    %209 = arith.truncf %205 : vector<8x128xf32> to vector<8x128xbf16>
    %cst_175 = arith.constant dense<0.000000e+00> : vector<8x128xf32>
    %210 = tpu.matmul %208, %209, %cst_175 {dimension_numbers = #tpu.dot_dimension_numbers<[1], [0], [0], [1], [0, 0, 1, 1], [], []>} : vector<8x8xbf16>, vector<8x128xbf16>, vector<8x128xf32> -> vector<8x128xf32>
    %c0_176 = arith.constant 0 : index
    %c0_177 = arith.constant 0 : index
    %c0_178 = arith.constant 0 : index
    %211 = vector.load %arg17[%c0_176, %c0_177, %c0_178] : memref<3x128x128xbf16, #tpu.memory_space<vmem>>, vector<1x128x128xbf16>
    %212 = vector.shape_cast %211 : vector<1x128x128xbf16> to vector<128x128xbf16>
    %213 = arith.truncf %210 : vector<8x128xf32> to vector<8x128xbf16>
    %cst_179 = arith.constant dense<0.000000e+00> : vector<8x128xf32>
    %214 = tpu.matmul %213, %212, %cst_179 {dimension_numbers = #tpu.dot_dimension_numbers<[1], [0], [0], [1], [0, 0, 1, 1], [], []>} : vector<8x128xbf16>, vector<128x128xbf16>, vector<8x128xf32> -> vector<8x128xf32>
    %215 = vector.broadcast %206 : vector<1x128xf32> to vector<8x128xf32>
    %216 = arith.addf %215, %214 : vector<8x128xf32>
    %c1_180 = arith.constant 1 : index
    %c0_181 = arith.constant 0 : index
    %c0_182 = arith.constant 0 : index
    %217 = vector.load %arg17[%c1_180, %c0_181, %c0_182] : memref<3x128x128xbf16, #tpu.memory_space<vmem>>, vector<1x128x128xbf16>
    %218 = vector.shape_cast %217 : vector<1x128x128xbf16> to vector<128x128xbf16>
    %219 = arith.truncf %205 : vector<8x128xf32> to vector<8x128xbf16>
    %cst_183 = arith.constant dense<0.000000e+00> : vector<8x128xf32>
    %220 = tpu.matmul %219, %218, %cst_183 {dimension_numbers = #tpu.dot_dimension_numbers<[1], [0], [0], [1], [0, 0, 1, 1], [], []>} : vector<8x128xbf16>, vector<128x128xbf16>, vector<8x128xf32> -> vector<8x128xf32>
    %221 = arith.addf %216, %220 : vector<8x128xf32>
    %c2_184 = arith.constant 2 : index
    %c0_185 = arith.constant 0 : index
    %c0_186 = arith.constant 0 : index
    %222 = vector.load %arg16[%c2_184, %c0_185, %c0_186] : memref<3x8x8xbf16, #tpu.memory_space<vmem>>, vector<1x8x8xbf16>
    %223 = vector.shape_cast %222 : vector<1x8x8xbf16> to vector<8x8xbf16>
    %224 = arith.truncf %205 : vector<8x128xf32> to vector<8x128xbf16>
    %cst_187 = arith.constant dense<0.000000e+00> : vector<8x128xf32>
    %225 = tpu.matmul %223, %224, %cst_187 {dimension_numbers = #tpu.dot_dimension_numbers<[1], [0], [0], [1], [0, 0, 1, 1], [], []>} : vector<8x8xbf16>, vector<8x128xbf16>, vector<8x128xf32> -> vector<8x128xf32>
    %c2_188 = arith.constant 2 : index
    %c0_189 = arith.constant 0 : index
    %c0_190 = arith.constant 0 : index
    %226 = vector.load %arg17[%c2_188, %c0_189, %c0_190] : memref<3x128x128xbf16, #tpu.memory_space<vmem>>, vector<1x128x128xbf16>
    %227 = vector.shape_cast %226 : vector<1x128x128xbf16> to vector<128x128xbf16>
    %228 = arith.truncf %225 : vector<8x128xf32> to vector<8x128xbf16>
    %cst_191 = arith.constant dense<0.000000e+00> : vector<8x128xf32>
    %229 = tpu.matmul %228, %227, %cst_191 {dimension_numbers = #tpu.dot_dimension_numbers<[1], [0], [0], [1], [0, 0, 1, 1], [], []>} : vector<8x128xbf16>, vector<128x128xbf16>, vector<8x128xf32> -> vector<8x128xf32>
    %230 = arith.addf %221, %229 : vector<8x128xf32>
    %231 = arith.addf %230, %178 : vector<8x128xf32>
    %cst_192 = arith.constant 0.000000e+00 : f32
    %232 = vector.broadcast %cst_192 : f32 to vector<8x128xf32>
    %233 = arith.maximumf %231, %232 : vector<8x128xf32>
    %c0_193 = arith.constant 0 : index
    %c0_194 = arith.constant 0 : index
    %234 = vector.load %arg21[%c0_193, %c0_194] : memref<1x128xf32, #tpu.memory_space<vmem>>, vector<1x128xf32>
    %c0_195 = arith.constant 0 : index
    %c0_196 = arith.constant 0 : index
    %c0_197 = arith.constant 0 : index
    %235 = vector.load %arg19[%c0_195, %c0_196, %c0_197] : memref<3x4x8xbf16, #tpu.memory_space<vmem>>, vector<1x4x8xbf16>
    %236 = vector.shape_cast %235 : vector<1x4x8xbf16> to vector<4x8xbf16>
    %237 = arith.truncf %233 : vector<8x128xf32> to vector<8x128xbf16>
    %cst_198 = arith.constant dense<0.000000e+00> : vector<4x128xf32>
    %238 = tpu.matmul %236, %237, %cst_198 {dimension_numbers = #tpu.dot_dimension_numbers<[1], [0], [0], [1], [0, 0, 1, 1], [], []>} : vector<4x8xbf16>, vector<8x128xbf16>, vector<4x128xf32> -> vector<4x128xf32>
    %c0_199 = arith.constant 0 : index
    %c0_200 = arith.constant 0 : index
    %c0_201 = arith.constant 0 : index
    %239 = vector.load %arg20[%c0_199, %c0_200, %c0_201] : memref<3x128x128xbf16, #tpu.memory_space<vmem>>, vector<1x128x128xbf16>
    %240 = vector.shape_cast %239 : vector<1x128x128xbf16> to vector<128x128xbf16>
    %241 = arith.truncf %238 : vector<4x128xf32> to vector<4x128xbf16>
    %cst_202 = arith.constant dense<0.000000e+00> : vector<4x128xf32>
    %242 = tpu.matmul %241, %240, %cst_202 {dimension_numbers = #tpu.dot_dimension_numbers<[1], [0], [0], [1], [0, 0, 1, 1], [], []>} : vector<4x128xbf16>, vector<128x128xbf16>, vector<4x128xf32> -> vector<4x128xf32>
    %243 = vector.broadcast %234 : vector<1x128xf32> to vector<4x128xf32>
    %244 = arith.addf %243, %242 : vector<4x128xf32>
    %c1_203 = arith.constant 1 : index
    %c0_204 = arith.constant 0 : index
    %c0_205 = arith.constant 0 : index
    %245 = vector.load %arg19[%c1_203, %c0_204, %c0_205] : memref<3x4x8xbf16, #tpu.memory_space<vmem>>, vector<1x4x8xbf16>
    %246 = vector.shape_cast %245 : vector<1x4x8xbf16> to vector<4x8xbf16>
    %247 = arith.truncf %233 : vector<8x128xf32> to vector<8x128xbf16>
    %cst_206 = arith.constant dense<0.000000e+00> : vector<4x128xf32>
    %248 = tpu.matmul %246, %247, %cst_206 {dimension_numbers = #tpu.dot_dimension_numbers<[1], [0], [0], [1], [0, 0, 1, 1], [], []>} : vector<4x8xbf16>, vector<8x128xbf16>, vector<4x128xf32> -> vector<4x128xf32>
    %c1_207 = arith.constant 1 : index
    %c0_208 = arith.constant 0 : index
    %c0_209 = arith.constant 0 : index
    %249 = vector.load %arg20[%c1_207, %c0_208, %c0_209] : memref<3x128x128xbf16, #tpu.memory_space<vmem>>, vector<1x128x128xbf16>
    %250 = vector.shape_cast %249 : vector<1x128x128xbf16> to vector<128x128xbf16>
    %251 = arith.truncf %248 : vector<4x128xf32> to vector<4x128xbf16>
    %cst_210 = arith.constant dense<0.000000e+00> : vector<4x128xf32>
    %252 = tpu.matmul %251, %250, %cst_210 {dimension_numbers = #tpu.dot_dimension_numbers<[1], [0], [0], [1], [0, 0, 1, 1], [], []>} : vector<4x128xbf16>, vector<128x128xbf16>, vector<4x128xf32> -> vector<4x128xf32>
    %253 = arith.addf %244, %252 : vector<4x128xf32>
    %c2_211 = arith.constant 2 : index
    %c0_212 = arith.constant 0 : index
    %c0_213 = arith.constant 0 : index
    %254 = vector.load %arg19[%c2_211, %c0_212, %c0_213] : memref<3x4x8xbf16, #tpu.memory_space<vmem>>, vector<1x4x8xbf16>
    %255 = vector.shape_cast %254 : vector<1x4x8xbf16> to vector<4x8xbf16>
    %256 = arith.truncf %233 : vector<8x128xf32> to vector<8x128xbf16>
    %cst_214 = arith.constant dense<0.000000e+00> : vector<4x128xf32>
    %257 = tpu.matmul %255, %256, %cst_214 {dimension_numbers = #tpu.dot_dimension_numbers<[1], [0], [0], [1], [0, 0, 1, 1], [], []>} : vector<4x8xbf16>, vector<8x128xbf16>, vector<4x128xf32> -> vector<4x128xf32>
    %c2_215 = arith.constant 2 : index
    %c0_216 = arith.constant 0 : index
    %c0_217 = arith.constant 0 : index
    %258 = vector.load %arg20[%c2_215, %c0_216, %c0_217] : memref<3x128x128xbf16, #tpu.memory_space<vmem>>, vector<1x128x128xbf16>
    %259 = vector.shape_cast %258 : vector<1x128x128xbf16> to vector<128x128xbf16>
    %260 = arith.truncf %257 : vector<4x128xf32> to vector<4x128xbf16>
    %cst_218 = arith.constant dense<0.000000e+00> : vector<4x128xf32>
    %261 = tpu.matmul %260, %259, %cst_218 {dimension_numbers = #tpu.dot_dimension_numbers<[1], [0], [0], [1], [0, 0, 1, 1], [], []>} : vector<4x128xbf16>, vector<128x128xbf16>, vector<4x128xf32> -> vector<4x128xf32>
    %262 = arith.addf %253, %261 : vector<4x128xf32>
    %cst_219 = arith.constant 0.000000e+00 : f32
    %263 = vector.broadcast %cst_219 : f32 to vector<4x128xf32>
    %264 = arith.maximumf %262, %263 : vector<4x128xf32>
    %c0_220 = arith.constant 0 : index
    %c0_221 = arith.constant 0 : index
    %265 = vector.load %arg24[%c0_220, %c0_221] : memref<1x128xf32, #tpu.memory_space<vmem>>, vector<1x128xf32>
    %c0_222 = arith.constant 0 : index
    %c0_223 = arith.constant 0 : index
    %c0_224 = arith.constant 0 : index
    %266 = vector.load %arg22[%c0_222, %c0_223, %c0_224] : memref<1x4x8xbf16, #tpu.memory_space<vmem>>, vector<1x4x8xbf16>
    %267 = vector.shape_cast %266 : vector<1x4x8xbf16> to vector<4x8xbf16>
    %268 = arith.truncf %233 : vector<8x128xf32> to vector<8x128xbf16>
    %cst_225 = arith.constant dense<0.000000e+00> : vector<4x128xf32>
    %269 = tpu.matmul %267, %268, %cst_225 {dimension_numbers = #tpu.dot_dimension_numbers<[1], [0], [0], [1], [0, 0, 1, 1], [], []>} : vector<4x8xbf16>, vector<8x128xbf16>, vector<4x128xf32> -> vector<4x128xf32>
    %c0_226 = arith.constant 0 : index
    %c0_227 = arith.constant 0 : index
    %c0_228 = arith.constant 0 : index
    %270 = vector.load %arg23[%c0_226, %c0_227, %c0_228] : memref<1x128x128xbf16, #tpu.memory_space<vmem>>, vector<1x128x128xbf16>
    %271 = vector.shape_cast %270 : vector<1x128x128xbf16> to vector<128x128xbf16>
    %272 = arith.truncf %269 : vector<4x128xf32> to vector<4x128xbf16>
    %cst_229 = arith.constant dense<0.000000e+00> : vector<4x128xf32>
    %273 = tpu.matmul %272, %271, %cst_229 {dimension_numbers = #tpu.dot_dimension_numbers<[1], [0], [0], [1], [0, 0, 1, 1], [], []>} : vector<4x128xbf16>, vector<128x128xbf16>, vector<4x128xf32> -> vector<4x128xf32>
    %274 = vector.broadcast %265 : vector<1x128xf32> to vector<4x128xf32>
    %275 = arith.addf %274, %273 : vector<4x128xf32>
    %c0_230 = arith.constant 0 : index
    %c0_231 = arith.constant 0 : index
    %276 = vector.load %arg27[%c0_230, %c0_231] : memref<1x128xf32, #tpu.memory_space<vmem>>, vector<1x128xf32>
    %c0_232 = arith.constant 0 : index
    %c0_233 = arith.constant 0 : index
    %c0_234 = arith.constant 0 : index
    %277 = vector.load %arg25[%c0_232, %c0_233, %c0_234] : memref<3x4x4xbf16, #tpu.memory_space<vmem>>, vector<1x4x4xbf16>
    %278 = vector.shape_cast %277 : vector<1x4x4xbf16> to vector<4x4xbf16>
    %279 = arith.truncf %264 : vector<4x128xf32> to vector<4x128xbf16>
    %cst_235 = arith.constant dense<0.000000e+00> : vector<4x128xf32>
    %280 = tpu.matmul %278, %279, %cst_235 {dimension_numbers = #tpu.dot_dimension_numbers<[1], [0], [0], [1], [0, 0, 1, 1], [], []>} : vector<4x4xbf16>, vector<4x128xbf16>, vector<4x128xf32> -> vector<4x128xf32>
    %c0_236 = arith.constant 0 : index
    %c0_237 = arith.constant 0 : index
    %c0_238 = arith.constant 0 : index
    %281 = vector.load %arg26[%c0_236, %c0_237, %c0_238] : memref<3x128x128xbf16, #tpu.memory_space<vmem>>, vector<1x128x128xbf16>
    %282 = vector.shape_cast %281 : vector<1x128x128xbf16> to vector<128x128xbf16>
    %283 = arith.truncf %280 : vector<4x128xf32> to vector<4x128xbf16>
    %cst_239 = arith.constant dense<0.000000e+00> : vector<4x128xf32>
    %284 = tpu.matmul %283, %282, %cst_239 {dimension_numbers = #tpu.dot_dimension_numbers<[1], [0], [0], [1], [0, 0, 1, 1], [], []>} : vector<4x128xbf16>, vector<128x128xbf16>, vector<4x128xf32> -> vector<4x128xf32>
    %285 = vector.broadcast %276 : vector<1x128xf32> to vector<4x128xf32>
    %286 = arith.addf %285, %284 : vector<4x128xf32>
    %c1_240 = arith.constant 1 : index
    %c0_241 = arith.constant 0 : index
    %c0_242 = arith.constant 0 : index
    %287 = vector.load %arg26[%c1_240, %c0_241, %c0_242] : memref<3x128x128xbf16, #tpu.memory_space<vmem>>, vector<1x128x128xbf16>
    %288 = vector.shape_cast %287 : vector<1x128x128xbf16> to vector<128x128xbf16>
    %289 = arith.truncf %264 : vector<4x128xf32> to vector<4x128xbf16>
    %cst_243 = arith.constant dense<0.000000e+00> : vector<4x128xf32>
    %290 = tpu.matmul %289, %288, %cst_243 {dimension_numbers = #tpu.dot_dimension_numbers<[1], [0], [0], [1], [0, 0, 1, 1], [], []>} : vector<4x128xbf16>, vector<128x128xbf16>, vector<4x128xf32> -> vector<4x128xf32>
    %291 = arith.addf %286, %290 : vector<4x128xf32>
    %c2_244 = arith.constant 2 : index
    %c0_245 = arith.constant 0 : index
    %c0_246 = arith.constant 0 : index
    %292 = vector.load %arg25[%c2_244, %c0_245, %c0_246] : memref<3x4x4xbf16, #tpu.memory_space<vmem>>, vector<1x4x4xbf16>
    %293 = vector.shape_cast %292 : vector<1x4x4xbf16> to vector<4x4xbf16>
    %294 = arith.truncf %264 : vector<4x128xf32> to vector<4x128xbf16>
    %cst_247 = arith.constant dense<0.000000e+00> : vector<4x128xf32>
    %295 = tpu.matmul %293, %294, %cst_247 {dimension_numbers = #tpu.dot_dimension_numbers<[1], [0], [0], [1], [0, 0, 1, 1], [], []>} : vector<4x4xbf16>, vector<4x128xbf16>, vector<4x128xf32> -> vector<4x128xf32>
    %c2_248 = arith.constant 2 : index
    %c0_249 = arith.constant 0 : index
    %c0_250 = arith.constant 0 : index
    %296 = vector.load %arg26[%c2_248, %c0_249, %c0_250] : memref<3x128x128xbf16, #tpu.memory_space<vmem>>, vector<1x128x128xbf16>
    %297 = vector.shape_cast %296 : vector<1x128x128xbf16> to vector<128x128xbf16>
    %298 = arith.truncf %295 : vector<4x128xf32> to vector<4x128xbf16>
    %cst_251 = arith.constant dense<0.000000e+00> : vector<4x128xf32>
    %299 = tpu.matmul %298, %297, %cst_251 {dimension_numbers = #tpu.dot_dimension_numbers<[1], [0], [0], [1], [0, 0, 1, 1], [], []>} : vector<4x128xbf16>, vector<128x128xbf16>, vector<4x128xf32> -> vector<4x128xf32>
    %300 = arith.addf %291, %299 : vector<4x128xf32>
    %301 = arith.addf %300, %275 : vector<4x128xf32>
    %cst_252 = arith.constant 0.000000e+00 : f32
    %302 = vector.broadcast %cst_252 : f32 to vector<4x128xf32>
    %303 = arith.maximumf %301, %302 : vector<4x128xf32>
    %c0_253 = arith.constant 0 : index
    %c0_254 = arith.constant 0 : index
    %304 = vector.load %arg30[%c0_253, %c0_254] : memref<1x128xf32, #tpu.memory_space<vmem>>, vector<1x128xf32>
    %c0_255 = arith.constant 0 : index
    %c0_256 = arith.constant 0 : index
    %c0_257 = arith.constant 0 : index
    %305 = vector.load %arg28[%c0_255, %c0_256, %c0_257] : memref<3x4x4xbf16, #tpu.memory_space<vmem>>, vector<1x4x4xbf16>
    %306 = vector.shape_cast %305 : vector<1x4x4xbf16> to vector<4x4xbf16>
    %307 = arith.truncf %303 : vector<4x128xf32> to vector<4x128xbf16>
    %cst_258 = arith.constant dense<0.000000e+00> : vector<4x128xf32>
    %308 = tpu.matmul %306, %307, %cst_258 {dimension_numbers = #tpu.dot_dimension_numbers<[1], [0], [0], [1], [0, 0, 1, 1], [], []>} : vector<4x4xbf16>, vector<4x128xbf16>, vector<4x128xf32> -> vector<4x128xf32>
    %c0_259 = arith.constant 0 : index
    %c0_260 = arith.constant 0 : index
    %c0_261 = arith.constant 0 : index
    %309 = vector.load %arg29[%c0_259, %c0_260, %c0_261] : memref<3x128x128xbf16, #tpu.memory_space<vmem>>, vector<1x128x128xbf16>
    %310 = vector.shape_cast %309 : vector<1x128x128xbf16> to vector<128x128xbf16>
    %311 = arith.truncf %308 : vector<4x128xf32> to vector<4x128xbf16>
    %cst_262 = arith.constant dense<0.000000e+00> : vector<4x128xf32>
    %312 = tpu.matmul %311, %310, %cst_262 {dimension_numbers = #tpu.dot_dimension_numbers<[1], [0], [0], [1], [0, 0, 1, 1], [], []>} : vector<4x128xbf16>, vector<128x128xbf16>, vector<4x128xf32> -> vector<4x128xf32>
    %313 = vector.broadcast %304 : vector<1x128xf32> to vector<4x128xf32>
    %314 = arith.addf %313, %312 : vector<4x128xf32>
    %c1_263 = arith.constant 1 : index
    %c0_264 = arith.constant 0 : index
    %c0_265 = arith.constant 0 : index
    %315 = vector.load %arg29[%c1_263, %c0_264, %c0_265] : memref<3x128x128xbf16, #tpu.memory_space<vmem>>, vector<1x128x128xbf16>
    %316 = vector.shape_cast %315 : vector<1x128x128xbf16> to vector<128x128xbf16>
    %317 = arith.truncf %303 : vector<4x128xf32> to vector<4x128xbf16>
    %cst_266 = arith.constant dense<0.000000e+00> : vector<4x128xf32>
    %318 = tpu.matmul %317, %316, %cst_266 {dimension_numbers = #tpu.dot_dimension_numbers<[1], [0], [0], [1], [0, 0, 1, 1], [], []>} : vector<4x128xbf16>, vector<128x128xbf16>, vector<4x128xf32> -> vector<4x128xf32>
    %319 = arith.addf %314, %318 : vector<4x128xf32>
    %c2_267 = arith.constant 2 : index
    %c0_268 = arith.constant 0 : index
    %c0_269 = arith.constant 0 : index
    %320 = vector.load %arg28[%c2_267, %c0_268, %c0_269] : memref<3x4x4xbf16, #tpu.memory_space<vmem>>, vector<1x4x4xbf16>
    %321 = vector.shape_cast %320 : vector<1x4x4xbf16> to vector<4x4xbf16>
    %322 = arith.truncf %303 : vector<4x128xf32> to vector<4x128xbf16>
    %cst_270 = arith.constant dense<0.000000e+00> : vector<4x128xf32>
    %323 = tpu.matmul %321, %322, %cst_270 {dimension_numbers = #tpu.dot_dimension_numbers<[1], [0], [0], [1], [0, 0, 1, 1], [], []>} : vector<4x4xbf16>, vector<4x128xbf16>, vector<4x128xf32> -> vector<4x128xf32>
    %c2_271 = arith.constant 2 : index
    %c0_272 = arith.constant 0 : index
    %c0_273 = arith.constant 0 : index
    %324 = vector.load %arg29[%c2_271, %c0_272, %c0_273] : memref<3x128x128xbf16, #tpu.memory_space<vmem>>, vector<1x128x128xbf16>
    %325 = vector.shape_cast %324 : vector<1x128x128xbf16> to vector<128x128xbf16>
    %326 = arith.truncf %323 : vector<4x128xf32> to vector<4x128xbf16>
    %cst_274 = arith.constant dense<0.000000e+00> : vector<4x128xf32>
    %327 = tpu.matmul %326, %325, %cst_274 {dimension_numbers = #tpu.dot_dimension_numbers<[1], [0], [0], [1], [0, 0, 1, 1], [], []>} : vector<4x128xbf16>, vector<128x128xbf16>, vector<4x128xf32> -> vector<4x128xf32>
    %328 = arith.addf %319, %327 : vector<4x128xf32>
    %cst_275 = arith.constant 0.000000e+00 : f32
    %329 = vector.broadcast %cst_275 : f32 to vector<4x128xf32>
    %330 = arith.maximumf %328, %329 : vector<4x128xf32>
    %c0_276 = arith.constant 0 : index
    %c0_277 = arith.constant 0 : index
    %331 = vector.load %arg33[%c0_276, %c0_277] : memref<1x128xf32, #tpu.memory_space<vmem>>, vector<1x128xf32>
    %c0_278 = arith.constant 0 : index
    %c0_279 = arith.constant 0 : index
    %c0_280 = arith.constant 0 : index
    %332 = vector.load %arg31[%c0_278, %c0_279, %c0_280] : memref<3x4x4xbf16, #tpu.memory_space<vmem>>, vector<1x4x4xbf16>
    %333 = vector.shape_cast %332 : vector<1x4x4xbf16> to vector<4x4xbf16>
    %334 = arith.truncf %330 : vector<4x128xf32> to vector<4x128xbf16>
    %cst_281 = arith.constant dense<0.000000e+00> : vector<4x128xf32>
    %335 = tpu.matmul %333, %334, %cst_281 {dimension_numbers = #tpu.dot_dimension_numbers<[1], [0], [0], [1], [0, 0, 1, 1], [], []>} : vector<4x4xbf16>, vector<4x128xbf16>, vector<4x128xf32> -> vector<4x128xf32>
    %c0_282 = arith.constant 0 : index
    %c0_283 = arith.constant 0 : index
    %c0_284 = arith.constant 0 : index
    %336 = vector.load %arg32[%c0_282, %c0_283, %c0_284] : memref<3x128x128xbf16, #tpu.memory_space<vmem>>, vector<1x128x128xbf16>
    %337 = vector.shape_cast %336 : vector<1x128x128xbf16> to vector<128x128xbf16>
    %338 = arith.truncf %335 : vector<4x128xf32> to vector<4x128xbf16>
    %cst_285 = arith.constant dense<0.000000e+00> : vector<4x128xf32>
    %339 = tpu.matmul %338, %337, %cst_285 {dimension_numbers = #tpu.dot_dimension_numbers<[1], [0], [0], [1], [0, 0, 1, 1], [], []>} : vector<4x128xbf16>, vector<128x128xbf16>, vector<4x128xf32> -> vector<4x128xf32>
    %340 = vector.broadcast %331 : vector<1x128xf32> to vector<4x128xf32>
    %341 = arith.addf %340, %339 : vector<4x128xf32>
    %c1_286 = arith.constant 1 : index
    %c0_287 = arith.constant 0 : index
    %c0_288 = arith.constant 0 : index
    %342 = vector.load %arg32[%c1_286, %c0_287, %c0_288] : memref<3x128x128xbf16, #tpu.memory_space<vmem>>, vector<1x128x128xbf16>
    %343 = vector.shape_cast %342 : vector<1x128x128xbf16> to vector<128x128xbf16>
    %344 = arith.truncf %330 : vector<4x128xf32> to vector<4x128xbf16>
    %cst_289 = arith.constant dense<0.000000e+00> : vector<4x128xf32>
    %345 = tpu.matmul %344, %343, %cst_289 {dimension_numbers = #tpu.dot_dimension_numbers<[1], [0], [0], [1], [0, 0, 1, 1], [], []>} : vector<4x128xbf16>, vector<128x128xbf16>, vector<4x128xf32> -> vector<4x128xf32>
    %346 = arith.addf %341, %345 : vector<4x128xf32>
    %c2_290 = arith.constant 2 : index
    %c0_291 = arith.constant 0 : index
    %c0_292 = arith.constant 0 : index
    %347 = vector.load %arg31[%c2_290, %c0_291, %c0_292] : memref<3x4x4xbf16, #tpu.memory_space<vmem>>, vector<1x4x4xbf16>
    %348 = vector.shape_cast %347 : vector<1x4x4xbf16> to vector<4x4xbf16>
    %349 = arith.truncf %330 : vector<4x128xf32> to vector<4x128xbf16>
    %cst_293 = arith.constant dense<0.000000e+00> : vector<4x128xf32>
    %350 = tpu.matmul %348, %349, %cst_293 {dimension_numbers = #tpu.dot_dimension_numbers<[1], [0], [0], [1], [0, 0, 1, 1], [], []>} : vector<4x4xbf16>, vector<4x128xbf16>, vector<4x128xf32> -> vector<4x128xf32>
    %c2_294 = arith.constant 2 : index
    %c0_295 = arith.constant 0 : index
    %c0_296 = arith.constant 0 : index
    %351 = vector.load %arg32[%c2_294, %c0_295, %c0_296] : memref<3x128x128xbf16, #tpu.memory_space<vmem>>, vector<1x128x128xbf16>
    %352 = vector.shape_cast %351 : vector<1x128x128xbf16> to vector<128x128xbf16>
    %353 = arith.truncf %350 : vector<4x128xf32> to vector<4x128xbf16>
    %cst_297 = arith.constant dense<0.000000e+00> : vector<4x128xf32>
    %354 = tpu.matmul %353, %352, %cst_297 {dimension_numbers = #tpu.dot_dimension_numbers<[1], [0], [0], [1], [0, 0, 1, 1], [], []>} : vector<4x128xbf16>, vector<128x128xbf16>, vector<4x128xf32> -> vector<4x128xf32>
    %355 = arith.addf %346, %354 : vector<4x128xf32>
    %356 = arith.addf %355, %303 : vector<4x128xf32>
    %cst_298 = arith.constant 0.000000e+00 : f32
    %357 = vector.broadcast %cst_298 : f32 to vector<4x128xf32>
    %358 = arith.maximumf %356, %357 : vector<4x128xf32>
    %c0_299 = arith.constant 0 : index
    %c0_300 = arith.constant 0 : index
    %359 = vector.load %arg36[%c0_299, %c0_300] : memref<1x128xf32, #tpu.memory_space<vmem>>, vector<1x128xf32>
    %c0_301 = arith.constant 0 : index
    %c0_302 = arith.constant 0 : index
    %c0_303 = arith.constant 0 : index
    %360 = vector.load %arg34[%c0_301, %c0_302, %c0_303] : memref<3x2x4xbf16, #tpu.memory_space<vmem>>, vector<1x2x4xbf16>
    %361 = vector.shape_cast %360 : vector<1x2x4xbf16> to vector<2x4xbf16>
    %362 = arith.truncf %358 : vector<4x128xf32> to vector<4x128xbf16>
    %cst_304 = arith.constant dense<0.000000e+00> : vector<2x128xf32>
    %363 = tpu.matmul %361, %362, %cst_304 {dimension_numbers = #tpu.dot_dimension_numbers<[1], [0], [0], [1], [0, 0, 1, 1], [], []>} : vector<2x4xbf16>, vector<4x128xbf16>, vector<2x128xf32> -> vector<2x128xf32>
    %c0_305 = arith.constant 0 : index
    %c0_306 = arith.constant 0 : index
    %c0_307 = arith.constant 0 : index
    %364 = vector.load %arg35[%c0_305, %c0_306, %c0_307] : memref<3x128x128xbf16, #tpu.memory_space<vmem>>, vector<1x128x128xbf16>
    %365 = vector.shape_cast %364 : vector<1x128x128xbf16> to vector<128x128xbf16>
    %366 = arith.truncf %363 : vector<2x128xf32> to vector<2x128xbf16>
    %cst_308 = arith.constant dense<0.000000e+00> : vector<2x128xf32>
    %367 = tpu.matmul %366, %365, %cst_308 {dimension_numbers = #tpu.dot_dimension_numbers<[1], [0], [0], [1], [0, 0, 1, 1], [], []>} : vector<2x128xbf16>, vector<128x128xbf16>, vector<2x128xf32> -> vector<2x128xf32>
    %368 = vector.broadcast %359 : vector<1x128xf32> to vector<2x128xf32>
    %369 = arith.addf %368, %367 : vector<2x128xf32>
    %c1_309 = arith.constant 1 : index
    %c0_310 = arith.constant 0 : index
    %c0_311 = arith.constant 0 : index
    %370 = vector.load %arg34[%c1_309, %c0_310, %c0_311] : memref<3x2x4xbf16, #tpu.memory_space<vmem>>, vector<1x2x4xbf16>
    %371 = vector.shape_cast %370 : vector<1x2x4xbf16> to vector<2x4xbf16>
    %372 = arith.truncf %358 : vector<4x128xf32> to vector<4x128xbf16>
    %cst_312 = arith.constant dense<0.000000e+00> : vector<2x128xf32>
    %373 = tpu.matmul %371, %372, %cst_312 {dimension_numbers = #tpu.dot_dimension_numbers<[1], [0], [0], [1], [0, 0, 1, 1], [], []>} : vector<2x4xbf16>, vector<4x128xbf16>, vector<2x128xf32> -> vector<2x128xf32>
    %c1_313 = arith.constant 1 : index
    %c0_314 = arith.constant 0 : index
    %c0_315 = arith.constant 0 : index
    %374 = vector.load %arg35[%c1_313, %c0_314, %c0_315] : memref<3x128x128xbf16, #tpu.memory_space<vmem>>, vector<1x128x128xbf16>
    %375 = vector.shape_cast %374 : vector<1x128x128xbf16> to vector<128x128xbf16>
    %376 = arith.truncf %373 : vector<2x128xf32> to vector<2x128xbf16>
    %cst_316 = arith.constant dense<0.000000e+00> : vector<2x128xf32>
    %377 = tpu.matmul %376, %375, %cst_316 {dimension_numbers = #tpu.dot_dimension_numbers<[1], [0], [0], [1], [0, 0, 1, 1], [], []>} : vector<2x128xbf16>, vector<128x128xbf16>, vector<2x128xf32> -> vector<2x128xf32>
    %378 = arith.addf %369, %377 : vector<2x128xf32>
    %c2_317 = arith.constant 2 : index
    %c0_318 = arith.constant 0 : index
    %c0_319 = arith.constant 0 : index
    %379 = vector.load %arg34[%c2_317, %c0_318, %c0_319] : memref<3x2x4xbf16, #tpu.memory_space<vmem>>, vector<1x2x4xbf16>
    %380 = vector.shape_cast %379 : vector<1x2x4xbf16> to vector<2x4xbf16>
    %381 = arith.truncf %358 : vector<4x128xf32> to vector<4x128xbf16>
    %cst_320 = arith.constant dense<0.000000e+00> : vector<2x128xf32>
    %382 = tpu.matmul %380, %381, %cst_320 {dimension_numbers = #tpu.dot_dimension_numbers<[1], [0], [0], [1], [0, 0, 1, 1], [], []>} : vector<2x4xbf16>, vector<4x128xbf16>, vector<2x128xf32> -> vector<2x128xf32>
    %c2_321 = arith.constant 2 : index
    %c0_322 = arith.constant 0 : index
    %c0_323 = arith.constant 0 : index
    %383 = vector.load %arg35[%c2_321, %c0_322, %c0_323] : memref<3x128x128xbf16, #tpu.memory_space<vmem>>, vector<1x128x128xbf16>
    %384 = vector.shape_cast %383 : vector<1x128x128xbf16> to vector<128x128xbf16>
    %385 = arith.truncf %382 : vector<2x128xf32> to vector<2x128xbf16>
    %cst_324 = arith.constant dense<0.000000e+00> : vector<2x128xf32>
    %386 = tpu.matmul %385, %384, %cst_324 {dimension_numbers = #tpu.dot_dimension_numbers<[1], [0], [0], [1], [0, 0, 1, 1], [], []>} : vector<2x128xbf16>, vector<128x128xbf16>, vector<2x128xf32> -> vector<2x128xf32>
    %387 = arith.addf %378, %386 : vector<2x128xf32>
    %cst_325 = arith.constant 0.000000e+00 : f32
    %388 = vector.broadcast %cst_325 : f32 to vector<2x128xf32>
    %389 = arith.maximumf %387, %388 : vector<2x128xf32>
    %c0_326 = arith.constant 0 : index
    %c0_327 = arith.constant 0 : index
    %390 = vector.load %arg39[%c0_326, %c0_327] : memref<1x128xf32, #tpu.memory_space<vmem>>, vector<1x128xf32>
    %c0_328 = arith.constant 0 : index
    %c0_329 = arith.constant 0 : index
    %c0_330 = arith.constant 0 : index
    %391 = vector.load %arg37[%c0_328, %c0_329, %c0_330] : memref<1x2x4xbf16, #tpu.memory_space<vmem>>, vector<1x2x4xbf16>
    %392 = vector.shape_cast %391 : vector<1x2x4xbf16> to vector<2x4xbf16>
    %393 = arith.truncf %358 : vector<4x128xf32> to vector<4x128xbf16>
    %cst_331 = arith.constant dense<0.000000e+00> : vector<2x128xf32>
    %394 = tpu.matmul %392, %393, %cst_331 {dimension_numbers = #tpu.dot_dimension_numbers<[1], [0], [0], [1], [0, 0, 1, 1], [], []>} : vector<2x4xbf16>, vector<4x128xbf16>, vector<2x128xf32> -> vector<2x128xf32>
    %c0_332 = arith.constant 0 : index
    %c0_333 = arith.constant 0 : index
    %c0_334 = arith.constant 0 : index
    %395 = vector.load %arg38[%c0_332, %c0_333, %c0_334] : memref<1x128x128xbf16, #tpu.memory_space<vmem>>, vector<1x128x128xbf16>
    %396 = vector.shape_cast %395 : vector<1x128x128xbf16> to vector<128x128xbf16>
    %397 = arith.truncf %394 : vector<2x128xf32> to vector<2x128xbf16>
    %cst_335 = arith.constant dense<0.000000e+00> : vector<2x128xf32>
    %398 = tpu.matmul %397, %396, %cst_335 {dimension_numbers = #tpu.dot_dimension_numbers<[1], [0], [0], [1], [0, 0, 1, 1], [], []>} : vector<2x128xbf16>, vector<128x128xbf16>, vector<2x128xf32> -> vector<2x128xf32>
    %399 = vector.broadcast %390 : vector<1x128xf32> to vector<2x128xf32>
    %400 = arith.addf %399, %398 : vector<2x128xf32>
    %c0_336 = arith.constant 0 : index
    %c0_337 = arith.constant 0 : index
    %401 = vector.load %arg42[%c0_336, %c0_337] : memref<1x128xf32, #tpu.memory_space<vmem>>, vector<1x128xf32>
    %c0_338 = arith.constant 0 : index
    %c0_339 = arith.constant 0 : index
    %c0_340 = arith.constant 0 : index
    %402 = vector.load %arg40[%c0_338, %c0_339, %c0_340] : memref<3x2x2xbf16, #tpu.memory_space<vmem>>, vector<1x2x2xbf16>
    %403 = vector.shape_cast %402 : vector<1x2x2xbf16> to vector<2x2xbf16>
    %404 = arith.truncf %389 : vector<2x128xf32> to vector<2x128xbf16>
    %cst_341 = arith.constant dense<0.000000e+00> : vector<2x128xf32>
    %405 = tpu.matmul %403, %404, %cst_341 {dimension_numbers = #tpu.dot_dimension_numbers<[1], [0], [0], [1], [0, 0, 1, 1], [], []>} : vector<2x2xbf16>, vector<2x128xbf16>, vector<2x128xf32> -> vector<2x128xf32>
    %c0_342 = arith.constant 0 : index
    %c0_343 = arith.constant 0 : index
    %c0_344 = arith.constant 0 : index
    %406 = vector.load %arg41[%c0_342, %c0_343, %c0_344] : memref<3x128x128xbf16, #tpu.memory_space<vmem>>, vector<1x128x128xbf16>
    %407 = vector.shape_cast %406 : vector<1x128x128xbf16> to vector<128x128xbf16>
    %408 = arith.truncf %405 : vector<2x128xf32> to vector<2x128xbf16>
    %cst_345 = arith.constant dense<0.000000e+00> : vector<2x128xf32>
    %409 = tpu.matmul %408, %407, %cst_345 {dimension_numbers = #tpu.dot_dimension_numbers<[1], [0], [0], [1], [0, 0, 1, 1], [], []>} : vector<2x128xbf16>, vector<128x128xbf16>, vector<2x128xf32> -> vector<2x128xf32>
    %410 = vector.broadcast %401 : vector<1x128xf32> to vector<2x128xf32>
    %411 = arith.addf %410, %409 : vector<2x128xf32>
    %c1_346 = arith.constant 1 : index
    %c0_347 = arith.constant 0 : index
    %c0_348 = arith.constant 0 : index
    %412 = vector.load %arg41[%c1_346, %c0_347, %c0_348] : memref<3x128x128xbf16, #tpu.memory_space<vmem>>, vector<1x128x128xbf16>
    %413 = vector.shape_cast %412 : vector<1x128x128xbf16> to vector<128x128xbf16>
    %414 = arith.truncf %389 : vector<2x128xf32> to vector<2x128xbf16>
    %cst_349 = arith.constant dense<0.000000e+00> : vector<2x128xf32>
    %415 = tpu.matmul %414, %413, %cst_349 {dimension_numbers = #tpu.dot_dimension_numbers<[1], [0], [0], [1], [0, 0, 1, 1], [], []>} : vector<2x128xbf16>, vector<128x128xbf16>, vector<2x128xf32> -> vector<2x128xf32>
    %416 = arith.addf %411, %415 : vector<2x128xf32>
    %c2_350 = arith.constant 2 : index
    %c0_351 = arith.constant 0 : index
    %c0_352 = arith.constant 0 : index
    %417 = vector.load %arg40[%c2_350, %c0_351, %c0_352] : memref<3x2x2xbf16, #tpu.memory_space<vmem>>, vector<1x2x2xbf16>
    %418 = vector.shape_cast %417 : vector<1x2x2xbf16> to vector<2x2xbf16>
    %419 = arith.truncf %389 : vector<2x128xf32> to vector<2x128xbf16>
    %cst_353 = arith.constant dense<0.000000e+00> : vector<2x128xf32>
    %420 = tpu.matmul %418, %419, %cst_353 {dimension_numbers = #tpu.dot_dimension_numbers<[1], [0], [0], [1], [0, 0, 1, 1], [], []>} : vector<2x2xbf16>, vector<2x128xbf16>, vector<2x128xf32> -> vector<2x128xf32>
    %c2_354 = arith.constant 2 : index
    %c0_355 = arith.constant 0 : index
    %c0_356 = arith.constant 0 : index
    %421 = vector.load %arg41[%c2_354, %c0_355, %c0_356] : memref<3x128x128xbf16, #tpu.memory_space<vmem>>, vector<1x128x128xbf16>
    %422 = vector.shape_cast %421 : vector<1x128x128xbf16> to vector<128x128xbf16>
    %423 = arith.truncf %420 : vector<2x128xf32> to vector<2x128xbf16>
    %cst_357 = arith.constant dense<0.000000e+00> : vector<2x128xf32>
    %424 = tpu.matmul %423, %422, %cst_357 {dimension_numbers = #tpu.dot_dimension_numbers<[1], [0], [0], [1], [0, 0, 1, 1], [], []>} : vector<2x128xbf16>, vector<128x128xbf16>, vector<2x128xf32> -> vector<2x128xf32>
    %425 = arith.addf %416, %424 : vector<2x128xf32>
    %426 = arith.addf %425, %400 : vector<2x128xf32>
    %cst_358 = arith.constant 0.000000e+00 : f32
    %427 = vector.broadcast %cst_358 : f32 to vector<2x128xf32>
    %428 = arith.maximumf %426, %427 : vector<2x128xf32>
    %c0_359 = arith.constant 0 : index
    %c0_360 = arith.constant 0 : index
    %429 = vector.load %arg45[%c0_359, %c0_360] : memref<1x128xf32, #tpu.memory_space<vmem>>, vector<1x128xf32>
    %c0_361 = arith.constant 0 : index
    %c0_362 = arith.constant 0 : index
    %c0_363 = arith.constant 0 : index
    %430 = vector.load %arg43[%c0_361, %c0_362, %c0_363] : memref<3x2x2xbf16, #tpu.memory_space<vmem>>, vector<1x2x2xbf16>
    %431 = vector.shape_cast %430 : vector<1x2x2xbf16> to vector<2x2xbf16>
    %432 = arith.truncf %428 : vector<2x128xf32> to vector<2x128xbf16>
    %cst_364 = arith.constant dense<0.000000e+00> : vector<2x128xf32>
    %433 = tpu.matmul %431, %432, %cst_364 {dimension_numbers = #tpu.dot_dimension_numbers<[1], [0], [0], [1], [0, 0, 1, 1], [], []>} : vector<2x2xbf16>, vector<2x128xbf16>, vector<2x128xf32> -> vector<2x128xf32>
    %c0_365 = arith.constant 0 : index
    %c0_366 = arith.constant 0 : index
    %c0_367 = arith.constant 0 : index
    %434 = vector.load %arg44[%c0_365, %c0_366, %c0_367] : memref<3x128x128xbf16, #tpu.memory_space<vmem>>, vector<1x128x128xbf16>
    %435 = vector.shape_cast %434 : vector<1x128x128xbf16> to vector<128x128xbf16>
    %436 = arith.truncf %433 : vector<2x128xf32> to vector<2x128xbf16>
    %cst_368 = arith.constant dense<0.000000e+00> : vector<2x128xf32>
    %437 = tpu.matmul %436, %435, %cst_368 {dimension_numbers = #tpu.dot_dimension_numbers<[1], [0], [0], [1], [0, 0, 1, 1], [], []>} : vector<2x128xbf16>, vector<128x128xbf16>, vector<2x128xf32> -> vector<2x128xf32>
    %438 = vector.broadcast %429 : vector<1x128xf32> to vector<2x128xf32>
    %439 = arith.addf %438, %437 : vector<2x128xf32>
    %c1_369 = arith.constant 1 : index
    %c0_370 = arith.constant 0 : index
    %c0_371 = arith.constant 0 : index
    %440 = vector.load %arg44[%c1_369, %c0_370, %c0_371] : memref<3x128x128xbf16, #tpu.memory_space<vmem>>, vector<1x128x128xbf16>
    %441 = vector.shape_cast %440 : vector<1x128x128xbf16> to vector<128x128xbf16>
    %442 = arith.truncf %428 : vector<2x128xf32> to vector<2x128xbf16>
    %cst_372 = arith.constant dense<0.000000e+00> : vector<2x128xf32>
    %443 = tpu.matmul %442, %441, %cst_372 {dimension_numbers = #tpu.dot_dimension_numbers<[1], [0], [0], [1], [0, 0, 1, 1], [], []>} : vector<2x128xbf16>, vector<128x128xbf16>, vector<2x128xf32> -> vector<2x128xf32>
    %444 = arith.addf %439, %443 : vector<2x128xf32>
    %c2_373 = arith.constant 2 : index
    %c0_374 = arith.constant 0 : index
    %c0_375 = arith.constant 0 : index
    %445 = vector.load %arg43[%c2_373, %c0_374, %c0_375] : memref<3x2x2xbf16, #tpu.memory_space<vmem>>, vector<1x2x2xbf16>
    %446 = vector.shape_cast %445 : vector<1x2x2xbf16> to vector<2x2xbf16>
    %447 = arith.truncf %428 : vector<2x128xf32> to vector<2x128xbf16>
    %cst_376 = arith.constant dense<0.000000e+00> : vector<2x128xf32>
    %448 = tpu.matmul %446, %447, %cst_376 {dimension_numbers = #tpu.dot_dimension_numbers<[1], [0], [0], [1], [0, 0, 1, 1], [], []>} : vector<2x2xbf16>, vector<2x128xbf16>, vector<2x128xf32> -> vector<2x128xf32>
    %c2_377 = arith.constant 2 : index
    %c0_378 = arith.constant 0 : index
    %c0_379 = arith.constant 0 : index
    %449 = vector.load %arg44[%c2_377, %c0_378, %c0_379] : memref<3x128x128xbf16, #tpu.memory_space<vmem>>, vector<1x128x128xbf16>
    %450 = vector.shape_cast %449 : vector<1x128x128xbf16> to vector<128x128xbf16>
    %451 = arith.truncf %448 : vector<2x128xf32> to vector<2x128xbf16>
    %cst_380 = arith.constant dense<0.000000e+00> : vector<2x128xf32>
    %452 = tpu.matmul %451, %450, %cst_380 {dimension_numbers = #tpu.dot_dimension_numbers<[1], [0], [0], [1], [0, 0, 1, 1], [], []>} : vector<2x128xbf16>, vector<128x128xbf16>, vector<2x128xf32> -> vector<2x128xf32>
    %453 = arith.addf %444, %452 : vector<2x128xf32>
    %cst_381 = arith.constant 0.000000e+00 : f32
    %454 = vector.broadcast %cst_381 : f32 to vector<2x128xf32>
    %455 = arith.maximumf %453, %454 : vector<2x128xf32>
    %c0_382 = arith.constant 0 : index
    %c0_383 = arith.constant 0 : index
    %456 = vector.load %arg48[%c0_382, %c0_383] : memref<1x128xf32, #tpu.memory_space<vmem>>, vector<1x128xf32>
    %c0_384 = arith.constant 0 : index
    %c0_385 = arith.constant 0 : index
    %c0_386 = arith.constant 0 : index
    %457 = vector.load %arg46[%c0_384, %c0_385, %c0_386] : memref<3x2x2xbf16, #tpu.memory_space<vmem>>, vector<1x2x2xbf16>
    %458 = vector.shape_cast %457 : vector<1x2x2xbf16> to vector<2x2xbf16>
    %459 = arith.truncf %455 : vector<2x128xf32> to vector<2x128xbf16>
    %cst_387 = arith.constant dense<0.000000e+00> : vector<2x128xf32>
    %460 = tpu.matmul %458, %459, %cst_387 {dimension_numbers = #tpu.dot_dimension_numbers<[1], [0], [0], [1], [0, 0, 1, 1], [], []>} : vector<2x2xbf16>, vector<2x128xbf16>, vector<2x128xf32> -> vector<2x128xf32>
    %c0_388 = arith.constant 0 : index
    %c0_389 = arith.constant 0 : index
    %c0_390 = arith.constant 0 : index
    %461 = vector.load %arg47[%c0_388, %c0_389, %c0_390] : memref<3x128x128xbf16, #tpu.memory_space<vmem>>, vector<1x128x128xbf16>
    %462 = vector.shape_cast %461 : vector<1x128x128xbf16> to vector<128x128xbf16>
    %463 = arith.truncf %460 : vector<2x128xf32> to vector<2x128xbf16>
    %cst_391 = arith.constant dense<0.000000e+00> : vector<2x128xf32>
    %464 = tpu.matmul %463, %462, %cst_391 {dimension_numbers = #tpu.dot_dimension_numbers<[1], [0], [0], [1], [0, 0, 1, 1], [], []>} : vector<2x128xbf16>, vector<128x128xbf16>, vector<2x128xf32> -> vector<2x128xf32>
    %465 = vector.broadcast %456 : vector<1x128xf32> to vector<2x128xf32>
    %466 = arith.addf %465, %464 : vector<2x128xf32>
    %c1_392 = arith.constant 1 : index
    %c0_393 = arith.constant 0 : index
    %c0_394 = arith.constant 0 : index
    %467 = vector.load %arg47[%c1_392, %c0_393, %c0_394] : memref<3x128x128xbf16, #tpu.memory_space<vmem>>, vector<1x128x128xbf16>
    %468 = vector.shape_cast %467 : vector<1x128x128xbf16> to vector<128x128xbf16>
    %469 = arith.truncf %455 : vector<2x128xf32> to vector<2x128xbf16>
    %cst_395 = arith.constant dense<0.000000e+00> : vector<2x128xf32>
    %470 = tpu.matmul %469, %468, %cst_395 {dimension_numbers = #tpu.dot_dimension_numbers<[1], [0], [0], [1], [0, 0, 1, 1], [], []>} : vector<2x128xbf16>, vector<128x128xbf16>, vector<2x128xf32> -> vector<2x128xf32>
    %471 = arith.addf %466, %470 : vector<2x128xf32>
    %c2_396 = arith.constant 2 : index
    %c0_397 = arith.constant 0 : index
    %c0_398 = arith.constant 0 : index
    %472 = vector.load %arg46[%c2_396, %c0_397, %c0_398] : memref<3x2x2xbf16, #tpu.memory_space<vmem>>, vector<1x2x2xbf16>
    %473 = vector.shape_cast %472 : vector<1x2x2xbf16> to vector<2x2xbf16>
    %474 = arith.truncf %455 : vector<2x128xf32> to vector<2x128xbf16>
    %cst_399 = arith.constant dense<0.000000e+00> : vector<2x128xf32>
    %475 = tpu.matmul %473, %474, %cst_399 {dimension_numbers = #tpu.dot_dimension_numbers<[1], [0], [0], [1], [0, 0, 1, 1], [], []>} : vector<2x2xbf16>, vector<2x128xbf16>, vector<2x128xf32> -> vector<2x128xf32>
    %c2_400 = arith.constant 2 : index
    %c0_401 = arith.constant 0 : index
    %c0_402 = arith.constant 0 : index
    %476 = vector.load %arg47[%c2_400, %c0_401, %c0_402] : memref<3x128x128xbf16, #tpu.memory_space<vmem>>, vector<1x128x128xbf16>
    %477 = vector.shape_cast %476 : vector<1x128x128xbf16> to vector<128x128xbf16>
    %478 = arith.truncf %475 : vector<2x128xf32> to vector<2x128xbf16>
    %cst_403 = arith.constant dense<0.000000e+00> : vector<2x128xf32>
    %479 = tpu.matmul %478, %477, %cst_403 {dimension_numbers = #tpu.dot_dimension_numbers<[1], [0], [0], [1], [0, 0, 1, 1], [], []>} : vector<2x128xbf16>, vector<128x128xbf16>, vector<2x128xf32> -> vector<2x128xf32>
    %480 = arith.addf %471, %479 : vector<2x128xf32>
    %481 = arith.addf %480, %428 : vector<2x128xf32>
    %cst_404 = arith.constant 0.000000e+00 : f32
    %482 = vector.broadcast %cst_404 : f32 to vector<2x128xf32>
    %483 = arith.maximumf %481, %482 : vector<2x128xf32>
    %c0_405 = arith.constant 0 : index
    %c0_406 = arith.constant 0 : index
    %484 = vector.load %arg51[%c0_405, %c0_406] : memref<1x128xf32, #tpu.memory_space<vmem>>, vector<1x128xf32>
    %c0_407 = arith.constant 0 : index
    %c0_408 = arith.constant 0 : index
    %c0_409 = arith.constant 0 : index
    %485 = vector.load %arg49[%c0_407, %c0_408, %c0_409] : memref<2x1x2xbf16, #tpu.memory_space<vmem>>, vector<1x1x2xbf16>
    %486 = vector.shape_cast %485 : vector<1x1x2xbf16> to vector<1x2xbf16>
    %487 = arith.truncf %483 : vector<2x128xf32> to vector<2x128xbf16>
    %cst_410 = arith.constant dense<0.000000e+00> : vector<1x128xf32>
    %488 = tpu.matmul %486, %487, %cst_410 {dimension_numbers = #tpu.dot_dimension_numbers<[1], [0], [0], [1], [0, 0, 1, 1], [], []>} : vector<1x2xbf16>, vector<2x128xbf16>, vector<1x128xf32> -> vector<1x128xf32>
    %c0_411 = arith.constant 0 : index
    %c0_412 = arith.constant 0 : index
    %c0_413 = arith.constant 0 : index
    %489 = vector.load %arg50[%c0_411, %c0_412, %c0_413] : memref<2x128x128xbf16, #tpu.memory_space<vmem>>, vector<1x128x128xbf16>
    %490 = vector.shape_cast %489 : vector<1x128x128xbf16> to vector<128x128xbf16>
    %491 = arith.truncf %488 : vector<1x128xf32> to vector<1x128xbf16>
    %cst_414 = arith.constant dense<0.000000e+00> : vector<1x128xf32>
    %492 = tpu.matmul %491, %490, %cst_414 {dimension_numbers = #tpu.dot_dimension_numbers<[1], [0], [0], [1], [0, 0, 1, 1], [], []>} : vector<1x128xbf16>, vector<128x128xbf16>, vector<1x128xf32> -> vector<1x128xf32>
    %493 = arith.addf %484, %492 : vector<1x128xf32>
    %c1_415 = arith.constant 1 : index
    %c0_416 = arith.constant 0 : index
    %c0_417 = arith.constant 0 : index
    %494 = vector.load %arg49[%c1_415, %c0_416, %c0_417] : memref<2x1x2xbf16, #tpu.memory_space<vmem>>, vector<1x1x2xbf16>
    %495 = vector.shape_cast %494 : vector<1x1x2xbf16> to vector<1x2xbf16>
    %496 = arith.truncf %483 : vector<2x128xf32> to vector<2x128xbf16>
    %cst_418 = arith.constant dense<0.000000e+00> : vector<1x128xf32>
    %497 = tpu.matmul %495, %496, %cst_418 {dimension_numbers = #tpu.dot_dimension_numbers<[1], [0], [0], [1], [0, 0, 1, 1], [], []>} : vector<1x2xbf16>, vector<2x128xbf16>, vector<1x128xf32> -> vector<1x128xf32>
    %c1_419 = arith.constant 1 : index
    %c0_420 = arith.constant 0 : index
    %c0_421 = arith.constant 0 : index
    %498 = vector.load %arg50[%c1_419, %c0_420, %c0_421] : memref<2x128x128xbf16, #tpu.memory_space<vmem>>, vector<1x128x128xbf16>
    %499 = vector.shape_cast %498 : vector<1x128x128xbf16> to vector<128x128xbf16>
    %500 = arith.truncf %497 : vector<1x128xf32> to vector<1x128xbf16>
    %cst_422 = arith.constant dense<0.000000e+00> : vector<1x128xf32>
    %501 = tpu.matmul %500, %499, %cst_422 {dimension_numbers = #tpu.dot_dimension_numbers<[1], [0], [0], [1], [0, 0, 1, 1], [], []>} : vector<1x128xbf16>, vector<128x128xbf16>, vector<1x128xf32> -> vector<1x128xf32>
    %502 = arith.addf %493, %501 : vector<1x128xf32>
    %cst_423 = arith.constant 0.000000e+00 : f32
    %503 = vector.broadcast %cst_423 : f32 to vector<1x128xf32>
    %504 = arith.maximumf %502, %503 : vector<1x128xf32>
    %c0_424 = arith.constant 0 : index
    %c0_425 = arith.constant 0 : index
    %505 = vector.load %arg54[%c0_424, %c0_425] : memref<1x128xf32, #tpu.memory_space<vmem>>, vector<1x128xf32>
    %c0_426 = arith.constant 0 : index
    %c0_427 = arith.constant 0 : index
    %c0_428 = arith.constant 0 : index
    %506 = vector.load %arg52[%c0_426, %c0_427, %c0_428] : memref<1x1x2xbf16, #tpu.memory_space<vmem>>, vector<1x1x2xbf16>
    %507 = vector.shape_cast %506 : vector<1x1x2xbf16> to vector<1x2xbf16>
    %508 = arith.truncf %483 : vector<2x128xf32> to vector<2x128xbf16>
    %cst_429 = arith.constant dense<0.000000e+00> : vector<1x128xf32>
    %509 = tpu.matmul %507, %508, %cst_429 {dimension_numbers = #tpu.dot_dimension_numbers<[1], [0], [0], [1], [0, 0, 1, 1], [], []>} : vector<1x2xbf16>, vector<2x128xbf16>, vector<1x128xf32> -> vector<1x128xf32>
    %c0_430 = arith.constant 0 : index
    %c0_431 = arith.constant 0 : index
    %c0_432 = arith.constant 0 : index
    %510 = vector.load %arg53[%c0_430, %c0_431, %c0_432] : memref<1x128x128xbf16, #tpu.memory_space<vmem>>, vector<1x128x128xbf16>
    %511 = vector.shape_cast %510 : vector<1x128x128xbf16> to vector<128x128xbf16>
    %512 = arith.truncf %509 : vector<1x128xf32> to vector<1x128xbf16>
    %cst_433 = arith.constant dense<0.000000e+00> : vector<1x128xf32>
    %513 = tpu.matmul %512, %511, %cst_433 {dimension_numbers = #tpu.dot_dimension_numbers<[1], [0], [0], [1], [0, 0, 1, 1], [], []>} : vector<1x128xbf16>, vector<128x128xbf16>, vector<1x128xf32> -> vector<1x128xf32>
    %514 = arith.addf %505, %513 : vector<1x128xf32>
    %c0_434 = arith.constant 0 : index
    %c0_435 = arith.constant 0 : index
    %515 = vector.load %arg57[%c0_434, %c0_435] : memref<1x128xf32, #tpu.memory_space<vmem>>, vector<1x128xf32>
    %c0_436 = arith.constant 0 : index
    %c0_437 = arith.constant 0 : index
    %c0_438 = arith.constant 0 : index
    %516 = vector.load %arg56[%c0_436, %c0_437, %c0_438] : memref<1x128x128xbf16, #tpu.memory_space<vmem>>, vector<1x128x128xbf16>
    %517 = vector.shape_cast %516 : vector<1x128x128xbf16> to vector<128x128xbf16>
    %518 = arith.truncf %504 : vector<1x128xf32> to vector<1x128xbf16>
    %cst_439 = arith.constant dense<0.000000e+00> : vector<1x128xf32>
    %519 = tpu.matmul %518, %517, %cst_439 {dimension_numbers = #tpu.dot_dimension_numbers<[1], [0], [0], [1], [0, 0, 1, 1], [], []>} : vector<1x128xbf16>, vector<128x128xbf16>, vector<1x128xf32> -> vector<1x128xf32>
    %520 = arith.addf %515, %519 : vector<1x128xf32>
    %521 = arith.addf %520, %514 : vector<1x128xf32>
    %cst_440 = arith.constant 0.000000e+00 : f32
    %522 = vector.broadcast %cst_440 : f32 to vector<1x128xf32>
    %523 = arith.maximumf %521, %522 : vector<1x128xf32>
    %c0_441 = arith.constant 0 : index
    %c0_442 = arith.constant 0 : index
    %524 = vector.load %arg60[%c0_441, %c0_442] : memref<1x128xf32, #tpu.memory_space<vmem>>, vector<1x128xf32>
    %c0_443 = arith.constant 0 : index
    %c0_444 = arith.constant 0 : index
    %c0_445 = arith.constant 0 : index
    %525 = vector.load %arg59[%c0_443, %c0_444, %c0_445] : memref<1x128x128xbf16, #tpu.memory_space<vmem>>, vector<1x128x128xbf16>
    %526 = vector.shape_cast %525 : vector<1x128x128xbf16> to vector<128x128xbf16>
    %527 = arith.truncf %523 : vector<1x128xf32> to vector<1x128xbf16>
    %cst_446 = arith.constant dense<0.000000e+00> : vector<1x128xf32>
    %528 = tpu.matmul %527, %526, %cst_446 {dimension_numbers = #tpu.dot_dimension_numbers<[1], [0], [0], [1], [0, 0, 1, 1], [], []>} : vector<1x128xbf16>, vector<128x128xbf16>, vector<1x128xf32> -> vector<1x128xf32>
    %529 = arith.addf %524, %528 : vector<1x128xf32>
    %cst_447 = arith.constant 0.000000e+00 : f32
    %530 = vector.broadcast %cst_447 : f32 to vector<1x128xf32>
    %531 = arith.maximumf %529, %530 : vector<1x128xf32>
    %c0_448 = arith.constant 0 : index
    %c0_449 = arith.constant 0 : index
    %532 = vector.load %arg63[%c0_448, %c0_449] : memref<1x128xf32, #tpu.memory_space<vmem>>, vector<1x128xf32>
    %c0_450 = arith.constant 0 : index
    %c0_451 = arith.constant 0 : index
    %c0_452 = arith.constant 0 : index
    %533 = vector.load %arg62[%c0_450, %c0_451, %c0_452] : memref<1x128x128xbf16, #tpu.memory_space<vmem>>, vector<1x128x128xbf16>
    %534 = vector.shape_cast %533 : vector<1x128x128xbf16> to vector<128x128xbf16>
    %535 = arith.truncf %531 : vector<1x128xf32> to vector<1x128xbf16>
    %cst_453 = arith.constant dense<0.000000e+00> : vector<1x128xf32>
    %536 = tpu.matmul %535, %534, %cst_453 {dimension_numbers = #tpu.dot_dimension_numbers<[1], [0], [0], [1], [0, 0, 1, 1], [], []>} : vector<1x128xbf16>, vector<128x128xbf16>, vector<1x128xf32> -> vector<1x128xf32>
    %537 = arith.addf %532, %536 : vector<1x128xf32>
    %538 = arith.addf %537, %523 : vector<1x128xf32>
    %cst_454 = arith.constant 0.000000e+00 : f32
    %539 = vector.broadcast %cst_454 : f32 to vector<1x128xf32>
    %540 = arith.maximumf %538, %539 : vector<1x128xf32>
    %c0_455 = arith.constant 0 : index
    %c0_456 = arith.constant 0 : index
    %541 = vector.load %arg66[%c0_455, %c0_456] : memref<1x128xf32, #tpu.memory_space<vmem>>, vector<1x128xf32>
    tpu.vector_store %arg66[%c0_455, %c0_456], %540 {strides = array<i32>} : memref<1x128xf32, #tpu.memory_space<vmem>>, vector<1x128xf32>,
    return
  }
  func.func @transform_0(%arg0: i32) -> (i32, i32) {
    %c0_i32 = arith.constant 0 : i32
    %c0_i32_0 = arith.constant 0 : i32
    %c0_i32_1 = arith.constant 0 : i32
    return %c0_i32, %c0_i32_0 : i32, i32
  }
  func.func @transform_1(%arg0: i32) -> (i32, i32, i32) {
    %c0_i32 = arith.constant 0 : i32
    %c0_i32_0 = arith.constant 0 : i32
    %c0_i32_1 = arith.constant 0 : i32
    %c0_i32_2 = arith.constant 0 : i32
    return %c0_i32, %c0_i32_0, %c0_i32_1 : i32, i32, i32
  }
  func.func @transform_2(%arg0: i32) -> (i32, i32, i32) {
    %c0_i32 = arith.constant 0 : i32
    %c0_i32_0 = arith.constant 0 : i32
    %c0_i32_1 = arith.constant 0 : i32
    %c0_i32_2 = arith.constant 0 : i32
    return %c0_i32, %c0_i32_0, %c0_i32_1 : i32, i32, i32
  }
  func.func @transform_3(%arg0: i32) -> (i32, i32) {
    %c0_i32 = arith.constant 0 : i32
    %c0_i32_0 = arith.constant 0 : i32
    %c0_i32_1 = arith.constant 0 : i32
    return %c0_i32, %c0_i32_0 : i32, i32
  }
  func.func @transform_4(%arg0: i32) -> (i32, i32, i32) {
    %c0_i32 = arith.constant 0 : i32
    %c0_i32_0 = arith.constant 0 : i32
    %c0_i32_1 = arith.constant 0 : i32
    %c0_i32_2 = arith.constant 0 : i32
    return %c0_i32, %c0_i32_0, %c0_i32_1 : i32, i32, i32
  }
  func.func @transform_5(%arg0: i32) -> (i32, i32, i32) {
    %c0_i32 = arith.constant 0 : i32
    %c0_i32_0 = arith.constant 0 : i32
    %c0_i32_1 = arith.constant 0 : i32
    %c0_i32_2 = arith.constant 0 : i32
    return %c0_i32, %c0_i32_0, %c0_i32_1 : i32, i32, i32
  }
  func.func @transform_6(%arg0: i32) -> (i32, i32, i32) {
    %c0_i32 = arith.constant 0 : i32
    %c0_i32_0 = arith.constant 0 : i32
    %c0_i32_1 = arith.constant 0 : i32
    %c0_i32_2 = arith.constant 0 : i32
    return %c0_i32, %c0_i32_0, %c0_i32_1 : i32, i32, i32
  }
  func.func @transform_7(%arg0: i32) -> (i32, i32, i32) {
    %c0_i32 = arith.constant 0 : i32
    %c0_i32_0 = arith.constant 0 : i32
    %c0_i32_1 = arith.constant 0 : i32
    %c0_i32_2 = arith.constant 0 : i32
    return %c0_i32, %c0_i32_0, %c0_i32_1 : i32, i32, i32
  }
  func.func @transform_8(%arg0: i32) -> (i32, i32) {
    %c0_i32 = arith.constant 0 : i32
    %c0_i32_0 = arith.constant 0 : i32
    %c0_i32_1 = arith.constant 0 : i32
    return %c0_i32, %c0_i32_0 : i32, i32
  }
  func.func @transform_9(%arg0: i32) -> (i32, i32, i32) {
    %c0_i32 = arith.constant 0 : i32
    %c0_i32_0 = arith.constant 0 : i32
    %c0_i32_1 = arith.constant 0 : i32
    %c0_i32_2 = arith.constant 0 : i32
    return %c0_i32, %c0_i32_0, %c0_i32_1 : i32, i32, i32
  }
  func.func @transform_10(%arg0: i32) -> (i32, i32, i32) {
    %c0_i32 = arith.constant 0 : i32
    %c0_i32_0 = arith.constant 0 : i32
    %c0_i32_1 = arith.constant 0 : i32
    %c0_i32_2 = arith.constant 0 : i32
    return %c0_i32, %c0_i32_0, %c0_i32_1 : i32, i32, i32
  }
  func.func @transform_11(%arg0: i32) -> (i32, i32) {
    %c0_i32 = arith.constant 0 : i32
    %c0_i32_0 = arith.constant 0 : i32
    %c0_i32_1 = arith.constant 0 : i32
    return %c0_i32, %c0_i32_0 : i32, i32
  }
  func.func @transform_12(%arg0: i32) -> (i32, i32, i32) {
    %c0_i32 = arith.constant 0 : i32
    %c0_i32_0 = arith.constant 0 : i32
    %c0_i32_1 = arith.constant 0 : i32
    %c0_i32_2 = arith.constant 0 : i32
    return %c0_i32, %c0_i32_0, %c0_i32_1 : i32, i32, i32
  }
  func.func @transform_13(%arg0: i32) -> (i32, i32, i32) {
    %c0_i32 = arith.constant 0 : i32
    %c0_i32_0 = arith.constant 0 : i32
    %c0_i32_1 = arith.constant 0 : i32
    %c0_i32_2 = arith.constant 0 : i32
    return %c0_i32, %c0_i32_0, %c0_i32_1 : i32, i32, i32
  }
  func.func @transform_14(%arg0: i32) -> (i32, i32) {
    %c0_i32 = arith.constant 0 : i32
    %c0_i32_0 = arith.constant 0 : i32
    %c0_i32_1 = arith.constant 0 : i32
    return %c0_i32, %c0_i32_0 : i32, i32
  }
  func.func @transform_15(%arg0: i32) -> (i32, i32, i32) {
    %c0_i32 = arith.constant 0 : i32
    %c0_i32_0 = arith.constant 0 : i32
    %c0_i32_1 = arith.constant 0 : i32
    %c0_i32_2 = arith.constant 0 : i32
    return %c0_i32, %c0_i32_0, %c0_i32_1 : i32, i32, i32
  }
  func.func @transform_16(%arg0: i32) -> (i32, i32, i32) {
    %c0_i32 = arith.constant 0 : i32
    %c0_i32_0 = arith.constant 0 : i32
    %c0_i32_1 = arith.constant 0 : i32
    %c0_i32_2 = arith.constant 0 : i32
    return %c0_i32, %c0_i32_0, %c0_i32_1 : i32, i32, i32
  }
  func.func @transform_17(%arg0: i32) -> (i32, i32) {
    %c0_i32 = arith.constant 0 : i32
    %c0_i32_0 = arith.constant 0 : i32
    %c0_i32_1 = arith.constant 0 : i32
    return %c0_i32, %c0_i32_0 : i32, i32
  }
  func.func @transform_18(%arg0: i32) -> (i32, i32, i32) {
    %c0_i32 = arith.constant 0 : i32
    %c0_i32_0 = arith.constant 0 : i32
    %c0_i32_1 = arith.constant 0 : i32
    %c0_i32_2 = arith.constant 0 : i32
    return %c0_i32, %c0_i32_0, %c0_i32_1 : i32, i32, i32
  }
  func.func @transform_19(%arg0: i32) -> (i32, i32, i32) {
    %c0_i32 = arith.constant 0 : i32
    %c0_i32_0 = arith.constant 0 : i32
    %c0_i32_1 = arith.constant 0 : i32
    %c0_i32_2 = arith.constant 0 : i32
    return %c0_i32, %c0_i32_0, %c0_i32_1 : i32, i32, i32
  }
  func.func @transform_20(%arg0: i32) -> (i32, i32) {
    %c0_i32 = arith.constant 0 : i32
    %c0_i32_0 = arith.constant 0 : i32
    %c0_i32_1 = arith.constant 0 : i32
    return %c0_i32, %c0_i32_0 : i32, i32
  }
  func.func @transform_21(%arg0: i32) -> (i32, i32, i32) {
    %c0_i32 = arith.constant 0 : i32
    %c0_i32_0 = arith.constant 0 : i32
    %c0_i32_1 = arith.constant 0 : i32
    %c0_i32_2 = arith.constant 0 : i32
    return %c0_i32, %c0_i32_0, %c0_i32_1 : i32, i32, i32
  }
  func.func @transform_22(%arg0: i32) -> (i32, i32, i32) {
    %c0_i32 = arith.constant 0 : i32
    %c0_i32_0 = arith.constant 0 : i32
    %c0_i32_1 = arith.constant 0 : i32
    %c0_i32_2 = arith.constant 0 : i32
    return %c0_i32, %c0_i32_0, %c0_i32_1 : i32, i32, i32
  }
  func.func @transform_23(%arg0: i32) -> (i32, i32) {
    %c0_i32 = arith.constant 0 : i32
    %c0_i32_0 = arith.constant 0 : i32
    %c0_i32_1 = arith.constant 0 : i32
    return %c0_i32, %c0_i32_0 : i32, i32
  }
  func.func @transform_24(%arg0: i32) -> (i32, i32, i32) {
    %c0_i32 = arith.constant 0 : i32
    %c0_i32_0 = arith.constant 0 : i32
    %c0_i32_1 = arith.constant 0 : i32
    %c0_i32_2 = arith.constant 0 : i32
    return %c0_i32, %c0_i32_0, %c0_i32_1 : i32, i32, i32
  }
  func.func @transform_25(%arg0: i32) -> (i32, i32, i32) {
    %c0_i32 = arith.constant 0 : i32
    %c0_i32_0 = arith.constant 0 : i32
    %c0_i32_1 = arith.constant 0 : i32
    %c0_i32_2 = arith.constant 0 : i32
    return %c0_i32, %c0_i32_0, %c0_i32_1 : i32, i32, i32
  }
  func.func @transform_26(%arg0: i32) -> (i32, i32) {
    %c0_i32 = arith.constant 0 : i32
    %c0_i32_0 = arith.constant 0 : i32
    %c0_i32_1 = arith.constant 0 : i32
    return %c0_i32, %c0_i32_0 : i32, i32
  }
  func.func @transform_27(%arg0: i32) -> (i32, i32, i32) {
    %c0_i32 = arith.constant 0 : i32
    %c0_i32_0 = arith.constant 0 : i32
    %c0_i32_1 = arith.constant 0 : i32
    %c0_i32_2 = arith.constant 0 : i32
    return %c0_i32, %c0_i32_0, %c0_i32_1 : i32, i32, i32
  }
  func.func @transform_28(%arg0: i32) -> (i32, i32, i32) {
    %c0_i32 = arith.constant 0 : i32
    %c0_i32_0 = arith.constant 0 : i32
    %c0_i32_1 = arith.constant 0 : i32
    %c0_i32_2 = arith.constant 0 : i32
    return %c0_i32, %c0_i32_0, %c0_i32_1 : i32, i32, i32
  }
  func.func @transform_29(%arg0: i32) -> (i32, i32) {
    %c0_i32 = arith.constant 0 : i32
    %c0_i32_0 = arith.constant 0 : i32
    %c0_i32_1 = arith.constant 0 : i32
    return %c0_i32, %c0_i32_0 : i32, i32
  }
  func.func @transform_30(%arg0: i32) -> (i32, i32, i32) {
    %c0_i32 = arith.constant 0 : i32
    %c0_i32_0 = arith.constant 0 : i32
    %c0_i32_1 = arith.constant 0 : i32
    %c0_i32_2 = arith.constant 0 : i32
    return %c0_i32, %c0_i32_0, %c0_i32_1 : i32, i32, i32
  }
  func.func @transform_31(%arg0: i32) -> (i32, i32, i32) {
    %c0_i32 = arith.constant 0 : i32
    %c0_i32_0 = arith.constant 0 : i32
    %c0_i32_1 = arith.constant 0 : i32
    %c0_i32_2 = arith.constant 0 : i32
    return %c0_i32, %c0_i32_0, %c0_i32_1 : i32, i32, i32
  }
  func.func @transform_32(%arg0: i32) -> (i32, i32) {
    %c0_i32 = arith.constant 0 : i32
    %c0_i32_0 = arith.constant 0 : i32
    %c0_i32_1 = arith.constant 0 : i32
    return %c0_i32, %c0_i32_0 : i32, i32
  }
  func.func @transform_33(%arg0: i32) -> (i32, i32, i32) {
    %c0_i32 = arith.constant 0 : i32
    %c0_i32_0 = arith.constant 0 : i32
    %c0_i32_1 = arith.constant 0 : i32
    %c0_i32_2 = arith.constant 0 : i32
    return %c0_i32, %c0_i32_0, %c0_i32_1 : i32, i32, i32
  }
  func.func @transform_34(%arg0: i32) -> (i32, i32, i32) {
    %c0_i32 = arith.constant 0 : i32
    %c0_i32_0 = arith.constant 0 : i32
    %c0_i32_1 = arith.constant 0 : i32
    %c0_i32_2 = arith.constant 0 : i32
    return %c0_i32, %c0_i32_0, %c0_i32_1 : i32, i32, i32
  }
  func.func @transform_35(%arg0: i32) -> (i32, i32) {
    %c0_i32 = arith.constant 0 : i32
    %c0_i32_0 = arith.constant 0 : i32
    %c0_i32_1 = arith.constant 0 : i32
    return %c0_i32, %c0_i32_0 : i32, i32
  }
  func.func @transform_36(%arg0: i32) -> (i32, i32, i32) {
    %c0_i32 = arith.constant 0 : i32
    %c0_i32_0 = arith.constant 0 : i32
    %c0_i32_1 = arith.constant 0 : i32
    %c0_i32_2 = arith.constant 0 : i32
    return %c0_i32, %c0_i32_0, %c0_i32_1 : i32, i32, i32
  }
  func.func @transform_37(%arg0: i32) -> (i32, i32, i32) {
    %c0_i32 = arith.constant 0 : i32
    %c0_i32_0 = arith.constant 0 : i32
    %c0_i32_1 = arith.constant 0 : i32
    %c0_i32_2 = arith.constant 0 : i32
    return %c0_i32, %c0_i32_0, %c0_i32_1 : i32, i32, i32
  }
  func.func @transform_38(%arg0: i32) -> (i32, i32) {
    %c0_i32 = arith.constant 0 : i32
    %c0_i32_0 = arith.constant 0 : i32
    %c0_i32_1 = arith.constant 0 : i32
    return %c0_i32, %c0_i32_0 : i32, i32
  }
  func.func @transform_39(%arg0: i32) -> (i32, i32, i32) {
    %c0_i32 = arith.constant 0 : i32
    %c0_i32_0 = arith.constant 0 : i32
    %c0_i32_1 = arith.constant 0 : i32
    %c0_i32_2 = arith.constant 0 : i32
    return %c0_i32, %c0_i32_0, %c0_i32_1 : i32, i32, i32
  }
  func.func @transform_40(%arg0: i32) -> (i32, i32, i32) {
    %c0_i32 = arith.constant 0 : i32
    %c0_i32_0 = arith.constant 0 : i32
    %c0_i32_1 = arith.constant 0 : i32
    %c0_i32_2 = arith.constant 0 : i32
    return %c0_i32, %c0_i32_0, %c0_i32_1 : i32, i32, i32
  }
  func.func @transform_41(%arg0: i32) -> (i32, i32) {
    %c0_i32 = arith.constant 0 : i32
    %c0_i32_0 = arith.constant 0 : i32
    %c0_i32_1 = arith.constant 0 : i32
    return %c0_i32, %c0_i32_0 : i32, i32
  }
  func.func @transform_42(%arg0: i32) -> (i32, i32, i32) {
    %c0_i32 = arith.constant 0 : i32
    %c0_i32_0 = arith.constant 0 : i32
    %c0_i32_1 = arith.constant 0 : i32
    %c0_i32_2 = arith.constant 0 : i32
    return %c0_i32, %c0_i32_0, %c0_i32_1 : i32, i32, i32
  }
  func.func @transform_43(%arg0: i32) -> (i32, i32, i32) {
    %c0_i32 = arith.constant 0 : i32
    %c0_i32_0 = arith.constant 0 : i32
    %c0_i32_1 = arith.constant 0 : i32
    %c0_i32_2 = arith.constant 0 : i32
    return %c0_i32, %c0_i32_0, %c0_i32_1 : i32, i32, i32
  }
  func.func @transform_44(%arg0: i32) -> (i32, i32) {
    %c0_i32 = arith.constant 0 : i32
    %c0_i32_0 = arith.constant 0 : i32
    %c0_i32_1 = arith.constant 0 : i32
    return %c0_i32, %c0_i32_0 : i32, i32
  }
  func.func @transform_45(%arg0: i32) -> (i32, i32, i32) {
    %c0_i32 = arith.constant 0 : i32
    %c0_i32_0 = arith.constant 0 : i32
    %c0_i32_1 = arith.constant 0 : i32
    %c0_i32_2 = arith.constant 0 : i32
    return %c0_i32, %c0_i32_0, %c0_i32_1 : i32, i32, i32
  }
  func.func @transform_46(%arg0: i32) -> (i32, i32, i32) {
    %c0_i32 = arith.constant 0 : i32
    %c0_i32_0 = arith.constant 0 : i32
    %c0_i32_1 = arith.constant 0 : i32
    %c0_i32_2 = arith.constant 0 : i32
    return %c0_i32, %c0_i32_0, %c0_i32_1 : i32, i32, i32
  }
  func.func @transform_47(%arg0: i32) -> (i32, i32) {
    %c0_i32 = arith.constant 0 : i32
    %c0_i32_0 = arith.constant 0 : i32
    %c0_i32_1 = arith.constant 0 : i32
    return %c0_i32, %c0_i32_0 : i32, i32
  }
  func.func @transform_48(%arg0: i32) -> (i32, i32, i32) {
    %c0_i32 = arith.constant 0 : i32
    %c0_i32_0 = arith.constant 0 : i32
    %c0_i32_1 = arith.constant 0 : i32
    %c0_i32_2 = arith.constant 0 : i32
    return %c0_i32, %c0_i32_0, %c0_i32_1 : i32, i32, i32
  }
  func.func @transform_49(%arg0: i32) -> (i32, i32, i32) {
    %c0_i32 = arith.constant 0 : i32
    %c0_i32_0 = arith.constant 0 : i32
    %c0_i32_1 = arith.constant 0 : i32
    %c0_i32_2 = arith.constant 0 : i32
    return %c0_i32, %c0_i32_0, %c0_i32_1 : i32, i32, i32
  }
  func.func @transform_50(%arg0: i32) -> (i32, i32) {
    %c0_i32 = arith.constant 0 : i32
    %c0_i32_0 = arith.constant 0 : i32
    %c0_i32_1 = arith.constant 0 : i32
    return %c0_i32, %c0_i32_0 : i32, i32
  }
  func.func @transform_51(%arg0: i32) -> (i32, i32, i32) {
    %c0_i32 = arith.constant 0 : i32
    %c0_i32_0 = arith.constant 0 : i32
    %c0_i32_1 = arith.constant 0 : i32
    %c0_i32_2 = arith.constant 0 : i32
    return %c0_i32, %c0_i32_0, %c0_i32_1 : i32, i32, i32
  }
  func.func @transform_52(%arg0: i32) -> (i32, i32, i32) {
    %c0_i32 = arith.constant 0 : i32
    %c0_i32_0 = arith.constant 0 : i32
    %c0_i32_1 = arith.constant 0 : i32
    %c0_i32_2 = arith.constant 0 : i32
    return %c0_i32, %c0_i32_0, %c0_i32_1 : i32, i32, i32
  }
  func.func @transform_53(%arg0: i32) -> (i32, i32) {
    %c0_i32 = arith.constant 0 : i32
    %c0_i32_0 = arith.constant 0 : i32
    %c0_i32_1 = arith.constant 0 : i32
    return %c0_i32, %c0_i32_0 : i32, i32
  }
  func.func @transform_54(%arg0: i32) -> (i32, i32, i32) {
    %c0_i32 = arith.constant 0 : i32
    %c0_i32_0 = arith.constant 0 : i32
    %c0_i32_1 = arith.constant 0 : i32
    %c0_i32_2 = arith.constant 0 : i32
    return %c0_i32, %c0_i32_0, %c0_i32_1 : i32, i32, i32
  }
  func.func @transform_55(%arg0: i32) -> (i32, i32, i32) {
    %c0_i32 = arith.constant 0 : i32
    %c0_i32_0 = arith.constant 0 : i32
    %c0_i32_1 = arith.constant 0 : i32
    %c0_i32_2 = arith.constant 0 : i32
    return %c0_i32, %c0_i32_0, %c0_i32_1 : i32, i32, i32
  }
  func.func @transform_56(%arg0: i32) -> (i32, i32) {
    %c0_i32 = arith.constant 0 : i32
    %c0_i32_0 = arith.constant 0 : i32
    %c0_i32_1 = arith.constant 0 : i32
    return %c0_i32, %c0_i32_0 : i32, i32
  }
  func.func @transform_57(%arg0: i32) -> (i32, i32, i32) {
    %c0_i32 = arith.constant 0 : i32
    %c0_i32_0 = arith.constant 0 : i32
    %c0_i32_1 = arith.constant 0 : i32
    %c0_i32_2 = arith.constant 0 : i32
    return %c0_i32, %c0_i32_0, %c0_i32_1 : i32, i32, i32
  }
  func.func @transform_58(%arg0: i32) -> (i32, i32, i32) {
    %c0_i32 = arith.constant 0 : i32
    %c0_i32_0 = arith.constant 0 : i32
    %c0_i32_1 = arith.constant 0 : i32
    %c0_i32_2 = arith.constant 0 : i32
    return %c0_i32, %c0_i32_0, %c0_i32_1 : i32, i32, i32
  }
  func.func @transform_59(%arg0: i32) -> (i32, i32) {
    %c0_i32 = arith.constant 0 : i32
    %c0_i32_0 = arith.constant 0 : i32
    %c0_i32_1 = arith.constant 0 : i32
    return %c0_i32, %c0_i32_0 : i32, i32
  }
  func.func @transform_60(%arg0: i32) -> (i32, i32, i32) {
    %c0_i32 = arith.constant 0 : i32
    %c0_i32_0 = arith.constant 0 : i32
    %c0_i32_1 = arith.constant 0 : i32
    %c0_i32_2 = arith.constant 0 : i32
    return %c0_i32, %c0_i32_0, %c0_i32_1 : i32, i32, i32
  }
  func.func @transform_61(%arg0: i32) -> (i32, i32, i32) {
    %c0_i32 = arith.constant 0 : i32
    %c0_i32_0 = arith.constant 0 : i32
    %c0_i32_1 = arith.constant 0 : i32
    %c0_i32_2 = arith.constant 0 : i32
    return %c0_i32, %c0_i32_0, %c0_i32_1 : i32, i32, i32
  }
  func.func @transform_62(%arg0: i32) -> (i32, i32) {
    %c0_i32 = arith.constant 0 : i32
    %c0_i32_0 = arith.constant 0 : i32
    %c0_i32_1 = arith.constant 0 : i32
    return %c0_i32, %c0_i32_0 : i32, i32
  }
  func.func @transform_63(%arg0: i32) -> (i32, i32) {
    %c0_i32 = arith.constant 0 : i32
    %c0_i32_0 = arith.constant 0 : i32
    %c0_i32_1 = arith.constant 0 : i32
    return %c0_i32, %c0_i32_0 : i32, i32
  }
  func.func @transform_64(%arg0: i32) -> (i32, i32) {
    %c0_i32 = arith.constant 0 : i32
    %c0_i32_0 = arith.constant 0 : i32
    %c0_i32_1 = arith.constant 0 : i32
    return %c0_i32, %c0_i32_0 : i32, i32
  }
  func.func @transform_65(%arg0: i32) -> (i32, i32) {
    %c0_i32 = arith.constant 0 : i32
    %c0_i32_0 = arith.constant 0 : i32
    %c0_i32_1 = arith.constant 0 : i32
    return %c0_i32, %c0_i32_0 : i32, i32
  }
}

</mosaic_0001>

<llo_original>
// kernel: _forward.1
$region0: #{_forward.1}
  #allocation0 [shape = 'u32[]', space=smem, size = 0x4, offset = 0x4, fixed_abs, tag = 'smem constant byte address 0x4 - core index']
  #allocation1 [shape = 'u32[72,128]{1,0:T(1,128)}', space=vmem, size = 0x9000, scoped, tag = 'internal scratch']
  #allocation2 [shape = 'bf16[1,1,1]{2,1,0:T(2,128)S(1)}', space=vmem, size = 0x200, scoped, tag = 'scoped memory for _forward.1']
  #allocation3 [shape = 'bf16[1,1,1]{2,1,0:T(2,128)S(1)}', space=vmem, size = 0x200, scoped, tag = 'scoped memory for _forward.1']
  #allocation4 [shape = 'bf16[1,1,1]{2,1,0:T(2,128)S(1)}', space=vmem, size = 0x200, scoped, tag = 'scoped memory for _forward.1']
  #allocation5 [shape = 'bf16[1,1]{1,0:T(2,128)S(1)}', space=vmem, size = 0x200, scoped, tag = 'scoped memory for _forward.1']
  %s0 = inlined_call_operand.smem [shape: u32[66], index: -1, kind: input, shape index: {}]
  %s1 = sld [smem:[%s0]]
  %s2 = scalar_lea.smem %s0, 1
  %s3 = sld [smem:[%s2]]
  %s4 = scalar_lea.smem %s0, 2
  %s5 = sld [smem:[%s4]]
  %s6 = scalar_lea.smem %s0, 3
  %s7 = sld [smem:[%s6]]
  %s8 = scalar_lea.smem %s0, 4
  %s9 = sld [smem:[%s8]]
  %s10 = scalar_lea.smem %s0, 5
  %s11 = sld [smem:[%s10]]
  %s12 = scalar_lea.smem %s0, 6
  %s13 = sld [smem:[%s12]]
  %s14 = scalar_lea.smem %s0, 7
  %s15 = sld [smem:[%s14]]
  %s16 = scalar_lea.smem %s0, 8
  %s17 = sld [smem:[%s16]]
  %s18 = scalar_lea.smem %s0, 9
  %s19 = sld [smem:[%s18]]
  %s20 = scalar_lea.smem %s0, 10
  %s21 = sld [smem:[%s20]]
  %s22 = scalar_lea.smem %s0, 11
  %s23 = sld [smem:[%s22]]
  %s24 = scalar_lea.smem %s0, 12
  %s25 = sld [smem:[%s24]]
  %s26 = scalar_lea.smem %s0, 13
  %s27 = sld [smem:[%s26]]
  %s28 = scalar_lea.smem %s0, 14
  %s29 = sld [smem:[%s28]]
  %s30 = scalar_lea.smem %s0, 15
  %s31 = sld [smem:[%s30]]
  %s32 = scalar_lea.smem %s0, 16
  %s33 = sld [smem:[%s32]]
  %s34 = scalar_lea.smem %s0, 17
  %s35 = sld [smem:[%s34]]
  %s36 = scalar_lea.smem %s0, 18
  %s37 = sld [smem:[%s36]]
  %s38 = scalar_lea.smem %s0, 19
  %s39 = sld [smem:[%s38]]
  %s40 = scalar_lea.smem %s0, 20
  %s41 = sld [smem:[%s40]]
  %s42 = scalar_lea.smem %s0, 21
  %s43 = sld [smem:[%s42]]
  %s44 = scalar_lea.smem %s0, 22
  %s45 = sld [smem:[%s44]]
  %s46 = scalar_lea.smem %s0, 23
  %s47 = sld [smem:[%s46]]
  %s48 = scalar_lea.smem %s0, 24
  %s49 = sld [smem:[%s48]]
  %s50 = scalar_lea.smem %s0, 25
  %s51 = sld [smem:[%s50]]
  %s52 = scalar_lea.smem %s0, 26
  %s53 = sld [smem:[%s52]]
  %s54 = scalar_lea.smem %s0, 27
  %s55 = sld [smem:[%s54]]
  %s56 = scalar_lea.smem %s0, 28
  %s57 = sld [smem:[%s56]]
  %s58 = scalar_lea.smem %s0, 29
  %s59 = sld [smem:[%s58]]
  %s60 = scalar_lea.smem %s0, 30
  %s61 = sld [smem:[%s60]]
  %s62 = scalar_lea.smem %s0, 31
  %s63 = sld [smem:[%s62]]
  %s64 = scalar_lea.smem %s0, 32
  %s65 = sld [smem:[%s64]]
  %s66 = scalar_lea.smem %s0, 33
  %s67 = sld [smem:[%s66]]
  %s68 = scalar_lea.smem %s0, 34
  %s69 = sld [smem:[%s68]]
  %s70 = scalar_lea.smem %s0, 35
  %s71 = sld [smem:[%s70]]
  %s72 = scalar_lea.smem %s0, 36
  %s73 = sld [smem:[%s72]]
  %s74 = scalar_lea.smem %s0, 37
  %s75 = sld [smem:[%s74]]
  %s76 = scalar_lea.smem %s0, 38
  %s77 = sld [smem:[%s76]]
  %s78 = scalar_lea.smem %s0, 39
  %s79 = sld [smem:[%s78]]
  %s80 = scalar_lea.smem %s0, 40
  %s81 = sld [smem:[%s80]]
  %s82 = scalar_lea.smem %s0, 41
  %s83 = sld [smem:[%s82]]
  %s84 = scalar_lea.smem %s0, 42
  %s85 = sld [smem:[%s84]]
  %s86 = scalar_lea.smem %s0, 43
  %s87 = sld [smem:[%s86]]
  %s88 = scalar_lea.smem %s0, 44
  %s89 = sld [smem:[%s88]]
  %s90 = scalar_lea.smem %s0, 45
  %s91 = sld [smem:[%s90]]
  %s92 = scalar_lea.smem %s0, 46
  %s93 = sld [smem:[%s92]]
  %s94 = scalar_lea.smem %s0, 47
  %s95 = sld [smem:[%s94]]
  %s96 = scalar_lea.smem %s0, 48
  %s97 = sld [smem:[%s96]]
  %s98 = scalar_lea.smem %s0, 49
  %s99 = sld [smem:[%s98]]
  %s100 = scalar_lea.smem %s0, 50
  %s101 = sld [smem:[%s100]]
  %s102 = scalar_lea.smem %s0, 51
  %s103 = sld [smem:[%s102]]
  %s104 = scalar_lea.smem %s0, 52
  %s105 = sld [smem:[%s104]]
  %s106 = scalar_lea.smem %s0, 53
  %s107 = sld [smem:[%s106]]
  %s108 = scalar_lea.smem %s0, 54
  %s109 = sld [smem:[%s108]]
  %s110 = scalar_lea.smem %s0, 55
  %s111 = sld [smem:[%s110]]
  %s112 = scalar_lea.smem %s0, 56
  %s113 = sld [smem:[%s112]]
  %s114 = scalar_lea.smem %s0, 57
  %s115 = sld [smem:[%s114]]
  %s116 = scalar_lea.smem %s0, 58
  %s117 = sld [smem:[%s116]]
  %s118 = scalar_lea.smem %s0, 59
  %s119 = sld [smem:[%s118]]
  %s120 = scalar_lea.smem %s0, 60
  %s121 = sld [smem:[%s120]]
  %s122 = scalar_lea.smem %s0, 61
  %s123 = sld [smem:[%s122]]
  %s124 = scalar_lea.smem %s0, 62
  %s125 = sld [smem:[%s124]]
  %s126 = scalar_lea.smem %s0, 63
  %s127 = sld [smem:[%s126]]
  %s128 = scalar_lea.smem %s0, 64
  %s129 = sld [smem:[%s128]]
  %s130 = scalar_lea.smem %s0, 65
  %s131 = sld [smem:[%s130]]
  %s132 = sld [smem:[#allocation0]]
  $region458: #{_forward.1} parent=0
    _
  %s134 = ssub.s32 1, %s132
  %s135 = scalar_select 0, %s134, %s132
  %v136 = vstv %s109
  %137 = vst [vmem:[#allocation2] sm:$0x1] %v136
  %v138 = vstv %s115
  %139 = vst [vmem:[#allocation3] sm:$0x1] %v138
  %v140 = vstv %s121
  %141 = vst [vmem:[#allocation4] sm:$0x1] %v140
  %v142 = vstv %s127
  %143 = vst [vmem:[#allocation5] sm:$0x1] %v142
  $region1: #{_forward.1} parent=0
    #allocation6 [shape = 'u8[28672]{0}', space=vmem, size = 0x7000, scoped, tag = 'input window, operand 1, single buffered']
    #allocation7 [shape = 's32[1]{0}', space=sflag, size = 0x4, scoped, tag = 'scoped memory for _forward.1']
    #allocation8 [shape = 'u8[688128]{0}', space=vmem, size = 0xa8000, scoped, tag = 'input window, operand 2, single buffered']
    #allocation9 [shape = 's32[1]{0}', space=sflag, size = 0x4, scoped, tag = 'scoped memory for _forward.1']
    #allocation10 [shape = 'u8[6144]{0}', space=vmem, size = 0x1800, scoped, tag = 'input window, operand 4, single buffered']
    #allocation11 [shape = 'u8[6144]{0}', space=vmem, size = 0x1800, scoped, tag = 'input window, operand 6, single buffered']
    #allocation12 [shape = 's32[1]{0}', space=sflag, size = 0x4, scoped, tag = 'scoped memory for _forward.1']
    #allocation13 [shape = 'u8[512]{0}', space=vmem, size = 0x400, scoped, tag = 'input window, operand 8, single buffered']
    #allocation14 [shape = 'u8[6144]{0}', space=vmem, size = 0x1800, scoped, tag = 'input window, operand 9, single buffered']
    #allocation15 [shape = 's32[1]{0}', space=sflag, size = 0x4, scoped, tag = 'scoped memory for _forward.1']
    #allocation16 [shape = 'u8[6144]{0}', space=vmem, size = 0x1800, scoped, tag = 'input window, operand 12, single buffered']
    #allocation17 [shape = 'u8[6144]{0}', space=vmem, size = 0x1800, scoped, tag = 'input window, operand 15, single buffered']
    #allocation18 [shape = 's32[1]{0}', space=sflag, size = 0x4, scoped, tag = 'scoped memory for _forward.1']
    #allocation19 [shape = 'u8[512]{0}', space=vmem, size = 0x400, scoped, tag = 'input window, operand 17, single buffered']
    #allocation20 [shape = 'u8[3072]{0}', space=vmem, size = 0xc00, scoped, tag = 'input window, operand 18, single buffered']
    #allocation21 [shape = 's32[1]{0}', space=sflag, size = 0x4, scoped, tag = 'scoped memory for _forward.1']
    #allocation22 [shape = 'u8[98304]{0}', space=vmem, size = 0x18000, scoped, tag = 'input window, operand 19, single buffered']
    #allocation23 [shape = 'u8[512]{0}', space=vmem, size = 0x400, scoped, tag = 'input window, operand 20, single buffered']
    #allocation24 [shape = 's32[1]{0}', space=sflag, size = 0x4, scoped, tag = 'scoped memory for _forward.1']
    #allocation25 [shape = 'u8[1024]{0}', space=vmem, size = 0x400, scoped, tag = 'input window, operand 21, single buffered']
    #allocation26 [shape = 'u8[512]{0}', space=vmem, size = 0x400, scoped, tag = 'input window, operand 23, single buffered']
    #allocation27 [shape = 's32[1]{0}', space=sflag, size = 0x4, scoped, tag = 'scoped memory for _forward.1']
    #allocation28 [shape = 'u8[3072]{0}', space=vmem, size = 0xc00, scoped, tag = 'input window, operand 24, single buffered']
    #allocation29 [shape = 'u8[98304]{0}', space=vmem, size = 0x18000, scoped, tag = 'input window, operand 25, single buffered']
    #allocation30 [shape = 's32[1]{0}', space=sflag, size = 0x4, scoped, tag = 'scoped memory for _forward.1']
    #allocation31 [shape = 'u8[512]{0}', space=vmem, size = 0x400, scoped, tag = 'input window, operand 26, single buffered']
    #allocation32 [shape = 'u8[3072]{0}', space=vmem, size = 0xc00, scoped, tag = 'input window, operand 27, single buffered']
    #allocation33 [shape = 's32[1]{0}', space=sflag, size = 0x4, scoped, tag = 'scoped memory for _forward.1']
    #allocation34 [shape = 'u8[98304]{0}', space=vmem, size = 0x18000, scoped, tag = 'input window, operand 28, single buffered']
    #allocation35 [shape = 'u8[512]{0}', space=vmem, size = 0x400, scoped, tag = 'input window, operand 29, single buffered']
    #allocation36 [shape = 's32[1]{0}', space=sflag, size = 0x4, scoped, tag = 'scoped memory for _forward.1']
    #allocation37 [shape = 'u8[3072]{0}', space=vmem, size = 0xc00, scoped, tag = 'input window, operand 30, single buffered']
    #allocation38 [shape = 'u8[98304]{0}', space=vmem, size = 0x18000, scoped, tag = 'input window, operand 31, single buffered']
    #allocation39 [shape = 's32[1]{0}', space=sflag, size = 0x4, scoped, tag = 'scoped memory for _forward.1']
    #allocation40 [shape = 'u8[512]{0}', space=vmem, size = 0x400, scoped, tag = 'input window, operand 32, single buffered']
    #allocation41 [shape = 'u8[1536]{0}', space=vmem, size = 0x800, scoped, tag = 'input window, operand 33, single buffered']
    #allocation42 [shape = 's32[1]{0}', space=sflag, size = 0x4, scoped, tag = 'scoped memory for _forward.1']
    #allocation43 [shape = 'u8[98304]{0}', space=vmem, size = 0x18000, scoped, tag = 'input window, operand 34, single buffered']
    #allocation44 [shape = 'u8[512]{0}', space=vmem, size = 0x400, scoped, tag = 'input window, operand 35, single buffered']
    #allocation45 [shape = 's32[1]{0}', space=sflag, size = 0x4, scoped, tag = 'scoped memory for _forward.1']
    #allocation46 [shape = 'u8[512]{0}', space=vmem, size = 0x400, scoped, tag = 'input window, operand 36, single buffered']
    #allocation47 [shape = 'u8[32768]{0}', space=vmem, size = 0x8000, scoped, tag = 'input window, operand 37, single buffered']
    #allocation48 [shape = 's32[1]{0}', space=sflag, size = 0x4, scoped, tag = 'scoped memory for _forward.1']
    #allocation49 [shape = 'u8[512]{0}', space=vmem, size = 0x400, scoped, tag = 'input window, operand 38, single buffered']
    #allocation50 [shape = 'u8[98304]{0}', space=vmem, size = 0x18000, scoped, tag = 'input window, operand 40, single buffered']
    #allocation51 [shape = 's32[1]{0}', space=sflag, size = 0x4, scoped, tag = 'scoped memory for _forward.1']
    #allocation52 [shape = 'u8[512]{0}', space=vmem, size = 0x400, scoped, tag = 'input window, operand 41, single buffered']
    #allocation53 [shape = 'u8[98304]{0}', space=vmem, size = 0x18000, scoped, tag = 'input window, operand 43, single buffered']
    #allocation54 [shape = 's32[1]{0}', space=sflag, size = 0x4, scoped, tag = 'scoped memory for _forward.1']
    #allocation55 [shape = 'u8[512]{0}', space=vmem, size = 0x400, scoped, tag = 'input window, operand 44, single buffered']
    #allocation56 [shape = 'u8[98304]{0}', space=vmem, size = 0x18000, scoped, tag = 'input window, operand 46, single buffered']
    #allocation57 [shape = 's32[1]{0}', space=sflag, size = 0x4, scoped, tag = 'scoped memory for _forward.1']
    #allocation58 [shape = 'u8[512]{0}', space=vmem, size = 0x400, scoped, tag = 'input window, operand 47, single buffered']
    #allocation59 [shape = 'u8[65536]{0}', space=vmem, size = 0x10000, scoped, tag = 'input window, operand 49, single buffered']
    #allocation60 [shape = 's32[1]{0}', space=sflag, size = 0x4, scoped, tag = 'scoped memory for _forward.1']
    #allocation61 [shape = 'u8[512]{0}', space=vmem, size = 0x400, scoped, tag = 'input window, operand 50, single buffered']
    #allocation62 [shape = 'u8[512]{0}', space=vmem, size = 0x400, scoped, tag = 'input window, operand 51, single buffered']
    #allocation63 [shape = 's32[1]{0}', space=sflag, size = 0x4, scoped, tag = 'scoped memory for _forward.1']
    #allocation64 [shape = 'u8[32768]{0}', space=vmem, size = 0x8000, scoped, tag = 'input window, operand 52, single buffered']
    #allocation65 [shape = 'u8[512]{0}', space=vmem, size = 0x400, scoped, tag = 'input window, operand 53, single buffered']
    #allocation66 [shape = 's32[1]{0}', space=sflag, size = 0x4, scoped, tag = 'scoped memory for _forward.1']
    #allocation67 [shape = 'u8[32768]{0}', space=vmem, size = 0x8000, scoped, tag = 'input window, operand 55, single buffered']
    #allocation68 [shape = 'u8[512]{0}', space=vmem, size = 0x400, scoped, tag = 'input window, operand 56, single buffered']
    #allocation69 [shape = 's32[1]{0}', space=sflag, size = 0x4, scoped, tag = 'scoped memory for _forward.1']
    #allocation70 [shape = 'u8[32768]{0}', space=vmem, size = 0x8000, scoped, tag = 'input window, operand 58, single buffered']
    #allocation71 [shape = 'u8[512]{0}', space=vmem, size = 0x400, scoped, tag = 'input window, operand 59, single buffered']
    #allocation72 [shape = 's32[1]{0}', space=sflag, size = 0x4, scoped, tag = 'scoped memory for _forward.1']
    #allocation73 [shape = 'u8[32768]{0}', space=vmem, size = 0x8000, scoped, tag = 'input window, operand 61, single buffered']
    #allocation74 [shape = 'u8[512]{0}', space=vmem, size = 0x400, scoped, tag = 'input window, operand 62, single buffered']
    #allocation75 [shape = 's32[1]{0}', space=sflag, size = 0x4, scoped, tag = 'scoped memory for _forward.1']
    #allocation76 [shape = 'u8[32768]{0}', space=vmem, size = 0x8000, scoped, tag = 'input window, operand 64, single buffered']
    %144 = vsyncpa [#allocation7], 0
    %145 = vsyncpa [#allocation9], 0
    %146 = vsyncpa [#allocation12], 0
    %147 = vsyncpa [#allocation15], 0
    %148 = vsyncpa [#allocation18], 0
    %149 = vsyncpa [#allocation21], 0
    %150 = vsyncpa [#allocation24], 0
    %151 = vsyncpa [#allocation27], 0
    %152 = vsyncpa [#allocation30], 0
    %153 = vsyncpa [#allocation33], 0
    %154 = vsyncpa [#allocation36], 0
    %155 = vsyncpa [#allocation39], 0
    %156 = vsyncpa [#allocation42], 0
    %157 = vsyncpa [#allocation45], 0
    %158 = vsyncpa [#allocation48], 0
    %159 = vsyncpa [#allocation51], 0
    %160 = vsyncpa [#allocation54], 0
    %161 = vsyncpa [#allocation57], 0
    %162 = vsyncpa [#allocation60], 0
    %163 = vsyncpa [#allocation63], 0
    %164 = vsyncpa [#allocation66], 0
    %165 = vsyncpa [#allocation69], 0
    %166 = vsyncpa [#allocation72], 0
    %167 = vsyncpa [#allocation75], 0
    // Predicated region
    $region2: #{_forward.1} parent=1 // pred_check
      _
    $region3: #{_forward.1} parent=1 // pred_check_branch
      %169 = sbr.rel (0) target = $region5
    $region4: #{_forward.1} parent=1 // pred_region
      _
    $region5: #{_forward.1} parent=1 // pred_fallthru
      _
    // Predicated region
    $region6: #{_forward.1} parent=1 // pred_check
      _
    $region7: #{_forward.1} parent=1 // pred_check_branch
      %171 = sbr.rel (0) target = $region9
    $region8: #{_forward.1} parent=1 // pred_region
      %173 = vsyncadd [#allocation7], 0
      %s174 = sshll.u32 %s3, 4
      %s175 = int_to_ptr.hbm [resolvable:$true] %s174
      %s176 = sshll.u32 [#allocation6], 4
      %s177 = int_to_ptr.vmem [resolvable:$true] %s176
      %182 = dma.hbm_to_vmem [thread:$0]  %s175, 896, %s177, [#allocation7], 64, 64, 4
    $region9: #{_forward.1} parent=1 // pred_fallthru
      _
    // Predicated region
    $region10: #{_forward.1} parent=1 // pred_check
      _
    $region11: #{_forward.1} parent=1 // pred_check_branch
      %184 = sbr.rel (0) target = $region13
    $region12: #{_forward.1} parent=1 // pred_region
      %186 = vsyncadd [#allocation9], 0
      %s187 = sshll.u32 %s5, 4
      %s188 = int_to_ptr.hbm [resolvable:$true] %s187
      %s189 = sshll.u32 [#allocation8], 4
      %s190 = int_to_ptr.vmem [resolvable:$true] %s189
      %195 = dma.hbm_to_vmem [thread:$0]  %s188, 21504, %s190, [#allocation9], 128, 128, 8
    $region13: #{_forward.1} parent=1 // pred_fallthru
      _
    // Predicated region
    $region14: #{_forward.1} parent=1 // pred_check
      _
    $region15: #{_forward.1} parent=1 // pred_check_branch
      %197 = sbr.rel (0) target = $region17
    $region16: #{_forward.1} parent=1 // pred_region
      _
    $region17: #{_forward.1} parent=1 // pred_fallthru
      _
    // Predicated region
    $region18: #{_forward.1} parent=1 // pred_check
      _
    $region19: #{_forward.1} parent=1 // pred_check_branch
      %199 = sbr.rel (0) target = $region21
    $region20: #{_forward.1} parent=1 // pred_region
      %201 = vsyncadd [#allocation9], 0
      %s202 = sshll.u32 %s9, 4
      %s203 = int_to_ptr.hbm [resolvable:$true] %s202
      %s204 = sshll.u32 [#allocation10], 4
      %s205 = int_to_ptr.vmem [resolvable:$true] %s204
      %210 = dma.hbm_to_vmem [thread:$0]  %s203, 192, %s205, [#allocation9], 64, 64, 4
    $region21: #{_forward.1} parent=1 // pred_fallthru
      _
    // Predicated region
    $region22: #{_forward.1} parent=1 // pred_check
      _
    $region23: #{_forward.1} parent=1 // pred_check_branch
      %212 = sbr.rel (0) target = $region25
    $region24: #{_forward.1} parent=1 // pred_region
      _
    $region25: #{_forward.1} parent=1 // pred_fallthru
      _
    // Predicated region
    $region26: #{_forward.1} parent=1 // pred_check
      _
    $region27: #{_forward.1} parent=1 // pred_check_branch
      %214 = sbr.rel (0) target = $region29
    $region28: #{_forward.1} parent=1 // pred_region
      %216 = vsyncadd [#allocation12], 0
      %s217 = sshll.u32 %s13, 4
      %s218 = int_to_ptr.hbm [resolvable:$true] %s217
      %s219 = sshll.u32 [#allocation11], 4
      %s220 = int_to_ptr.vmem [resolvable:$true] %s219
      %225 = dma.hbm_to_vmem [thread:$0]  %s218, 192, %s220, [#allocation12], 64, 64, 4
    $region29: #{_forward.1} parent=1 // pred_fallthru
      _
    // Predicated region
    $region30: #{_forward.1} parent=1 // pred_check
      _
    $region31: #{_forward.1} parent=1 // pred_check_branch
      %227 = sbr.rel (0) target = $region33
    $region32: #{_forward.1} parent=1 // pred_region
      _
    $region33: #{_forward.1} parent=1 // pred_fallthru
      _
    // Predicated region
    $region34: #{_forward.1} parent=1 // pred_check
      _
    $region35: #{_forward.1} parent=1 // pred_check_branch
      %229 = sbr.rel (0) target = $region37
    $region36: #{_forward.1} parent=1 // pred_region
      %231 = vsyncadd [#allocation12], 0
      %s233 = sshll.u32 %s17, 4
      %s234 = int_to_ptr.hbm [resolvable:$true] %s233
      %s235 = sshll.u32 [#allocation13], 4
      %s236 = int_to_ptr.vmem [resolvable:$true] %s235
      %238 = dma.hbm_to_vmem [thread:$0]  %s234, 16, %s236, [#allocation12]
    $region37: #{_forward.1} parent=1 // pred_fallthru
      _
    // Predicated region
    $region38: #{_forward.1} parent=1 // pred_check
      _
    $region39: #{_forward.1} parent=1 // pred_check_branch
      %240 = sbr.rel (0) target = $region41
    $region40: #{_forward.1} parent=1 // pred_region
      %242 = vsyncadd [#allocation15], 0
      %s243 = sshll.u32 %s19, 4
      %s244 = int_to_ptr.hbm [resolvable:$true] %s243
      %s245 = sshll.u32 [#allocation14], 4
      %s246 = int_to_ptr.vmem [resolvable:$true] %s245
      %251 = dma.hbm_to_vmem [thread:$0]  %s244, 192, %s246, [#allocation15], 64, 64, 4
    $region41: #{_forward.1} parent=1 // pred_fallthru
      _
    // Predicated region
    $region42: #{_forward.1} parent=1 // pred_check
      _
    $region43: #{_forward.1} parent=1 // pred_check_branch
      %253 = sbr.rel (0) target = $region45
    $region44: #{_forward.1} parent=1 // pred_region
      _
    $region45: #{_forward.1} parent=1 // pred_fallthru
      _
    // Predicated region
    $region46: #{_forward.1} parent=1 // pred_check
      _
    $region47: #{_forward.1} parent=1 // pred_check_branch
      %255 = sbr.rel (0) target = $region49
    $region48: #{_forward.1} parent=1 // pred_region
      _
    $region49: #{_forward.1} parent=1 // pred_fallthru
      _
    // Predicated region
    $region50: #{_forward.1} parent=1 // pred_check
      _
    $region51: #{_forward.1} parent=1 // pred_check_branch
      %257 = sbr.rel (0) target = $region53
    $region52: #{_forward.1} parent=1 // pred_region
      %259 = vsyncadd [#allocation15], 0
      %s260 = sshll.u32 %s25, 4
      %s261 = int_to_ptr.hbm [resolvable:$true] %s260
      %s262 = sshll.u32 [#allocation16], 4
      %s263 = int_to_ptr.vmem [resolvable:$true] %s262
      %268 = dma.hbm_to_vmem [thread:$0]  %s261, 192, %s263, [#allocation15], 64, 64, 4
    $region53: #{_forward.1} parent=1 // pred_fallthru
      _
    // Predicated region
    $region54: #{_forward.1} parent=1 // pred_check
      _
    $region55: #{_forward.1} parent=1 // pred_check_branch
      %270 = sbr.rel (0) target = $region57
    $region56: #{_forward.1} parent=1 // pred_region
      _
    $region57: #{_forward.1} parent=1 // pred_fallthru
      _
    // Predicated region
    $region58: #{_forward.1} parent=1 // pred_check
      _
    $region59: #{_forward.1} parent=1 // pred_check_branch
      %272 = sbr.rel (0) target = $region61
    $region60: #{_forward.1} parent=1 // pred_region
      _
    $region61: #{_forward.1} parent=1 // pred_fallthru
      _
    // Predicated region
    $region62: #{_forward.1} parent=1 // pred_check
      _
    $region63: #{_forward.1} parent=1 // pred_check_branch
      %274 = sbr.rel (0) target = $region65
    $region64: #{_forward.1} parent=1 // pred_region
      %276 = vsyncadd [#allocation18], 0
      %s277 = sshll.u32 %s31, 4
      %s278 = int_to_ptr.hbm [resolvable:$true] %s277
      %s279 = sshll.u32 [#allocation17], 4
      %s280 = int_to_ptr.vmem [resolvable:$true] %s279
      %285 = dma.hbm_to_vmem [thread:$0]  %s278, 192, %s280, [#allocation18], 64, 64, 4
    $region65: #{_forward.1} parent=1 // pred_fallthru
      _
    // Predicated region
    $region66: #{_forward.1} parent=1 // pred_check
      _
    $region67: #{_forward.1} parent=1 // pred_check_branch
      %287 = sbr.rel (0) target = $region69
    $region68: #{_forward.1} parent=1 // pred_region
      _
    $region69: #{_forward.1} parent=1 // pred_fallthru
      _
    // Predicated region
    $region70: #{_forward.1} parent=1 // pred_check
      _
    $region71: #{_forward.1} parent=1 // pred_check_branch
      %289 = sbr.rel (0) target = $region73
    $region72: #{_forward.1} parent=1 // pred_region
      %291 = vsyncadd [#allocation18], 0
      %s293 = sshll.u32 %s35, 4
      %s294 = int_to_ptr.hbm [resolvable:$true] %s293
      %s295 = sshll.u32 [#allocation19], 4
      %s296 = int_to_ptr.vmem [resolvable:$true] %s295
      %298 = dma.hbm_to_vmem [thread:$0]  %s294, 16, %s296, [#allocation18]
    $region73: #{_forward.1} parent=1 // pred_fallthru
      _
    // Predicated region
    $region74: #{_forward.1} parent=1 // pred_check
      _
    $region75: #{_forward.1} parent=1 // pred_check_branch
      %300 = sbr.rel (0) target = $region77
    $region76: #{_forward.1} parent=1 // pred_region
      %302 = vsyncadd [#allocation21], 0
      %s303 = sshll.u32 %s37, 4
      %s304 = int_to_ptr.hbm [resolvable:$true] %s303
      %s305 = sshll.u32 [#allocation20], 4
      %s306 = int_to_ptr.vmem [resolvable:$true] %s305
      %311 = dma.hbm_to_vmem [thread:$0]  %s304, 96, %s306, [#allocation21], 32, 32, 2
    $region77: #{_forward.1} parent=1 // pred_fallthru
      _
    // Predicated region
    $region78: #{_forward.1} parent=1 // pred_check
      _
    $region79: #{_forward.1} parent=1 // pred_check_branch
      %313 = sbr.rel (0) target = $region81
    $region80: #{_forward.1} parent=1 // pred_region
      %315 = vsyncadd [#allocation21], 0
      %s316 = sshll.u32 %s39, 4
      %s317 = int_to_ptr.hbm [resolvable:$true] %s316
      %s318 = sshll.u32 [#allocation22], 4
      %s319 = int_to_ptr.vmem [resolvable:$true] %s318
      %324 = dma.hbm_to_vmem [thread:$0]  %s317, 3072, %s319, [#allocation21], 64, 64, 4
    $region81: #{_forward.1} parent=1 // pred_fallthru
      _
    // Predicated region
    $region82: #{_forward.1} parent=1 // pred_check
      _
    $region83: #{_forward.1} parent=1 // pred_check_branch
      %326 = sbr.rel (0) target = $region85
    $region84: #{_forward.1} parent=1 // pred_region
      %328 = vsyncadd [#allocation24], 0
      %s330 = sshll.u32 %s41, 4
      %s331 = int_to_ptr.hbm [resolvable:$true] %s330
      %s332 = sshll.u32 [#allocation23], 4
      %s333 = int_to_ptr.vmem [resolvable:$true] %s332
      %335 = dma.hbm_to_vmem [thread:$0]  %s331, 16, %s333, [#allocation24]
    $region85: #{_forward.1} parent=1 // pred_fallthru
      _
    // Predicated region
    $region86: #{_forward.1} parent=1 // pred_check
      _
    $region87: #{_forward.1} parent=1 // pred_check_branch
      %337 = sbr.rel (0) target = $region89
    $region88: #{_forward.1} parent=1 // pred_region
      %339 = vsyncadd [#allocation24], 0
      %s341 = sshll.u32 %s43, 4
      %s342 = int_to_ptr.hbm [resolvable:$true] %s341
      %s343 = sshll.u32 [#allocation25], 4
      %s344 = int_to_ptr.vmem [resolvable:$true] %s343
      %346 = dma.hbm_to_vmem [thread:$0]  %s342, 32, %s344, [#allocation24]
    $region89: #{_forward.1} parent=1 // pred_fallthru
      _
    // Predicated region
    $region90: #{_forward.1} parent=1 // pred_check
      _
    $region91: #{_forward.1} parent=1 // pred_check_branch
      %348 = sbr.rel (0) target = $region93
    $region92: #{_forward.1} parent=1 // pred_region
      _
    $region93: #{_forward.1} parent=1 // pred_fallthru
      _
    // Predicated region
    $region94: #{_forward.1} parent=1 // pred_check
      _
    $region95: #{_forward.1} parent=1 // pred_check_branch
      %350 = sbr.rel (0) target = $region97
    $region96: #{_forward.1} parent=1 // pred_region
      %352 = vsyncadd [#allocation27], 0
      %s354 = sshll.u32 %s47, 4
      %s355 = int_to_ptr.hbm [resolvable:$true] %s354
      %s356 = sshll.u32 [#allocation26], 4
      %s357 = int_to_ptr.vmem [resolvable:$true] %s356
      %359 = dma.hbm_to_vmem [thread:$0]  %s355, 16, %s357, [#allocation27]
    $region97: #{_forward.1} parent=1 // pred_fallthru
      _
    // Predicated region
    $region98: #{_forward.1} parent=1 // pred_check
      _
    $region99: #{_forward.1} parent=1 // pred_check_branch
      %361 = sbr.rel (0) target = $region101
    $region100: #{_forward.1} parent=1 // pred_region
      %363 = vsyncadd [#allocation27], 0
      %s364 = sshll.u32 %s49, 4
      %s365 = int_to_ptr.hbm [resolvable:$true] %s364
      %s366 = sshll.u32 [#allocation28], 4
      %s367 = int_to_ptr.vmem [resolvable:$true] %s366
      %372 = dma.hbm_to_vmem [thread:$0]  %s365, 96, %s367, [#allocation27], 32, 32, 2
    $region101: #{_forward.1} parent=1 // pred_fallthru
      _
    // Predicated region
    $region102: #{_forward.1} parent=1 // pred_check
      _
    $region103: #{_forward.1} parent=1 // pred_check_branch
      %374 = sbr.rel (0) target = $region105
    $region104: #{_forward.1} parent=1 // pred_region
      %376 = vsyncadd [#allocation30], 0
      %s377 = sshll.u32 %s51, 4
      %s378 = int_to_ptr.hbm [resolvable:$true] %s377
      %s379 = sshll.u32 [#allocation29], 4
      %s380 = int_to_ptr.vmem [resolvable:$true] %s379
      %385 = dma.hbm_to_vmem [thread:$0]  %s378, 3072, %s380, [#allocation30], 64, 64, 4
    $region105: #{_forward.1} parent=1 // pred_fallthru
      _
    // Predicated region
    $region106: #{_forward.1} parent=1 // pred_check
      _
    $region107: #{_forward.1} parent=1 // pred_check_branch
      %387 = sbr.rel (0) target = $region109
    $region108: #{_forward.1} parent=1 // pred_region
      %389 = vsyncadd [#allocation30], 0
      %s391 = sshll.u32 %s53, 4
      %s392 = int_to_ptr.hbm [resolvable:$true] %s391
      %s393 = sshll.u32 [#allocation31], 4
      %s394 = int_to_ptr.vmem [resolvable:$true] %s393
      %396 = dma.hbm_to_vmem [thread:$0]  %s392, 16, %s394, [#allocation30]
    $region109: #{_forward.1} parent=1 // pred_fallthru
      _
    // Predicated region
    $region110: #{_forward.1} parent=1 // pred_check
      _
    $region111: #{_forward.1} parent=1 // pred_check_branch
      %398 = sbr.rel (0) target = $region113
    $region112: #{_forward.1} parent=1 // pred_region
      %400 = vsyncadd [#allocation33], 0
      %s401 = sshll.u32 %s55, 4
      %s402 = int_to_ptr.hbm [resolvable:$true] %s401
      %s403 = sshll.u32 [#allocation32], 4
      %s404 = int_to_ptr.vmem [resolvable:$true] %s403
      %409 = dma.hbm_to_vmem [thread:$0]  %s402, 96, %s404, [#allocation33], 32, 32, 2
    $region113: #{_forward.1} parent=1 // pred_fallthru
      _
    // Predicated region
    $region114: #{_forward.1} parent=1 // pred_check
      _
    $region115: #{_forward.1} parent=1 // pred_check_branch
      %411 = sbr.rel (0) target = $region117
    $region116: #{_forward.1} parent=1 // pred_region
      %413 = vsyncadd [#allocation33], 0
      %s414 = sshll.u32 %s57, 4
      %s415 = int_to_ptr.hbm [resolvable:$true] %s414
      %s416 = sshll.u32 [#allocation34], 4
      %s417 = int_to_ptr.vmem [resolvable:$true] %s416
      %422 = dma.hbm_to_vmem [thread:$0]  %s415, 3072, %s417, [#allocation33], 64, 64, 4
    $region117: #{_forward.1} parent=1 // pred_fallthru
      _
    // Predicated region
    $region118: #{_forward.1} parent=1 // pred_check
      _
    $region119: #{_forward.1} parent=1 // pred_check_branch
      %424 = sbr.rel (0) target = $region121
    $region120: #{_forward.1} parent=1 // pred_region
      %426 = vsyncadd [#allocation36], 0
      %s428 = sshll.u32 %s59, 4
      %s429 = int_to_ptr.hbm [resolvable:$true] %s428
      %s430 = sshll.u32 [#allocation35], 4
      %s431 = int_to_ptr.vmem [resolvable:$true] %s430
      %433 = dma.hbm_to_vmem [thread:$0]  %s429, 16, %s431, [#allocation36]
    $region121: #{_forward.1} parent=1 // pred_fallthru
      _
    // Predicated region
    $region122: #{_forward.1} parent=1 // pred_check
      _
    $region123: #{_forward.1} parent=1 // pred_check_branch
      %435 = sbr.rel (0) target = $region125
    $region124: #{_forward.1} parent=1 // pred_region
      %437 = vsyncadd [#allocation36], 0
      %s438 = sshll.u32 %s61, 4
      %s439 = int_to_ptr.hbm [resolvable:$true] %s438
      %s440 = sshll.u32 [#allocation37], 4
      %s441 = int_to_ptr.vmem [resolvable:$true] %s440
      %446 = dma.hbm_to_vmem [thread:$0]  %s439, 96, %s441, [#allocation36], 32, 32, 2
    $region125: #{_forward.1} parent=1 // pred_fallthru
      _
    // Predicated region
    $region126: #{_forward.1} parent=1 // pred_check
      _
    $region127: #{_forward.1} parent=1 // pred_check_branch
      %448 = sbr.rel (0) target = $region129
    $region128: #{_forward.1} parent=1 // pred_region
      %450 = vsyncadd [#allocation39], 0
      %s451 = sshll.u32 %s63, 4
      %s452 = int_to_ptr.hbm [resolvable:$true] %s451
      %s453 = sshll.u32 [#allocation38], 4
      %s454 = int_to_ptr.vmem [resolvable:$true] %s453
      %459 = dma.hbm_to_vmem [thread:$0]  %s452, 3072, %s454, [#allocation39], 64, 64, 4
    $region129: #{_forward.1} parent=1 // pred_fallthru
      _
    // Predicated region
    $region130: #{_forward.1} parent=1 // pred_check
      _
    $region131: #{_forward.1} parent=1 // pred_check_branch
      %461 = sbr.rel (0) target = $region133
    $region132: #{_forward.1} parent=1 // pred_region
      %463 = vsyncadd [#allocation39], 0
      %s465 = sshll.u32 %s65, 4
      %s466 = int_to_ptr.hbm [resolvable:$true] %s465
      %s467 = sshll.u32 [#allocation40], 4
      %s468 = int_to_ptr.vmem [resolvable:$true] %s467
      %470 = dma.hbm_to_vmem [thread:$0]  %s466, 16, %s468, [#allocation39]
    $region133: #{_forward.1} parent=1 // pred_fallthru
      _
    // Predicated region
    $region134: #{_forward.1} parent=1 // pred_check
      _
    $region135: #{_forward.1} parent=1 // pred_check_branch
      %472 = sbr.rel (0) target = $region137
    $region136: #{_forward.1} parent=1 // pred_region
      %474 = vsyncadd [#allocation42], 0
      %s475 = sshll.u32 %s67, 4
      %s476 = int_to_ptr.hbm [resolvable:$true] %s475
      %s477 = sshll.u32 [#allocation41], 4
      %s478 = int_to_ptr.vmem [resolvable:$true] %s477
      %483 = dma.hbm_to_vmem [thread:$0]  %s476, 48, %s478, [#allocation42], 16, 16, 1
    $region137: #{_forward.1} parent=1 // pred_fallthru
      _
    // Predicated region
    $region138: #{_forward.1} parent=1 // pred_check
      _
    $region139: #{_forward.1} parent=1 // pred_check_branch
      %485 = sbr.rel (0) target = $region141
    $region140: #{_forward.1} parent=1 // pred_region
      %487 = vsyncadd [#allocation42], 0
      %s488 = sshll.u32 %s69, 4
      %s489 = int_to_ptr.hbm [resolvable:$true] %s488
      %s490 = sshll.u32 [#allocation43], 4
      %s491 = int_to_ptr.vmem [resolvable:$true] %s490
      %496 = dma.hbm_to_vmem [thread:$0]  %s489, 3072, %s491, [#allocation42], 64, 64, 4
    $region141: #{_forward.1} parent=1 // pred_fallthru
      _
    // Predicated region
    $region142: #{_forward.1} parent=1 // pred_check
      _
    $region143: #{_forward.1} parent=1 // pred_check_branch
      %498 = sbr.rel (0) target = $region145
    $region144: #{_forward.1} parent=1 // pred_region
      %500 = vsyncadd [#allocation45], 0
      %s502 = sshll.u32 %s71, 4
      %s503 = int_to_ptr.hbm [resolvable:$true] %s502
      %s504 = sshll.u32 [#allocation44], 4
      %s505 = int_to_ptr.vmem [resolvable:$true] %s504
      %507 = dma.hbm_to_vmem [thread:$0]  %s503, 16, %s505, [#allocation45]
    $region145: #{_forward.1} parent=1 // pred_fallthru
      _
    // Predicated region
    $region146: #{_forward.1} parent=1 // pred_check
      _
    $region147: #{_forward.1} parent=1 // pred_check_branch
      %509 = sbr.rel (0) target = $region149
    $region148: #{_forward.1} parent=1 // pred_region
      %511 = vsyncadd [#allocation45], 0
      %s513 = sshll.u32 %s73, 4
      %s514 = int_to_ptr.hbm [resolvable:$true] %s513
      %s515 = sshll.u32 [#allocation46], 4
      %s516 = int_to_ptr.vmem [resolvable:$true] %s515
      %518 = dma.hbm_to_vmem [thread:$0]  %s514, 16, %s516, [#allocation45]
    $region149: #{_forward.1} parent=1 // pred_fallthru
      _
    // Predicated region
    $region150: #{_forward.1} parent=1 // pred_check
      _
    $region151: #{_forward.1} parent=1 // pred_check_branch
      %520 = sbr.rel (0) target = $region153
    $region152: #{_forward.1} parent=1 // pred_region
      %522 = vsyncadd [#allocation48], 0
      %s523 = sshll.u32 %s75, 4
      %s524 = int_to_ptr.hbm [resolvable:$true] %s523
      %s525 = sshll.u32 [#allocation47], 4
      %s526 = int_to_ptr.vmem [resolvable:$true] %s525
      %531 = dma.hbm_to_vmem [thread:$0]  %s524, 1024, %s526, [#allocation48], 64, 64, 4
    $region153: #{_forward.1} parent=1 // pred_fallthru
      _
    // Predicated region
    $region154: #{_forward.1} parent=1 // pred_check
      _
    $region155: #{_forward.1} parent=1 // pred_check_branch
      %533 = sbr.rel (0) target = $region157
    $region156: #{_forward.1} parent=1 // pred_region
      %535 = vsyncadd [#allocation48], 0
      %s537 = sshll.u32 %s77, 4
      %s538 = int_to_ptr.hbm [resolvable:$true] %s537
      %s539 = sshll.u32 [#allocation49], 4
      %s540 = int_to_ptr.vmem [resolvable:$true] %s539
      %542 = dma.hbm_to_vmem [thread:$0]  %s538, 16, %s540, [#allocation48]
    $region157: #{_forward.1} parent=1 // pred_fallthru
      _
    // Predicated region
    $region158: #{_forward.1} parent=1 // pred_check
      _
    $region159: #{_forward.1} parent=1 // pred_check_branch
      %544 = sbr.rel (0) target = $region161
    $region160: #{_forward.1} parent=1 // pred_region
      _
    $region161: #{_forward.1} parent=1 // pred_fallthru
      _
    // Predicated region
    $region162: #{_forward.1} parent=1 // pred_check
      _
    $region163: #{_forward.1} parent=1 // pred_check_branch
      %546 = sbr.rel (0) target = $region165
    $region164: #{_forward.1} parent=1 // pred_region
      %548 = vsyncadd [#allocation51], 0
      %s549 = sshll.u32 %s81, 4
      %s550 = int_to_ptr.hbm [resolvable:$true] %s549
      %s551 = sshll.u32 [#allocation50], 4
      %s552 = int_to_ptr.vmem [resolvable:$true] %s551
      %557 = dma.hbm_to_vmem [thread:$0]  %s550, 3072, %s552, [#allocation51], 64, 64, 4
    $region165: #{_forward.1} parent=1 // pred_fallthru
      _
    // Predicated region
    $region166: #{_forward.1} parent=1 // pred_check
      _
    $region167: #{_forward.1} parent=1 // pred_check_branch
      %559 = sbr.rel (0) target = $region169
    $region168: #{_forward.1} parent=1 // pred_region
      %561 = vsyncadd [#allocation51], 0
      %s563 = sshll.u32 %s83, 4
      %s564 = int_to_ptr.hbm [resolvable:$true] %s563
      %s565 = sshll.u32 [#allocation52], 4
      %s566 = int_to_ptr.vmem [resolvable:$true] %s565
      %568 = dma.hbm_to_vmem [thread:$0]  %s564, 16, %s566, [#allocation51]
    $region169: #{_forward.1} parent=1 // pred_fallthru
      _
    // Predicated region
    $region170: #{_forward.1} parent=1 // pred_check
      _
    $region171: #{_forward.1} parent=1 // pred_check_branch
      %570 = sbr.rel (0) target = $region173
    $region172: #{_forward.1} parent=1 // pred_region
      _
    $region173: #{_forward.1} parent=1 // pred_fallthru
      _
    // Predicated region
    $region174: #{_forward.1} parent=1 // pred_check
      _
    $region175: #{_forward.1} parent=1 // pred_check_branch
      %572 = sbr.rel (0) target = $region177
    $region176: #{_forward.1} parent=1 // pred_region
      %574 = vsyncadd [#allocation54], 0
      %s575 = sshll.u32 %s87, 4
      %s576 = int_to_ptr.hbm [resolvable:$true] %s575
      %s577 = sshll.u32 [#allocation53], 4
      %s578 = int_to_ptr.vmem [resolvable:$true] %s577
      %583 = dma.hbm_to_vmem [thread:$0]  %s576, 3072, %s578, [#allocation54], 64, 64, 4
    $region177: #{_forward.1} parent=1 // pred_fallthru
      _
    // Predicated region
    $region178: #{_forward.1} parent=1 // pred_check
      _
    $region179: #{_forward.1} parent=1 // pred_check_branch
      %585 = sbr.rel (0) target = $region181
    $region180: #{_forward.1} parent=1 // pred_region
      %587 = vsyncadd [#allocation54], 0
      %s589 = sshll.u32 %s89, 4
      %s590 = int_to_ptr.hbm [resolvable:$true] %s589
      %s591 = sshll.u32 [#allocation55], 4
      %s592 = int_to_ptr.vmem [resolvable:$true] %s591
      %594 = dma.hbm_to_vmem [thread:$0]  %s590, 16, %s592, [#allocation54]
    $region181: #{_forward.1} parent=1 // pred_fallthru
      _
    // Predicated region
    $region182: #{_forward.1} parent=1 // pred_check
      _
    $region183: #{_forward.1} parent=1 // pred_check_branch
      %596 = sbr.rel (0) target = $region185
    $region184: #{_forward.1} parent=1 // pred_region
      _
    $region185: #{_forward.1} parent=1 // pred_fallthru
      _
    // Predicated region
    $region186: #{_forward.1} parent=1 // pred_check
      _
    $region187: #{_forward.1} parent=1 // pred_check_branch
      %598 = sbr.rel (0) target = $region189
    $region188: #{_forward.1} parent=1 // pred_region
      %600 = vsyncadd [#allocation57], 0
      %s601 = sshll.u32 %s93, 4
      %s602 = int_to_ptr.hbm [resolvable:$true] %s601
      %s603 = sshll.u32 [#allocation56], 4
      %s604 = int_to_ptr.vmem [resolvable:$true] %s603
      %609 = dma.hbm_to_vmem [thread:$0]  %s602, 3072, %s604, [#allocation57], 64, 64, 4
    $region189: #{_forward.1} parent=1 // pred_fallthru
      _
    // Predicated region
    $region190: #{_forward.1} parent=1 // pred_check
      _
    $region191: #{_forward.1} parent=1 // pred_check_branch
      %611 = sbr.rel (0) target = $region193
    $region192: #{_forward.1} parent=1 // pred_region
      %613 = vsyncadd [#allocation57], 0
      %s615 = sshll.u32 %s95, 4
      %s616 = int_to_ptr.hbm [resolvable:$true] %s615
      %s617 = sshll.u32 [#allocation58], 4
      %s618 = int_to_ptr.vmem [resolvable:$true] %s617
      %620 = dma.hbm_to_vmem [thread:$0]  %s616, 16, %s618, [#allocation57]
    $region193: #{_forward.1} parent=1 // pred_fallthru
      _
    // Predicated region
    $region194: #{_forward.1} parent=1 // pred_check
      _
    $region195: #{_forward.1} parent=1 // pred_check_branch
      %622 = sbr.rel (0) target = $region197
    $region196: #{_forward.1} parent=1 // pred_region
      _
    $region197: #{_forward.1} parent=1 // pred_fallthru
      _
    // Predicated region
    $region198: #{_forward.1} parent=1 // pred_check
      _
    $region199: #{_forward.1} parent=1 // pred_check_branch
      %624 = sbr.rel (0) target = $region201
    $region200: #{_forward.1} parent=1 // pred_region
      %626 = vsyncadd [#allocation60], 0
      %s627 = sshll.u32 %s99, 4
      %s628 = int_to_ptr.hbm [resolvable:$true] %s627
      %s629 = sshll.u32 [#allocation59], 4
      %s630 = int_to_ptr.vmem [resolvable:$true] %s629
      %635 = dma.hbm_to_vmem [thread:$0]  %s628, 2048, %s630, [#allocation60], 64, 64, 4
    $region201: #{_forward.1} parent=1 // pred_fallthru
      _
    // Predicated region
    $region202: #{_forward.1} parent=1 // pred_check
      _
    $region203: #{_forward.1} parent=1 // pred_check_branch
      %637 = sbr.rel (0) target = $region205
    $region204: #{_forward.1} parent=1 // pred_region
      %639 = vsyncadd [#allocation60], 0
      %s641 = sshll.u32 %s101, 4
      %s642 = int_to_ptr.hbm [resolvable:$true] %s641
      %s643 = sshll.u32 [#allocation61], 4
      %s644 = int_to_ptr.vmem [resolvable:$true] %s643
      %646 = dma.hbm_to_vmem [thread:$0]  %s642, 16, %s644, [#allocation60]
    $region205: #{_forward.1} parent=1 // pred_fallthru
      _
    // Predicated region
    $region206: #{_forward.1} parent=1 // pred_check
      _
    $region207: #{_forward.1} parent=1 // pred_check_branch
      %648 = sbr.rel (0) target = $region209
    $region208: #{_forward.1} parent=1 // pred_region
      %650 = vsyncadd [#allocation63], 0
      %s652 = sshll.u32 %s103, 4
      %s653 = int_to_ptr.hbm [resolvable:$true] %s652
      %s654 = sshll.u32 [#allocation62], 4
      %s655 = int_to_ptr.vmem [resolvable:$true] %s654
      %657 = dma.hbm_to_vmem [thread:$0]  %s653, 16, %s655, [#allocation63]
    $region209: #{_forward.1} parent=1 // pred_fallthru
      _
    // Predicated region
    $region210: #{_forward.1} parent=1 // pred_check
      _
    $region211: #{_forward.1} parent=1 // pred_check_branch
      %659 = sbr.rel (0) target = $region213
    $region212: #{_forward.1} parent=1 // pred_region
      %661 = vsyncadd [#allocation63], 0
      %s662 = sshll.u32 %s105, 4
      %s663 = int_to_ptr.hbm [resolvable:$true] %s662
      %s664 = sshll.u32 [#allocation64], 4
      %s665 = int_to_ptr.vmem [resolvable:$true] %s664
      %670 = dma.hbm_to_vmem [thread:$0]  %s663, 1024, %s665, [#allocation63], 64, 64, 4
    $region213: #{_forward.1} parent=1 // pred_fallthru
      _
    // Predicated region
    $region214: #{_forward.1} parent=1 // pred_check
      _
    $region215: #{_forward.1} parent=1 // pred_check_branch
      %672 = sbr.rel (0) target = $region217
    $region216: #{_forward.1} parent=1 // pred_region
      %674 = vsyncadd [#allocation66], 0
      %s676 = sshll.u32 %s107, 4
      %s677 = int_to_ptr.hbm [resolvable:$true] %s676
      %s678 = sshll.u32 [#allocation65], 4
      %s679 = int_to_ptr.vmem [resolvable:$true] %s678
      %681 = dma.hbm_to_vmem [thread:$0]  %s677, 16, %s679, [#allocation66]
    $region217: #{_forward.1} parent=1 // pred_fallthru
      _
    // Predicated region
    $region218: #{_forward.1} parent=1 // pred_check
      _
    $region219: #{_forward.1} parent=1 // pred_check_branch
      %683 = sbr.rel (0) target = $region221
    $region220: #{_forward.1} parent=1 // pred_region
      _
    $region221: #{_forward.1} parent=1 // pred_fallthru
      _
    // Predicated region
    $region222: #{_forward.1} parent=1 // pred_check
      _
    $region223: #{_forward.1} parent=1 // pred_check_branch
      %685 = sbr.rel (0) target = $region225
    $region224: #{_forward.1} parent=1 // pred_region
      %687 = vsyncadd [#allocation66], 0
      %s688 = sshll.u32 %s111, 4
      %s689 = int_to_ptr.hbm [resolvable:$true] %s688
      %s690 = sshll.u32 [#allocation67], 4
      %s691 = int_to_ptr.vmem [resolvable:$true] %s690
      %696 = dma.hbm_to_vmem [thread:$0]  %s689, 1024, %s691, [#allocation66], 64, 64, 4
    $region225: #{_forward.1} parent=1 // pred_fallthru
      _
    // Predicated region
    $region226: #{_forward.1} parent=1 // pred_check
      _
    $region227: #{_forward.1} parent=1 // pred_check_branch
      %698 = sbr.rel (0) target = $region229
    $region228: #{_forward.1} parent=1 // pred_region
      %700 = vsyncadd [#allocation69], 0
      %s702 = sshll.u32 %s113, 4
      %s703 = int_to_ptr.hbm [resolvable:$true] %s702
      %s704 = sshll.u32 [#allocation68], 4
      %s705 = int_to_ptr.vmem [resolvable:$true] %s704
      %707 = dma.hbm_to_vmem [thread:$0]  %s703, 16, %s705, [#allocation69]
    $region229: #{_forward.1} parent=1 // pred_fallthru
      _
    // Predicated region
    $region230: #{_forward.1} parent=1 // pred_check
      _
    $region231: #{_forward.1} parent=1 // pred_check_branch
      %709 = sbr.rel (0) target = $region233
    $region232: #{_forward.1} parent=1 // pred_region
      _
    $region233: #{_forward.1} parent=1 // pred_fallthru
      _
    // Predicated region
    $region234: #{_forward.1} parent=1 // pred_check
      _
    $region235: #{_forward.1} parent=1 // pred_check_branch
      %711 = sbr.rel (0) target = $region237
    $region236: #{_forward.1} parent=1 // pred_region
      %713 = vsyncadd [#allocation69], 0
      %s714 = sshll.u32 %s117, 4
      %s715 = int_to_ptr.hbm [resolvable:$true] %s714
      %s716 = sshll.u32 [#allocation70], 4
      %s717 = int_to_ptr.vmem [resolvable:$true] %s716
      %722 = dma.hbm_to_vmem [thread:$0]  %s715, 1024, %s717, [#allocation69], 64, 64, 4
    $region237: #{_forward.1} parent=1 // pred_fallthru
      _
    // Predicated region
    $region238: #{_forward.1} parent=1 // pred_check
      _
    $region239: #{_forward.1} parent=1 // pred_check_branch
      %724 = sbr.rel (0) target = $region241
    $region240: #{_forward.1} parent=1 // pred_region
      %726 = vsyncadd [#allocation72], 0
      %s728 = sshll.u32 %s119, 4
      %s729 = int_to_ptr.hbm [resolvable:$true] %s728
      %s730 = sshll.u32 [#allocation71], 4
      %s731 = int_to_ptr.vmem [resolvable:$true] %s730
      %733 = dma.hbm_to_vmem [thread:$0]  %s729, 16, %s731, [#allocation72]
    $region241: #{_forward.1} parent=1 // pred_fallthru
      _
    // Predicated region
    $region242: #{_forward.1} parent=1 // pred_check
      _
    $region243: #{_forward.1} parent=1 // pred_check_branch
      %735 = sbr.rel (0) target = $region245
    $region244: #{_forward.1} parent=1 // pred_region
      _
    $region245: #{_forward.1} parent=1 // pred_fallthru
      _
    // Predicated region
    $region246: #{_forward.1} parent=1 // pred_check
      _
    $region247: #{_forward.1} parent=1 // pred_check_branch
      %737 = sbr.rel (0) target = $region249
    $region248: #{_forward.1} parent=1 // pred_region
      %739 = vsyncadd [#allocation72], 0
      %s740 = sshll.u32 %s123, 4
      %s741 = int_to_ptr.hbm [resolvable:$true] %s740
      %s742 = sshll.u32 [#allocation73], 4
      %s743 = int_to_ptr.vmem [resolvable:$true] %s742
      %748 = dma.hbm_to_vmem [thread:$0]  %s741, 1024, %s743, [#allocation72], 64, 64, 4
    $region249: #{_forward.1} parent=1 // pred_fallthru
      _
    // Predicated region
    $region250: #{_forward.1} parent=1 // pred_check
      _
    $region251: #{_forward.1} parent=1 // pred_check_branch
      %750 = sbr.rel (0) target = $region253
    $region252: #{_forward.1} parent=1 // pred_region
      %752 = vsyncadd [#allocation75], 0
      %s754 = sshll.u32 %s125, 4
      %s755 = int_to_ptr.hbm [resolvable:$true] %s754
      %s756 = sshll.u32 [#allocation74], 4
      %s757 = int_to_ptr.vmem [resolvable:$true] %s756
      %759 = dma.hbm_to_vmem [thread:$0]  %s755, 16, %s757, [#allocation75]
    $region253: #{_forward.1} parent=1 // pred_fallthru
      _
    // Predicated region
    $region254: #{_forward.1} parent=1 // pred_check
      _
    $region255: #{_forward.1} parent=1 // pred_check_branch
      %761 = sbr.rel (0) target = $region257
    $region256: #{_forward.1} parent=1 // pred_region
      _
    $region257: #{_forward.1} parent=1 // pred_fallthru
      _
    // Predicated region
    $region258: #{_forward.1} parent=1 // pred_check
      _
    $region259: #{_forward.1} parent=1 // pred_check_branch
      %763 = sbr.rel (0) target = $region261
    $region260: #{_forward.1} parent=1 // pred_region
      %765 = vsyncadd [#allocation75], 0
      %s766 = sshll.u32 %s129, 4
      %s767 = int_to_ptr.hbm [resolvable:$true] %s766
      %s768 = sshll.u32 [#allocation76], 4
      %s769 = int_to_ptr.vmem [resolvable:$true] %s768
      %774 = dma.hbm_to_vmem [thread:$0]  %s767, 1024, %s769, [#allocation75], 64, 64, 4
    $region261: #{_forward.1} parent=1 // pred_fallthru
      _
    // Predicated region
    $region262: #{_forward.1} parent=1 // pred_check
      _
    $region263: #{_forward.1} parent=1 // pred_check_branch
      %776 = sbr.rel (0) target = $region265
    $region264: #{_forward.1} parent=1 // pred_region
      %778 = dma.done [#allocation7], 896
    $region265: #{_forward.1} parent=1 // pred_fallthru
      _
    // Predicated region
    $region266: #{_forward.1} parent=1 // pred_check
      _
    $region267: #{_forward.1} parent=1 // pred_check_branch
      %780 = sbr.rel (0) target = $region269
    $region268: #{_forward.1} parent=1 // pred_region
      %782 = dma.done [#allocation9], 21504
    $region269: #{_forward.1} parent=1 // pred_fallthru
      _
    // Predicated region
    $region270: #{_forward.1} parent=1 // pred_check
      _
    $region271: #{_forward.1} parent=1 // pred_check_branch
      %784 = sbr.rel (0) target = $region273
    $region272: #{_forward.1} parent=1 // pred_region
      %786 = dma.done [#allocation9], 192
    $region273: #{_forward.1} parent=1 // pred_fallthru
      _
    // Predicated region
    $region274: #{_forward.1} parent=1 // pred_check
      _
    $region275: #{_forward.1} parent=1 // pred_check_branch
      %788 = sbr.rel (0) target = $region277
    $region276: #{_forward.1} parent=1 // pred_region
      %790 = dma.done [#allocation12], 192
    $region277: #{_forward.1} parent=1 // pred_fallthru
      _
    // Predicated region
    $region278: #{_forward.1} parent=1 // pred_check
      _
    $region279: #{_forward.1} parent=1 // pred_check_branch
      %792 = sbr.rel (0) target = $region281
    $region280: #{_forward.1} parent=1 // pred_region
      %794 = dma.done [#allocation12], 16
    $region281: #{_forward.1} parent=1 // pred_fallthru
      _
    // Predicated region
    $region282: #{_forward.1} parent=1 // pred_check
      _
    $region283: #{_forward.1} parent=1 // pred_check_branch
      %796 = sbr.rel (0) target = $region285
    $region284: #{_forward.1} parent=1 // pred_region
      %798 = dma.done [#allocation15], 192
    $region285: #{_forward.1} parent=1 // pred_fallthru
      _
    // Predicated region
    $region286: #{_forward.1} parent=1 // pred_check
      _
    $region287: #{_forward.1} parent=1 // pred_check_branch
      %800 = sbr.rel (0) target = $region289
    $region288: #{_forward.1} parent=1 // pred_region
      %802 = dma.done [#allocation15], 192
    $region289: #{_forward.1} parent=1 // pred_fallthru
      _
    // Predicated region
    $region290: #{_forward.1} parent=1 // pred_check
      _
    $region291: #{_forward.1} parent=1 // pred_check_branch
      %804 = sbr.rel (0) target = $region293
    $region292: #{_forward.1} parent=1 // pred_region
      %806 = dma.done [#allocation18], 192
    $region293: #{_forward.1} parent=1 // pred_fallthru
      _
    // Predicated region
    $region294: #{_forward.1} parent=1 // pred_check
      _
    $region295: #{_forward.1} parent=1 // pred_check_branch
      %808 = sbr.rel (0) target = $region297
    $region296: #{_forward.1} parent=1 // pred_region
      %810 = dma.done [#allocation18], 16
    $region297: #{_forward.1} parent=1 // pred_fallthru
      _
    // Predicated region
    $region298: #{_forward.1} parent=1 // pred_check
      _
    $region299: #{_forward.1} parent=1 // pred_check_branch
      %812 = sbr.rel (0) target = $region301
    $region300: #{_forward.1} parent=1 // pred_region
      %814 = dma.done [#allocation21], 96
    $region301: #{_forward.1} parent=1 // pred_fallthru
      _
    // Predicated region
    $region302: #{_forward.1} parent=1 // pred_check
      _
    $region303: #{_forward.1} parent=1 // pred_check_branch
      %816 = sbr.rel (0) target = $region305
    $region304: #{_forward.1} parent=1 // pred_region
      %818 = dma.done [#allocation21], 3072
    $region305: #{_forward.1} parent=1 // pred_fallthru
      _
    // Predicated region
    $region306: #{_forward.1} parent=1 // pred_check
      _
    $region307: #{_forward.1} parent=1 // pred_check_branch
      %820 = sbr.rel (0) target = $region309
    $region308: #{_forward.1} parent=1 // pred_region
      %822 = dma.done [#allocation24], 16
    $region309: #{_forward.1} parent=1 // pred_fallthru
      _
    // Predicated region
    $region310: #{_forward.1} parent=1 // pred_check
      _
    $region311: #{_forward.1} parent=1 // pred_check_branch
      %824 = sbr.rel (0) target = $region313
    $region312: #{_forward.1} parent=1 // pred_region
      %826 = dma.done [#allocation24], 32
    $region313: #{_forward.1} parent=1 // pred_fallthru
      _
    // Predicated region
    $region314: #{_forward.1} parent=1 // pred_check
      _
    $region315: #{_forward.1} parent=1 // pred_check_branch
      %828 = sbr.rel (0) target = $region317
    $region316: #{_forward.1} parent=1 // pred_region
      %830 = dma.done [#allocation27], 16
    $region317: #{_forward.1} parent=1 // pred_fallthru
      _
    // Predicated region
    $region318: #{_forward.1} parent=1 // pred_check
      _
    $region319: #{_forward.1} parent=1 // pred_check_branch
      %832 = sbr.rel (0) target = $region321
    $region320: #{_forward.1} parent=1 // pred_region
      %834 = dma.done [#allocation27], 96
    $region321: #{_forward.1} parent=1 // pred_fallthru
      _
    // Predicated region
    $region322: #{_forward.1} parent=1 // pred_check
      _
    $region323: #{_forward.1} parent=1 // pred_check_branch
      %836 = sbr.rel (0) target = $region325
    $region324: #{_forward.1} parent=1 // pred_region
      %838 = dma.done [#allocation30], 3072
    $region325: #{_forward.1} parent=1 // pred_fallthru
      _
    // Predicated region
    $region326: #{_forward.1} parent=1 // pred_check
      _
    $region327: #{_forward.1} parent=1 // pred_check_branch
      %840 = sbr.rel (0) target = $region329
    $region328: #{_forward.1} parent=1 // pred_region
      %842 = dma.done [#allocation30], 16
    $region329: #{_forward.1} parent=1 // pred_fallthru
      _
    // Predicated region
    $region330: #{_forward.1} parent=1 // pred_check
      _
    $region331: #{_forward.1} parent=1 // pred_check_branch
      %844 = sbr.rel (0) target = $region333
    $region332: #{_forward.1} parent=1 // pred_region
      %846 = dma.done [#allocation33], 96
    $region333: #{_forward.1} parent=1 // pred_fallthru
      _
    // Predicated region
    $region334: #{_forward.1} parent=1 // pred_check
      _
    $region335: #{_forward.1} parent=1 // pred_check_branch
      %848 = sbr.rel (0) target = $region337
    $region336: #{_forward.1} parent=1 // pred_region
      %850 = dma.done [#allocation33], 3072
    $region337: #{_forward.1} parent=1 // pred_fallthru
      _
    // Predicated region
    $region338: #{_forward.1} parent=1 // pred_check
      _
    $region339: #{_forward.1} parent=1 // pred_check_branch
      %852 = sbr.rel (0) target = $region341
    $region340: #{_forward.1} parent=1 // pred_region
      %854 = dma.done [#allocation36], 16
    $region341: #{_forward.1} parent=1 // pred_fallthru
      _
    // Predicated region
    $region342: #{_forward.1} parent=1 // pred_check
      _
    $region343: #{_forward.1} parent=1 // pred_check_branch
      %856 = sbr.rel (0) target = $region345
    $region344: #{_forward.1} parent=1 // pred_region
      %858 = dma.done [#allocation36], 96
    $region345: #{_forward.1} parent=1 // pred_fallthru
      _
    // Predicated region
    $region346: #{_forward.1} parent=1 // pred_check
      _
    $region347: #{_forward.1} parent=1 // pred_check_branch
      %860 = sbr.rel (0) target = $region349
    $region348: #{_forward.1} parent=1 // pred_region
      %862 = dma.done [#allocation39], 3072
    $region349: #{_forward.1} parent=1 // pred_fallthru
      _
    // Predicated region
    $region350: #{_forward.1} parent=1 // pred_check
      _
    $region351: #{_forward.1} parent=1 // pred_check_branch
      %864 = sbr.rel (0) target = $region353
    $region352: #{_forward.1} parent=1 // pred_region
      %866 = dma.done [#allocation39], 16
    $region353: #{_forward.1} parent=1 // pred_fallthru
      _
    // Predicated region
    $region354: #{_forward.1} parent=1 // pred_check
      _
    $region355: #{_forward.1} parent=1 // pred_check_branch
      %868 = sbr.rel (0) target = $region357
    $region356: #{_forward.1} parent=1 // pred_region
      %870 = dma.done [#allocation42], 48
    $region357: #{_forward.1} parent=1 // pred_fallthru
      _
    // Predicated region
    $region358: #{_forward.1} parent=1 // pred_check
      _
    $region359: #{_forward.1} parent=1 // pred_check_branch
      %872 = sbr.rel (0) target = $region361
    $region360: #{_forward.1} parent=1 // pred_region
      %874 = dma.done [#allocation42], 3072
    $region361: #{_forward.1} parent=1 // pred_fallthru
      _
    // Predicated region
    $region362: #{_forward.1} parent=1 // pred_check
      _
    $region363: #{_forward.1} parent=1 // pred_check_branch
      %876 = sbr.rel (0) target = $region365
    $region364: #{_forward.1} parent=1 // pred_region
      %878 = dma.done [#allocation45], 16
    $region365: #{_forward.1} parent=1 // pred_fallthru
      _
    // Predicated region
    $region366: #{_forward.1} parent=1 // pred_check
      _
    $region367: #{_forward.1} parent=1 // pred_check_branch
      %880 = sbr.rel (0) target = $region369
    $region368: #{_forward.1} parent=1 // pred_region
      %882 = dma.done [#allocation45], 16
    $region369: #{_forward.1} parent=1 // pred_fallthru
      _
    // Predicated region
    $region370: #{_forward.1} parent=1 // pred_check
      _
    $region371: #{_forward.1} parent=1 // pred_check_branch
      %884 = sbr.rel (0) target = $region373
    $region372: #{_forward.1} parent=1 // pred_region
      %886 = dma.done [#allocation48], 1024
    $region373: #{_forward.1} parent=1 // pred_fallthru
      _
    // Predicated region
    $region374: #{_forward.1} parent=1 // pred_check
      _
    $region375: #{_forward.1} parent=1 // pred_check_branch
      %888 = sbr.rel (0) target = $region377
    $region376: #{_forward.1} parent=1 // pred_region
      %890 = dma.done [#allocation48], 16
    $region377: #{_forward.1} parent=1 // pred_fallthru
      _
    // Predicated region
    $region378: #{_forward.1} parent=1 // pred_check
      _
    $region379: #{_forward.1} parent=1 // pred_check_branch
      %892 = sbr.rel (0) target = $region381
    $region380: #{_forward.1} parent=1 // pred_region
      %894 = dma.done [#allocation51], 3072
    $region381: #{_forward.1} parent=1 // pred_fallthru
      _
    // Predicated region
    $region382: #{_forward.1} parent=1 // pred_check
      _
    $region383: #{_forward.1} parent=1 // pred_check_branch
      %896 = sbr.rel (0) target = $region385
    $region384: #{_forward.1} parent=1 // pred_region
      %898 = dma.done [#allocation51], 16
    $region385: #{_forward.1} parent=1 // pred_fallthru
      _
    // Predicated region
    $region386: #{_forward.1} parent=1 // pred_check
      _
    $region387: #{_forward.1} parent=1 // pred_check_branch
      %900 = sbr.rel (0) target = $region389
    $region388: #{_forward.1} parent=1 // pred_region
      %902 = dma.done [#allocation54], 3072
    $region389: #{_forward.1} parent=1 // pred_fallthru
      _
    // Predicated region
    $region390: #{_forward.1} parent=1 // pred_check
      _
    $region391: #{_forward.1} parent=1 // pred_check_branch
      %904 = sbr.rel (0) target = $region393
    $region392: #{_forward.1} parent=1 // pred_region
      %906 = dma.done [#allocation54], 16
    $region393: #{_forward.1} parent=1 // pred_fallthru
      _
    // Predicated region
    $region394: #{_forward.1} parent=1 // pred_check
      _
    $region395: #{_forward.1} parent=1 // pred_check_branch
      %908 = sbr.rel (0) target = $region397
    $region396: #{_forward.1} parent=1 // pred_region
      %910 = dma.done [#allocation57], 3072
    $region397: #{_forward.1} parent=1 // pred_fallthru
      _
    // Predicated region
    $region398: #{_forward.1} parent=1 // pred_check
      _
    $region399: #{_forward.1} parent=1 // pred_check_branch
      %912 = sbr.rel (0) target = $region401
    $region400: #{_forward.1} parent=1 // pred_region
      %914 = dma.done [#allocation57], 16
    $region401: #{_forward.1} parent=1 // pred_fallthru
      _
    // Predicated region
    $region402: #{_forward.1} parent=1 // pred_check
      _
    $region403: #{_forward.1} parent=1 // pred_check_branch
      %916 = sbr.rel (0) target = $region405
    $region404: #{_forward.1} parent=1 // pred_region
      %918 = dma.done [#allocation60], 2048
    $region405: #{_forward.1} parent=1 // pred_fallthru
      _
    // Predicated region
    $region406: #{_forward.1} parent=1 // pred_check
      _
    $region407: #{_forward.1} parent=1 // pred_check_branch
      %920 = sbr.rel (0) target = $region409
    $region408: #{_forward.1} parent=1 // pred_region
      %922 = dma.done [#allocation60], 16
    $region409: #{_forward.1} parent=1 // pred_fallthru
      _
    // Predicated region
    $region410: #{_forward.1} parent=1 // pred_check
      _
    $region411: #{_forward.1} parent=1 // pred_check_branch
      %924 = sbr.rel (0) target = $region413
    $region412: #{_forward.1} parent=1 // pred_region
      %926 = dma.done [#allocation63], 16
    $region413: #{_forward.1} parent=1 // pred_fallthru
      _
    // Predicated region
    $region414: #{_forward.1} parent=1 // pred_check
      _
    $region415: #{_forward.1} parent=1 // pred_check_branch
      %928 = sbr.rel (0) target = $region417
    $region416: #{_forward.1} parent=1 // pred_region
      %930 = dma.done [#allocation63], 1024
    $region417: #{_forward.1} parent=1 // pred_fallthru
      _
    // Predicated region
    $region418: #{_forward.1} parent=1 // pred_check
      _
    $region419: #{_forward.1} parent=1 // pred_check_branch
      %932 = sbr.rel (0) target = $region421
    $region420: #{_forward.1} parent=1 // pred_region
      %934 = dma.done [#allocation66], 16
    $region421: #{_forward.1} parent=1 // pred_fallthru
      _
    // Predicated region
    $region422: #{_forward.1} parent=1 // pred_check
      _
    $region423: #{_forward.1} parent=1 // pred_check_branch
      %936 = sbr.rel (0) target = $region425
    $region424: #{_forward.1} parent=1 // pred_region
      %938 = dma.done [#allocation66], 1024
    $region425: #{_forward.1} parent=1 // pred_fallthru
      _
    // Predicated region
    $region426: #{_forward.1} parent=1 // pred_check
      _
    $region427: #{_forward.1} parent=1 // pred_check_branch
      %940 = sbr.rel (0) target = $region429
    $region428: #{_forward.1} parent=1 // pred_region
      %942 = dma.done [#allocation69], 16
    $region429: #{_forward.1} parent=1 // pred_fallthru
      _
    // Predicated region
    $region430: #{_forward.1} parent=1 // pred_check
      _
    $region431: #{_forward.1} parent=1 // pred_check_branch
      %944 = sbr.rel (0) target = $region433
    $region432: #{_forward.1} parent=1 // pred_region
      %946 = dma.done [#allocation69], 1024
    $region433: #{_forward.1} parent=1 // pred_fallthru
      _
    // Predicated region
    $region434: #{_forward.1} parent=1 // pred_check
      _
    $region435: #{_forward.1} parent=1 // pred_check_branch
      %948 = sbr.rel (0) target = $region437
    $region436: #{_forward.1} parent=1 // pred_region
      %950 = dma.done [#allocation72], 16
    $region437: #{_forward.1} parent=1 // pred_fallthru
      _
    // Predicated region
    $region438: #{_forward.1} parent=1 // pred_check
      _
    $region439: #{_forward.1} parent=1 // pred_check_branch
      %952 = sbr.rel (0) target = $region441
    $region440: #{_forward.1} parent=1 // pred_region
      %954 = dma.done [#allocation72], 1024
    $region441: #{_forward.1} parent=1 // pred_fallthru
      _
    // Predicated region
    $region442: #{_forward.1} parent=1 // pred_check
      _
    $region443: #{_forward.1} parent=1 // pred_check_branch
      %956 = sbr.rel (0) target = $region445
    $region444: #{_forward.1} parent=1 // pred_region
      %958 = dma.done [#allocation75], 16
    $region445: #{_forward.1} parent=1 // pred_fallthru
      _
    // Predicated region
    $region446: #{_forward.1} parent=1 // pred_check
      _
    $region447: #{_forward.1} parent=1 // pred_check_branch
      %960 = sbr.rel (0) target = $region449
    $region448: #{_forward.1} parent=1 // pred_region
      %962 = dma.done [#allocation75], 1024
    $region449: #{_forward.1} parent=1 // pred_fallthru
      _
    %v964 = vld [vmem:[%s1] sm:$0xff]
    %v965 = vld [vmem:[%s1 + $0x8] sm:$0xff]
    %v966 = vld [vmem:[%s1 + $0x10] sm:$0xff]
    %v967 = vld [vmem:[%s1 + $0x18] sm:$0xff]
    %v968 = vld [vmem:[%s1 + $0x20] sm:$0xff]
    %v969 = vld [vmem:[%s1 + $0x28] sm:$0xff]
    %v970 = vld [vmem:[%s1 + $0x30] sm:$0xff]
    %v971 = vld [vmem:[%s1 + $0x38] sm:$0xff]
    %v972 = vld [vmem:[%s7] sm:$0x3]
    %v973 = vld [vmem:[#allocation6] sm:$0xf]
    %v974 = vld [vmem:[#allocation6 + $0x4] sm:$0xf]
    %v975 = vpack.c.bf16 %v966, %v964
    %v976 = vpack.c.bf16 %v967, %v965
    %v977 = vpack.c.bf16 %v970, %v968
    %v978 = vpack.c.bf16 %v971, %v969
    %v981 = vunpack.c.l.b16 %v973
    %v982 = vunpack.c.l.b16 %v974
    %v983 = vpack.c.b16 %v982, %v981
    %vm984 = vcmask 261120
    %v986 = vsel %vm984, %v983, 0
    %988 = vmatpush.bf16.msra.mxu0 0
    %989 = vmatpush.bf16.msra.mxu0 0
    %990 = vmatpush.bf16.msra.mxu0 0
    %991 = vmatpush.bf16.msra.mxu0 0
    %992 = vmatpush.bf16.msra.mxu0 0
    %993 = vmatpush.bf16.msra.mxu0 0
    %994 = vmatpush.bf16.msra.mxu0 %v977
    %995 = vmatpush.bf16.msra.mxu0 %v975
    %996 = vmatmul.bf16.gmra.mxu0 %v986
    %v997 = vpop.f32.mrf.mxu0
    %v998 = vadd.f32 0.0, %v997
    %v999 = vpop.f32.mrf.mxu0
    %v1000 = vadd.f32 0.0, %v999
    %1001 = vdwg.mxu0
    %1002 = vmatpush.bf16.msra.mxu0 0
    %1003 = vmatpush.bf16.msra.mxu0 0
    %1004 = vmatpush.bf16.msra.mxu0 0
    %1005 = vmatpush.bf16.msra.mxu0 0
    %1006 = vmatpush.bf16.msra.mxu0 0
    %1007 = vmatpush.bf16.msra.mxu0 0
    %1008 = vmatpush.bf16.msra.mxu0 %v978
    %1009 = vmatpush.bf16.msra.mxu0 %v976
    %1010 = vmatmul.bf16.gmra.mxu0 %v986
    %v1011 = vpop.f32.mrf.mxu0
    %v1012 = vadd.f32 0.0, %v1011
    %v1013 = vpop.f32.mrf.mxu0
    %v1014 = vadd.f32 0.0, %v1013
    %1015 = vdwg.mxu0
    %v1016 = vld [vmem:[#allocation8] sm:$0xff]
    %v1017 = vld [vmem:[#allocation8 + $0x8] sm:$0xff]
    %v1018 = vld [vmem:[#allocation8 + $0x10] sm:$0xff]
    %v1019 = vld [vmem:[#allocation8 + $0x18] sm:$0xff]
    %v1020 = vld [vmem:[#allocation8 + $0x20] sm:$0xff]
    %v1021 = vld [vmem:[#allocation8 + $0x28] sm:$0xff]
    %v1022 = vld [vmem:[#allocation8 + $0x30] sm:$0xff]
    %v1023 = vld [vmem:[#allocation8 + $0x38] sm:$0xff]
    %v1024 = vld [vmem:[#allocation8 + $0x40] sm:$0xff]
    %v1025 = vld [vmem:[#allocation8 + $0x48] sm:$0xff]
    %v1026 = vld [vmem:[#allocation8 + $0x50] sm:$0xff]
    %v1027 = vld [vmem:[#allocation8 + $0x58] sm:$0xff]
    %v1028 = vld [vmem:[#allocation8 + $0x60] sm:$0xff]
    %v1029 = vld [vmem:[#allocation8 + $0x68] sm:$0xff]
    %v1030 = vld [vmem:[#allocation8 + $0x70] sm:$0xff]
    %v1031 = vld [vmem:[#allocation8 + $0x78] sm:$0xff]
    %v1032 = vld [vmem:[#allocation8 + $0x80] sm:$0xff]
    %v1033 = vld [vmem:[#allocation8 + $0x88] sm:$0xff]
    %v1034 = vld [vmem:[#allocation8 + $0x90] sm:$0xff]
    %v1035 = vld [vmem:[#allocation8 + $0x98] sm:$0xff]
    %v1036 = vld [vmem:[#allocation8 + $0xa0] sm:$0xff]
    %v1037 = vld [vmem:[#allocation8 + $0xa8] sm:$0xff]
    %v1038 = vld [vmem:[#allocation8 + $0xb0] sm:$0xff]
    %v1039 = vld [vmem:[#allocation8 + $0xb8] sm:$0xff]
    %v1040 = vpack.c.bf16 %v1000, %v998
    %v1041 = vpack.c.bf16 %v1014, %v1012
    %v1066 = vunpack.c.l.b16 %v1016
    %v1067 = vunpack.c.h.b16 %v1016
    %v1068 = vunpack.c.l.b16 %v1017
    %v1069 = vunpack.c.h.b16 %v1017
    %v1070 = vunpack.c.l.b16 %v1018
    %v1071 = vunpack.c.h.b16 %v1018
    %v1072 = vunpack.c.l.b16 %v1019
    %v1073 = vunpack.c.h.b16 %v1019
    %v1074 = vunpack.c.l.b16 %v1020
    %v1075 = vunpack.c.h.b16 %v1020
    %v1076 = vunpack.c.l.b16 %v1021
    %v1077 = vunpack.c.h.b16 %v1021
    %v1078 = vunpack.c.l.b16 %v1022
    %v1079 = vunpack.c.h.b16 %v1022
    %v1080 = vunpack.c.l.b16 %v1023
    %v1081 = vunpack.c.h.b16 %v1023
    %v1082 = vunpack.c.l.b16 %v1024
    %v1083 = vunpack.c.h.b16 %v1024
    %v1084 = vunpack.c.l.b16 %v1025
    %v1085 = vunpack.c.h.b16 %v1025
    %v1086 = vunpack.c.l.b16 %v1026
    %v1087 = vunpack.c.h.b16 %v1026
    %v1088 = vunpack.c.l.b16 %v1027
    %v1089 = vunpack.c.h.b16 %v1027
    %v1090 = vunpack.c.l.b16 %v1028
    %v1091 = vunpack.c.h.b16 %v1028
    %v1092 = vunpack.c.l.b16 %v1029
    %v1093 = vunpack.c.h.b16 %v1029
    %v1094 = vunpack.c.l.b16 %v1030
    %v1095 = vunpack.c.h.b16 %v1030
    %v1096 = vunpack.c.l.b16 %v1031
    %v1097 = vunpack.c.h.b16 %v1031
    %v1098 = vunpack.c.l.b16 %v1032
    %v1099 = vunpack.c.h.b16 %v1032
    %v1100 = vunpack.c.l.b16 %v1033
    %v1101 = vunpack.c.h.b16 %v1033
    %v1102 = vunpack.c.l.b16 %v1034
    %v1103 = vunpack.c.h.b16 %v1034
    %v1104 = vunpack.c.l.b16 %v1035
    %v1105 = vunpack.c.h.b16 %v1035
    %v1106 = vunpack.c.l.b16 %v1036
    %v1107 = vunpack.c.h.b16 %v1036
    %v1108 = vunpack.c.l.b16 %v1037
    %v1109 = vunpack.c.h.b16 %v1037
    %v1110 = vunpack.c.l.b16 %v1038
    %v1111 = vunpack.c.h.b16 %v1038
    %v1112 = vunpack.c.l.b16 %v1039
    %v1113 = vunpack.c.h.b16 %v1039
    %v1114 = vpack.c.b16 %v1068, %v1066
    %v1115 = vpack.c.b16 %v1069, %v1067
    %v1116 = vpack.c.b16 %v1072, %v1070
    %v1117 = vpack.c.b16 %v1073, %v1071
    %v1118 = vpack.c.b16 %v1076, %v1074
    %v1119 = vpack.c.b16 %v1077, %v1075
    %v1120 = vpack.c.b16 %v1080, %v1078
    %v1121 = vpack.c.b16 %v1081, %v1079
    %v1122 = vpack.c.b16 %v1084, %v1082
    %v1123 = vpack.c.b16 %v1085, %v1083
    %v1124 = vpack.c.b16 %v1088, %v1086
    %v1125 = vpack.c.b16 %v1089, %v1087
    %v1126 = vpack.c.b16 %v1092, %v1090
    %v1127 = vpack.c.b16 %v1093, %v1091
    %v1128 = vpack.c.b16 %v1096, %v1094
    %v1129 = vpack.c.b16 %v1097, %v1095
    %v1130 = vpack.c.b16 %v1100, %v1098
    %v1131 = vpack.c.b16 %v1101, %v1099
    %v1132 = vpack.c.b16 %v1104, %v1102
    %v1133 = vpack.c.b16 %v1105, %v1103
    %v1134 = vpack.c.b16 %v1108, %v1106
    %v1135 = vpack.c.b16 %v1109, %v1107
    %v1136 = vpack.c.b16 %v1112, %v1110
    %v1137 = vpack.c.b16 %v1113, %v1111
    %vm1162 = vcmask 523264
    %v1164 = vsel %vm1162, %v1041, 0
    %1166 = vmatpush.bf16.msra.mxu0 %v1128
    %1167 = vmatpush.bf16.msra.mxu0 %v1126
    %1168 = vmatpush.bf16.msra.mxu0 %v1124
    %1169 = vmatpush.bf16.msra.mxu0 %v1122
    %1170 = vmatpush.bf16.msra.mxu0 %v1120
    %1171 = vmatpush.bf16.msra.mxu0 %v1118
    %1172 = vmatpush.bf16.msra.mxu0 %v1116
    %1173 = vmatpush.bf16.msra.mxu0 %v1114
    %1174 = vmatmul.bf16.gmra.mxu0 %v1040
    %v1175 = vpop.f32.mrf.mxu0
    %v1176 = vadd.f32 0.0, %v1175
    %v1177 = vpop.f32.mrf.mxu0
    %v1178 = vadd.f32 0.0, %v1177
    %1179 = vdwg.mxu0
    %1180 = vmatpush.bf16.msra.mxu0 0
    %1181 = vmatpush.bf16.msra.mxu0 0
    %1182 = vmatpush.bf16.msra.mxu0 0
    %1183 = vmatpush.bf16.msra.mxu0 0
    %1184 = vmatpush.bf16.msra.mxu0 %v1136
    %1185 = vmatpush.bf16.msra.mxu0 %v1134
    %1186 = vmatpush.bf16.msra.mxu0 %v1132
    %1187 = vmatpush.bf16.msra.mxu0 %v1130
    %1188 = vmatmul.bf16.gmra.mxu0 %v1164
    %v1189 = vpop.f32.mrf.mxu0
    %v1190 = vadd.f32 %v1176, %v1189
    %v1191 = vpop.f32.mrf.mxu0
    %v1192 = vadd.f32 %v1178, %v1191
    %1193 = vdwg.mxu0
    %1194 = vmatpush.bf16.msra.mxu0 %v1129
    %1195 = vmatpush.bf16.msra.mxu0 %v1127
    %1196 = vmatpush.bf16.msra.mxu0 %v1125
    %1197 = vmatpush.bf16.msra.mxu0 %v1123
    %1198 = vmatpush.bf16.msra.mxu0 %v1121
    %1199 = vmatpush.bf16.msra.mxu0 %v1119
    %1200 = vmatpush.bf16.msra.mxu0 %v1117
    %1201 = vmatpush.bf16.msra.mxu0 %v1115
    %1202 = vmatmul.bf16.gmra.mxu0 %v1040
    %v1203 = vpop.f32.mrf.mxu0
    %v1204 = vadd.f32 0.0, %v1203
    %v1205 = vpop.f32.mrf.mxu0
    %v1206 = vadd.f32 0.0, %v1205
    %1207 = vdwg.mxu0
    %1208 = vmatpush.bf16.msra.mxu0 0
    %1209 = vmatpush.bf16.msra.mxu0 0
    %1210 = vmatpush.bf16.msra.mxu0 0
    %1211 = vmatpush.bf16.msra.mxu0 0
    %1212 = vmatpush.bf16.msra.mxu0 %v1137
    %1213 = vmatpush.bf16.msra.mxu0 %v1135
    %1214 = vmatpush.bf16.msra.mxu0 %v1133
    %1215 = vmatpush.bf16.msra.mxu0 %v1131
    %1216 = vmatmul.bf16.gmra.mxu0 %v1164
    %v1217 = vpop.f32.mrf.mxu0
    %v1218 = vadd.f32 %v1204, %v1217
    %v1219 = vpop.f32.mrf.mxu0
    %v1220 = vadd.f32 %v1206, %v1219
    %1221 = vdwg.mxu0
    %v1223 = vperm.slane %v972, 0
    %v1224 = vperm.slane %v972, 1
    %v1227 = vadd.f32 %v1223, %v1190
    %v1228 = vadd.f32 %v1224, %v1218
    %v1229 = vadd.f32 %v1223, %v1192
    %v1230 = vadd.f32 %v1224, %v1220
    %s1231 = scalar_lea.vmem [#allocation6], 8
    %v1232 = vld [vmem:[%s1231] sm:$0xf]
    %v1233 = vld [vmem:[%s1231 + $0x4] sm:$0xf]
    %v1236 = vunpack.c.l.b16 %v1232
    %v1237 = vunpack.c.l.b16 %v1233
    %v1238 = vpack.c.b16 %v1237, %v1236
    %v1240 = vsel %vm984, %v1238, 0
    %1242 = vmatpush.bf16.msra.mxu0 0
    %1243 = vmatpush.bf16.msra.mxu0 0
    %1244 = vmatpush.bf16.msra.mxu0 0
    %1245 = vmatpush.bf16.msra.mxu0 0
    %1246 = vmatpush.bf16.msra.mxu0 0
    %1247 = vmatpush.bf16.msra.mxu0 0
    %1248 = vmatpush.bf16.msra.mxu0 %v977
    %1249 = vmatpush.bf16.msra.mxu0 %v975
    %1250 = vmatmul.bf16.gmra.mxu0 %v1240
    %v1251 = vpop.f32.mrf.mxu0
    %v1252 = vadd.f32 0.0, %v1251
    %v1253 = vpop.f32.mrf.mxu0
    %v1254 = vadd.f32 0.0, %v1253
    %1255 = vdwg.mxu0
    %1256 = vmatpush.bf16.msra.mxu0 0
    %1257 = vmatpush.bf16.msra.mxu0 0
    %1258 = vmatpush.bf16.msra.mxu0 0
    %1259 = vmatpush.bf16.msra.mxu0 0
    %1260 = vmatpush.bf16.msra.mxu0 0
    %1261 = vmatpush.bf16.msra.mxu0 0
    %1262 = vmatpush.bf16.msra.mxu0 %v978
    %1263 = vmatpush.bf16.msra.mxu0 %v976
    %1264 = vmatmul.bf16.gmra.mxu0 %v1240
    %v1265 = vpop.f32.mrf.mxu0
    %v1266 = vadd.f32 0.0, %v1265
    %v1267 = vpop.f32.mrf.mxu0
    %v1268 = vadd.f32 0.0, %v1267
    %1269 = vdwg.mxu0
    %s1270 = scalar_lea.vmem [#allocation8], 192
    %v1271 = vld [vmem:[%s1270] sm:$0xff]
    %v1272 = vld [vmem:[%s1270 + $0x8] sm:$0xff]
    %v1273 = vld [vmem:[%s1270 + $0x10] sm:$0xff]
    %v1274 = vld [vmem:[%s1270 + $0x18] sm:$0xff]
    %v1275 = vld [vmem:[%s1270 + $0x20] sm:$0xff]
    %v1276 = vld [vmem:[%s1270 + $0x28] sm:$0xff]
    %v1277 = vld [vmem:[%s1270 + $0x30] sm:$0xff]
    %v1278 = vld [vmem:[%s1270 + $0x38] sm:$0xff]
    %v1279 = vld [vmem:[%s1270 + $0x40] sm:$0xff]
    %v1280 = vld [vmem:[%s1270 + $0x48] sm:$0xff]
    %v1281 = vld [vmem:[%s1270 + $0x50] sm:$0xff]
    %v1282 = vld [vmem:[%s1270 + $0x58] sm:$0xff]
    %v1283 = vld [vmem:[%s1270 + $0x60] sm:$0xff]
    %v1284 = vld [vmem:[%s1270 + $0x68] sm:$0xff]
    %v1285 = vld [vmem:[%s1270 + $0x70] sm:$0xff]
    %v1286 = vld [vmem:[%s1270 + $0x78] sm:$0xff]
    %v1287 = vld [vmem:[%s1270 + $0x80] sm:$0xff]
    %v1288 = vld [vmem:[%s1270 + $0x88] sm:$0xff]
    %v1289 = vld [vmem:[%s1270 + $0x90] sm:$0xff]
    %v1290 = vld [vmem:[%s1270 + $0x98] sm:$0xff]
    %v1291 = vld [vmem:[%s1270 + $0xa0] sm:$0xff]
    %v1292 = vld [vmem:[%s1270 + $0xa8] sm:$0xff]
    %v1293 = vld [vmem:[%s1270 + $0xb0] sm:$0xff]
    %v1294 = vld [vmem:[%s1270 + $0xb8] sm:$0xff]
    %v1295 = vpack.c.bf16 %v1254, %v1252
    %v1296 = vpack.c.bf16 %v1268, %v1266
    %v1321 = vunpack.c.l.b16 %v1271
    %v1322 = vunpack.c.h.b16 %v1271
    %v1323 = vunpack.c.l.b16 %v1272
    %v1324 = vunpack.c.h.b16 %v1272
    %v1325 = vunpack.c.l.b16 %v1273
    %v1326 = vunpack.c.h.b16 %v1273
    %v1327 = vunpack.c.l.b16 %v1274
    %v1328 = vunpack.c.h.b16 %v1274
    %v1329 = vunpack.c.l.b16 %v1275
    %v1330 = vunpack.c.h.b16 %v1275
    %v1331 = vunpack.c.l.b16 %v1276
    %v1332 = vunpack.c.h.b16 %v1276
    %v1333 = vunpack.c.l.b16 %v1277
    %v1334 = vunpack.c.h.b16 %v1277
    %v1335 = vunpack.c.l.b16 %v1278
    %v1336 = vunpack.c.h.b16 %v1278
    %v1337 = vunpack.c.l.b16 %v1279
    %v1338 = vunpack.c.h.b16 %v1279
    %v1339 = vunpack.c.l.b16 %v1280
    %v1340 = vunpack.c.h.b16 %v1280
    %v1341 = vunpack.c.l.b16 %v1281
    %v1342 = vunpack.c.h.b16 %v1281
    %v1343 = vunpack.c.l.b16 %v1282
    %v1344 = vunpack.c.h.b16 %v1282
    %v1345 = vunpack.c.l.b16 %v1283
    %v1346 = vunpack.c.h.b16 %v1283
    %v1347 = vunpack.c.l.b16 %v1284
    %v1348 = vunpack.c.h.b16 %v1284
    %v1349 = vunpack.c.l.b16 %v1285
    %v1350 = vunpack.c.h.b16 %v1285
    %v1351 = vunpack.c.l.b16 %v1286
    %v1352 = vunpack.c.h.b16 %v1286
    %v1353 = vunpack.c.l.b16 %v1287
    %v1354 = vunpack.c.h.b16 %v1287
    %v1355 = vunpack.c.l.b16 %v1288
    %v1356 = vunpack.c.h.b16 %v1288
    %v1357 = vunpack.c.l.b16 %v1289
    %v1358 = vunpack.c.h.b16 %v1289
    %v1359 = vunpack.c.l.b16 %v1290
    %v1360 = vunpack.c.h.b16 %v1290
    %v1361 = vunpack.c.l.b16 %v1291
    %v1362 = vunpack.c.h.b16 %v1291
    %v1363 = vunpack.c.l.b16 %v1292
    %v1364 = vunpack.c.h.b16 %v1292
    %v1365 = vunpack.c.l.b16 %v1293
    %v1366 = vunpack.c.h.b16 %v1293
    %v1367 = vunpack.c.l.b16 %v1294
    %v1368 = vunpack.c.h.b16 %v1294
    %v1369 = vpack.c.b16 %v1323, %v1321
    %v1370 = vpack.c.b16 %v1324, %v1322
    %v1371 = vpack.c.b16 %v1327, %v1325
    %v1372 = vpack.c.b16 %v1328, %v1326
    %v1373 = vpack.c.b16 %v1331, %v1329
    %v1374 = vpack.c.b16 %v1332, %v1330
    %v1375 = vpack.c.b16 %v1335, %v1333
    %v1376 = vpack.c.b16 %v1336, %v1334
    %v1377 = vpack.c.b16 %v1339, %v1337
    %v1378 = vpack.c.b16 %v1340, %v1338
    %v1379 = vpack.c.b16 %v1343, %v1341
    %v1380 = vpack.c.b16 %v1344, %v1342
    %v1381 = vpack.c.b16 %v1347, %v1345
    %v1382 = vpack.c.b16 %v1348, %v1346
    %v1383 = vpack.c.b16 %v1351, %v1349
    %v1384 = vpack.c.b16 %v1352, %v1350
    %v1385 = vpack.c.b16 %v1355, %v1353
    %v1386 = vpack.c.b16 %v1356, %v1354
    %v1387 = vpack.c.b16 %v1359, %v1357
    %v1388 = vpack.c.b16 %v1360, %v1358
    %v1389 = vpack.c.b16 %v1363, %v1361
    %v1390 = vpack.c.b16 %v1364, %v1362
    %v1391 = vpack.c.b16 %v1367, %v1365
    %v1392 = vpack.c.b16 %v1368, %v1366
    %v1418 = vsel %vm1162, %v1296, 0
    %1420 = vmatpush.bf16.msra.mxu0 %v1383
    %1421 = vmatpush.bf16.msra.mxu0 %v1381
    %1422 = vmatpush.bf16.msra.mxu0 %v1379
    %1423 = vmatpush.bf16.msra.mxu0 %v1377
    %1424 = vmatpush.bf16.msra.mxu0 %v1375
    %1425 = vmatpush.bf16.msra.mxu0 %v1373
    %1426 = vmatpush.bf16.msra.mxu0 %v1371
    %1427 = vmatpush.bf16.msra.mxu0 %v1369
    %1428 = vmatmul.bf16.gmra.mxu0 %v1295
    %v1429 = vpop.f32.mrf.mxu0
    %v1430 = vadd.f32 0.0, %v1429
    %v1431 = vpop.f32.mrf.mxu0
    %v1432 = vadd.f32 0.0, %v1431
    %1433 = vdwg.mxu0
    %1434 = vmatpush.bf16.msra.mxu0 0
    %1435 = vmatpush.bf16.msra.mxu0 0
    %1436 = vmatpush.bf16.msra.mxu0 0
    %1437 = vmatpush.bf16.msra.mxu0 0
    %1438 = vmatpush.bf16.msra.mxu0 %v1391
    %1439 = vmatpush.bf16.msra.mxu0 %v1389
    %1440 = vmatpush.bf16.msra.mxu0 %v1387
    %1441 = vmatpush.bf16.msra.mxu0 %v1385
    %1442 = vmatmul.bf16.gmra.mxu0 %v1418
    %v1443 = vpop.f32.mrf.mxu0
    %v1444 = vadd.f32 %v1430, %v1443
    %v1445 = vpop.f32.mrf.mxu0
    %v1446 = vadd.f32 %v1432, %v1445
    %1447 = vdwg.mxu0
    %1448 = vmatpush.bf16.msra.mxu0 %v1384
    %1449 = vmatpush.bf16.msra.mxu0 %v1382
    %1450 = vmatpush.bf16.msra.mxu0 %v1380
    %1451 = vmatpush.bf16.msra.mxu0 %v1378
    %1452 = vmatpush.bf16.msra.mxu0 %v1376
    %1453 = vmatpush.bf16.msra.mxu0 %v1374
    %1454 = vmatpush.bf16.msra.mxu0 %v1372
    %1455 = vmatpush.bf16.msra.mxu0 %v1370
    %1456 = vmatmul.bf16.gmra.mxu0 %v1295
    %v1457 = vpop.f32.mrf.mxu0
    %v1458 = vadd.f32 0.0, %v1457
    %v1459 = vpop.f32.mrf.mxu0
    %v1460 = vadd.f32 0.0, %v1459
    %1461 = vdwg.mxu0
    %1462 = vmatpush.bf16.msra.mxu0 0
    %1463 = vmatpush.bf16.msra.mxu0 0
    %1464 = vmatpush.bf16.msra.mxu0 0
    %1465 = vmatpush.bf16.msra.mxu0 0
    %1466 = vmatpush.bf16.msra.mxu0 %v1392
    %1467 = vmatpush.bf16.msra.mxu0 %v1390
    %1468 = vmatpush.bf16.msra.mxu0 %v1388
    %1469 = vmatpush.bf16.msra.mxu0 %v1386
    %1470 = vmatmul.bf16.gmra.mxu0 %v1418
    %v1471 = vpop.f32.mrf.mxu0
    %v1472 = vadd.f32 %v1458, %v1471
    %v1473 = vpop.f32.mrf.mxu0
    %v1474 = vadd.f32 %v1460, %v1473
    %1475 = vdwg.mxu0
    %v1476 = vadd.f32 %v1227, %v1444
    %v1477 = vadd.f32 %v1228, %v1472
    %v1478 = vadd.f32 %v1229, %v1446
    %v1479 = vadd.f32 %v1230, %v1474
    %s1480 = scalar_lea.vmem [#allocation6], 16
    %v1481 = vld [vmem:[%s1480] sm:$0xf]
    %v1482 = vld [vmem:[%s1480 + $0x4] sm:$0xf]
    %v1485 = vunpack.c.l.b16 %v1481
    %v1486 = vunpack.c.l.b16 %v1482
    %v1487 = vpack.c.b16 %v1486, %v1485
    %v1489 = vsel %vm984, %v1487, 0
    %1491 = vmatpush.bf16.msra.mxu0 0
    %1492 = vmatpush.bf16.msra.mxu0 0
    %1493 = vmatpush.bf16.msra.mxu0 0
    %1494 = vmatpush.bf16.msra.mxu0 0
    %1495 = vmatpush.bf16.msra.mxu0 0
    %1496 = vmatpush.bf16.msra.mxu0 0
    %1497 = vmatpush.bf16.msra.mxu0 %v977
    %1498 = vmatpush.bf16.msra.mxu0 %v975
    %1499 = vmatmul.bf16.gmra.mxu0 %v1489
    %v1500 = vpop.f32.mrf.mxu0
    %v1501 = vadd.f32 0.0, %v1500
    %v1502 = vpop.f32.mrf.mxu0
    %v1503 = vadd.f32 0.0, %v1502
    %1504 = vdwg.mxu0
    %1505 = vmatpush.bf16.msra.mxu0 0
    %1506 = vmatpush.bf16.msra.mxu0 0
    %1507 = vmatpush.bf16.msra.mxu0 0
    %1508 = vmatpush.bf16.msra.mxu0 0
    %1509 = vmatpush.bf16.msra.mxu0 0
    %1510 = vmatpush.bf16.msra.mxu0 0
    %1511 = vmatpush.bf16.msra.mxu0 %v978
    %1512 = vmatpush.bf16.msra.mxu0 %v976
    %1513 = vmatmul.bf16.gmra.mxu0 %v1489
    %v1514 = vpop.f32.mrf.mxu0
    %v1515 = vadd.f32 0.0, %v1514
    %v1516 = vpop.f32.mrf.mxu0
    %v1517 = vadd.f32 0.0, %v1516
    %1518 = vdwg.mxu0
    %s1519 = scalar_lea.vmem [#allocation8], 384
    %v1520 = vld [vmem:[%s1519] sm:$0xff]
    %v1521 = vld [vmem:[%s1519 + $0x8] sm:$0xff]
    %v1522 = vld [vmem:[%s1519 + $0x10] sm:$0xff]
    %v1523 = vld [vmem:[%s1519 + $0x18] sm:$0xff]
    %v1524 = vld [vmem:[%s1519 + $0x20] sm:$0xff]
    %v1525 = vld [vmem:[%s1519 + $0x28] sm:$0xff]
    %v1526 = vld [vmem:[%s1519 + $0x30] sm:$0xff]
    %v1527 = vld [vmem:[%s1519 + $0x38] sm:$0xff]
    %v1528 = vld [vmem:[%s1519 + $0x40] sm:$0xff]
    %v1529 = vld [vmem:[%s1519 + $0x48] sm:$0xff]
    %v1530 = vld [vmem:[%s1519 + $0x50] sm:$0xff]
    %v1531 = vld [vmem:[%s1519 + $0x58] sm:$0xff]
    %v1532 = vld [vmem:[%s1519 + $0x60] sm:$0xff]
    %v1533 = vld [vmem:[%s1519 + $0x68] sm:$0xff]
    %v1534 = vld [vmem:[%s1519 + $0x70] sm:$0xff]
    %v1535 = vld [vmem:[%s1519 + $0x78] sm:$0xff]
    %v1536 = vld [vmem:[%s1519 + $0x80] sm:$0xff]
    %v1537 = vld [vmem:[%s1519 + $0x88] sm:$0xff]
    %v1538 = vld [vmem:[%s1519 + $0x90] sm:$0xff]
    %v1539 = vld [vmem:[%s1519 + $0x98] sm:$0xff]
    %v1540 = vld [vmem:[%s1519 + $0xa0] sm:$0xff]
    %v1541 = vld [vmem:[%s1519 + $0xa8] sm:$0xff]
    %v1542 = vld [vmem:[%s1519 + $0xb0] sm:$0xff]
    %v1543 = vld [vmem:[%s1519 + $0xb8] sm:$0xff]
    %v1544 = vpack.c.bf16 %v1503, %v1501
    %v1545 = vpack.c.bf16 %v1517, %v1515
    %v1570 = vunpack.c.l.b16 %v1520
    %v1571 = vunpack.c.h.b16 %v1520
    %v1572 = vunpack.c.l.b16 %v1521
    %v1573 = vunpack.c.h.b16 %v1521
    %v1574 = vunpack.c.l.b16 %v1522
    %v1575 = vunpack.c.h.b16 %v1522
    %v1576 = vunpack.c.l.b16 %v1523
    %v1577 = vunpack.c.h.b16 %v1523
    %v1578 = vunpack.c.l.b16 %v1524
    %v1579 = vunpack.c.h.b16 %v1524
    %v1580 = vunpack.c.l.b16 %v1525
    %v1581 = vunpack.c.h.b16 %v1525
    %v1582 = vunpack.c.l.b16 %v1526
    %v1583 = vunpack.c.h.b16 %v1526
    %v1584 = vunpack.c.l.b16 %v1527
    %v1585 = vunpack.c.h.b16 %v1527
    %v1586 = vunpack.c.l.b16 %v1528
    %v1587 = vunpack.c.h.b16 %v1528
    %v1588 = vunpack.c.l.b16 %v1529
    %v1589 = vunpack.c.h.b16 %v1529
    %v1590 = vunpack.c.l.b16 %v1530
    %v1591 = vunpack.c.h.b16 %v1530
    %v1592 = vunpack.c.l.b16 %v1531
    %v1593 = vunpack.c.h.b16 %v1531
    %v1594 = vunpack.c.l.b16 %v1532
    %v1595 = vunpack.c.h.b16 %v1532
    %v1596 = vunpack.c.l.b16 %v1533
    %v1597 = vunpack.c.h.b16 %v1533
    %v1598 = vunpack.c.l.b16 %v1534
    %v1599 = vunpack.c.h.b16 %v1534
    %v1600 = vunpack.c.l.b16 %v1535
    %v1601 = vunpack.c.h.b16 %v1535
    %v1602 = vunpack.c.l.b16 %v1536
    %v1603 = vunpack.c.h.b16 %v1536
    %v1604 = vunpack.c.l.b16 %v1537
    %v1605 = vunpack.c.h.b16 %v1537
    %v1606 = vunpack.c.l.b16 %v1538
    %v1607 = vunpack.c.h.b16 %v1538
    %v1608 = vunpack.c.l.b16 %v1539
    %v1609 = vunpack.c.h.b16 %v1539
    %v1610 = vunpack.c.l.b16 %v1540
    %v1611 = vunpack.c.h.b16 %v1540
    %v1612 = vunpack.c.l.b16 %v1541
    %v1613 = vunpack.c.h.b16 %v1541
    %v1614 = vunpack.c.l.b16 %v1542
    %v1615 = vunpack.c.h.b16 %v1542
    %v1616 = vunpack.c.l.b16 %v1543
    %v1617 = vunpack.c.h.b16 %v1543
    %v1618 = vpack.c.b16 %v1572, %v1570
    %v1619 = vpack.c.b16 %v1573, %v1571
    %v1620 = vpack.c.b16 %v1576, %v1574
    %v1621 = vpack.c.b16 %v1577, %v1575
    %v1622 = vpack.c.b16 %v1580, %v1578
    %v1623 = vpack.c.b16 %v1581, %v1579
    %v1624 = vpack.c.b16 %v1584, %v1582
    %v1625 = vpack.c.b16 %v1585, %v1583
    %v1626 = vpack.c.b16 %v1588, %v1586
    %v1627 = vpack.c.b16 %v1589, %v1587
    %v1628 = vpack.c.b16 %v1592, %v1590
    %v1629 = vpack.c.b16 %v1593, %v1591
    %v1630 = vpack.c.b16 %v1596, %v1594
    %v1631 = vpack.c.b16 %v1597, %v1595
    %v1632 = vpack.c.b16 %v1600, %v1598
    %v1633 = vpack.c.b16 %v1601, %v1599
    %v1634 = vpack.c.b16 %v1604, %v1602
    %v1635 = vpack.c.b16 %v1605, %v1603
    %v1636 = vpack.c.b16 %v1608, %v1606
    %v1637 = vpack.c.b16 %v1609, %v1607
    %v1638 = vpack.c.b16 %v1612, %v1610
    %v1639 = vpack.c.b16 %v1613, %v1611
    %v1640 = vpack.c.b16 %v1616, %v1614
    %v1641 = vpack.c.b16 %v1617, %v1615
    %v1667 = vsel %vm1162, %v1545, 0
    %1669 = vmatpush.bf16.msra.mxu0 %v1632
    %1670 = vmatpush.bf16.msra.mxu0 %v1630
    %1671 = vmatpush.bf16.msra.mxu0 %v1628
    %1672 = vmatpush.bf16.msra.mxu0 %v1626
    %1673 = vmatpush.bf16.msra.mxu0 %v1624
    %1674 = vmatpush.bf16.msra.mxu0 %v1622
    %1675 = vmatpush.bf16.msra.mxu0 %v1620
    %1676 = vmatpush.bf16.msra.mxu0 %v1618
    %1677 = vmatmul.bf16.gmra.mxu0 %v1544
    %v1678 = vpop.f32.mrf.mxu0
    %v1679 = vadd.f32 0.0, %v1678
    %v1680 = vpop.f32.mrf.mxu0
    %v1681 = vadd.f32 0.0, %v1680
    %1682 = vdwg.mxu0
    %1683 = vmatpush.bf16.msra.mxu0 0
    %1684 = vmatpush.bf16.msra.mxu0 0
    %1685 = vmatpush.bf16.msra.mxu0 0
    %1686 = vmatpush.bf16.msra.mxu0 0
    %1687 = vmatpush.bf16.msra.mxu0 %v1640
    %1688 = vmatpush.bf16.msra.mxu0 %v1638
    %1689 = vmatpush.bf16.msra.mxu0 %v1636
    %1690 = vmatpush.bf16.msra.mxu0 %v1634
    %1691 = vmatmul.bf16.gmra.mxu0 %v1667
    %v1692 = vpop.f32.mrf.mxu0
    %v1693 = vadd.f32 %v1679, %v1692
    %v1694 = vpop.f32.mrf.mxu0
    %v1695 = vadd.f32 %v1681, %v1694
    %1696 = vdwg.mxu0
    %1697 = vmatpush.bf16.msra.mxu0 %v1633
    %1698 = vmatpush.bf16.msra.mxu0 %v1631
    %1699 = vmatpush.bf16.msra.mxu0 %v1629
    %1700 = vmatpush.bf16.msra.mxu0 %v1627
    %1701 = vmatpush.bf16.msra.mxu0 %v1625
    %1702 = vmatpush.bf16.msra.mxu0 %v1623
    %1703 = vmatpush.bf16.msra.mxu0 %v1621
    %1704 = vmatpush.bf16.msra.mxu0 %v1619
    %1705 = vmatmul.bf16.gmra.mxu0 %v1544
    %v1706 = vpop.f32.mrf.mxu0
    %v1707 = vadd.f32 0.0, %v1706
    %v1708 = vpop.f32.mrf.mxu0
    %v1709 = vadd.f32 0.0, %v1708
    %1710 = vdwg.mxu0
    %1711 = vmatpush.bf16.msra.mxu0 0
    %1712 = vmatpush.bf16.msra.mxu0 0
    %1713 = vmatpush.bf16.msra.mxu0 0
    %1714 = vmatpush.bf16.msra.mxu0 0
    %1715 = vmatpush.bf16.msra.mxu0 %v1641
    %1716 = vmatpush.bf16.msra.mxu0 %v1639
    %1717 = vmatpush.bf16.msra.mxu0 %v1637
    %1718 = vmatpush.bf16.msra.mxu0 %v1635
    %1719 = vmatmul.bf16.gmra.mxu0 %v1667
    %v1720 = vpop.f32.mrf.mxu0
    %v1721 = vadd.f32 %v1707, %v1720
    %v1722 = vpop.f32.mrf.mxu0
    %v1723 = vadd.f32 %v1709, %v1722
    %1724 = vdwg.mxu0
    %v1725 = vadd.f32 %v1476, %v1693
    %v1726 = vadd.f32 %v1477, %v1721
    %v1727 = vadd.f32 %v1478, %v1695
    %v1728 = vadd.f32 %v1479, %v1723
    %s1729 = scalar_lea.vmem [#allocation6], 24
    %v1730 = vld [vmem:[%s1729] sm:$0xf]
    %v1731 = vld [vmem:[%s1729 + $0x4] sm:$0xf]
    %v1734 = vunpack.c.l.b16 %v1730
    %v1735 = vunpack.c.l.b16 %v1731
    %v1736 = vpack.c.b16 %v1735, %v1734
    %v1738 = vsel %vm984, %v1736, 0
    %1740 = vmatpush.bf16.msra.mxu0 0
    %1741 = vmatpush.bf16.msra.mxu0 0
    %1742 = vmatpush.bf16.msra.mxu0 0
    %1743 = vmatpush.bf16.msra.mxu0 0
    %1744 = vmatpush.bf16.msra.mxu0 0
    %1745 = vmatpush.bf16.msra.mxu0 0
    %1746 = vmatpush.bf16.msra.mxu0 %v977
    %1747 = vmatpush.bf16.msra.mxu0 %v975
    %1748 = vmatmul.bf16.gmra.mxu0 %v1738
    %v1749 = vpop.f32.mrf.mxu0
    %v1750 = vadd.f32 0.0, %v1749
    %v1751 = vpop.f32.mrf.mxu0
    %v1752 = vadd.f32 0.0, %v1751
    %1753 = vdwg.mxu0
    %1754 = vmatpush.bf16.msra.mxu0 0
    %1755 = vmatpush.bf16.msra.mxu0 0
    %1756 = vmatpush.bf16.msra.mxu0 0
    %1757 = vmatpush.bf16.msra.mxu0 0
    %1758 = vmatpush.bf16.msra.mxu0 0
    %1759 = vmatpush.bf16.msra.mxu0 0
    %1760 = vmatpush.bf16.msra.mxu0 %v978
    %1761 = vmatpush.bf16.msra.mxu0 %v976
    %1762 = vmatmul.bf16.gmra.mxu0 %v1738
    %v1763 = vpop.f32.mrf.mxu0
    %v1764 = vadd.f32 0.0, %v1763
    %v1765 = vpop.f32.mrf.mxu0
    %v1766 = vadd.f32 0.0, %v1765
    %1767 = vdwg.mxu0
    %s1768 = scalar_lea.vmem [#allocation8], 576
    %v1769 = vld [vmem:[%s1768] sm:$0xff]
    %v1770 = vld [vmem:[%s1768 + $0x8] sm:$0xff]
    %v1771 = vld [vmem:[%s1768 + $0x10] sm:$0xff]
    %v1772 = vld [vmem:[%s1768 + $0x18] sm:$0xff]
    %v1773 = vld [vmem:[%s1768 + $0x20] sm:$0xff]
    %v1774 = vld [vmem:[%s1768 + $0x28] sm:$0xff]
    %v1775 = vld [vmem:[%s1768 + $0x30] sm:$0xff]
    %v1776 = vld [vmem:[%s1768 + $0x38] sm:$0xff]
    %v1777 = vld [vmem:[%s1768 + $0x40] sm:$0xff]
    %v1778 = vld [vmem:[%s1768 + $0x48] sm:$0xff]
    %v1779 = vld [vmem:[%s1768 + $0x50] sm:$0xff]
    %v1780 = vld [vmem:[%s1768 + $0x58] sm:$0xff]
    %v1781 = vld [vmem:[%s1768 + $0x60] sm:$0xff]
    %v1782 = vld [vmem:[%s1768 + $0x68] sm:$0xff]
    %v1783 = vld [vmem:[%s1768 + $0x70] sm:$0xff]
    %v1784 = vld [vmem:[%s1768 + $0x78] sm:$0xff]
    %v1785 = vld [vmem:[%s1768 + $0x80] sm:$0xff]
    %v1786 = vld [vmem:[%s1768 + $0x88] sm:$0xff]
    %v1787 = vld [vmem:[%s1768 + $0x90] sm:$0xff]
    %v1788 = vld [vmem:[%s1768 + $0x98] sm:$0xff]
    %v1789 = vld [vmem:[%s1768 + $0xa0] sm:$0xff]
    %v1790 = vld [vmem:[%s1768 + $0xa8] sm:$0xff]
    %v1791 = vld [vmem:[%s1768 + $0xb0] sm:$0xff]
    %v1792 = vld [vmem:[%s1768 + $0xb8] sm:$0xff]
    %v1793 = vpack.c.bf16 %v1752, %v1750
    %v1794 = vpack.c.bf16 %v1766, %v1764
    %v1819 = vunpack.c.l.b16 %v1769
    %v1820 = vunpack.c.h.b16 %v1769
    %v1821 = vunpack.c.l.b16 %v1770
    %v1822 = vunpack.c.h.b16 %v1770
    %v1823 = vunpack.c.l.b16 %v1771
    %v1824 = vunpack.c.h.b16 %v1771
    %v1825 = vunpack.c.l.b16 %v1772
    %v1826 = vunpack.c.h.b16 %v1772
    %v1827 = vunpack.c.l.b16 %v1773
    %v1828 = vunpack.c.h.b16 %v1773
    %v1829 = vunpack.c.l.b16 %v1774
    %v1830 = vunpack.c.h.b16 %v1774
    %v1831 = vunpack.c.l.b16 %v1775
    %v1832 = vunpack.c.h.b16 %v1775
    %v1833 = vunpack.c.l.b16 %v1776
    %v1834 = vunpack.c.h.b16 %v1776
    %v1835 = vunpack.c.l.b16 %v1777
    %v1836 = vunpack.c.h.b16 %v1777
    %v1837 = vunpack.c.l.b16 %v1778
    %v1838 = vunpack.c.h.b16 %v1778
    %v1839 = vunpack.c.l.b16 %v1779
    %v1840 = vunpack.c.h.b16 %v1779
    %v1841 = vunpack.c.l.b16 %v1780
    %v1842 = vunpack.c.h.b16 %v1780
    %v1843 = vunpack.c.l.b16 %v1781
    %v1844 = vunpack.c.h.b16 %v1781
    %v1845 = vunpack.c.l.b16 %v1782
    %v1846 = vunpack.c.h.b16 %v1782
    %v1847 = vunpack.c.l.b16 %v1783
    %v1848 = vunpack.c.h.b16 %v1783
    %v1849 = vunpack.c.l.b16 %v1784
    %v1850 = vunpack.c.h.b16 %v1784
    %v1851 = vunpack.c.l.b16 %v1785
    %v1852 = vunpack.c.h.b16 %v1785
    %v1853 = vunpack.c.l.b16 %v1786
    %v1854 = vunpack.c.h.b16 %v1786
    %v1855 = vunpack.c.l.b16 %v1787
    %v1856 = vunpack.c.h.b16 %v1787
    %v1857 = vunpack.c.l.b16 %v1788
    %v1858 = vunpack.c.h.b16 %v1788
    %v1859 = vunpack.c.l.b16 %v1789
    %v1860 = vunpack.c.h.b16 %v1789
    %v1861 = vunpack.c.l.b16 %v1790
    %v1862 = vunpack.c.h.b16 %v1790
    %v1863 = vunpack.c.l.b16 %v1791
    %v1864 = vunpack.c.h.b16 %v1791
    %v1865 = vunpack.c.l.b16 %v1792
    %v1866 = vunpack.c.h.b16 %v1792
    %v1867 = vpack.c.b16 %v1821, %v1819
    %v1868 = vpack.c.b16 %v1822, %v1820
    %v1869 = vpack.c.b16 %v1825, %v1823
    %v1870 = vpack.c.b16 %v1826, %v1824
    %v1871 = vpack.c.b16 %v1829, %v1827
    %v1872 = vpack.c.b16 %v1830, %v1828
    %v1873 = vpack.c.b16 %v1833, %v1831
    %v1874 = vpack.c.b16 %v1834, %v1832
    %v1875 = vpack.c.b16 %v1837, %v1835
    %v1876 = vpack.c.b16 %v1838, %v1836
    %v1877 = vpack.c.b16 %v1841, %v1839
    %v1878 = vpack.c.b16 %v1842, %v1840
    %v1879 = vpack.c.b16 %v1845, %v1843
    %v1880 = vpack.c.b16 %v1846, %v1844
    %v1881 = vpack.c.b16 %v1849, %v1847
    %v1882 = vpack.c.b16 %v1850, %v1848
    %v1883 = vpack.c.b16 %v1853, %v1851
    %v1884 = vpack.c.b16 %v1854, %v1852
    %v1885 = vpack.c.b16 %v1857, %v1855
    %v1886 = vpack.c.b16 %v1858, %v1856
    %v1887 = vpack.c.b16 %v1861, %v1859
    %v1888 = vpack.c.b16 %v1862, %v1860
    %v1889 = vpack.c.b16 %v1865, %v1863
    %v1890 = vpack.c.b16 %v1866, %v1864
    %v1916 = vsel %vm1162, %v1794, 0
    %1918 = vmatpush.bf16.msra.mxu0 %v1881
    %1919 = vmatpush.bf16.msra.mxu0 %v1879
    %1920 = vmatpush.bf16.msra.mxu0 %v1877
    %1921 = vmatpush.bf16.msra.mxu0 %v1875
    %1922 = vmatpush.bf16.msra.mxu0 %v1873
    %1923 = vmatpush.bf16.msra.mxu0 %v1871
    %1924 = vmatpush.bf16.msra.mxu0 %v1869
    %1925 = vmatpush.bf16.msra.mxu0 %v1867
    %1926 = vmatmul.bf16.gmra.mxu0 %v1793
    %v1927 = vpop.f32.mrf.mxu0
    %v1928 = vadd.f32 0.0, %v1927
    %v1929 = vpop.f32.mrf.mxu0
    %v1930 = vadd.f32 0.0, %v1929
    %1931 = vdwg.mxu0
    %1932 = vmatpush.bf16.msra.mxu0 0
    %1933 = vmatpush.bf16.msra.mxu0 0
    %1934 = vmatpush.bf16.msra.mxu0 0
    %1935 = vmatpush.bf16.msra.mxu0 0
    %1936 = vmatpush.bf16.msra.mxu0 %v1889
    %1937 = vmatpush.bf16.msra.mxu0 %v1887
    %1938 = vmatpush.bf16.msra.mxu0 %v1885
    %1939 = vmatpush.bf16.msra.mxu0 %v1883
    %1940 = vmatmul.bf16.gmra.mxu0 %v1916
    %v1941 = vpop.f32.mrf.mxu0
    %v1942 = vadd.f32 %v1928, %v1941
    %v1943 = vpop.f32.mrf.mxu0
    %v1944 = vadd.f32 %v1930, %v1943
    %1945 = vdwg.mxu0
    %1946 = vmatpush.bf16.msra.mxu0 %v1882
    %1947 = vmatpush.bf16.msra.mxu0 %v1880
    %1948 = vmatpush.bf16.msra.mxu0 %v1878
    %1949 = vmatpush.bf16.msra.mxu0 %v1876
    %1950 = vmatpush.bf16.msra.mxu0 %v1874
    %1951 = vmatpush.bf16.msra.mxu0 %v1872
    %1952 = vmatpush.bf16.msra.mxu0 %v1870
    %1953 = vmatpush.bf16.msra.mxu0 %v1868
    %1954 = vmatmul.bf16.gmra.mxu0 %v1793
    %v1955 = vpop.f32.mrf.mxu0
    %v1956 = vadd.f32 0.0, %v1955
    %v1957 = vpop.f32.mrf.mxu0
    %v1958 = vadd.f32 0.0, %v1957
    %1959 = vdwg.mxu0
    %1960 = vmatpush.bf16.msra.mxu0 0
    %1961 = vmatpush.bf16.msra.mxu0 0
    %1962 = vmatpush.bf16.msra.mxu0 0
    %1963 = vmatpush.bf16.msra.mxu0 0
    %1964 = vmatpush.bf16.msra.mxu0 %v1890
    %1965 = vmatpush.bf16.msra.mxu0 %v1888
    %1966 = vmatpush.bf16.msra.mxu0 %v1886
    %1967 = vmatpush.bf16.msra.mxu0 %v1884
    %1968 = vmatmul.bf16.gmra.mxu0 %v1916
    %v1969 = vpop.f32.mrf.mxu0
    %v1970 = vadd.f32 %v1956, %v1969
    %v1971 = vpop.f32.mrf.mxu0
    %v1972 = vadd.f32 %v1958, %v1971
    %1973 = vdwg.mxu0
    %v1974 = vadd.f32 %v1725, %v1942
    %v1975 = vadd.f32 %v1726, %v1970
    %v1976 = vadd.f32 %v1727, %v1944
    %v1977 = vadd.f32 %v1728, %v1972
    %s1978 = scalar_lea.vmem [#allocation6], 32
    %v1979 = vld [vmem:[%s1978] sm:$0xf]
    %v1980 = vld [vmem:[%s1978 + $0x4] sm:$0xf]
    %v1983 = vunpack.c.l.b16 %v1979
    %v1984 = vunpack.c.l.b16 %v1980
    %v1985 = vpack.c.b16 %v1984, %v1983
    %v1987 = vsel %vm984, %v1985, 0
    %1989 = vmatpush.bf16.msra.mxu0 0
    %1990 = vmatpush.bf16.msra.mxu0 0
    %1991 = vmatpush.bf16.msra.mxu0 0
    %1992 = vmatpush.bf16.msra.mxu0 0
    %1993 = vmatpush.bf16.msra.mxu0 0
    %1994 = vmatpush.bf16.msra.mxu0 0
    %1995 = vmatpush.bf16.msra.mxu0 %v977
    %1996 = vmatpush.bf16.msra.mxu0 %v975
    %1997 = vmatmul.bf16.gmra.mxu0 %v1987
    %v1998 = vpop.f32.mrf.mxu0
    %v1999 = vadd.f32 0.0, %v1998
    %v2000 = vpop.f32.mrf.mxu0
    %v2001 = vadd.f32 0.0, %v2000
    %2002 = vdwg.mxu0
    %2003 = vmatpush.bf16.msra.mxu0 0
    %2004 = vmatpush.bf16.msra.mxu0 0
    %2005 = vmatpush.bf16.msra.mxu0 0
    %2006 = vmatpush.bf16.msra.mxu0 0
    %2007 = vmatpush.bf16.msra.mxu0 0
    %2008 = vmatpush.bf16.msra.mxu0 0
    %2009 = vmatpush.bf16.msra.mxu0 %v978
    %2010 = vmatpush.bf16.msra.mxu0 %v976
    %2011 = vmatmul.bf16.gmra.mxu0 %v1987
    %v2012 = vpop.f32.mrf.mxu0
    %v2013 = vadd.f32 0.0, %v2012
    %v2014 = vpop.f32.mrf.mxu0
    %v2015 = vadd.f32 0.0, %v2014
    %2016 = vdwg.mxu0
    %s2017 = scalar_lea.vmem [#allocation8], 768
    %v2018 = vld [vmem:[%s2017] sm:$0xff]
    %v2019 = vld [vmem:[%s2017 + $0x8] sm:$0xff]
    %v2020 = vld [vmem:[%s2017 + $0x10] sm:$0xff]
    %v2021 = vld [vmem:[%s2017 + $0x18] sm:$0xff]
    %v2022 = vld [vmem:[%s2017 + $0x20] sm:$0xff]
    %v2023 = vld [vmem:[%s2017 + $0x28] sm:$0xff]
    %v2024 = vld [vmem:[%s2017 + $0x30] sm:$0xff]
    %v2025 = vld [vmem:[%s2017 + $0x38] sm:$0xff]
    %v2026 = vld [vmem:[%s2017 + $0x40] sm:$0xff]
    %v2027 = vld [vmem:[%s2017 + $0x48] sm:$0xff]
    %v2028 = vld [vmem:[%s2017 + $0x50] sm:$0xff]
    %v2029 = vld [vmem:[%s2017 + $0x58] sm:$0xff]
    %v2030 = vld [vmem:[%s2017 + $0x60] sm:$0xff]
    %v2031 = vld [vmem:[%s2017 + $0x68] sm:$0xff]
    %v2032 = vld [vmem:[%s2017 + $0x70] sm:$0xff]
    %v2033 = vld [vmem:[%s2017 + $0x78] sm:$0xff]
    %v2034 = vld [vmem:[%s2017 + $0x80] sm:$0xff]
    %v2035 = vld [vmem:[%s2017 + $0x88] sm:$0xff]
    %v2036 = vld [vmem:[%s2017 + $0x90] sm:$0xff]
    %v2037 = vld [vmem:[%s2017 + $0x98] sm:$0xff]
    %v2038 = vld [vmem:[%s2017 + $0xa0] sm:$0xff]
    %v2039 = vld [vmem:[%s2017 + $0xa8] sm:$0xff]
    %v2040 = vld [vmem:[%s2017 + $0xb0] sm:$0xff]
    %v2041 = vld [vmem:[%s2017 + $0xb8] sm:$0xff]
    %v2042 = vpack.c.bf16 %v2001, %v1999
    %v2043 = vpack.c.bf16 %v2015, %v2013
    %v2068 = vunpack.c.l.b16 %v2018
    %v2069 = vunpack.c.h.b16 %v2018
    %v2070 = vunpack.c.l.b16 %v2019
    %v2071 = vunpack.c.h.b16 %v2019
    %v2072 = vunpack.c.l.b16 %v2020
    %v2073 = vunpack.c.h.b16 %v2020
    %v2074 = vunpack.c.l.b16 %v2021
    %v2075 = vunpack.c.h.b16 %v2021
    %v2076 = vunpack.c.l.b16 %v2022
    %v2077 = vunpack.c.h.b16 %v2022
    %v2078 = vunpack.c.l.b16 %v2023
    %v2079 = vunpack.c.h.b16 %v2023
    %v2080 = vunpack.c.l.b16 %v2024
    %v2081 = vunpack.c.h.b16 %v2024
    %v2082 = vunpack.c.l.b16 %v2025
    %v2083 = vunpack.c.h.b16 %v2025
    %v2084 = vunpack.c.l.b16 %v2026
    %v2085 = vunpack.c.h.b16 %v2026
    %v2086 = vunpack.c.l.b16 %v2027
    %v2087 = vunpack.c.h.b16 %v2027
    %v2088 = vunpack.c.l.b16 %v2028
    %v2089 = vunpack.c.h.b16 %v2028
    %v2090 = vunpack.c.l.b16 %v2029
    %v2091 = vunpack.c.h.b16 %v2029
    %v2092 = vunpack.c.l.b16 %v2030
    %v2093 = vunpack.c.h.b16 %v2030
    %v2094 = vunpack.c.l.b16 %v2031
    %v2095 = vunpack.c.h.b16 %v2031
    %v2096 = vunpack.c.l.b16 %v2032
    %v2097 = vunpack.c.h.b16 %v2032
    %v2098 = vunpack.c.l.b16 %v2033
    %v2099 = vunpack.c.h.b16 %v2033
    %v2100 = vunpack.c.l.b16 %v2034
    %v2101 = vunpack.c.h.b16 %v2034
    %v2102 = vunpack.c.l.b16 %v2035
    %v2103 = vunpack.c.h.b16 %v2035
    %v2104 = vunpack.c.l.b16 %v2036
    %v2105 = vunpack.c.h.b16 %v2036
    %v2106 = vunpack.c.l.b16 %v2037
    %v2107 = vunpack.c.h.b16 %v2037
    %v2108 = vunpack.c.l.b16 %v2038
    %v2109 = vunpack.c.h.b16 %v2038
    %v2110 = vunpack.c.l.b16 %v2039
    %v2111 = vunpack.c.h.b16 %v2039
    %v2112 = vunpack.c.l.b16 %v2040
    %v2113 = vunpack.c.h.b16 %v2040
    %v2114 = vunpack.c.l.b16 %v2041
    %v2115 = vunpack.c.h.b16 %v2041
    %v2116 = vpack.c.b16 %v2070, %v2068
    %v2117 = vpack.c.b16 %v2071, %v2069
    %v2118 = vpack.c.b16 %v2074, %v2072
    %v2119 = vpack.c.b16 %v2075, %v2073
    %v2120 = vpack.c.b16 %v2078, %v2076
    %v2121 = vpack.c.b16 %v2079, %v2077
    %v2122 = vpack.c.b16 %v2082, %v2080
    %v2123 = vpack.c.b16 %v2083, %v2081
    %v2124 = vpack.c.b16 %v2086, %v2084
    %v2125 = vpack.c.b16 %v2087, %v2085
    %v2126 = vpack.c.b16 %v2090, %v2088
    %v2127 = vpack.c.b16 %v2091, %v2089
    %v2128 = vpack.c.b16 %v2094, %v2092
    %v2129 = vpack.c.b16 %v2095, %v2093
    %v2130 = vpack.c.b16 %v2098, %v2096
    %v2131 = vpack.c.b16 %v2099, %v2097
    %v2132 = vpack.c.b16 %v2102, %v2100
    %v2133 = vpack.c.b16 %v2103, %v2101
    %v2134 = vpack.c.b16 %v2106, %v2104
    %v2135 = vpack.c.b16 %v2107, %v2105
    %v2136 = vpack.c.b16 %v2110, %v2108
    %v2137 = vpack.c.b16 %v2111, %v2109
    %v2138 = vpack.c.b16 %v2114, %v2112
    %v2139 = vpack.c.b16 %v2115, %v2113
    %v2165 = vsel %vm1162, %v2043, 0
    %2167 = vmatpush.bf16.msra.mxu0 %v2130
    %2168 = vmatpush.bf16.msra.mxu0 %v2128
    %2169 = vmatpush.bf16.msra.mxu0 %v2126
    %2170 = vmatpush.bf16.msra.mxu0 %v2124
    %2171 = vmatpush.bf16.msra.mxu0 %v2122
    %2172 = vmatpush.bf16.msra.mxu0 %v2120
    %2173 = vmatpush.bf16.msra.mxu0 %v2118
    %2174 = vmatpush.bf16.msra.mxu0 %v2116
    %2175 = vmatmul.bf16.gmra.mxu0 %v2042
    %v2176 = vpop.f32.mrf.mxu0
    %v2177 = vadd.f32 0.0, %v2176
    %v2178 = vpop.f32.mrf.mxu0
    %v2179 = vadd.f32 0.0, %v2178
    %2180 = vdwg.mxu0
    %2181 = vmatpush.bf16.msra.mxu0 0
    %2182 = vmatpush.bf16.msra.mxu0 0
    %2183 = vmatpush.bf16.msra.mxu0 0
    %2184 = vmatpush.bf16.msra.mxu0 0
    %2185 = vmatpush.bf16.msra.mxu0 %v2138
    %2186 = vmatpush.bf16.msra.mxu0 %v2136
    %2187 = vmatpush.bf16.msra.mxu0 %v2134
    %2188 = vmatpush.bf16.msra.mxu0 %v2132
    %2189 = vmatmul.bf16.gmra.mxu0 %v2165
    %v2190 = vpop.f32.mrf.mxu0
    %v2191 = vadd.f32 %v2177, %v2190
    %v2192 = vpop.f32.mrf.mxu0
    %v2193 = vadd.f32 %v2179, %v2192
    %2194 = vdwg.mxu0
    %2195 = vmatpush.bf16.msra.mxu0 %v2131
    %2196 = vmatpush.bf16.msra.mxu0 %v2129
    %2197 = vmatpush.bf16.msra.mxu0 %v2127
    %2198 = vmatpush.bf16.msra.mxu0 %v2125
    %2199 = vmatpush.bf16.msra.mxu0 %v2123
    %2200 = vmatpush.bf16.msra.mxu0 %v2121
    %2201 = vmatpush.bf16.msra.mxu0 %v2119
    %2202 = vmatpush.bf16.msra.mxu0 %v2117
    %2203 = vmatmul.bf16.gmra.mxu0 %v2042
    %v2204 = vpop.f32.mrf.mxu0
    %v2205 = vadd.f32 0.0, %v2204
    %v2206 = vpop.f32.mrf.mxu0
    %v2207 = vadd.f32 0.0, %v2206
    %2208 = vdwg.mxu0
    %2209 = vmatpush.bf16.msra.mxu0 0
    %2210 = vmatpush.bf16.msra.mxu0 0
    %2211 = vmatpush.bf16.msra.mxu0 0
    %2212 = vmatpush.bf16.msra.mxu0 0
    %2213 = vmatpush.bf16.msra.mxu0 %v2139
    %2214 = vmatpush.bf16.msra.mxu0 %v2137
    %2215 = vmatpush.bf16.msra.mxu0 %v2135
    %2216 = vmatpush.bf16.msra.mxu0 %v2133
    %2217 = vmatmul.bf16.gmra.mxu0 %v2165
    %v2218 = vpop.f32.mrf.mxu0
    %v2219 = vadd.f32 %v2205, %v2218
    %v2220 = vpop.f32.mrf.mxu0
    %v2221 = vadd.f32 %v2207, %v2220
    %2222 = vdwg.mxu0
    %v2223 = vadd.f32 %v1974, %v2191
    %v2224 = vadd.f32 %v1975, %v2219
    %v2225 = vadd.f32 %v1976, %v2193
    %v2226 = vadd.f32 %v1977, %v2221
    %s2227 = scalar_lea.vmem [#allocation6], 40
    %v2228 = vld [vmem:[%s2227] sm:$0xf]
    %v2229 = vld [vmem:[%s2227 + $0x4] sm:$0xf]
    %v2232 = vunpack.c.l.b16 %v2228
    %v2233 = vunpack.c.l.b16 %v2229
    %v2234 = vpack.c.b16 %v2233, %v2232
    %v2236 = vsel %vm984, %v2234, 0
    %2238 = vmatpush.bf16.msra.mxu0 0
    %2239 = vmatpush.bf16.msra.mxu0 0
    %2240 = vmatpush.bf16.msra.mxu0 0
    %2241 = vmatpush.bf16.msra.mxu0 0
    %2242 = vmatpush.bf16.msra.mxu0 0
    %2243 = vmatpush.bf16.msra.mxu0 0
    %2244 = vmatpush.bf16.msra.mxu0 %v977
    %2245 = vmatpush.bf16.msra.mxu0 %v975
    %2246 = vmatmul.bf16.gmra.mxu0 %v2236
    %v2247 = vpop.f32.mrf.mxu0
    %v2248 = vadd.f32 0.0, %v2247
    %v2249 = vpop.f32.mrf.mxu0
    %v2250 = vadd.f32 0.0, %v2249
    %2251 = vdwg.mxu0
    %2252 = vmatpush.bf16.msra.mxu0 0
    %2253 = vmatpush.bf16.msra.mxu0 0
    %2254 = vmatpush.bf16.msra.mxu0 0
    %2255 = vmatpush.bf16.msra.mxu0 0
    %2256 = vmatpush.bf16.msra.mxu0 0
    %2257 = vmatpush.bf16.msra.mxu0 0
    %2258 = vmatpush.bf16.msra.mxu0 %v978
    %2259 = vmatpush.bf16.msra.mxu0 %v976
    %2260 = vmatmul.bf16.gmra.mxu0 %v2236
    %v2261 = vpop.f32.mrf.mxu0
    %v2262 = vadd.f32 0.0, %v2261
    %v2263 = vpop.f32.mrf.mxu0
    %v2264 = vadd.f32 0.0, %v2263
    %2265 = vdwg.mxu0
    %s2266 = scalar_lea.vmem [#allocation8], 960
    %v2267 = vld [vmem:[%s2266] sm:$0xff]
    %v2268 = vld [vmem:[%s2266 + $0x8] sm:$0xff]
    %v2269 = vld [vmem:[%s2266 + $0x10] sm:$0xff]
    %v2270 = vld [vmem:[%s2266 + $0x18] sm:$0xff]
    %v2271 = vld [vmem:[%s2266 + $0x20] sm:$0xff]
    %v2272 = vld [vmem:[%s2266 + $0x28] sm:$0xff]
    %v2273 = vld [vmem:[%s2266 + $0x30] sm:$0xff]
    %v2274 = vld [vmem:[%s2266 + $0x38] sm:$0xff]
    %v2275 = vld [vmem:[%s2266 + $0x40] sm:$0xff]
    %v2276 = vld [vmem:[%s2266 + $0x48] sm:$0xff]
    %v2277 = vld [vmem:[%s2266 + $0x50] sm:$0xff]
    %v2278 = vld [vmem:[%s2266 + $0x58] sm:$0xff]
    %v2279 = vld [vmem:[%s2266 + $0x60] sm:$0xff]
    %v2280 = vld [vmem:[%s2266 + $0x68] sm:$0xff]
    %v2281 = vld [vmem:[%s2266 + $0x70] sm:$0xff]
    %v2282 = vld [vmem:[%s2266 + $0x78] sm:$0xff]
    %v2283 = vld [vmem:[%s2266 + $0x80] sm:$0xff]
    %v2284 = vld [vmem:[%s2266 + $0x88] sm:$0xff]
    %v2285 = vld [vmem:[%s2266 + $0x90] sm:$0xff]
    %v2286 = vld [vmem:[%s2266 + $0x98] sm:$0xff]
    %v2287 = vld [vmem:[%s2266 + $0xa0] sm:$0xff]
    %v2288 = vld [vmem:[%s2266 + $0xa8] sm:$0xff]
    %v2289 = vld [vmem:[%s2266 + $0xb0] sm:$0xff]
    %v2290 = vld [vmem:[%s2266 + $0xb8] sm:$0xff]
    %v2291 = vpack.c.bf16 %v2250, %v2248
    %v2292 = vpack.c.bf16 %v2264, %v2262
    %v2317 = vunpack.c.l.b16 %v2267
    %v2318 = vunpack.c.h.b16 %v2267
    %v2319 = vunpack.c.l.b16 %v2268
    %v2320 = vunpack.c.h.b16 %v2268
    %v2321 = vunpack.c.l.b16 %v2269
    %v2322 = vunpack.c.h.b16 %v2269
    %v2323 = vunpack.c.l.b16 %v2270
    %v2324 = vunpack.c.h.b16 %v2270
    %v2325 = vunpack.c.l.b16 %v2271
    %v2326 = vunpack.c.h.b16 %v2271
    %v2327 = vunpack.c.l.b16 %v2272
    %v2328 = vunpack.c.h.b16 %v2272
    %v2329 = vunpack.c.l.b16 %v2273
    %v2330 = vunpack.c.h.b16 %v2273
    %v2331 = vunpack.c.l.b16 %v2274
    %v2332 = vunpack.c.h.b16 %v2274
    %v2333 = vunpack.c.l.b16 %v2275
    %v2334 = vunpack.c.h.b16 %v2275
    %v2335 = vunpack.c.l.b16 %v2276
    %v2336 = vunpack.c.h.b16 %v2276
    %v2337 = vunpack.c.l.b16 %v2277
    %v2338 = vunpack.c.h.b16 %v2277
    %v2339 = vunpack.c.l.b16 %v2278
    %v2340 = vunpack.c.h.b16 %v2278
    %v2341 = vunpack.c.l.b16 %v2279
    %v2342 = vunpack.c.h.b16 %v2279
    %v2343 = vunpack.c.l.b16 %v2280
    %v2344 = vunpack.c.h.b16 %v2280
    %v2345 = vunpack.c.l.b16 %v2281
    %v2346 = vunpack.c.h.b16 %v2281
    %v2347 = vunpack.c.l.b16 %v2282
    %v2348 = vunpack.c.h.b16 %v2282
    %v2349 = vunpack.c.l.b16 %v2283
    %v2350 = vunpack.c.h.b16 %v2283
    %v2351 = vunpack.c.l.b16 %v2284
    %v2352 = vunpack.c.h.b16 %v2284
    %v2353 = vunpack.c.l.b16 %v2285
    %v2354 = vunpack.c.h.b16 %v2285
    %v2355 = vunpack.c.l.b16 %v2286
    %v2356 = vunpack.c.h.b16 %v2286
    %v2357 = vunpack.c.l.b16 %v2287
    %v2358 = vunpack.c.h.b16 %v2287
    %v2359 = vunpack.c.l.b16 %v2288
    %v2360 = vunpack.c.h.b16 %v2288
    %v2361 = vunpack.c.l.b16 %v2289
    %v2362 = vunpack.c.h.b16 %v2289
    %v2363 = vunpack.c.l.b16 %v2290
    %v2364 = vunpack.c.h.b16 %v2290
    %v2365 = vpack.c.b16 %v2319, %v2317
    %v2366 = vpack.c.b16 %v2320, %v2318
    %v2367 = vpack.c.b16 %v2323, %v2321
    %v2368 = vpack.c.b16 %v2324, %v2322
    %v2369 = vpack.c.b16 %v2327, %v2325
    %v2370 = vpack.c.b16 %v2328, %v2326
    %v2371 = vpack.c.b16 %v2331, %v2329
    %v2372 = vpack.c.b16 %v2332, %v2330
    %v2373 = vpack.c.b16 %v2335, %v2333
    %v2374 = vpack.c.b16 %v2336, %v2334
    %v2375 = vpack.c.b16 %v2339, %v2337
    %v2376 = vpack.c.b16 %v2340, %v2338
    %v2377 = vpack.c.b16 %v2343, %v2341
    %v2378 = vpack.c.b16 %v2344, %v2342
    %v2379 = vpack.c.b16 %v2347, %v2345
    %v2380 = vpack.c.b16 %v2348, %v2346
    %v2381 = vpack.c.b16 %v2351, %v2349
    %v2382 = vpack.c.b16 %v2352, %v2350
    %v2383 = vpack.c.b16 %v2355, %v2353
    %v2384 = vpack.c.b16 %v2356, %v2354
    %v2385 = vpack.c.b16 %v2359, %v2357
    %v2386 = vpack.c.b16 %v2360, %v2358
    %v2387 = vpack.c.b16 %v2363, %v2361
    %v2388 = vpack.c.b16 %v2364, %v2362
    %v2414 = vsel %vm1162, %v2292, 0
    %2416 = vmatpush.bf16.msra.mxu0 %v2379
    %2417 = vmatpush.bf16.msra.mxu0 %v2377
    %2418 = vmatpush.bf16.msra.mxu0 %v2375
    %2419 = vmatpush.bf16.msra.mxu0 %v2373
    %2420 = vmatpush.bf16.msra.mxu0 %v2371
    %2421 = vmatpush.bf16.msra.mxu0 %v2369
    %2422 = vmatpush.bf16.msra.mxu0 %v2367
    %2423 = vmatpush.bf16.msra.mxu0 %v2365
    %2424 = vmatmul.bf16.gmra.mxu0 %v2291
    %v2425 = vpop.f32.mrf.mxu0
    %v2426 = vadd.f32 0.0, %v2425
    %v2427 = vpop.f32.mrf.mxu0
    %v2428 = vadd.f32 0.0, %v2427
    %2429 = vdwg.mxu0
    %2430 = vmatpush.bf16.msra.mxu0 0
    %2431 = vmatpush.bf16.msra.mxu0 0
    %2432 = vmatpush.bf16.msra.mxu0 0
    %2433 = vmatpush.bf16.msra.mxu0 0
    %2434 = vmatpush.bf16.msra.mxu0 %v2387
    %2435 = vmatpush.bf16.msra.mxu0 %v2385
    %2436 = vmatpush.bf16.msra.mxu0 %v2383
    %2437 = vmatpush.bf16.msra.mxu0 %v2381
    %2438 = vmatmul.bf16.gmra.mxu0 %v2414
    %v2439 = vpop.f32.mrf.mxu0
    %v2440 = vadd.f32 %v2426, %v2439
    %v2441 = vpop.f32.mrf.mxu0
    %v2442 = vadd.f32 %v2428, %v2441
    %2443 = vdwg.mxu0
    %2444 = vmatpush.bf16.msra.mxu0 %v2380
    %2445 = vmatpush.bf16.msra.mxu0 %v2378
    %2446 = vmatpush.bf16.msra.mxu0 %v2376
    %2447 = vmatpush.bf16.msra.mxu0 %v2374
    %2448 = vmatpush.bf16.msra.mxu0 %v2372
    %2449 = vmatpush.bf16.msra.mxu0 %v2370
    %2450 = vmatpush.bf16.msra.mxu0 %v2368
    %2451 = vmatpush.bf16.msra.mxu0 %v2366
    %2452 = vmatmul.bf16.gmra.mxu0 %v2291
    %v2453 = vpop.f32.mrf.mxu0
    %v2454 = vadd.f32 0.0, %v2453
    %v2455 = vpop.f32.mrf.mxu0
    %v2456 = vadd.f32 0.0, %v2455
    %2457 = vdwg.mxu0
    %2458 = vmatpush.bf16.msra.mxu0 0
    %2459 = vmatpush.bf16.msra.mxu0 0
    %2460 = vmatpush.bf16.msra.mxu0 0
    %2461 = vmatpush.bf16.msra.mxu0 0
    %2462 = vmatpush.bf16.msra.mxu0 %v2388
    %2463 = vmatpush.bf16.msra.mxu0 %v2386
    %2464 = vmatpush.bf16.msra.mxu0 %v2384
    %2465 = vmatpush.bf16.msra.mxu0 %v2382
    %2466 = vmatmul.bf16.gmra.mxu0 %v2414
    %v2467 = vpop.f32.mrf.mxu0
    %v2468 = vadd.f32 %v2454, %v2467
    %v2469 = vpop.f32.mrf.mxu0
    %v2470 = vadd.f32 %v2456, %v2469
    %2471 = vdwg.mxu0
    %v2472 = vadd.f32 %v2223, %v2440
    %v2473 = vadd.f32 %v2224, %v2468
    %v2474 = vadd.f32 %v2225, %v2442
    %v2475 = vadd.f32 %v2226, %v2470
    %s2476 = scalar_lea.vmem [#allocation6], 48
    %v2477 = vld [vmem:[%s2476] sm:$0xf]
    %v2478 = vld [vmem:[%s2476 + $0x4] sm:$0xf]
    %v2481 = vunpack.c.l.b16 %v2477
    %v2482 = vunpack.c.l.b16 %v2478
    %v2483 = vpack.c.b16 %v2482, %v2481
    %v2485 = vsel %vm984, %v2483, 0
    %2487 = vmatpush.bf16.msra.mxu0 0
    %2488 = vmatpush.bf16.msra.mxu0 0
    %2489 = vmatpush.bf16.msra.mxu0 0
    %2490 = vmatpush.bf16.msra.mxu0 0
    %2491 = vmatpush.bf16.msra.mxu0 0
    %2492 = vmatpush.bf16.msra.mxu0 0
    %2493 = vmatpush.bf16.msra.mxu0 %v977
    %2494 = vmatpush.bf16.msra.mxu0 %v975
    %2495 = vmatmul.bf16.gmra.mxu0 %v2485
    %v2496 = vpop.f32.mrf.mxu0
    %v2497 = vadd.f32 0.0, %v2496
    %v2498 = vpop.f32.mrf.mxu0
    %v2499 = vadd.f32 0.0, %v2498
    %2500 = vdwg.mxu0
    %2501 = vmatpush.bf16.msra.mxu0 0
    %2502 = vmatpush.bf16.msra.mxu0 0
    %2503 = vmatpush.bf16.msra.mxu0 0
    %2504 = vmatpush.bf16.msra.mxu0 0
    %2505 = vmatpush.bf16.msra.mxu0 0
    %2506 = vmatpush.bf16.msra.mxu0 0
    %2507 = vmatpush.bf16.msra.mxu0 %v978
    %2508 = vmatpush.bf16.msra.mxu0 %v976
    %2509 = vmatmul.bf16.gmra.mxu0 %v2485
    %v2510 = vpop.f32.mrf.mxu0
    %v2511 = vadd.f32 0.0, %v2510
    %v2512 = vpop.f32.mrf.mxu0
    %v2513 = vadd.f32 0.0, %v2512
    %2514 = vdwg.mxu0
    %s2515 = scalar_lea.vmem [#allocation8], 1152
    %v2516 = vld [vmem:[%s2515] sm:$0xff]
    %v2517 = vld [vmem:[%s2515 + $0x8] sm:$0xff]
    %v2518 = vld [vmem:[%s2515 + $0x10] sm:$0xff]
    %v2519 = vld [vmem:[%s2515 + $0x18] sm:$0xff]
    %v2520 = vld [vmem:[%s2515 + $0x20] sm:$0xff]
    %v2521 = vld [vmem:[%s2515 + $0x28] sm:$0xff]
    %v2522 = vld [vmem:[%s2515 + $0x30] sm:$0xff]
    %v2523 = vld [vmem:[%s2515 + $0x38] sm:$0xff]
    %v2524 = vld [vmem:[%s2515 + $0x40] sm:$0xff]
    %v2525 = vld [vmem:[%s2515 + $0x48] sm:$0xff]
    %v2526 = vld [vmem:[%s2515 + $0x50] sm:$0xff]
    %v2527 = vld [vmem:[%s2515 + $0x58] sm:$0xff]
    %v2528 = vld [vmem:[%s2515 + $0x60] sm:$0xff]
    %v2529 = vld [vmem:[%s2515 + $0x68] sm:$0xff]
    %v2530 = vld [vmem:[%s2515 + $0x70] sm:$0xff]
    %v2531 = vld [vmem:[%s2515 + $0x78] sm:$0xff]
    %v2532 = vld [vmem:[%s2515 + $0x80] sm:$0xff]
    %v2533 = vld [vmem:[%s2515 + $0x88] sm:$0xff]
    %v2534 = vld [vmem:[%s2515 + $0x90] sm:$0xff]
    %v2535 = vld [vmem:[%s2515 + $0x98] sm:$0xff]
    %v2536 = vld [vmem:[%s2515 + $0xa0] sm:$0xff]
    %v2537 = vld [vmem:[%s2515 + $0xa8] sm:$0xff]
    %v2538 = vld [vmem:[%s2515 + $0xb0] sm:$0xff]
    %v2539 = vld [vmem:[%s2515 + $0xb8] sm:$0xff]
    %v2540 = vpack.c.bf16 %v2499, %v2497
    %v2541 = vpack.c.bf16 %v2513, %v2511
    %v2566 = vunpack.c.l.b16 %v2516
    %v2567 = vunpack.c.h.b16 %v2516
    %v2568 = vunpack.c.l.b16 %v2517
    %v2569 = vunpack.c.h.b16 %v2517
    %v2570 = vunpack.c.l.b16 %v2518
    %v2571 = vunpack.c.h.b16 %v2518
    %v2572 = vunpack.c.l.b16 %v2519
    %v2573 = vunpack.c.h.b16 %v2519
    %v2574 = vunpack.c.l.b16 %v2520
    %v2575 = vunpack.c.h.b16 %v2520
    %v2576 = vunpack.c.l.b16 %v2521
    %v2577 = vunpack.c.h.b16 %v2521
    %v2578 = vunpack.c.l.b16 %v2522
    %v2579 = vunpack.c.h.b16 %v2522
    %v2580 = vunpack.c.l.b16 %v2523
    %v2581 = vunpack.c.h.b16 %v2523
    %v2582 = vunpack.c.l.b16 %v2524
    %v2583 = vunpack.c.h.b16 %v2524
    %v2584 = vunpack.c.l.b16 %v2525
    %v2585 = vunpack.c.h.b16 %v2525
    %v2586 = vunpack.c.l.b16 %v2526
    %v2587 = vunpack.c.h.b16 %v2526
    %v2588 = vunpack.c.l.b16 %v2527
    %v2589 = vunpack.c.h.b16 %v2527
    %v2590 = vunpack.c.l.b16 %v2528
    %v2591 = vunpack.c.h.b16 %v2528
    %v2592 = vunpack.c.l.b16 %v2529
    %v2593 = vunpack.c.h.b16 %v2529
    %v2594 = vunpack.c.l.b16 %v2530
    %v2595 = vunpack.c.h.b16 %v2530
    %v2596 = vunpack.c.l.b16 %v2531
    %v2597 = vunpack.c.h.b16 %v2531
    %v2598 = vunpack.c.l.b16 %v2532
    %v2599 = vunpack.c.h.b16 %v2532
    %v2600 = vunpack.c.l.b16 %v2533
    %v2601 = vunpack.c.h.b16 %v2533
    %v2602 = vunpack.c.l.b16 %v2534
    %v2603 = vunpack.c.h.b16 %v2534
    %v2604 = vunpack.c.l.b16 %v2535
    %v2605 = vunpack.c.h.b16 %v2535
    %v2606 = vunpack.c.l.b16 %v2536
    %v2607 = vunpack.c.h.b16 %v2536
    %v2608 = vunpack.c.l.b16 %v2537
    %v2609 = vunpack.c.h.b16 %v2537
    %v2610 = vunpack.c.l.b16 %v2538
    %v2611 = vunpack.c.h.b16 %v2538
    %v2612 = vunpack.c.l.b16 %v2539
    %v2613 = vunpack.c.h.b16 %v2539
    %v2614 = vpack.c.b16 %v2568, %v2566
    %v2615 = vpack.c.b16 %v2569, %v2567
    %v2616 = vpack.c.b16 %v2572, %v2570
    %v2617 = vpack.c.b16 %v2573, %v2571
    %v2618 = vpack.c.b16 %v2576, %v2574
    %v2619 = vpack.c.b16 %v2577, %v2575
    %v2620 = vpack.c.b16 %v2580, %v2578
    %v2621 = vpack.c.b16 %v2581, %v2579
    %v2622 = vpack.c.b16 %v2584, %v2582
    %v2623 = vpack.c.b16 %v2585, %v2583
    %v2624 = vpack.c.b16 %v2588, %v2586
    %v2625 = vpack.c.b16 %v2589, %v2587
    %v2626 = vpack.c.b16 %v2592, %v2590
    %v2627 = vpack.c.b16 %v2593, %v2591
    %v2628 = vpack.c.b16 %v2596, %v2594
    %v2629 = vpack.c.b16 %v2597, %v2595
    %v2630 = vpack.c.b16 %v2600, %v2598
    %v2631 = vpack.c.b16 %v2601, %v2599
    %v2632 = vpack.c.b16 %v2604, %v2602
    %v2633 = vpack.c.b16 %v2605, %v2603
    %v2634 = vpack.c.b16 %v2608, %v2606
    %v2635 = vpack.c.b16 %v2609, %v2607
    %v2636 = vpack.c.b16 %v2612, %v2610
    %v2637 = vpack.c.b16 %v2613, %v2611
    %v2663 = vsel %vm1162, %v2541, 0
    %2665 = vmatpush.bf16.msra.mxu0 %v2628
    %2666 = vmatpush.bf16.msra.mxu0 %v2626
    %2667 = vmatpush.bf16.msra.mxu0 %v2624
    %2668 = vmatpush.bf16.msra.mxu0 %v2622
    %2669 = vmatpush.bf16.msra.mxu0 %v2620
    %2670 = vmatpush.bf16.msra.mxu0 %v2618
    %2671 = vmatpush.bf16.msra.mxu0 %v2616
    %2672 = vmatpush.bf16.msra.mxu0 %v2614
    %2673 = vmatmul.bf16.gmra.mxu0 %v2540
    %v2674 = vpop.f32.mrf.mxu0
    %v2675 = vadd.f32 0.0, %v2674
    %v2676 = vpop.f32.mrf.mxu0
    %v2677 = vadd.f32 0.0, %v2676
    %2678 = vdwg.mxu0
    %2679 = vmatpush.bf16.msra.mxu0 0
    %2680 = vmatpush.bf16.msra.mxu0 0
    %2681 = vmatpush.bf16.msra.mxu0 0
    %2682 = vmatpush.bf16.msra.mxu0 0
    %2683 = vmatpush.bf16.msra.mxu0 %v2636
    %2684 = vmatpush.bf16.msra.mxu0 %v2634
    %2685 = vmatpush.bf16.msra.mxu0 %v2632
    %2686 = vmatpush.bf16.msra.mxu0 %v2630
    %2687 = vmatmul.bf16.gmra.mxu0 %v2663
    %v2688 = vpop.f32.mrf.mxu0
    %v2689 = vadd.f32 %v2675, %v2688
    %v2690 = vpop.f32.mrf.mxu0
    %v2691 = vadd.f32 %v2677, %v2690
    %2692 = vdwg.mxu0
    %2693 = vmatpush.bf16.msra.mxu0 %v2629
    %2694 = vmatpush.bf16.msra.mxu0 %v2627
    %2695 = vmatpush.bf16.msra.mxu0 %v2625
    %2696 = vmatpush.bf16.msra.mxu0 %v2623
    %2697 = vmatpush.bf16.msra.mxu0 %v2621
    %2698 = vmatpush.bf16.msra.mxu0 %v2619
    %2699 = vmatpush.bf16.msra.mxu0 %v2617
    %2700 = vmatpush.bf16.msra.mxu0 %v2615
    %2701 = vmatmul.bf16.gmra.mxu0 %v2540
    %v2702 = vpop.f32.mrf.mxu0
    %v2703 = vadd.f32 0.0, %v2702
    %v2704 = vpop.f32.mrf.mxu0
    %v2705 = vadd.f32 0.0, %v2704
    %2706 = vdwg.mxu0
    %2707 = vmatpush.bf16.msra.mxu0 0
    %2708 = vmatpush.bf16.msra.mxu0 0
    %2709 = vmatpush.bf16.msra.mxu0 0
    %2710 = vmatpush.bf16.msra.mxu0 0
    %2711 = vmatpush.bf16.msra.mxu0 %v2637
    %2712 = vmatpush.bf16.msra.mxu0 %v2635
    %2713 = vmatpush.bf16.msra.mxu0 %v2633
    %2714 = vmatpush.bf16.msra.mxu0 %v2631
    %2715 = vmatmul.bf16.gmra.mxu0 %v2663
    %v2716 = vpop.f32.mrf.mxu0
    %v2717 = vadd.f32 %v2703, %v2716
    %v2718 = vpop.f32.mrf.mxu0
    %v2719 = vadd.f32 %v2705, %v2718
    %2720 = vdwg.mxu0
    %v2721 = vadd.f32 %v2472, %v2689
    %v2722 = vadd.f32 %v2473, %v2717
    %v2723 = vadd.f32 %v2474, %v2691
    %v2724 = vadd.f32 %v2475, %v2719
    %v2725 = vmax.f32 %v2721, 0.0
    %v2726 = vmax.f32 %v2722, 0.0
    %v2727 = vmax.f32 %v2723, 0.0
    %v2728 = vmax.f32 %v2724, 0.0
    %v2729 = vld [vmem:[#allocation10] sm:$0xf]
    %v2730 = vpack.c.bf16 %v2727, %v2725
    %v2731 = vpack.c.bf16 %v2728, %v2726
    %vm2732 = vcmask 130048
    %v2734 = vsel %vm2732, %v2729, 0
    %2736 = vmatpush.bf16.msra.mxu0 0
    %2737 = vmatpush.bf16.msra.mxu0 0
    %2738 = vmatpush.bf16.msra.mxu0 0
    %2739 = vmatpush.bf16.msra.mxu0 0
    %2740 = vmatpush.bf16.msra.mxu0 0
    %2741 = vmatpush.bf16.msra.mxu0 0
    %2742 = vmatpush.bf16.msra.mxu0 0
    %2743 = vmatpush.bf16.msra.mxu0 %v2730
    %2744 = vmatmul.bf16.gmra.mxu0 %v2734
    %v2745 = vpop.f32.mrf.mxu0
    %v2746 = vadd.f32 0.0, %v2745
    %v2747 = vpop.f32.mrf.mxu0
    %2748 = vdwg.mxu0
    %2749 = vmatpush.bf16.msra.mxu0 0
    %2750 = vmatpush.bf16.msra.mxu0 0
    %2751 = vmatpush.bf16.msra.mxu0 0
    %2752 = vmatpush.bf16.msra.mxu0 0
    %2753 = vmatpush.bf16.msra.mxu0 0
    %2754 = vmatpush.bf16.msra.mxu0 0
    %2755 = vmatpush.bf16.msra.mxu0 0
    %2756 = vmatpush.bf16.msra.mxu0 %v2731
    %2757 = vmatmul.bf16.gmra.mxu0 %v2734
    %v2758 = vpop.f32.mrf.mxu0
    %v2759 = vadd.f32 0.0, %v2758
    %v2760 = vpop.f32.mrf.mxu0
    %2761 = vdwg.mxu0
    %v2762 = vld [vmem:[%s11] sm:$0xf]
    %v2763 = vld [vmem:[%s11 + $0x4] sm:$0xf]
    %v2764 = vld [vmem:[%s11 + $0x8] sm:$0xf]
    %v2765 = vld [vmem:[%s11 + $0xc] sm:$0xf]
    %v2766 = vld [vmem:[%s11 + $0x10] sm:$0xf]
    %v2767 = vld [vmem:[%s11 + $0x14] sm:$0xf]
    %v2768 = vld [vmem:[%s11 + $0x18] sm:$0xf]
    %v2769 = vld [vmem:[%s11 + $0x1c] sm:$0xf]
    %v2770 = vld [vmem:[%s11 + $0x20] sm:$0xf]
    %v2771 = vld [vmem:[%s11 + $0x24] sm:$0xf]
    %v2772 = vld [vmem:[%s11 + $0x28] sm:$0xf]
    %v2773 = vld [vmem:[%s11 + $0x2c] sm:$0xf]
    %v2774 = vld [vmem:[%s11 + $0x30] sm:$0xf]
    %v2775 = vld [vmem:[%s11 + $0x34] sm:$0xf]
    %v2776 = vld [vmem:[%s11 + $0x38] sm:$0xf]
    %v2777 = vld [vmem:[%s11 + $0x3c] sm:$0xf]
    %v2778 = vld [vmem:[%s11 + $0x40] sm:$0xf]
    %v2779 = vld [vmem:[%s11 + $0x44] sm:$0xf]
    %v2780 = vld [vmem:[%s11 + $0x48] sm:$0xf]
    %v2781 = vld [vmem:[%s11 + $0x4c] sm:$0xf]
    %v2782 = vld [vmem:[%s11 + $0x50] sm:$0xf]
    %v2783 = vld [vmem:[%s11 + $0x54] sm:$0xf]
    %v2784 = vld [vmem:[%s11 + $0x58] sm:$0xf]
    %v2785 = vld [vmem:[%s11 + $0x5c] sm:$0xf]
    %v2786 = vld [vmem:[%s11 + $0x60] sm:$0xf]
    %v2787 = vld [vmem:[%s11 + $0x64] sm:$0xf]
    %v2788 = vld [vmem:[%s11 + $0x68] sm:$0xf]
    %v2789 = vld [vmem:[%s11 + $0x6c] sm:$0xf]
    %v2790 = vld [vmem:[%s11 + $0x70] sm:$0xf]
    %v2791 = vld [vmem:[%s11 + $0x74] sm:$0xf]
    %v2792 = vld [vmem:[%s11 + $0x78] sm:$0xf]
    %v2793 = vld [vmem:[%s11 + $0x7c] sm:$0xf]
    %v2794 = vpack.c.bf16 %v2746, %v2746
    %v2795 = vpack.c.bf16 %v2759, %v2759
    %v2828 = vunpack.c.l.b16 %v2762
    %v2829 = vunpack.c.l.b16 %v2763
    %v2830 = vunpack.c.l.b16 %v2764
    %v2831 = vunpack.c.l.b16 %v2765
    %v2832 = vunpack.c.l.b16 %v2766
    %v2833 = vunpack.c.l.b16 %v2767
    %v2834 = vunpack.c.l.b16 %v2768
    %v2835 = vunpack.c.l.b16 %v2769
    %v2836 = vunpack.c.l.b16 %v2770
    %v2837 = vunpack.c.l.b16 %v2771
    %v2838 = vunpack.c.l.b16 %v2772
    %v2839 = vunpack.c.l.b16 %v2773
    %v2840 = vunpack.c.l.b16 %v2774
    %v2841 = vunpack.c.l.b16 %v2775
    %v2842 = vunpack.c.l.b16 %v2776
    %v2843 = vunpack.c.l.b16 %v2777
    %v2844 = vunpack.c.l.b16 %v2778
    %v2845 = vunpack.c.l.b16 %v2779
    %v2846 = vunpack.c.l.b16 %v2780
    %v2847 = vunpack.c.l.b16 %v2781
    %v2848 = vunpack.c.l.b16 %v2782
    %v2849 = vunpack.c.l.b16 %v2783
    %v2850 = vunpack.c.l.b16 %v2784
    %v2851 = vunpack.c.l.b16 %v2785
    %v2852 = vunpack.c.l.b16 %v2786
    %v2853 = vunpack.c.l.b16 %v2787
    %v2854 = vunpack.c.l.b16 %v2788
    %v2855 = vunpack.c.l.b16 %v2789
    %v2856 = vunpack.c.l.b16 %v2790
    %v2857 = vunpack.c.l.b16 %v2791
    %v2858 = vunpack.c.l.b16 %v2792
    %v2859 = vunpack.c.l.b16 %v2793
    %v2860 = vpack.c.b16 %v2829, %v2828
    %v2861 = vpack.c.b16 %v2831, %v2830
    %v2862 = vpack.c.b16 %v2833, %v2832
    %v2863 = vpack.c.b16 %v2835, %v2834
    %v2864 = vpack.c.b16 %v2837, %v2836
    %v2865 = vpack.c.b16 %v2839, %v2838
    %v2866 = vpack.c.b16 %v2841, %v2840
    %v2867 = vpack.c.b16 %v2843, %v2842
    %v2868 = vpack.c.b16 %v2845, %v2844
    %v2869 = vpack.c.b16 %v2847, %v2846
    %v2870 = vpack.c.b16 %v2849, %v2848
    %v2871 = vpack.c.b16 %v2851, %v2850
    %v2872 = vpack.c.b16 %v2853, %v2852
    %v2873 = vpack.c.b16 %v2855, %v2854
    %v2874 = vpack.c.b16 %v2857, %v2856
    %v2875 = vpack.c.b16 %v2859, %v2858
    %2892 = vmatpush.bf16.msra.mxu0 %v2867
    %2893 = vmatpush.bf16.msra.mxu0 %v2866
    %2894 = vmatpush.bf16.msra.mxu0 %v2865
    %2895 = vmatpush.bf16.msra.mxu0 %v2864
    %2896 = vmatpush.bf16.msra.mxu0 %v2863
    %2897 = vmatpush.bf16.msra.mxu0 %v2862
    %2898 = vmatpush.bf16.msra.mxu0 %v2861
    %2899 = vmatpush.bf16.msra.mxu0 %v2860
    %2900 = vmatmul.bf16.gmra.mxu0 %v2794
    %v2901 = vpop.f32.mrf.mxu0
    %v2902 = vadd.f32 0.0, %v2901
    %v2903 = vpop.f32.mrf.mxu0
    %2904 = vdwg.mxu0
    %2905 = vmatpush.bf16.msra.mxu0 %v2875
    %2906 = vmatpush.bf16.msra.mxu0 %v2874
    %2907 = vmatpush.bf16.msra.mxu0 %v2873
    %2908 = vmatpush.bf16.msra.mxu0 %v2872
    %2909 = vmatpush.bf16.msra.mxu0 %v2871
    %2910 = vmatpush.bf16.msra.mxu0 %v2870
    %2911 = vmatpush.bf16.msra.mxu0 %v2869
    %2912 = vmatpush.bf16.msra.mxu0 %v2868
    %2913 = vmatmul.bf16.gmra.mxu0 %v2795
    %v2914 = vpop.f32.mrf.mxu0
    %v2915 = vadd.f32 %v2902, %v2914
    %v2916 = vpop.f32.mrf.mxu0
    %2917 = vdwg.mxu0
    %s2918 = scalar_lea.vmem %s11, 128
    %v2919 = vld [vmem:[%s2918] sm:$0xf]
    %v2920 = vld [vmem:[%s2918 + $0x4] sm:$0xf]
    %v2921 = vld [vmem:[%s2918 + $0x8] sm:$0xf]
    %v2922 = vld [vmem:[%s2918 + $0xc] sm:$0xf]
    %v2923 = vld [vmem:[%s2918 + $0x10] sm:$0xf]
    %v2924 = vld [vmem:[%s2918 + $0x14] sm:$0xf]
    %v2925 = vld [vmem:[%s2918 + $0x18] sm:$0xf]
    %v2926 = vld [vmem:[%s2918 + $0x1c] sm:$0xf]
    %v2927 = vld [vmem:[%s2918 + $0x20] sm:$0xf]
    %v2928 = vld [vmem:[%s2918 + $0x24] sm:$0xf]
    %v2929 = vld [vmem:[%s2918 + $0x28] sm:$0xf]
    %v2930 = vld [vmem:[%s2918 + $0x2c] sm:$0xf]
    %v2931 = vld [vmem:[%s2918 + $0x30] sm:$0xf]
    %v2932 = vld [vmem:[%s2918 + $0x34] sm:$0xf]
    %v2933 = vld [vmem:[%s2918 + $0x38] sm:$0xf]
    %v2934 = vld [vmem:[%s2918 + $0x3c] sm:$0xf]
    %v2935 = vld [vmem:[%s2918 + $0x40] sm:$0xf]
    %v2936 = vld [vmem:[%s2918 + $0x44] sm:$0xf]
    %v2937 = vld [vmem:[%s2918 + $0x48] sm:$0xf]
    %v2938 = vld [vmem:[%s2918 + $0x4c] sm:$0xf]
    %v2939 = vld [vmem:[%s2918 + $0x50] sm:$0xf]
    %v2940 = vld [vmem:[%s2918 + $0x54] sm:$0xf]
    %v2941 = vld [vmem:[%s2918 + $0x58] sm:$0xf]
    %v2942 = vld [vmem:[%s2918 + $0x5c] sm:$0xf]
    %v2943 = vld [vmem:[%s2918 + $0x60] sm:$0xf]
    %v2944 = vld [vmem:[%s2918 + $0x64] sm:$0xf]
    %v2945 = vld [vmem:[%s2918 + $0x68] sm:$0xf]
    %v2946 = vld [vmem:[%s2918 + $0x6c] sm:$0xf]
    %v2947 = vld [vmem:[%s2918 + $0x70] sm:$0xf]
    %v2948 = vld [vmem:[%s2918 + $0x74] sm:$0xf]
    %v2949 = vld [vmem:[%s2918 + $0x78] sm:$0xf]
    %v2950 = vld [vmem:[%s2918 + $0x7c] sm:$0xf]
    %v2983 = vunpack.c.l.b16 %v2919
    %v2984 = vunpack.c.l.b16 %v2920
    %v2985 = vunpack.c.l.b16 %v2921
    %v2986 = vunpack.c.l.b16 %v2922
    %v2987 = vunpack.c.l.b16 %v2923
    %v2988 = vunpack.c.l.b16 %v2924
    %v2989 = vunpack.c.l.b16 %v2925
    %v2990 = vunpack.c.l.b16 %v2926
    %v2991 = vunpack.c.l.b16 %v2927
    %v2992 = vunpack.c.l.b16 %v2928
    %v2993 = vunpack.c.l.b16 %v2929
    %v2994 = vunpack.c.l.b16 %v2930
    %v2995 = vunpack.c.l.b16 %v2931
    %v2996 = vunpack.c.l.b16 %v2932
    %v2997 = vunpack.c.l.b16 %v2933
    %v2998 = vunpack.c.l.b16 %v2934
    %v2999 = vunpack.c.l.b16 %v2935
    %v3000 = vunpack.c.l.b16 %v2936
    %v3001 = vunpack.c.l.b16 %v2937
    %v3002 = vunpack.c.l.b16 %v2938
    %v3003 = vunpack.c.l.b16 %v2939
    %v3004 = vunpack.c.l.b16 %v2940
    %v3005 = vunpack.c.l.b16 %v2941
    %v3006 = vunpack.c.l.b16 %v2942
    %v3007 = vunpack.c.l.b16 %v2943
    %v3008 = vunpack.c.l.b16 %v2944
    %v3009 = vunpack.c.l.b16 %v2945
    %v3010 = vunpack.c.l.b16 %v2946
    %v3011 = vunpack.c.l.b16 %v2947
    %v3012 = vunpack.c.l.b16 %v2948
    %v3013 = vunpack.c.l.b16 %v2949
    %v3014 = vunpack.c.l.b16 %v2950
    %v3015 = vpack.c.b16 %v2984, %v2983
    %v3016 = vpack.c.b16 %v2986, %v2985
    %v3017 = vpack.c.b16 %v2988, %v2987
    %v3018 = vpack.c.b16 %v2990, %v2989
    %v3019 = vpack.c.b16 %v2992, %v2991
    %v3020 = vpack.c.b16 %v2994, %v2993
    %v3021 = vpack.c.b16 %v2996, %v2995
    %v3022 = vpack.c.b16 %v2998, %v2997
    %v3023 = vpack.c.b16 %v3000, %v2999
    %v3024 = vpack.c.b16 %v3002, %v3001
    %v3025 = vpack.c.b16 %v3004, %v3003
    %v3026 = vpack.c.b16 %v3006, %v3005
    %v3027 = vpack.c.b16 %v3008, %v3007
    %v3028 = vpack.c.b16 %v3010, %v3009
    %v3029 = vpack.c.b16 %v3012, %v3011
    %v3030 = vpack.c.b16 %v3014, %v3013
    %3047 = vmatpush.bf16.msra.mxu0 %v3022
    %3048 = vmatpush.bf16.msra.mxu0 %v3021
    %3049 = vmatpush.bf16.msra.mxu0 %v3020
    %3050 = vmatpush.bf16.msra.mxu0 %v3019
    %3051 = vmatpush.bf16.msra.mxu0 %v3018
    %3052 = vmatpush.bf16.msra.mxu0 %v3017
    %3053 = vmatpush.bf16.msra.mxu0 %v3016
    %3054 = vmatpush.bf16.msra.mxu0 %v3015
    %3055 = vmatmul.bf16.gmra.mxu0 %v2794
    %v3056 = vpop.f32.mrf.mxu0
    %v3057 = vadd.f32 0.0, %v3056
    %v3058 = vpop.f32.mrf.mxu0
    %3059 = vdwg.mxu0
    %3060 = vmatpush.bf16.msra.mxu0 %v3030
    %3061 = vmatpush.bf16.msra.mxu0 %v3029
    %3062 = vmatpush.bf16.msra.mxu0 %v3028
    %3063 = vmatpush.bf16.msra.mxu0 %v3027
    %3064 = vmatpush.bf16.msra.mxu0 %v3026
    %3065 = vmatpush.bf16.msra.mxu0 %v3025
    %3066 = vmatpush.bf16.msra.mxu0 %v3024
    %3067 = vmatpush.bf16.msra.mxu0 %v3023
    %3068 = vmatmul.bf16.gmra.mxu0 %v2795
    %v3069 = vpop.f32.mrf.mxu0
    %v3070 = vadd.f32 %v3057, %v3069
    %v3071 = vpop.f32.mrf.mxu0
    %3072 = vdwg.mxu0
    %v3073 = vmax.f32 %v2915, %v3070
    %s3074 = scalar_lea.vmem %s11, 256
    %v3075 = vld [vmem:[%s3074] sm:$0xf]
    %v3076 = vld [vmem:[%s3074 + $0x4] sm:$0xf]
    %v3077 = vld [vmem:[%s3074 + $0x8] sm:$0xf]
    %v3078 = vld [vmem:[%s3074 + $0xc] sm:$0xf]
    %v3079 = vld [vmem:[%s3074 + $0x10] sm:$0xf]
    %v3080 = vld [vmem:[%s3074 + $0x14] sm:$0xf]
    %v3081 = vld [vmem:[%s3074 + $0x18] sm:$0xf]
    %v3082 = vld [vmem:[%s3074 + $0x1c] sm:$0xf]
    %v3083 = vld [vmem:[%s3074 + $0x20] sm:$0xf]
    %v3084 = vld [vmem:[%s3074 + $0x24] sm:$0xf]
    %v3085 = vld [vmem:[%s3074 + $0x28] sm:$0xf]
    %v3086 = vld [vmem:[%s3074 + $0x2c] sm:$0xf]
    %v3087 = vld [vmem:[%s3074 + $0x30] sm:$0xf]
    %v3088 = vld [vmem:[%s3074 + $0x34] sm:$0xf]
    %v3089 = vld [vmem:[%s3074 + $0x38] sm:$0xf]
    %v3090 = vld [vmem:[%s3074 + $0x3c] sm:$0xf]
    %v3091 = vld [vmem:[%s3074 + $0x40] sm:$0xf]
    %v3092 = vld [vmem:[%s3074 + $0x44] sm:$0xf]
    %v3093 = vld [vmem:[%s3074 + $0x48] sm:$0xf]
    %v3094 = vld [vmem:[%s3074 + $0x4c] sm:$0xf]
    %v3095 = vld [vmem:[%s3074 + $0x50] sm:$0xf]
    %v3096 = vld [vmem:[%s3074 + $0x54] sm:$0xf]
    %v3097 = vld [vmem:[%s3074 + $0x58] sm:$0xf]
    %v3098 = vld [vmem:[%s3074 + $0x5c] sm:$0xf]
    %v3099 = vld [vmem:[%s3074 + $0x60] sm:$0xf]
    %v3100 = vld [vmem:[%s3074 + $0x64] sm:$0xf]
    %v3101 = vld [vmem:[%s3074 + $0x68] sm:$0xf]
    %v3102 = vld [vmem:[%s3074 + $0x6c] sm:$0xf]
    %v3103 = vld [vmem:[%s3074 + $0x70] sm:$0xf]
    %v3104 = vld [vmem:[%s3074 + $0x74] sm:$0xf]
    %v3105 = vld [vmem:[%s3074 + $0x78] sm:$0xf]
    %v3106 = vld [vmem:[%s3074 + $0x7c] sm:$0xf]
    %v3139 = vunpack.c.l.b16 %v3075
    %v3140 = vunpack.c.l.b16 %v3076
    %v3141 = vunpack.c.l.b16 %v3077
    %v3142 = vunpack.c.l.b16 %v3078
    %v3143 = vunpack.c.l.b16 %v3079
    %v3144 = vunpack.c.l.b16 %v3080
    %v3145 = vunpack.c.l.b16 %v3081
    %v3146 = vunpack.c.l.b16 %v3082
    %v3147 = vunpack.c.l.b16 %v3083
    %v3148 = vunpack.c.l.b16 %v3084
    %v3149 = vunpack.c.l.b16 %v3085
    %v3150 = vunpack.c.l.b16 %v3086
    %v3151 = vunpack.c.l.b16 %v3087
    %v3152 = vunpack.c.l.b16 %v3088
    %v3153 = vunpack.c.l.b16 %v3089
    %v3154 = vunpack.c.l.b16 %v3090
    %v3155 = vunpack.c.l.b16 %v3091
    %v3156 = vunpack.c.l.b16 %v3092
    %v3157 = vunpack.c.l.b16 %v3093
    %v3158 = vunpack.c.l.b16 %v3094
    %v3159 = vunpack.c.l.b16 %v3095
    %v3160 = vunpack.c.l.b16 %v3096
    %v3161 = vunpack.c.l.b16 %v3097
    %v3162 = vunpack.c.l.b16 %v3098
    %v3163 = vunpack.c.l.b16 %v3099
    %v3164 = vunpack.c.l.b16 %v3100
    %v3165 = vunpack.c.l.b16 %v3101
    %v3166 = vunpack.c.l.b16 %v3102
    %v3167 = vunpack.c.l.b16 %v3103
    %v3168 = vunpack.c.l.b16 %v3104
    %v3169 = vunpack.c.l.b16 %v3105
    %v3170 = vunpack.c.l.b16 %v3106
    %v3171 = vpack.c.b16 %v3140, %v3139
    %v3172 = vpack.c.b16 %v3142, %v3141
    %v3173 = vpack.c.b16 %v3144, %v3143
    %v3174 = vpack.c.b16 %v3146, %v3145
    %v3175 = vpack.c.b16 %v3148, %v3147
    %v3176 = vpack.c.b16 %v3150, %v3149
    %v3177 = vpack.c.b16 %v3152, %v3151
    %v3178 = vpack.c.b16 %v3154, %v3153
    %v3179 = vpack.c.b16 %v3156, %v3155
    %v3180 = vpack.c.b16 %v3158, %v3157
    %v3181 = vpack.c.b16 %v3160, %v3159
    %v3182 = vpack.c.b16 %v3162, %v3161
    %v3183 = vpack.c.b16 %v3164, %v3163
    %v3184 = vpack.c.b16 %v3166, %v3165
    %v3185 = vpack.c.b16 %v3168, %v3167
    %v3186 = vpack.c.b16 %v3170, %v3169
    %3203 = vmatpush.bf16.msra.mxu0 %v3178
    %3204 = vmatpush.bf16.msra.mxu0 %v3177
    %3205 = vmatpush.bf16.msra.mxu0 %v3176
    %3206 = vmatpush.bf16.msra.mxu0 %v3175
    %3207 = vmatpush.bf16.msra.mxu0 %v3174
    %3208 = vmatpush.bf16.msra.mxu0 %v3173
    %3209 = vmatpush.bf16.msra.mxu0 %v3172
    %3210 = vmatpush.bf16.msra.mxu0 %v3171
    %3211 = vmatmul.bf16.gmra.mxu0 %v2794
    %v3212 = vpop.f32.mrf.mxu0
    %v3213 = vadd.f32 0.0, %v3212
    %v3214 = vpop.f32.mrf.mxu0
    %3215 = vdwg.mxu0
    %3216 = vmatpush.bf16.msra.mxu0 %v3186
    %3217 = vmatpush.bf16.msra.mxu0 %v3185
    %3218 = vmatpush.bf16.msra.mxu0 %v3184
    %3219 = vmatpush.bf16.msra.mxu0 %v3183
    %3220 = vmatpush.bf16.msra.mxu0 %v3182
    %3221 = vmatpush.bf16.msra.mxu0 %v3181
    %3222 = vmatpush.bf16.msra.mxu0 %v3180
    %3223 = vmatpush.bf16.msra.mxu0 %v3179
    %3224 = vmatmul.bf16.gmra.mxu0 %v2795
    %v3225 = vpop.f32.mrf.mxu0
    %v3226 = vadd.f32 %v3213, %v3225
    %v3227 = vpop.f32.mrf.mxu0
    %3228 = vdwg.mxu0
    %v3229 = vmax.f32 %v3073, %v3226
    %s3230 = scalar_lea.vmem [#allocation10], 4
    %v3231 = vld [vmem:[%s3230] sm:$0xf]
    %v3233 = vsel %vm2732, %v3231, 0
    %3235 = vmatpush.bf16.msra.mxu0 0
    %3236 = vmatpush.bf16.msra.mxu0 0
    %3237 = vmatpush.bf16.msra.mxu0 0
    %3238 = vmatpush.bf16.msra.mxu0 0
    %3239 = vmatpush.bf16.msra.mxu0 0
    %3240 = vmatpush.bf16.msra.mxu0 0
    %3241 = vmatpush.bf16.msra.mxu0 0
    %3242 = vmatpush.bf16.msra.mxu0 %v2730
    %3243 = vmatmul.bf16.gmra.mxu0 %v3233
    %v3244 = vpop.f32.mrf.mxu0
    %v3245 = vadd.f32 0.0, %v3244
    %v3246 = vpop.f32.mrf.mxu0
    %3247 = vdwg.mxu0
    %3248 = vmatpush.bf16.msra.mxu0 0
    %3249 = vmatpush.bf16.msra.mxu0 0
    %3250 = vmatpush.bf16.msra.mxu0 0
    %3251 = vmatpush.bf16.msra.mxu0 0
    %3252 = vmatpush.bf16.msra.mxu0 0
    %3253 = vmatpush.bf16.msra.mxu0 0
    %3254 = vmatpush.bf16.msra.mxu0 0
    %3255 = vmatpush.bf16.msra.mxu0 %v2731
    %3256 = vmatmul.bf16.gmra.mxu0 %v3233
    %v3257 = vpop.f32.mrf.mxu0
    %v3258 = vadd.f32 0.0, %v3257
    %v3259 = vpop.f32.mrf.mxu0
    %3260 = vdwg.mxu0
    %v3261 = vpack.c.bf16 %v3245, %v3245
    %v3262 = vpack.c.bf16 %v3258, %v3258
    %3263 = vmatpush.bf16.msra.mxu0 %v2867
    %3264 = vmatpush.bf16.msra.mxu0 %v2866
    %3265 = vmatpush.bf16.msra.mxu0 %v2865
    %3266 = vmatpush.bf16.msra.mxu0 %v2864
    %3267 = vmatpush.bf16.msra.mxu0 %v2863
    %3268 = vmatpush.bf16.msra.mxu0 %v2862
    %3269 = vmatpush.bf16.msra.mxu0 %v2861
    %3270 = vmatpush.bf16.msra.mxu0 %v2860
    %3271 = vmatmul.bf16.gmra.mxu0 %v3261
    %v3272 = vpop.f32.mrf.mxu0
    %v3273 = vadd.f32 0.0, %v3272
    %v3274 = vpop.f32.mrf.mxu0
    %3275 = vdwg.mxu0
    %3276 = vmatpush.bf16.msra.mxu0 %v2875
    %3277 = vmatpush.bf16.msra.mxu0 %v2874
    %3278 = vmatpush.bf16.msra.mxu0 %v2873
    %3279 = vmatpush.bf16.msra.mxu0 %v2872
    %3280 = vmatpush.bf16.msra.mxu0 %v2871
    %3281 = vmatpush.bf16.msra.mxu0 %v2870
    %3282 = vmatpush.bf16.msra.mxu0 %v2869
    %3283 = vmatpush.bf16.msra.mxu0 %v2868
    %3284 = vmatmul.bf16.gmra.mxu0 %v3262
    %v3285 = vpop.f32.mrf.mxu0
    %v3286 = vadd.f32 %v3273, %v3285
    %v3287 = vpop.f32.mrf.mxu0
    %3288 = vdwg.mxu0
    %v3289 = vmax.f32 %v3229, %v3286
    %3290 = vmatpush.bf16.msra.mxu0 %v3022
    %3291 = vmatpush.bf16.msra.mxu0 %v3021
    %3292 = vmatpush.bf16.msra.mxu0 %v3020
    %3293 = vmatpush.bf16.msra.mxu0 %v3019
    %3294 = vmatpush.bf16.msra.mxu0 %v3018
    %3295 = vmatpush.bf16.msra.mxu0 %v3017
    %3296 = vmatpush.bf16.msra.mxu0 %v3016
    %3297 = vmatpush.bf16.msra.mxu0 %v3015
    %3298 = vmatmul.bf16.gmra.mxu0 %v3261
    %v3299 = vpop.f32.mrf.mxu0
    %v3300 = vadd.f32 0.0, %v3299
    %v3301 = vpop.f32.mrf.mxu0
    %3302 = vdwg.mxu0
    %3303 = vmatpush.bf16.msra.mxu0 %v3030
    %3304 = vmatpush.bf16.msra.mxu0 %v3029
    %3305 = vmatpush.bf16.msra.mxu0 %v3028
    %3306 = vmatpush.bf16.msra.mxu0 %v3027
    %3307 = vmatpush.bf16.msra.mxu0 %v3026
    %3308 = vmatpush.bf16.msra.mxu0 %v3025
    %3309 = vmatpush.bf16.msra.mxu0 %v3024
    %3310 = vmatpush.bf16.msra.mxu0 %v3023
    %3311 = vmatmul.bf16.gmra.mxu0 %v3262
    %v3312 = vpop.f32.mrf.mxu0
    %v3313 = vadd.f32 %v3300, %v3312
    %v3314 = vpop.f32.mrf.mxu0
    %3315 = vdwg.mxu0
    %v3316 = vmax.f32 %v3289, %v3313
    %3317 = vmatpush.bf16.msra.mxu0 %v3178
    %3318 = vmatpush.bf16.msra.mxu0 %v3177
    %3319 = vmatpush.bf16.msra.mxu0 %v3176
    %3320 = vmatpush.bf16.msra.mxu0 %v3175
    %3321 = vmatpush.bf16.msra.mxu0 %v3174
    %3322 = vmatpush.bf16.msra.mxu0 %v3173
    %3323 = vmatpush.bf16.msra.mxu0 %v3172
    %3324 = vmatpush.bf16.msra.mxu0 %v3171
    %3325 = vmatmul.bf16.gmra.mxu0 %v3261
    %v3326 = vpop.f32.mrf.mxu0
    %v3327 = vadd.f32 0.0, %v3326
    %v3328 = vpop.f32.mrf.mxu0
    %3329 = vdwg.mxu0
    %3330 = vmatpush.bf16.msra.mxu0 %v3186
    %3331 = vmatpush.bf16.msra.mxu0 %v3185
    %3332 = vmatpush.bf16.msra.mxu0 %v3184
    %3333 = vmatpush.bf16.msra.mxu0 %v3183
    %3334 = vmatpush.bf16.msra.mxu0 %v3182
    %3335 = vmatpush.bf16.msra.mxu0 %v3181
    %3336 = vmatpush.bf16.msra.mxu0 %v3180
    %3337 = vmatpush.bf16.msra.mxu0 %v3179
    %3338 = vmatmul.bf16.gmra.mxu0 %v3262
    %v3339 = vpop.f32.mrf.mxu0
    %v3340 = vadd.f32 %v3327, %v3339
    %v3341 = vpop.f32.mrf.mxu0
    %3342 = vdwg.mxu0
    %v3343 = vmax.f32 %v3316, %v3340
    %s3344 = scalar_lea.vmem [#allocation10], 8
    %v3345 = vld [vmem:[%s3344] sm:$0xf]
    %v3347 = vsel %vm2732, %v3345, 0
    %3349 = vmatpush.bf16.msra.mxu0 0
    %3350 = vmatpush.bf16.msra.mxu0 0
    %3351 = vmatpush.bf16.msra.mxu0 0
    %3352 = vmatpush.bf16.msra.mxu0 0
    %3353 = vmatpush.bf16.msra.mxu0 0
    %3354 = vmatpush.bf16.msra.mxu0 0
    %3355 = vmatpush.bf16.msra.mxu0 0
    %3356 = vmatpush.bf16.msra.mxu0 %v2730
    %3357 = vmatmul.bf16.gmra.mxu0 %v3347
    %v3358 = vpop.f32.mrf.mxu0
    %v3359 = vadd.f32 0.0, %v3358
    %v3360 = vpop.f32.mrf.mxu0
    %3361 = vdwg.mxu0
    %3362 = vmatpush.bf16.msra.mxu0 0
    %3363 = vmatpush.bf16.msra.mxu0 0
    %3364 = vmatpush.bf16.msra.mxu0 0
    %3365 = vmatpush.bf16.msra.mxu0 0
    %3366 = vmatpush.bf16.msra.mxu0 0
    %3367 = vmatpush.bf16.msra.mxu0 0
    %3368 = vmatpush.bf16.msra.mxu0 0
    %3369 = vmatpush.bf16.msra.mxu0 %v2731
    %3370 = vmatmul.bf16.gmra.mxu0 %v3347
    %v3371 = vpop.f32.mrf.mxu0
    %v3372 = vadd.f32 0.0, %v3371
    %v3373 = vpop.f32.mrf.mxu0
    %3374 = vdwg.mxu0
    %v3375 = vpack.c.bf16 %v3359, %v3359
    %v3376 = vpack.c.bf16 %v3372, %v3372
    %3377 = vmatpush.bf16.msra.mxu0 %v2867
    %3378 = vmatpush.bf16.msra.mxu0 %v2866
    %3379 = vmatpush.bf16.msra.mxu0 %v2865
    %3380 = vmatpush.bf16.msra.mxu0 %v2864
    %3381 = vmatpush.bf16.msra.mxu0 %v2863
    %3382 = vmatpush.bf16.msra.mxu0 %v2862
    %3383 = vmatpush.bf16.msra.mxu0 %v2861
    %3384 = vmatpush.bf16.msra.mxu0 %v2860
    %3385 = vmatmul.bf16.gmra.mxu0 %v3375
    %v3386 = vpop.f32.mrf.mxu0
    %v3387 = vadd.f32 0.0, %v3386
    %v3388 = vpop.f32.mrf.mxu0
    %3389 = vdwg.mxu0
    %3390 = vmatpush.bf16.msra.mxu0 %v2875
    %3391 = vmatpush.bf16.msra.mxu0 %v2874
    %3392 = vmatpush.bf16.msra.mxu0 %v2873
    %3393 = vmatpush.bf16.msra.mxu0 %v2872
    %3394 = vmatpush.bf16.msra.mxu0 %v2871
    %3395 = vmatpush.bf16.msra.mxu0 %v2870
    %3396 = vmatpush.bf16.msra.mxu0 %v2869
    %3397 = vmatpush.bf16.msra.mxu0 %v2868
    %3398 = vmatmul.bf16.gmra.mxu0 %v3376
    %v3399 = vpop.f32.mrf.mxu0
    %v3400 = vadd.f32 %v3387, %v3399
    %v3401 = vpop.f32.mrf.mxu0
    %3402 = vdwg.mxu0
    %v3403 = vmax.f32 %v3343, %v3400
    %3404 = vmatpush.bf16.msra.mxu0 %v3022
    %3405 = vmatpush.bf16.msra.mxu0 %v3021
    %3406 = vmatpush.bf16.msra.mxu0 %v3020
    %3407 = vmatpush.bf16.msra.mxu0 %v3019
    %3408 = vmatpush.bf16.msra.mxu0 %v3018
    %3409 = vmatpush.bf16.msra.mxu0 %v3017
    %3410 = vmatpush.bf16.msra.mxu0 %v3016
    %3411 = vmatpush.bf16.msra.mxu0 %v3015
    %3412 = vmatmul.bf16.gmra.mxu0 %v3375
    %v3413 = vpop.f32.mrf.mxu0
    %v3414 = vadd.f32 0.0, %v3413
    %v3415 = vpop.f32.mrf.mxu0
    %3416 = vdwg.mxu0
    %3417 = vmatpush.bf16.msra.mxu0 %v3030
    %3418 = vmatpush.bf16.msra.mxu0 %v3029
    %3419 = vmatpush.bf16.msra.mxu0 %v3028
    %3420 = vmatpush.bf16.msra.mxu0 %v3027
    %3421 = vmatpush.bf16.msra.mxu0 %v3026
    %3422 = vmatpush.bf16.msra.mxu0 %v3025
    %3423 = vmatpush.bf16.msra.mxu0 %v3024
    %3424 = vmatpush.bf16.msra.mxu0 %v3023
    %3425 = vmatmul.bf16.gmra.mxu0 %v3376
    %v3426 = vpop.f32.mrf.mxu0
    %v3427 = vadd.f32 %v3414, %v3426
    %v3428 = vpop.f32.mrf.mxu0
    %3429 = vdwg.mxu0
    %v3430 = vmax.f32 %v3403, %v3427
    %3431 = vmatpush.bf16.msra.mxu0 %v3178
    %3432 = vmatpush.bf16.msra.mxu0 %v3177
    %3433 = vmatpush.bf16.msra.mxu0 %v3176
    %3434 = vmatpush.bf16.msra.mxu0 %v3175
    %3435 = vmatpush.bf16.msra.mxu0 %v3174
    %3436 = vmatpush.bf16.msra.mxu0 %v3173
    %3437 = vmatpush.bf16.msra.mxu0 %v3172
    %3438 = vmatpush.bf16.msra.mxu0 %v3171
    %3439 = vmatmul.bf16.gmra.mxu0 %v3375
    %v3440 = vpop.f32.mrf.mxu0
    %v3441 = vadd.f32 0.0, %v3440
    %v3442 = vpop.f32.mrf.mxu0
    %3443 = vdwg.mxu0
    %3444 = vmatpush.bf16.msra.mxu0 %v3186
    %3445 = vmatpush.bf16.msra.mxu0 %v3185
    %3446 = vmatpush.bf16.msra.mxu0 %v3184
    %3447 = vmatpush.bf16.msra.mxu0 %v3183
    %3448 = vmatpush.bf16.msra.mxu0 %v3182
    %3449 = vmatpush.bf16.msra.mxu0 %v3181
    %3450 = vmatpush.bf16.msra.mxu0 %v3180
    %3451 = vmatpush.bf16.msra.mxu0 %v3179
    %3452 = vmatmul.bf16.gmra.mxu0 %v3376
    %v3453 = vpop.f32.mrf.mxu0
    %v3454 = vadd.f32 %v3441, %v3453
    %v3455 = vpop.f32.mrf.mxu0
    %3456 = vdwg.mxu0
    %v3457 = vmax.f32 %v3430, %v3454
    %v3458 = vld [vmem:[#allocation13] sm:$0x1]
    %v3459 = vld [vmem:[#allocation11] sm:$0xf]
    %v3460 = vpack.c.bf16 %v3457, %v3457
    %vm3461 = vcmask 64512
    %v3463 = vsel %vm3461, %v3459, 0
    %vm3465 = vcmask 1043456
    %v3467 = vsel %vm3465, %v3460, 0
    %3469 = vmatpush.bf16.msra.mxu0 0
    %3470 = vmatpush.bf16.msra.mxu0 0
    %3471 = vmatpush.bf16.msra.mxu0 0
    %3472 = vmatpush.bf16.msra.mxu0 0
    %3473 = vmatpush.bf16.msra.mxu0 0
    %3474 = vmatpush.bf16.msra.mxu0 0
    %3475 = vmatpush.bf16.msra.mxu0 0
    %3476 = vmatpush.bf16.msra.mxu0 %v3467
    %3477 = vmatmul.bf16.gmra.mxu0 %v3463
    %v3478 = vpop.f32.mrf.mxu0
    %v3479 = vadd.f32 0.0, %v3478
    %v3480 = vpop.f32.mrf.mxu0
    %3481 = vdwg.mxu0
    %v3482 = vld [vmem:[%s15] sm:$0xf]
    %v3483 = vld [vmem:[%s15 + $0x4] sm:$0xf]
    %v3484 = vld [vmem:[%s15 + $0x8] sm:$0xf]
    %v3485 = vld [vmem:[%s15 + $0xc] sm:$0xf]
    %v3486 = vld [vmem:[%s15 + $0x10] sm:$0xf]
    %v3487 = vld [vmem:[%s15 + $0x14] sm:$0xf]
    %v3488 = vld [vmem:[%s15 + $0x18] sm:$0xf]
    %v3489 = vld [vmem:[%s15 + $0x1c] sm:$0xf]
    %v3490 = vld [vmem:[%s15 + $0x20] sm:$0xf]
    %v3491 = vld [vmem:[%s15 + $0x24] sm:$0xf]
    %v3492 = vld [vmem:[%s15 + $0x28] sm:$0xf]
    %v3493 = vld [vmem:[%s15 + $0x2c] sm:$0xf]
    %v3494 = vld [vmem:[%s15 + $0x30] sm:$0xf]
    %v3495 = vld [vmem:[%s15 + $0x34] sm:$0xf]
    %v3496 = vld [vmem:[%s15 + $0x38] sm:$0xf]
    %v3497 = vld [vmem:[%s15 + $0x3c] sm:$0xf]
    %v3498 = vpack.c.bf16 %v3479, %v3479
    %v3515 = vunpack.c.l.b16 %v3482
    %v3516 = vunpack.c.l.b16 %v3483
    %v3517 = vunpack.c.l.b16 %v3484
    %v3518 = vunpack.c.l.b16 %v3485
    %v3519 = vunpack.c.l.b16 %v3486
    %v3520 = vunpack.c.l.b16 %v3487
    %v3521 = vunpack.c.l.b16 %v3488
    %v3522 = vunpack.c.l.b16 %v3489
    %v3523 = vunpack.c.l.b16 %v3490
    %v3524 = vunpack.c.l.b16 %v3491
    %v3525 = vunpack.c.l.b16 %v3492
    %v3526 = vunpack.c.l.b16 %v3493
    %v3527 = vunpack.c.l.b16 %v3494
    %v3528 = vunpack.c.l.b16 %v3495
    %v3529 = vunpack.c.l.b16 %v3496
    %v3530 = vunpack.c.l.b16 %v3497
    %v3531 = vpack.c.b16 %v3516, %v3515
    %v3532 = vpack.c.b16 %v3518, %v3517
    %v3533 = vpack.c.b16 %v3520, %v3519
    %v3534 = vpack.c.b16 %v3522, %v3521
    %v3535 = vpack.c.b16 %v3524, %v3523
    %v3536 = vpack.c.b16 %v3526, %v3525
    %v3537 = vpack.c.b16 %v3528, %v3527
    %v3538 = vpack.c.b16 %v3530, %v3529
    %3547 = vmatpush.bf16.msra.mxu0 %v3538
    %3548 = vmatpush.bf16.msra.mxu0 %v3537
    %3549 = vmatpush.bf16.msra.mxu0 %v3536
    %3550 = vmatpush.bf16.msra.mxu0 %v3535
    %3551 = vmatpush.bf16.msra.mxu0 %v3534
    %3552 = vmatpush.bf16.msra.mxu0 %v3533
    %3553 = vmatpush.bf16.msra.mxu0 %v3532
    %3554 = vmatpush.bf16.msra.mxu0 %v3531
    %3555 = vmatmul.bf16.gmra.mxu0 %v3498
    %v3556 = vpop.f32.mrf.mxu0
    %v3557 = vadd.f32 0.0, %v3556
    %v3558 = vpop.f32.mrf.mxu0
    %3559 = vdwg.mxu0
    %v3561 = vperm.slane %v3458, 0
    %v3563 = vadd.f32 %v3561, %v3557
    %s3564 = scalar_lea.vmem %s15, 64
    %v3565 = vld [vmem:[%s3564] sm:$0xf]
    %v3566 = vld [vmem:[%s3564 + $0x4] sm:$0xf]
    %v3567 = vld [vmem:[%s3564 + $0x8] sm:$0xf]
    %v3568 = vld [vmem:[%s3564 + $0xc] sm:$0xf]
    %v3569 = vld [vmem:[%s3564 + $0x10] sm:$0xf]
    %v3570 = vld [vmem:[%s3564 + $0x14] sm:$0xf]
    %v3571 = vld [vmem:[%s3564 + $0x18] sm:$0xf]
    %v3572 = vld [vmem:[%s3564 + $0x1c] sm:$0xf]
    %v3573 = vld [vmem:[%s3564 + $0x20] sm:$0xf]
    %v3574 = vld [vmem:[%s3564 + $0x24] sm:$0xf]
    %v3575 = vld [vmem:[%s3564 + $0x28] sm:$0xf]
    %v3576 = vld [vmem:[%s3564 + $0x2c] sm:$0xf]
    %v3577 = vld [vmem:[%s3564 + $0x30] sm:$0xf]
    %v3578 = vld [vmem:[%s3564 + $0x34] sm:$0xf]
    %v3579 = vld [vmem:[%s3564 + $0x38] sm:$0xf]
    %v3580 = vld [vmem:[%s3564 + $0x3c] sm:$0xf]
    %v3597 = vunpack.c.l.b16 %v3565
    %v3598 = vunpack.c.l.b16 %v3566
    %v3599 = vunpack.c.l.b16 %v3567
    %v3600 = vunpack.c.l.b16 %v3568
    %v3601 = vunpack.c.l.b16 %v3569
    %v3602 = vunpack.c.l.b16 %v3570
    %v3603 = vunpack.c.l.b16 %v3571
    %v3604 = vunpack.c.l.b16 %v3572
    %v3605 = vunpack.c.l.b16 %v3573
    %v3606 = vunpack.c.l.b16 %v3574
    %v3607 = vunpack.c.l.b16 %v3575
    %v3608 = vunpack.c.l.b16 %v3576
    %v3609 = vunpack.c.l.b16 %v3577
    %v3610 = vunpack.c.l.b16 %v3578
    %v3611 = vunpack.c.l.b16 %v3579
    %v3612 = vunpack.c.l.b16 %v3580
    %v3613 = vpack.c.b16 %v3598, %v3597
    %v3614 = vpack.c.b16 %v3600, %v3599
    %v3615 = vpack.c.b16 %v3602, %v3601
    %v3616 = vpack.c.b16 %v3604, %v3603
    %v3617 = vpack.c.b16 %v3606, %v3605
    %v3618 = vpack.c.b16 %v3608, %v3607
    %v3619 = vpack.c.b16 %v3610, %v3609
    %v3620 = vpack.c.b16 %v3612, %v3611
    %3629 = vmatpush.bf16.msra.mxu0 %v3620
    %3630 = vmatpush.bf16.msra.mxu0 %v3619
    %3631 = vmatpush.bf16.msra.mxu0 %v3618
    %3632 = vmatpush.bf16.msra.mxu0 %v3617
    %3633 = vmatpush.bf16.msra.mxu0 %v3616
    %3634 = vmatpush.bf16.msra.mxu0 %v3615
    %3635 = vmatpush.bf16.msra.mxu0 %v3614
    %3636 = vmatpush.bf16.msra.mxu0 %v3613
    %3637 = vmatmul.bf16.gmra.mxu0 %v3460
    %v3638 = vpop.f32.mrf.mxu0
    %v3639 = vadd.f32 0.0, %v3638
    %v3640 = vpop.f32.mrf.mxu0
    %3641 = vdwg.mxu0
    %v3642 = vadd.f32 %v3563, %v3639
    %s3643 = scalar_lea.vmem [#allocation11], 8
    %v3644 = vld [vmem:[%s3643] sm:$0xf]
    %v3646 = vsel %vm3461, %v3644, 0
    %3648 = vmatpush.bf16.msra.mxu0 0
    %3649 = vmatpush.bf16.msra.mxu0 0
    %3650 = vmatpush.bf16.msra.mxu0 0
    %3651 = vmatpush.bf16.msra.mxu0 0
    %3652 = vmatpush.bf16.msra.mxu0 0
    %3653 = vmatpush.bf16.msra.mxu0 0
    %3654 = vmatpush.bf16.msra.mxu0 0
    %3655 = vmatpush.bf16.msra.mxu0 %v3467
    %3656 = vmatmul.bf16.gmra.mxu0 %v3646
    %v3657 = vpop.f32.mrf.mxu0
    %v3658 = vadd.f32 0.0, %v3657
    %v3659 = vpop.f32.mrf.mxu0
    %3660 = vdwg.mxu0
    %s3661 = scalar_lea.vmem %s15, 128
    %v3662 = vld [vmem:[%s3661] sm:$0xf]
    %v3663 = vld [vmem:[%s3661 + $0x4] sm:$0xf]
    %v3664 = vld [vmem:[%s3661 + $0x8] sm:$0xf]
    %v3665 = vld [vmem:[%s3661 + $0xc] sm:$0xf]
    %v3666 = vld [vmem:[%s3661 + $0x10] sm:$0xf]
    %v3667 = vld [vmem:[%s3661 + $0x14] sm:$0xf]
    %v3668 = vld [vmem:[%s3661 + $0x18] sm:$0xf]
    %v3669 = vld [vmem:[%s3661 + $0x1c] sm:$0xf]
    %v3670 = vld [vmem:[%s3661 + $0x20] sm:$0xf]
    %v3671 = vld [vmem:[%s3661 + $0x24] sm:$0xf]
    %v3672 = vld [vmem:[%s3661 + $0x28] sm:$0xf]
    %v3673 = vld [vmem:[%s3661 + $0x2c] sm:$0xf]
    %v3674 = vld [vmem:[%s3661 + $0x30] sm:$0xf]
    %v3675 = vld [vmem:[%s3661 + $0x34] sm:$0xf]
    %v3676 = vld [vmem:[%s3661 + $0x38] sm:$0xf]
    %v3677 = vld [vmem:[%s3661 + $0x3c] sm:$0xf]
    %v3678 = vpack.c.bf16 %v3658, %v3658
    %v3695 = vunpack.c.l.b16 %v3662
    %v3696 = vunpack.c.l.b16 %v3663
    %v3697 = vunpack.c.l.b16 %v3664
    %v3698 = vunpack.c.l.b16 %v3665
    %v3699 = vunpack.c.l.b16 %v3666
    %v3700 = vunpack.c.l.b16 %v3667
    %v3701 = vunpack.c.l.b16 %v3668
    %v3702 = vunpack.c.l.b16 %v3669
    %v3703 = vunpack.c.l.b16 %v3670
    %v3704 = vunpack.c.l.b16 %v3671
    %v3705 = vunpack.c.l.b16 %v3672
    %v3706 = vunpack.c.l.b16 %v3673
    %v3707 = vunpack.c.l.b16 %v3674
    %v3708 = vunpack.c.l.b16 %v3675
    %v3709 = vunpack.c.l.b16 %v3676
    %v3710 = vunpack.c.l.b16 %v3677
    %v3711 = vpack.c.b16 %v3696, %v3695
    %v3712 = vpack.c.b16 %v3698, %v3697
    %v3713 = vpack.c.b16 %v3700, %v3699
    %v3714 = vpack.c.b16 %v3702, %v3701
    %v3715 = vpack.c.b16 %v3704, %v3703
    %v3716 = vpack.c.b16 %v3706, %v3705
    %v3717 = vpack.c.b16 %v3708, %v3707
    %v3718 = vpack.c.b16 %v3710, %v3709
    %3727 = vmatpush.bf16.msra.mxu0 %v3718
    %3728 = vmatpush.bf16.msra.mxu0 %v3717
    %3729 = vmatpush.bf16.msra.mxu0 %v3716
    %3730 = vmatpush.bf16.msra.mxu0 %v3715
    %3731 = vmatpush.bf16.msra.mxu0 %v3714
    %3732 = vmatpush.bf16.msra.mxu0 %v3713
    %3733 = vmatpush.bf16.msra.mxu0 %v3712
    %3734 = vmatpush.bf16.msra.mxu0 %v3711
    %3735 = vmatmul.bf16.gmra.mxu0 %v3678
    %v3736 = vpop.f32.mrf.mxu0
    %v3737 = vadd.f32 0.0, %v3736
    %v3738 = vpop.f32.mrf.mxu0
    %3739 = vdwg.mxu0
    %v3740 = vadd.f32 %v3642, %v3737
    %v3741 = vmax.f32 %v3740, 0.0
    %v3742 = vld [vmem:[%s23] sm:$0x1]
    %v3743 = vld [vmem:[#allocation14] sm:$0xf]
    %v3744 = vpack.c.bf16 %v3741, %v3741
    %v3746 = vsel %vm3461, %v3743, 0
    %v3749 = vsel %vm3465, %v3744, 0
    %3751 = vmatpush.bf16.msra.mxu0 0
    %3752 = vmatpush.bf16.msra.mxu0 0
    %3753 = vmatpush.bf16.msra.mxu0 0
    %3754 = vmatpush.bf16.msra.mxu0 0
    %3755 = vmatpush.bf16.msra.mxu0 0
    %3756 = vmatpush.bf16.msra.mxu0 0
    %3757 = vmatpush.bf16.msra.mxu0 0
    %3758 = vmatpush.bf16.msra.mxu0 %v3749
    %3759 = vmatmul.bf16.gmra.mxu0 %v3746
    %v3760 = vpop.f32.mrf.mxu0
    %v3761 = vadd.f32 0.0, %v3760
    %v3762 = vpop.f32.mrf.mxu0
    %3763 = vdwg.mxu0
    %v3764 = vld [vmem:[%s21] sm:$0xf]
    %v3765 = vld [vmem:[%s21 + $0x4] sm:$0xf]
    %v3766 = vld [vmem:[%s21 + $0x8] sm:$0xf]
    %v3767 = vld [vmem:[%s21 + $0xc] sm:$0xf]
    %v3768 = vld [vmem:[%s21 + $0x10] sm:$0xf]
    %v3769 = vld [vmem:[%s21 + $0x14] sm:$0xf]
    %v3770 = vld [vmem:[%s21 + $0x18] sm:$0xf]
    %v3771 = vld [vmem:[%s21 + $0x1c] sm:$0xf]
    %v3772 = vld [vmem:[%s21 + $0x20] sm:$0xf]
    %v3773 = vld [vmem:[%s21 + $0x24] sm:$0xf]
    %v3774 = vld [vmem:[%s21 + $0x28] sm:$0xf]
    %v3775 = vld [vmem:[%s21 + $0x2c] sm:$0xf]
    %v3776 = vld [vmem:[%s21 + $0x30] sm:$0xf]
    %v3777 = vld [vmem:[%s21 + $0x34] sm:$0xf]
    %v3778 = vld [vmem:[%s21 + $0x38] sm:$0xf]
    %v3779 = vld [vmem:[%s21 + $0x3c] sm:$0xf]
    %v3780 = vpack.c.bf16 %v3761, %v3761
    %v3797 = vunpack.c.l.b16 %v3764
    %v3798 = vunpack.c.l.b16 %v3765
    %v3799 = vunpack.c.l.b16 %v3766
    %v3800 = vunpack.c.l.b16 %v3767
    %v3801 = vunpack.c.l.b16 %v3768
    %v3802 = vunpack.c.l.b16 %v3769
    %v3803 = vunpack.c.l.b16 %v3770
    %v3804 = vunpack.c.l.b16 %v3771
    %v3805 = vunpack.c.l.b16 %v3772
    %v3806 = vunpack.c.l.b16 %v3773
    %v3807 = vunpack.c.l.b16 %v3774
    %v3808 = vunpack.c.l.b16 %v3775
    %v3809 = vunpack.c.l.b16 %v3776
    %v3810 = vunpack.c.l.b16 %v3777
    %v3811 = vunpack.c.l.b16 %v3778
    %v3812 = vunpack.c.l.b16 %v3779
    %v3813 = vpack.c.b16 %v3798, %v3797
    %v3814 = vpack.c.b16 %v3800, %v3799
    %v3815 = vpack.c.b16 %v3802, %v3801
    %v3816 = vpack.c.b16 %v3804, %v3803
    %v3817 = vpack.c.b16 %v3806, %v3805
    %v3818 = vpack.c.b16 %v3808, %v3807
    %v3819 = vpack.c.b16 %v3810, %v3809
    %v3820 = vpack.c.b16 %v3812, %v3811
    %3829 = vmatpush.bf16.msra.mxu0 %v3820
    %3830 = vmatpush.bf16.msra.mxu0 %v3819
    %3831 = vmatpush.bf16.msra.mxu0 %v3818
    %3832 = vmatpush.bf16.msra.mxu0 %v3817
    %3833 = vmatpush.bf16.msra.mxu0 %v3816
    %3834 = vmatpush.bf16.msra.mxu0 %v3815
    %3835 = vmatpush.bf16.msra.mxu0 %v3814
    %3836 = vmatpush.bf16.msra.mxu0 %v3813
    %3837 = vmatmul.bf16.gmra.mxu0 %v3780
    %v3838 = vpop.f32.mrf.mxu0
    %v3839 = vadd.f32 0.0, %v3838
    %v3840 = vpop.f32.mrf.mxu0
    %3841 = vdwg.mxu0
    %v3843 = vperm.slane %v3742, 0
    %v3845 = vadd.f32 %v3843, %v3839
    %s3846 = scalar_lea.vmem %s21, 64
    %v3847 = vld [vmem:[%s3846] sm:$0xf]
    %v3848 = vld [vmem:[%s3846 + $0x4] sm:$0xf]
    %v3849 = vld [vmem:[%s3846 + $0x8] sm:$0xf]
    %v3850 = vld [vmem:[%s3846 + $0xc] sm:$0xf]
    %v3851 = vld [vmem:[%s3846 + $0x10] sm:$0xf]
    %v3852 = vld [vmem:[%s3846 + $0x14] sm:$0xf]
    %v3853 = vld [vmem:[%s3846 + $0x18] sm:$0xf]
    %v3854 = vld [vmem:[%s3846 + $0x1c] sm:$0xf]
    %v3855 = vld [vmem:[%s3846 + $0x20] sm:$0xf]
    %v3856 = vld [vmem:[%s3846 + $0x24] sm:$0xf]
    %v3857 = vld [vmem:[%s3846 + $0x28] sm:$0xf]
    %v3858 = vld [vmem:[%s3846 + $0x2c] sm:$0xf]
    %v3859 = vld [vmem:[%s3846 + $0x30] sm:$0xf]
    %v3860 = vld [vmem:[%s3846 + $0x34] sm:$0xf]
    %v3861 = vld [vmem:[%s3846 + $0x38] sm:$0xf]
    %v3862 = vld [vmem:[%s3846 + $0x3c] sm:$0xf]
    %v3879 = vunpack.c.l.b16 %v3847
    %v3880 = vunpack.c.l.b16 %v3848
    %v3881 = vunpack.c.l.b16 %v3849
    %v3882 = vunpack.c.l.b16 %v3850
    %v3883 = vunpack.c.l.b16 %v3851
    %v3884 = vunpack.c.l.b16 %v3852
    %v3885 = vunpack.c.l.b16 %v3853
    %v3886 = vunpack.c.l.b16 %v3854
    %v3887 = vunpack.c.l.b16 %v3855
    %v3888 = vunpack.c.l.b16 %v3856
    %v3889 = vunpack.c.l.b16 %v3857
    %v3890 = vunpack.c.l.b16 %v3858
    %v3891 = vunpack.c.l.b16 %v3859
    %v3892 = vunpack.c.l.b16 %v3860
    %v3893 = vunpack.c.l.b16 %v3861
    %v3894 = vunpack.c.l.b16 %v3862
    %v3895 = vpack.c.b16 %v3880, %v3879
    %v3896 = vpack.c.b16 %v3882, %v3881
    %v3897 = vpack.c.b16 %v3884, %v3883
    %v3898 = vpack.c.b16 %v3886, %v3885
    %v3899 = vpack.c.b16 %v3888, %v3887
    %v3900 = vpack.c.b16 %v3890, %v3889
    %v3901 = vpack.c.b16 %v3892, %v3891
    %v3902 = vpack.c.b16 %v3894, %v3893
    %3911 = vmatpush.bf16.msra.mxu0 %v3902
    %3912 = vmatpush.bf16.msra.mxu0 %v3901
    %3913 = vmatpush.bf16.msra.mxu0 %v3900
    %3914 = vmatpush.bf16.msra.mxu0 %v3899
    %3915 = vmatpush.bf16.msra.mxu0 %v3898
    %3916 = vmatpush.bf16.msra.mxu0 %v3897
    %3917 = vmatpush.bf16.msra.mxu0 %v3896
    %3918 = vmatpush.bf16.msra.mxu0 %v3895
    %3919 = vmatmul.bf16.gmra.mxu0 %v3744
    %v3920 = vpop.f32.mrf.mxu0
    %v3921 = vadd.f32 0.0, %v3920
    %v3922 = vpop.f32.mrf.mxu0
    %3923 = vdwg.mxu0
    %v3924 = vadd.f32 %v3845, %v3921
    %s3925 = scalar_lea.vmem [#allocation14], 8
    %v3926 = vld [vmem:[%s3925] sm:$0xf]
    %v3928 = vsel %vm3461, %v3926, 0
    %3930 = vmatpush.bf16.msra.mxu0 0
    %3931 = vmatpush.bf16.msra.mxu0 0
    %3932 = vmatpush.bf16.msra.mxu0 0
    %3933 = vmatpush.bf16.msra.mxu0 0
    %3934 = vmatpush.bf16.msra.mxu0 0
    %3935 = vmatpush.bf16.msra.mxu0 0
    %3936 = vmatpush.bf16.msra.mxu0 0
    %3937 = vmatpush.bf16.msra.mxu0 %v3749
    %3938 = vmatmul.bf16.gmra.mxu0 %v3928
    %v3939 = vpop.f32.mrf.mxu0
    %v3940 = vadd.f32 0.0, %v3939
    %v3941 = vpop.f32.mrf.mxu0
    %3942 = vdwg.mxu0
    %s3943 = scalar_lea.vmem %s21, 128
    %v3944 = vld [vmem:[%s3943] sm:$0xf]
    %v3945 = vld [vmem:[%s3943 + $0x4] sm:$0xf]
    %v3946 = vld [vmem:[%s3943 + $0x8] sm:$0xf]
    %v3947 = vld [vmem:[%s3943 + $0xc] sm:$0xf]
    %v3948 = vld [vmem:[%s3943 + $0x10] sm:$0xf]
    %v3949 = vld [vmem:[%s3943 + $0x14] sm:$0xf]
    %v3950 = vld [vmem:[%s3943 + $0x18] sm:$0xf]
    %v3951 = vld [vmem:[%s3943 + $0x1c] sm:$0xf]
    %v3952 = vld [vmem:[%s3943 + $0x20] sm:$0xf]
    %v3953 = vld [vmem:[%s3943 + $0x24] sm:$0xf]
    %v3954 = vld [vmem:[%s3943 + $0x28] sm:$0xf]
    %v3955 = vld [vmem:[%s3943 + $0x2c] sm:$0xf]
    %v3956 = vld [vmem:[%s3943 + $0x30] sm:$0xf]
    %v3957 = vld [vmem:[%s3943 + $0x34] sm:$0xf]
    %v3958 = vld [vmem:[%s3943 + $0x38] sm:$0xf]
    %v3959 = vld [vmem:[%s3943 + $0x3c] sm:$0xf]
    %v3960 = vpack.c.bf16 %v3940, %v3940
    %v3977 = vunpack.c.l.b16 %v3944
    %v3978 = vunpack.c.l.b16 %v3945
    %v3979 = vunpack.c.l.b16 %v3946
    %v3980 = vunpack.c.l.b16 %v3947
    %v3981 = vunpack.c.l.b16 %v3948
    %v3982 = vunpack.c.l.b16 %v3949
    %v3983 = vunpack.c.l.b16 %v3950
    %v3984 = vunpack.c.l.b16 %v3951
    %v3985 = vunpack.c.l.b16 %v3952
    %v3986 = vunpack.c.l.b16 %v3953
    %v3987 = vunpack.c.l.b16 %v3954
    %v3988 = vunpack.c.l.b16 %v3955
    %v3989 = vunpack.c.l.b16 %v3956
    %v3990 = vunpack.c.l.b16 %v3957
    %v3991 = vunpack.c.l.b16 %v3958
    %v3992 = vunpack.c.l.b16 %v3959
    %v3993 = vpack.c.b16 %v3978, %v3977
    %v3994 = vpack.c.b16 %v3980, %v3979
    %v3995 = vpack.c.b16 %v3982, %v3981
    %v3996 = vpack.c.b16 %v3984, %v3983
    %v3997 = vpack.c.b16 %v3986, %v3985
    %v3998 = vpack.c.b16 %v3988, %v3987
    %v3999 = vpack.c.b16 %v3990, %v3989
    %v4000 = vpack.c.b16 %v3992, %v3991
    %4009 = vmatpush.bf16.msra.mxu0 %v4000
    %4010 = vmatpush.bf16.msra.mxu0 %v3999
    %4011 = vmatpush.bf16.msra.mxu0 %v3998
    %4012 = vmatpush.bf16.msra.mxu0 %v3997
    %4013 = vmatpush.bf16.msra.mxu0 %v3996
    %4014 = vmatpush.bf16.msra.mxu0 %v3995
    %4015 = vmatpush.bf16.msra.mxu0 %v3994
    %4016 = vmatpush.bf16.msra.mxu0 %v3993
    %4017 = vmatmul.bf16.gmra.mxu0 %v3960
    %v4018 = vpop.f32.mrf.mxu0
    %v4019 = vadd.f32 0.0, %v4018
    %v4020 = vpop.f32.mrf.mxu0
    %4021 = vdwg.mxu0
    %v4022 = vadd.f32 %v3924, %v4019
    %v4023 = vadd.f32 %v4022, %v3457
    %v4024 = vmax.f32 %v4023, 0.0
    %v4025 = vld [vmem:[%s29] sm:$0x1]
    %v4026 = vld [vmem:[#allocation16] sm:$0xf]
    %v4027 = vpack.c.bf16 %v4024, %v4024
    %v4029 = vsel %vm3461, %v4026, 0
    %v4032 = vsel %vm3465, %v4027, 0
    %4034 = vmatpush.bf16.msra.mxu0 0
    %4035 = vmatpush.bf16.msra.mxu0 0
    %4036 = vmatpush.bf16.msra.mxu0 0
    %4037 = vmatpush.bf16.msra.mxu0 0
    %4038 = vmatpush.bf16.msra.mxu0 0
    %4039 = vmatpush.bf16.msra.mxu0 0
    %4040 = vmatpush.bf16.msra.mxu0 0
    %4041 = vmatpush.bf16.msra.mxu0 %v4032
    %4042 = vmatmul.bf16.gmra.mxu0 %v4029
    %v4043 = vpop.f32.mrf.mxu0
    %v4044 = vadd.f32 0.0, %v4043
    %v4045 = vpop.f32.mrf.mxu0
    %4046 = vdwg.mxu0
    %v4047 = vld [vmem:[%s27] sm:$0xf]
    %v4048 = vld [vmem:[%s27 + $0x4] sm:$0xf]
    %v4049 = vld [vmem:[%s27 + $0x8] sm:$0xf]
    %v4050 = vld [vmem:[%s27 + $0xc] sm:$0xf]
    %v4051 = vld [vmem:[%s27 + $0x10] sm:$0xf]
    %v4052 = vld [vmem:[%s27 + $0x14] sm:$0xf]
    %v4053 = vld [vmem:[%s27 + $0x18] sm:$0xf]
    %v4054 = vld [vmem:[%s27 + $0x1c] sm:$0xf]
    %v4055 = vld [vmem:[%s27 + $0x20] sm:$0xf]
    %v4056 = vld [vmem:[%s27 + $0x24] sm:$0xf]
    %v4057 = vld [vmem:[%s27 + $0x28] sm:$0xf]
    %v4058 = vld [vmem:[%s27 + $0x2c] sm:$0xf]
    %v4059 = vld [vmem:[%s27 + $0x30] sm:$0xf]
    %v4060 = vld [vmem:[%s27 + $0x34] sm:$0xf]
    %v4061 = vld [vmem:[%s27 + $0x38] sm:$0xf]
    %v4062 = vld [vmem:[%s27 + $0x3c] sm:$0xf]
    %v4063 = vpack.c.bf16 %v4044, %v4044
    %v4080 = vunpack.c.l.b16 %v4047
    %v4081 = vunpack.c.l.b16 %v4048
    %v4082 = vunpack.c.l.b16 %v4049
    %v4083 = vunpack.c.l.b16 %v4050
    %v4084 = vunpack.c.l.b16 %v4051
    %v4085 = vunpack.c.l.b16 %v4052
    %v4086 = vunpack.c.l.b16 %v4053
    %v4087 = vunpack.c.l.b16 %v4054
    %v4088 = vunpack.c.l.b16 %v4055
    %v4089 = vunpack.c.l.b16 %v4056
    %v4090 = vunpack.c.l.b16 %v4057
    %v4091 = vunpack.c.l.b16 %v4058
    %v4092 = vunpack.c.l.b16 %v4059
    %v4093 = vunpack.c.l.b16 %v4060
    %v4094 = vunpack.c.l.b16 %v4061
    %v4095 = vunpack.c.l.b16 %v4062
    %v4096 = vpack.c.b16 %v4081, %v4080
    %v4097 = vpack.c.b16 %v4083, %v4082
    %v4098 = vpack.c.b16 %v4085, %v4084
    %v4099 = vpack.c.b16 %v4087, %v4086
    %v4100 = vpack.c.b16 %v4089, %v4088
    %v4101 = vpack.c.b16 %v4091, %v4090
    %v4102 = vpack.c.b16 %v4093, %v4092
    %v4103 = vpack.c.b16 %v4095, %v4094
    %4112 = vmatpush.bf16.msra.mxu0 %v4103
    %4113 = vmatpush.bf16.msra.mxu0 %v4102
    %4114 = vmatpush.bf16.msra.mxu0 %v4101
    %4115 = vmatpush.bf16.msra.mxu0 %v4100
    %4116 = vmatpush.bf16.msra.mxu0 %v4099
    %4117 = vmatpush.bf16.msra.mxu0 %v4098
    %4118 = vmatpush.bf16.msra.mxu0 %v4097
    %4119 = vmatpush.bf16.msra.mxu0 %v4096
    %4120 = vmatmul.bf16.gmra.mxu0 %v4063
    %v4121 = vpop.f32.mrf.mxu0
    %v4122 = vadd.f32 0.0, %v4121
    %v4123 = vpop.f32.mrf.mxu0
    %4124 = vdwg.mxu0
    %v4126 = vperm.slane %v4025, 0
    %v4128 = vadd.f32 %v4126, %v4122
    %s4129 = scalar_lea.vmem %s27, 64
    %v4130 = vld [vmem:[%s4129] sm:$0xf]
    %v4131 = vld [vmem:[%s4129 + $0x4] sm:$0xf]
    %v4132 = vld [vmem:[%s4129 + $0x8] sm:$0xf]
    %v4133 = vld [vmem:[%s4129 + $0xc] sm:$0xf]
    %v4134 = vld [vmem:[%s4129 + $0x10] sm:$0xf]
    %v4135 = vld [vmem:[%s4129 + $0x14] sm:$0xf]
    %v4136 = vld [vmem:[%s4129 + $0x18] sm:$0xf]
    %v4137 = vld [vmem:[%s4129 + $0x1c] sm:$0xf]
    %v4138 = vld [vmem:[%s4129 + $0x20] sm:$0xf]
    %v4139 = vld [vmem:[%s4129 + $0x24] sm:$0xf]
    %v4140 = vld [vmem:[%s4129 + $0x28] sm:$0xf]
    %v4141 = vld [vmem:[%s4129 + $0x2c] sm:$0xf]
    %v4142 = vld [vmem:[%s4129 + $0x30] sm:$0xf]
    %v4143 = vld [vmem:[%s4129 + $0x34] sm:$0xf]
    %v4144 = vld [vmem:[%s4129 + $0x38] sm:$0xf]
    %v4145 = vld [vmem:[%s4129 + $0x3c] sm:$0xf]
    %v4162 = vunpack.c.l.b16 %v4130
    %v4163 = vunpack.c.l.b16 %v4131
    %v4164 = vunpack.c.l.b16 %v4132
    %v4165 = vunpack.c.l.b16 %v4133
    %v4166 = vunpack.c.l.b16 %v4134
    %v4167 = vunpack.c.l.b16 %v4135
    %v4168 = vunpack.c.l.b16 %v4136
    %v4169 = vunpack.c.l.b16 %v4137
    %v4170 = vunpack.c.l.b16 %v4138
    %v4171 = vunpack.c.l.b16 %v4139
    %v4172 = vunpack.c.l.b16 %v4140
    %v4173 = vunpack.c.l.b16 %v4141
    %v4174 = vunpack.c.l.b16 %v4142
    %v4175 = vunpack.c.l.b16 %v4143
    %v4176 = vunpack.c.l.b16 %v4144
    %v4177 = vunpack.c.l.b16 %v4145
    %v4178 = vpack.c.b16 %v4163, %v4162
    %v4179 = vpack.c.b16 %v4165, %v4164
    %v4180 = vpack.c.b16 %v4167, %v4166
    %v4181 = vpack.c.b16 %v4169, %v4168
    %v4182 = vpack.c.b16 %v4171, %v4170
    %v4183 = vpack.c.b16 %v4173, %v4172
    %v4184 = vpack.c.b16 %v4175, %v4174
    %v4185 = vpack.c.b16 %v4177, %v4176
    %4194 = vmatpush.bf16.msra.mxu0 %v4185
    %4195 = vmatpush.bf16.msra.mxu0 %v4184
    %4196 = vmatpush.bf16.msra.mxu0 %v4183
    %4197 = vmatpush.bf16.msra.mxu0 %v4182
    %4198 = vmatpush.bf16.msra.mxu0 %v4181
    %4199 = vmatpush.bf16.msra.mxu0 %v4180
    %4200 = vmatpush.bf16.msra.mxu0 %v4179
    %4201 = vmatpush.bf16.msra.mxu0 %v4178
    %4202 = vmatmul.bf16.gmra.mxu0 %v4027
    %v4203 = vpop.f32.mrf.mxu0
    %v4204 = vadd.f32 0.0, %v4203
    %v4205 = vpop.f32.mrf.mxu0
    %4206 = vdwg.mxu0
    %v4207 = vadd.f32 %v4128, %v4204
    %s4208 = scalar_lea.vmem [#allocation16], 8
    %v4209 = vld [vmem:[%s4208] sm:$0xf]
    %v4211 = vsel %vm3461, %v4209, 0
    %4213 = vmatpush.bf16.msra.mxu0 0
    %4214 = vmatpush.bf16.msra.mxu0 0
    %4215 = vmatpush.bf16.msra.mxu0 0
    %4216 = vmatpush.bf16.msra.mxu0 0
    %4217 = vmatpush.bf16.msra.mxu0 0
    %4218 = vmatpush.bf16.msra.mxu0 0
    %4219 = vmatpush.bf16.msra.mxu0 0
    %4220 = vmatpush.bf16.msra.mxu0 %v4032
    %4221 = vmatmul.bf16.gmra.mxu0 %v4211
    %v4222 = vpop.f32.mrf.mxu0
    %v4223 = vadd.f32 0.0, %v4222
    %v4224 = vpop.f32.mrf.mxu0
    %4225 = vdwg.mxu0
    %s4226 = scalar_lea.vmem %s27, 128
    %v4227 = vld [vmem:[%s4226] sm:$0xf]
    %v4228 = vld [vmem:[%s4226 + $0x4] sm:$0xf]
    %v4229 = vld [vmem:[%s4226 + $0x8] sm:$0xf]
    %v4230 = vld [vmem:[%s4226 + $0xc] sm:$0xf]
    %v4231 = vld [vmem:[%s4226 + $0x10] sm:$0xf]
    %v4232 = vld [vmem:[%s4226 + $0x14] sm:$0xf]
    %v4233 = vld [vmem:[%s4226 + $0x18] sm:$0xf]
    %v4234 = vld [vmem:[%s4226 + $0x1c] sm:$0xf]
    %v4235 = vld [vmem:[%s4226 + $0x20] sm:$0xf]
    %v4236 = vld [vmem:[%s4226 + $0x24] sm:$0xf]
    %v4237 = vld [vmem:[%s4226 + $0x28] sm:$0xf]
    %v4238 = vld [vmem:[%s4226 + $0x2c] sm:$0xf]
    %v4239 = vld [vmem:[%s4226 + $0x30] sm:$0xf]
    %v4240 = vld [vmem:[%s4226 + $0x34] sm:$0xf]
    %v4241 = vld [vmem:[%s4226 + $0x38] sm:$0xf]
    %v4242 = vld [vmem:[%s4226 + $0x3c] sm:$0xf]
    %v4243 = vpack.c.bf16 %v4223, %v4223
    %v4260 = vunpack.c.l.b16 %v4227
    %v4261 = vunpack.c.l.b16 %v4228
    %v4262 = vunpack.c.l.b16 %v4229
    %v4263 = vunpack.c.l.b16 %v4230
    %v4264 = vunpack.c.l.b16 %v4231
    %v4265 = vunpack.c.l.b16 %v4232
    %v4266 = vunpack.c.l.b16 %v4233
    %v4267 = vunpack.c.l.b16 %v4234
    %v4268 = vunpack.c.l.b16 %v4235
    %v4269 = vunpack.c.l.b16 %v4236
    %v4270 = vunpack.c.l.b16 %v4237
    %v4271 = vunpack.c.l.b16 %v4238
    %v4272 = vunpack.c.l.b16 %v4239
    %v4273 = vunpack.c.l.b16 %v4240
    %v4274 = vunpack.c.l.b16 %v4241
    %v4275 = vunpack.c.l.b16 %v4242
    %v4276 = vpack.c.b16 %v4261, %v4260
    %v4277 = vpack.c.b16 %v4263, %v4262
    %v4278 = vpack.c.b16 %v4265, %v4264
    %v4279 = vpack.c.b16 %v4267, %v4266
    %v4280 = vpack.c.b16 %v4269, %v4268
    %v4281 = vpack.c.b16 %v4271, %v4270
    %v4282 = vpack.c.b16 %v4273, %v4272
    %v4283 = vpack.c.b16 %v4275, %v4274
    %4292 = vmatpush.bf16.msra.mxu0 %v4283
    %4293 = vmatpush.bf16.msra.mxu0 %v4282
    %4294 = vmatpush.bf16.msra.mxu0 %v4281
    %4295 = vmatpush.bf16.msra.mxu0 %v4280
    %4296 = vmatpush.bf16.msra.mxu0 %v4279
    %4297 = vmatpush.bf16.msra.mxu0 %v4278
    %4298 = vmatpush.bf16.msra.mxu0 %v4277
    %4299 = vmatpush.bf16.msra.mxu0 %v4276
    %4300 = vmatmul.bf16.gmra.mxu0 %v4243
    %v4301 = vpop.f32.mrf.mxu0
    %v4302 = vadd.f32 0.0, %v4301
    %v4303 = vpop.f32.mrf.mxu0
    %4304 = vdwg.mxu0
    %v4305 = vadd.f32 %v4207, %v4302
    %v4306 = vmax.f32 %v4305, 0.0
    %v4307 = vld [vmem:[#allocation19] sm:$0x1]
    %v4308 = vld [vmem:[#allocation17] sm:$0xf]
    %v4309 = vpack.c.bf16 %v4306, %v4306
    %v4311 = vsel %vm3461, %v4308, 0
    %v4314 = vsel %vm3465, %v4309, 0
    %4316 = vmatpush.bf16.msra.mxu0 0
    %4317 = vmatpush.bf16.msra.mxu0 0
    %4318 = vmatpush.bf16.msra.mxu0 0
    %4319 = vmatpush.bf16.msra.mxu0 0
    %4320 = vmatpush.bf16.msra.mxu0 0
    %4321 = vmatpush.bf16.msra.mxu0 0
    %4322 = vmatpush.bf16.msra.mxu0 0
    %4323 = vmatpush.bf16.msra.mxu0 %v4314
    %4324 = vmatmul.bf16.gmra.mxu0 %v4311
    %v4325 = vpop.f32.mrf.mxu0
    %v4326 = vadd.f32 0.0, %v4325
    %v4327 = vpop.f32.mrf.mxu0
    %4328 = vdwg.mxu0
    %v4329 = vld [vmem:[%s33] sm:$0xf]
    %v4330 = vld [vmem:[%s33 + $0x4] sm:$0xf]
    %v4331 = vld [vmem:[%s33 + $0x8] sm:$0xf]
    %v4332 = vld [vmem:[%s33 + $0xc] sm:$0xf]
    %v4333 = vld [vmem:[%s33 + $0x10] sm:$0xf]
    %v4334 = vld [vmem:[%s33 + $0x14] sm:$0xf]
    %v4335 = vld [vmem:[%s33 + $0x18] sm:$0xf]
    %v4336 = vld [vmem:[%s33 + $0x1c] sm:$0xf]
    %v4337 = vld [vmem:[%s33 + $0x20] sm:$0xf]
    %v4338 = vld [vmem:[%s33 + $0x24] sm:$0xf]
    %v4339 = vld [vmem:[%s33 + $0x28] sm:$0xf]
    %v4340 = vld [vmem:[%s33 + $0x2c] sm:$0xf]
    %v4341 = vld [vmem:[%s33 + $0x30] sm:$0xf]
    %v4342 = vld [vmem:[%s33 + $0x34] sm:$0xf]
    %v4343 = vld [vmem:[%s33 + $0x38] sm:$0xf]
    %v4344 = vld [vmem:[%s33 + $0x3c] sm:$0xf]
    %v4345 = vpack.c.bf16 %v4326, %v4326
    %v4362 = vunpack.c.l.b16 %v4329
    %v4363 = vunpack.c.l.b16 %v4330
    %v4364 = vunpack.c.l.b16 %v4331
    %v4365 = vunpack.c.l.b16 %v4332
    %v4366 = vunpack.c.l.b16 %v4333
    %v4367 = vunpack.c.l.b16 %v4334
    %v4368 = vunpack.c.l.b16 %v4335
    %v4369 = vunpack.c.l.b16 %v4336
    %v4370 = vunpack.c.l.b16 %v4337
    %v4371 = vunpack.c.l.b16 %v4338
    %v4372 = vunpack.c.l.b16 %v4339
    %v4373 = vunpack.c.l.b16 %v4340
    %v4374 = vunpack.c.l.b16 %v4341
    %v4375 = vunpack.c.l.b16 %v4342
    %v4376 = vunpack.c.l.b16 %v4343
    %v4377 = vunpack.c.l.b16 %v4344
    %v4378 = vpack.c.b16 %v4363, %v4362
    %v4379 = vpack.c.b16 %v4365, %v4364
    %v4380 = vpack.c.b16 %v4367, %v4366
    %v4381 = vpack.c.b16 %v4369, %v4368
    %v4382 = vpack.c.b16 %v4371, %v4370
    %v4383 = vpack.c.b16 %v4373, %v4372
    %v4384 = vpack.c.b16 %v4375, %v4374
    %v4385 = vpack.c.b16 %v4377, %v4376
    %4394 = vmatpush.bf16.msra.mxu0 %v4385
    %4395 = vmatpush.bf16.msra.mxu0 %v4384
    %4396 = vmatpush.bf16.msra.mxu0 %v4383
    %4397 = vmatpush.bf16.msra.mxu0 %v4382
    %4398 = vmatpush.bf16.msra.mxu0 %v4381
    %4399 = vmatpush.bf16.msra.mxu0 %v4380
    %4400 = vmatpush.bf16.msra.mxu0 %v4379
    %4401 = vmatpush.bf16.msra.mxu0 %v4378
    %4402 = vmatmul.bf16.gmra.mxu0 %v4345
    %v4403 = vpop.f32.mrf.mxu0
    %v4404 = vadd.f32 0.0, %v4403
    %v4405 = vpop.f32.mrf.mxu0
    %4406 = vdwg.mxu0
    %v4408 = vperm.slane %v4307, 0
    %v4410 = vadd.f32 %v4408, %v4404
    %s4411 = scalar_lea.vmem %s33, 64
    %v4412 = vld [vmem:[%s4411] sm:$0xf]
    %v4413 = vld [vmem:[%s4411 + $0x4] sm:$0xf]
    %v4414 = vld [vmem:[%s4411 + $0x8] sm:$0xf]
    %v4415 = vld [vmem:[%s4411 + $0xc] sm:$0xf]
    %v4416 = vld [vmem:[%s4411 + $0x10] sm:$0xf]
    %v4417 = vld [vmem:[%s4411 + $0x14] sm:$0xf]
    %v4418 = vld [vmem:[%s4411 + $0x18] sm:$0xf]
    %v4419 = vld [vmem:[%s4411 + $0x1c] sm:$0xf]
    %v4420 = vld [vmem:[%s4411 + $0x20] sm:$0xf]
    %v4421 = vld [vmem:[%s4411 + $0x24] sm:$0xf]
    %v4422 = vld [vmem:[%s4411 + $0x28] sm:$0xf]
    %v4423 = vld [vmem:[%s4411 + $0x2c] sm:$0xf]
    %v4424 = vld [vmem:[%s4411 + $0x30] sm:$0xf]
    %v4425 = vld [vmem:[%s4411 + $0x34] sm:$0xf]
    %v4426 = vld [vmem:[%s4411 + $0x38] sm:$0xf]
    %v4427 = vld [vmem:[%s4411 + $0x3c] sm:$0xf]
    %v4444 = vunpack.c.l.b16 %v4412
    %v4445 = vunpack.c.l.b16 %v4413
    %v4446 = vunpack.c.l.b16 %v4414
    %v4447 = vunpack.c.l.b16 %v4415
    %v4448 = vunpack.c.l.b16 %v4416
    %v4449 = vunpack.c.l.b16 %v4417
    %v4450 = vunpack.c.l.b16 %v4418
    %v4451 = vunpack.c.l.b16 %v4419
    %v4452 = vunpack.c.l.b16 %v4420
    %v4453 = vunpack.c.l.b16 %v4421
    %v4454 = vunpack.c.l.b16 %v4422
    %v4455 = vunpack.c.l.b16 %v4423
    %v4456 = vunpack.c.l.b16 %v4424
    %v4457 = vunpack.c.l.b16 %v4425
    %v4458 = vunpack.c.l.b16 %v4426
    %v4459 = vunpack.c.l.b16 %v4427
    %v4460 = vpack.c.b16 %v4445, %v4444
    %v4461 = vpack.c.b16 %v4447, %v4446
    %v4462 = vpack.c.b16 %v4449, %v4448
    %v4463 = vpack.c.b16 %v4451, %v4450
    %v4464 = vpack.c.b16 %v4453, %v4452
    %v4465 = vpack.c.b16 %v4455, %v4454
    %v4466 = vpack.c.b16 %v4457, %v4456
    %v4467 = vpack.c.b16 %v4459, %v4458
    %4476 = vmatpush.bf16.msra.mxu0 %v4467
    %4477 = vmatpush.bf16.msra.mxu0 %v4466
    %4478 = vmatpush.bf16.msra.mxu0 %v4465
    %4479 = vmatpush.bf16.msra.mxu0 %v4464
    %4480 = vmatpush.bf16.msra.mxu0 %v4463
    %4481 = vmatpush.bf16.msra.mxu0 %v4462
    %4482 = vmatpush.bf16.msra.mxu0 %v4461
    %4483 = vmatpush.bf16.msra.mxu0 %v4460
    %4484 = vmatmul.bf16.gmra.mxu0 %v4309
    %v4485 = vpop.f32.mrf.mxu0
    %v4486 = vadd.f32 0.0, %v4485
    %v4487 = vpop.f32.mrf.mxu0
    %4488 = vdwg.mxu0
    %v4489 = vadd.f32 %v4410, %v4486
    %s4490 = scalar_lea.vmem [#allocation17], 8
    %v4491 = vld [vmem:[%s4490] sm:$0xf]
    %v4493 = vsel %vm3461, %v4491, 0
    %4495 = vmatpush.bf16.msra.mxu0 0
    %4496 = vmatpush.bf16.msra.mxu0 0
    %4497 = vmatpush.bf16.msra.mxu0 0
    %4498 = vmatpush.bf16.msra.mxu0 0
    %4499 = vmatpush.bf16.msra.mxu0 0
    %4500 = vmatpush.bf16.msra.mxu0 0
    %4501 = vmatpush.bf16.msra.mxu0 0
    %4502 = vmatpush.bf16.msra.mxu0 %v4314
    %4503 = vmatmul.bf16.gmra.mxu0 %v4493
    %v4504 = vpop.f32.mrf.mxu0
    %v4505 = vadd.f32 0.0, %v4504
    %v4506 = vpop.f32.mrf.mxu0
    %4507 = vdwg.mxu0
    %s4508 = scalar_lea.vmem %s33, 128
    %v4509 = vld [vmem:[%s4508] sm:$0xf]
    %v4510 = vld [vmem:[%s4508 + $0x4] sm:$0xf]
    %v4511 = vld [vmem:[%s4508 + $0x8] sm:$0xf]
    %v4512 = vld [vmem:[%s4508 + $0xc] sm:$0xf]
    %v4513 = vld [vmem:[%s4508 + $0x10] sm:$0xf]
    %v4514 = vld [vmem:[%s4508 + $0x14] sm:$0xf]
    %v4515 = vld [vmem:[%s4508 + $0x18] sm:$0xf]
    %v4516 = vld [vmem:[%s4508 + $0x1c] sm:$0xf]
    %v4517 = vld [vmem:[%s4508 + $0x20] sm:$0xf]
    %v4518 = vld [vmem:[%s4508 + $0x24] sm:$0xf]
    %v4519 = vld [vmem:[%s4508 + $0x28] sm:$0xf]
    %v4520 = vld [vmem:[%s4508 + $0x2c] sm:$0xf]
    %v4521 = vld [vmem:[%s4508 + $0x30] sm:$0xf]
    %v4522 = vld [vmem:[%s4508 + $0x34] sm:$0xf]
    %v4523 = vld [vmem:[%s4508 + $0x38] sm:$0xf]
    %v4524 = vld [vmem:[%s4508 + $0x3c] sm:$0xf]
    %v4525 = vpack.c.bf16 %v4505, %v4505
    %v4542 = vunpack.c.l.b16 %v4509
    %v4543 = vunpack.c.l.b16 %v4510
    %v4544 = vunpack.c.l.b16 %v4511
    %v4545 = vunpack.c.l.b16 %v4512
    %v4546 = vunpack.c.l.b16 %v4513
    %v4547 = vunpack.c.l.b16 %v4514
    %v4548 = vunpack.c.l.b16 %v4515
    %v4549 = vunpack.c.l.b16 %v4516
    %v4550 = vunpack.c.l.b16 %v4517
    %v4551 = vunpack.c.l.b16 %v4518
    %v4552 = vunpack.c.l.b16 %v4519
    %v4553 = vunpack.c.l.b16 %v4520
    %v4554 = vunpack.c.l.b16 %v4521
    %v4555 = vunpack.c.l.b16 %v4522
    %v4556 = vunpack.c.l.b16 %v4523
    %v4557 = vunpack.c.l.b16 %v4524
    %v4558 = vpack.c.b16 %v4543, %v4542
    %v4559 = vpack.c.b16 %v4545, %v4544
    %v4560 = vpack.c.b16 %v4547, %v4546
    %v4561 = vpack.c.b16 %v4549, %v4548
    %v4562 = vpack.c.b16 %v4551, %v4550
    %v4563 = vpack.c.b16 %v4553, %v4552
    %v4564 = vpack.c.b16 %v4555, %v4554
    %v4565 = vpack.c.b16 %v4557, %v4556
    %4574 = vmatpush.bf16.msra.mxu0 %v4565
    %4575 = vmatpush.bf16.msra.mxu0 %v4564
    %4576 = vmatpush.bf16.msra.mxu0 %v4563
    %4577 = vmatpush.bf16.msra.mxu0 %v4562
    %4578 = vmatpush.bf16.msra.mxu0 %v4561
    %4579 = vmatpush.bf16.msra.mxu0 %v4560
    %4580 = vmatpush.bf16.msra.mxu0 %v4559
    %4581 = vmatpush.bf16.msra.mxu0 %v4558
    %4582 = vmatmul.bf16.gmra.mxu0 %v4525
    %v4583 = vpop.f32.mrf.mxu0
    %v4584 = vadd.f32 0.0, %v4583
    %v4585 = vpop.f32.mrf.mxu0
    %4586 = vdwg.mxu0
    %v4587 = vadd.f32 %v4489, %v4584
    %v4588 = vadd.f32 %v4587, %v4024
    %v4589 = vmax.f32 %v4588, 0.0
    %v4590 = vld [vmem:[#allocation23] sm:$0x1]
    %v4591 = vld [vmem:[#allocation20] sm:$0x3]
    %v4592 = vpack.c.bf16 %v4589, %v4589
    %v4594 = vsel %vm3461, %v4591, 0
    %v4597 = vsel %vm3465, %v4592, 0
    %4599 = vmatpush.bf16.msra.mxu0 0
    %4600 = vmatpush.bf16.msra.mxu0 0
    %4601 = vmatpush.bf16.msra.mxu0 0
    %4602 = vmatpush.bf16.msra.mxu0 0
    %4603 = vmatpush.bf16.msra.mxu0 0
    %4604 = vmatpush.bf16.msra.mxu0 0
    %4605 = vmatpush.bf16.msra.mxu0 0
    %4606 = vmatpush.bf16.msra.mxu0 %v4597
    %4607 = vmatmul.bf16.gmra.mxu0 %v4594
    %v4608 = vpop.f32.mrf.mxu0
    %v4609 = vadd.f32 0.0, %v4608
    %v4610 = vpop.f32.mrf.mxu0
    %4611 = vdwg.mxu0
    %v4612 = vld [vmem:[#allocation22] sm:$0xf]
    %v4613 = vld [vmem:[#allocation22 + $0x4] sm:$0xf]
    %v4614 = vld [vmem:[#allocation22 + $0x8] sm:$0xf]
    %v4615 = vld [vmem:[#allocation22 + $0xc] sm:$0xf]
    %v4616 = vld [vmem:[#allocation22 + $0x10] sm:$0xf]
    %v4617 = vld [vmem:[#allocation22 + $0x14] sm:$0xf]
    %v4618 = vld [vmem:[#allocation22 + $0x18] sm:$0xf]
    %v4619 = vld [vmem:[#allocation22 + $0x1c] sm:$0xf]
    %v4620 = vld [vmem:[#allocation22 + $0x20] sm:$0xf]
    %v4621 = vld [vmem:[#allocation22 + $0x24] sm:$0xf]
    %v4622 = vld [vmem:[#allocation22 + $0x28] sm:$0xf]
    %v4623 = vld [vmem:[#allocation22 + $0x2c] sm:$0xf]
    %v4624 = vld [vmem:[#allocation22 + $0x30] sm:$0xf]
    %v4625 = vld [vmem:[#allocation22 + $0x34] sm:$0xf]
    %v4626 = vld [vmem:[#allocation22 + $0x38] sm:$0xf]
    %v4627 = vld [vmem:[#allocation22 + $0x3c] sm:$0xf]
    %v4628 = vpack.c.bf16 %v4609, %v4609
    %v4645 = vunpack.c.l.b16 %v4612
    %v4646 = vunpack.c.l.b16 %v4613
    %v4647 = vunpack.c.l.b16 %v4614
    %v4648 = vunpack.c.l.b16 %v4615
    %v4649 = vunpack.c.l.b16 %v4616
    %v4650 = vunpack.c.l.b16 %v4617
    %v4651 = vunpack.c.l.b16 %v4618
    %v4652 = vunpack.c.l.b16 %v4619
    %v4653 = vunpack.c.l.b16 %v4620
    %v4654 = vunpack.c.l.b16 %v4621
    %v4655 = vunpack.c.l.b16 %v4622
    %v4656 = vunpack.c.l.b16 %v4623
    %v4657 = vunpack.c.l.b16 %v4624
    %v4658 = vunpack.c.l.b16 %v4625
    %v4659 = vunpack.c.l.b16 %v4626
    %v4660 = vunpack.c.l.b16 %v4627
    %v4661 = vpack.c.b16 %v4646, %v4645
    %v4662 = vpack.c.b16 %v4648, %v4647
    %v4663 = vpack.c.b16 %v4650, %v4649
    %v4664 = vpack.c.b16 %v4652, %v4651
    %v4665 = vpack.c.b16 %v4654, %v4653
    %v4666 = vpack.c.b16 %v4656, %v4655
    %v4667 = vpack.c.b16 %v4658, %v4657
    %v4668 = vpack.c.b16 %v4660, %v4659
    %4677 = vmatpush.bf16.msra.mxu0 %v4668
    %4678 = vmatpush.bf16.msra.mxu0 %v4667
    %4679 = vmatpush.bf16.msra.mxu0 %v4666
    %4680 = vmatpush.bf16.msra.mxu0 %v4665
    %4681 = vmatpush.bf16.msra.mxu0 %v4664
    %4682 = vmatpush.bf16.msra.mxu0 %v4663
    %4683 = vmatpush.bf16.msra.mxu0 %v4662
    %4684 = vmatpush.bf16.msra.mxu0 %v4661
    %4685 = vmatmul.bf16.gmra.mxu0 %v4628
    %v4686 = vpop.f32.mrf.mxu0
    %v4687 = vadd.f32 0.0, %v4686
    %v4688 = vpop.f32.mrf.mxu0
    %4689 = vdwg.mxu0
    %v4691 = vperm.slane %v4590, 0
    %v4693 = vadd.f32 %v4691, %v4687
    %s4694 = scalar_lea.vmem [#allocation20], 2
    %v4695 = vld [vmem:[%s4694] sm:$0x3]
    %v4697 = vsel %vm3461, %v4695, 0
    %4699 = vmatpush.bf16.msra.mxu0 0
    %4700 = vmatpush.bf16.msra.mxu0 0
    %4701 = vmatpush.bf16.msra.mxu0 0
    %4702 = vmatpush.bf16.msra.mxu0 0
    %4703 = vmatpush.bf16.msra.mxu0 0
    %4704 = vmatpush.bf16.msra.mxu0 0
    %4705 = vmatpush.bf16.msra.mxu0 0
    %4706 = vmatpush.bf16.msra.mxu0 %v4597
    %4707 = vmatmul.bf16.gmra.mxu0 %v4697
    %v4708 = vpop.f32.mrf.mxu0
    %v4709 = vadd.f32 0.0, %v4708
    %v4710 = vpop.f32.mrf.mxu0
    %4711 = vdwg.mxu0
    %s4712 = scalar_lea.vmem [#allocation22], 64
    %v4713 = vld [vmem:[%s4712] sm:$0xf]
    %v4714 = vld [vmem:[%s4712 + $0x4] sm:$0xf]
    %v4715 = vld [vmem:[%s4712 + $0x8] sm:$0xf]
    %v4716 = vld [vmem:[%s4712 + $0xc] sm:$0xf]
    %v4717 = vld [vmem:[%s4712 + $0x10] sm:$0xf]
    %v4718 = vld [vmem:[%s4712 + $0x14] sm:$0xf]
    %v4719 = vld [vmem:[%s4712 + $0x18] sm:$0xf]
    %v4720 = vld [vmem:[%s4712 + $0x1c] sm:$0xf]
    %v4721 = vld [vmem:[%s4712 + $0x20] sm:$0xf]
    %v4722 = vld [vmem:[%s4712 + $0x24] sm:$0xf]
    %v4723 = vld [vmem:[%s4712 + $0x28] sm:$0xf]
    %v4724 = vld [vmem:[%s4712 + $0x2c] sm:$0xf]
    %v4725 = vld [vmem:[%s4712 + $0x30] sm:$0xf]
    %v4726 = vld [vmem:[%s4712 + $0x34] sm:$0xf]
    %v4727 = vld [vmem:[%s4712 + $0x38] sm:$0xf]
    %v4728 = vld [vmem:[%s4712 + $0x3c] sm:$0xf]
    %v4729 = vpack.c.bf16 %v4709, %v4709
    %v4746 = vunpack.c.l.b16 %v4713
    %v4747 = vunpack.c.l.b16 %v4714
    %v4748 = vunpack.c.l.b16 %v4715
    %v4749 = vunpack.c.l.b16 %v4716
    %v4750 = vunpack.c.l.b16 %v4717
    %v4751 = vunpack.c.l.b16 %v4718
    %v4752 = vunpack.c.l.b16 %v4719
    %v4753 = vunpack.c.l.b16 %v4720
    %v4754 = vunpack.c.l.b16 %v4721
    %v4755 = vunpack.c.l.b16 %v4722
    %v4756 = vunpack.c.l.b16 %v4723
    %v4757 = vunpack.c.l.b16 %v4724
    %v4758 = vunpack.c.l.b16 %v4725
    %v4759 = vunpack.c.l.b16 %v4726
    %v4760 = vunpack.c.l.b16 %v4727
    %v4761 = vunpack.c.l.b16 %v4728
    %v4762 = vpack.c.b16 %v4747, %v4746
    %v4763 = vpack.c.b16 %v4749, %v4748
    %v4764 = vpack.c.b16 %v4751, %v4750
    %v4765 = vpack.c.b16 %v4753, %v4752
    %v4766 = vpack.c.b16 %v4755, %v4754
    %v4767 = vpack.c.b16 %v4757, %v4756
    %v4768 = vpack.c.b16 %v4759, %v4758
    %v4769 = vpack.c.b16 %v4761, %v4760
    %4778 = vmatpush.bf16.msra.mxu0 %v4769
    %4779 = vmatpush.bf16.msra.mxu0 %v4768
    %4780 = vmatpush.bf16.msra.mxu0 %v4767
    %4781 = vmatpush.bf16.msra.mxu0 %v4766
    %4782 = vmatpush.bf16.msra.mxu0 %v4765
    %4783 = vmatpush.bf16.msra.mxu0 %v4764
    %4784 = vmatpush.bf16.msra.mxu0 %v4763
    %4785 = vmatpush.bf16.msra.mxu0 %v4762
    %4786 = vmatmul.bf16.gmra.mxu0 %v4729
    %v4787 = vpop.f32.mrf.mxu0
    %v4788 = vadd.f32 0.0, %v4787
    %v4789 = vpop.f32.mrf.mxu0
    %4790 = vdwg.mxu0
    %v4791 = vadd.f32 %v4693, %v4788
    %s4792 = scalar_lea.vmem [#allocation20], 4
    %v4793 = vld [vmem:[%s4792] sm:$0x3]
    %v4795 = vsel %vm3461, %v4793, 0
    %4797 = vmatpush.bf16.msra.mxu0 0
    %4798 = vmatpush.bf16.msra.mxu0 0
    %4799 = vmatpush.bf16.msra.mxu0 0
    %4800 = vmatpush.bf16.msra.mxu0 0
    %4801 = vmatpush.bf16.msra.mxu0 0
    %4802 = vmatpush.bf16.msra.mxu0 0
    %4803 = vmatpush.bf16.msra.mxu0 0
    %4804 = vmatpush.bf16.msra.mxu0 %v4597
    %4805 = vmatmul.bf16.gmra.mxu0 %v4795
    %v4806 = vpop.f32.mrf.mxu0
    %v4807 = vadd.f32 0.0, %v4806
    %v4808 = vpop.f32.mrf.mxu0
    %4809 = vdwg.mxu0
    %s4810 = scalar_lea.vmem [#allocation22], 128
    %v4811 = vld [vmem:[%s4810] sm:$0xf]
    %v4812 = vld [vmem:[%s4810 + $0x4] sm:$0xf]
    %v4813 = vld [vmem:[%s4810 + $0x8] sm:$0xf]
    %v4814 = vld [vmem:[%s4810 + $0xc] sm:$0xf]
    %v4815 = vld [vmem:[%s4810 + $0x10] sm:$0xf]
    %v4816 = vld [vmem:[%s4810 + $0x14] sm:$0xf]
    %v4817 = vld [vmem:[%s4810 + $0x18] sm:$0xf]
    %v4818 = vld [vmem:[%s4810 + $0x1c] sm:$0xf]
    %v4819 = vld [vmem:[%s4810 + $0x20] sm:$0xf]
    %v4820 = vld [vmem:[%s4810 + $0x24] sm:$0xf]
    %v4821 = vld [vmem:[%s4810 + $0x28] sm:$0xf]
    %v4822 = vld [vmem:[%s4810 + $0x2c] sm:$0xf]
    %v4823 = vld [vmem:[%s4810 + $0x30] sm:$0xf]
    %v4824 = vld [vmem:[%s4810 + $0x34] sm:$0xf]
    %v4825 = vld [vmem:[%s4810 + $0x38] sm:$0xf]
    %v4826 = vld [vmem:[%s4810 + $0x3c] sm:$0xf]
    %v4827 = vpack.c.bf16 %v4807, %v4807
    %v4844 = vunpack.c.l.b16 %v4811
    %v4845 = vunpack.c.l.b16 %v4812
    %v4846 = vunpack.c.l.b16 %v4813
    %v4847 = vunpack.c.l.b16 %v4814
    %v4848 = vunpack.c.l.b16 %v4815
    %v4849 = vunpack.c.l.b16 %v4816
    %v4850 = vunpack.c.l.b16 %v4817
    %v4851 = vunpack.c.l.b16 %v4818
    %v4852 = vunpack.c.l.b16 %v4819
    %v4853 = vunpack.c.l.b16 %v4820
    %v4854 = vunpack.c.l.b16 %v4821
    %v4855 = vunpack.c.l.b16 %v4822
    %v4856 = vunpack.c.l.b16 %v4823
    %v4857 = vunpack.c.l.b16 %v4824
    %v4858 = vunpack.c.l.b16 %v4825
    %v4859 = vunpack.c.l.b16 %v4826
    %v4860 = vpack.c.b16 %v4845, %v4844
    %v4861 = vpack.c.b16 %v4847, %v4846
    %v4862 = vpack.c.b16 %v4849, %v4848
    %v4863 = vpack.c.b16 %v4851, %v4850
    %v4864 = vpack.c.b16 %v4853, %v4852
    %v4865 = vpack.c.b16 %v4855, %v4854
    %v4866 = vpack.c.b16 %v4857, %v4856
    %v4867 = vpack.c.b16 %v4859, %v4858
    %4876 = vmatpush.bf16.msra.mxu0 %v4867
    %4877 = vmatpush.bf16.msra.mxu0 %v4866
    %4878 = vmatpush.bf16.msra.mxu0 %v4865
    %4879 = vmatpush.bf16.msra.mxu0 %v4864
    %4880 = vmatpush.bf16.msra.mxu0 %v4863
    %4881 = vmatpush.bf16.msra.mxu0 %v4862
    %4882 = vmatpush.bf16.msra.mxu0 %v4861
    %4883 = vmatpush.bf16.msra.mxu0 %v4860
    %4884 = vmatmul.bf16.gmra.mxu0 %v4827
    %v4885 = vpop.f32.mrf.mxu0
    %v4886 = vadd.f32 0.0, %v4885
    %v4887 = vpop.f32.mrf.mxu0
    %4888 = vdwg.mxu0
    %v4889 = vadd.f32 %v4791, %v4886
    %v4890 = vmax.f32 %v4889, 0.0
    %v4891 = vld [vmem:[#allocation26] sm:$0x1]
    %v4892 = vld [vmem:[#allocation25] sm:$0x3]
    %v4894 = vsel %vm3461, %v4892, 0
    %4896 = vmatpush.bf16.msra.mxu0 0
    %4897 = vmatpush.bf16.msra.mxu0 0
    %4898 = vmatpush.bf16.msra.mxu0 0
    %4899 = vmatpush.bf16.msra.mxu0 0
    %4900 = vmatpush.bf16.msra.mxu0 0
    %4901 = vmatpush.bf16.msra.mxu0 0
    %4902 = vmatpush.bf16.msra.mxu0 0
    %4903 = vmatpush.bf16.msra.mxu0 %v4597
    %4904 = vmatmul.bf16.gmra.mxu0 %v4894
    %v4905 = vpop.f32.mrf.mxu0
    %v4906 = vadd.f32 0.0, %v4905
    %v4907 = vpop.f32.mrf.mxu0
    %4908 = vdwg.mxu0
    %v4909 = vld [vmem:[%s45] sm:$0xf]
    %v4910 = vld [vmem:[%s45 + $0x4] sm:$0xf]
    %v4911 = vld [vmem:[%s45 + $0x8] sm:$0xf]
    %v4912 = vld [vmem:[%s45 + $0xc] sm:$0xf]
    %v4913 = vld [vmem:[%s45 + $0x10] sm:$0xf]
    %v4914 = vld [vmem:[%s45 + $0x14] sm:$0xf]
    %v4915 = vld [vmem:[%s45 + $0x18] sm:$0xf]
    %v4916 = vld [vmem:[%s45 + $0x1c] sm:$0xf]
    %v4917 = vld [vmem:[%s45 + $0x20] sm:$0xf]
    %v4918 = vld [vmem:[%s45 + $0x24] sm:$0xf]
    %v4919 = vld [vmem:[%s45 + $0x28] sm:$0xf]
    %v4920 = vld [vmem:[%s45 + $0x2c] sm:$0xf]
    %v4921 = vld [vmem:[%s45 + $0x30] sm:$0xf]
    %v4922 = vld [vmem:[%s45 + $0x34] sm:$0xf]
    %v4923 = vld [vmem:[%s45 + $0x38] sm:$0xf]
    %v4924 = vld [vmem:[%s45 + $0x3c] sm:$0xf]
    %v4925 = vpack.c.bf16 %v4906, %v4906
    %v4942 = vunpack.c.l.b16 %v4909
    %v4943 = vunpack.c.l.b16 %v4910
    %v4944 = vunpack.c.l.b16 %v4911
    %v4945 = vunpack.c.l.b16 %v4912
    %v4946 = vunpack.c.l.b16 %v4913
    %v4947 = vunpack.c.l.b16 %v4914
    %v4948 = vunpack.c.l.b16 %v4915
    %v4949 = vunpack.c.l.b16 %v4916
    %v4950 = vunpack.c.l.b16 %v4917
    %v4951 = vunpack.c.l.b16 %v4918
    %v4952 = vunpack.c.l.b16 %v4919
    %v4953 = vunpack.c.l.b16 %v4920
    %v4954 = vunpack.c.l.b16 %v4921
    %v4955 = vunpack.c.l.b16 %v4922
    %v4956 = vunpack.c.l.b16 %v4923
    %v4957 = vunpack.c.l.b16 %v4924
    %v4958 = vpack.c.b16 %v4943, %v4942
    %v4959 = vpack.c.b16 %v4945, %v4944
    %v4960 = vpack.c.b16 %v4947, %v4946
    %v4961 = vpack.c.b16 %v4949, %v4948
    %v4962 = vpack.c.b16 %v4951, %v4950
    %v4963 = vpack.c.b16 %v4953, %v4952
    %v4964 = vpack.c.b16 %v4955, %v4954
    %v4965 = vpack.c.b16 %v4957, %v4956
    %4974 = vmatpush.bf16.msra.mxu0 %v4965
    %4975 = vmatpush.bf16.msra.mxu0 %v4964
    %4976 = vmatpush.bf16.msra.mxu0 %v4963
    %4977 = vmatpush.bf16.msra.mxu0 %v4962
    %4978 = vmatpush.bf16.msra.mxu0 %v4961
    %4979 = vmatpush.bf16.msra.mxu0 %v4960
    %4980 = vmatpush.bf16.msra.mxu0 %v4959
    %4981 = vmatpush.bf16.msra.mxu0 %v4958
    %4982 = vmatmul.bf16.gmra.mxu0 %v4925
    %v4983 = vpop.f32.mrf.mxu0
    %v4984 = vadd.f32 0.0, %v4983
    %v4985 = vpop.f32.mrf.mxu0
    %4986 = vdwg.mxu0
    %v4988 = vperm.slane %v4891, 0
    %v4990 = vadd.f32 %v4988, %v4984
    %v4991 = vld [vmem:[#allocation31] sm:$0x1]
    %v4992 = vld [vmem:[#allocation28] sm:$0x3]
    %v4993 = vpack.c.bf16 %v4890, %v4890
    %vm4994 = vcmask 31744
    %v4996 = vsel %vm4994, %v4992, 0
    %vm4998 = vcmask 1041408
    %v5000 = vsel %vm4998, %v4993, 0
    %5002 = vmatpush.bf16.msra.mxu0 0
    %5003 = vmatpush.bf16.msra.mxu0 0
    %5004 = vmatpush.bf16.msra.mxu0 0
    %5005 = vmatpush.bf16.msra.mxu0 0
    %5006 = vmatpush.bf16.msra.mxu0 0
    %5007 = vmatpush.bf16.msra.mxu0 0
    %5008 = vmatpush.bf16.msra.mxu0 0
    %5009 = vmatpush.bf16.msra.mxu0 %v5000
    %5010 = vmatmul.bf16.gmra.mxu0 %v4996
    %v5011 = vpop.f32.mrf.mxu0
    %v5012 = vadd.f32 0.0, %v5011
    %v5013 = vpop.f32.mrf.mxu0
    %5014 = vdwg.mxu0
    %v5015 = vld [vmem:[#allocation29] sm:$0xf]
    %v5016 = vld [vmem:[#allocation29 + $0x4] sm:$0xf]
    %v5017 = vld [vmem:[#allocation29 + $0x8] sm:$0xf]
    %v5018 = vld [vmem:[#allocation29 + $0xc] sm:$0xf]
    %v5019 = vld [vmem:[#allocation29 + $0x10] sm:$0xf]
    %v5020 = vld [vmem:[#allocation29 + $0x14] sm:$0xf]
    %v5021 = vld [vmem:[#allocation29 + $0x18] sm:$0xf]
    %v5022 = vld [vmem:[#allocation29 + $0x1c] sm:$0xf]
    %v5023 = vld [vmem:[#allocation29 + $0x20] sm:$0xf]
    %v5024 = vld [vmem:[#allocation29 + $0x24] sm:$0xf]
    %v5025 = vld [vmem:[#allocation29 + $0x28] sm:$0xf]
    %v5026 = vld [vmem:[#allocation29 + $0x2c] sm:$0xf]
    %v5027 = vld [vmem:[#allocation29 + $0x30] sm:$0xf]
    %v5028 = vld [vmem:[#allocation29 + $0x34] sm:$0xf]
    %v5029 = vld [vmem:[#allocation29 + $0x38] sm:$0xf]
    %v5030 = vld [vmem:[#allocation29 + $0x3c] sm:$0xf]
    %v5031 = vpack.c.bf16 %v5012, %v5012
    %v5048 = vunpack.c.l.b16 %v5015
    %v5049 = vunpack.c.l.b16 %v5016
    %v5050 = vunpack.c.l.b16 %v5017
    %v5051 = vunpack.c.l.b16 %v5018
    %v5052 = vunpack.c.l.b16 %v5019
    %v5053 = vunpack.c.l.b16 %v5020
    %v5054 = vunpack.c.l.b16 %v5021
    %v5055 = vunpack.c.l.b16 %v5022
    %v5056 = vunpack.c.l.b16 %v5023
    %v5057 = vunpack.c.l.b16 %v5024
    %v5058 = vunpack.c.l.b16 %v5025
    %v5059 = vunpack.c.l.b16 %v5026
    %v5060 = vunpack.c.l.b16 %v5027
    %v5061 = vunpack.c.l.b16 %v5028
    %v5062 = vunpack.c.l.b16 %v5029
    %v5063 = vunpack.c.l.b16 %v5030
    %v5064 = vpack.c.b16 %v5049, %v5048
    %v5065 = vpack.c.b16 %v5051, %v5050
    %v5066 = vpack.c.b16 %v5053, %v5052
    %v5067 = vpack.c.b16 %v5055, %v5054
    %v5068 = vpack.c.b16 %v5057, %v5056
    %v5069 = vpack.c.b16 %v5059, %v5058
    %v5070 = vpack.c.b16 %v5061, %v5060
    %v5071 = vpack.c.b16 %v5063, %v5062
    %5080 = vmatpush.bf16.msra.mxu0 %v5071
    %5081 = vmatpush.bf16.msra.mxu0 %v5070
    %5082 = vmatpush.bf16.msra.mxu0 %v5069
    %5083 = vmatpush.bf16.msra.mxu0 %v5068
    %5084 = vmatpush.bf16.msra.mxu0 %v5067
    %5085 = vmatpush.bf16.msra.mxu0 %v5066
    %5086 = vmatpush.bf16.msra.mxu0 %v5065
    %5087 = vmatpush.bf16.msra.mxu0 %v5064
    %5088 = vmatmul.bf16.gmra.mxu0 %v5031
    %v5089 = vpop.f32.mrf.mxu0
    %v5090 = vadd.f32 0.0, %v5089
    %v5091 = vpop.f32.mrf.mxu0
    %5092 = vdwg.mxu0
    %v5094 = vperm.slane %v4991, 0
    %v5096 = vadd.f32 %v5094, %v5090
    %s5097 = scalar_lea.vmem [#allocation29], 64
    %v5098 = vld [vmem:[%s5097] sm:$0xf]
    %v5099 = vld [vmem:[%s5097 + $0x4] sm:$0xf]
    %v5100 = vld [vmem:[%s5097 + $0x8] sm:$0xf]
    %v5101 = vld [vmem:[%s5097 + $0xc] sm:$0xf]
    %v5102 = vld [vmem:[%s5097 + $0x10] sm:$0xf]
    %v5103 = vld [vmem:[%s5097 + $0x14] sm:$0xf]
    %v5104 = vld [vmem:[%s5097 + $0x18] sm:$0xf]
    %v5105 = vld [vmem:[%s5097 + $0x1c] sm:$0xf]
    %v5106 = vld [vmem:[%s5097 + $0x20] sm:$0xf]
    %v5107 = vld [vmem:[%s5097 + $0x24] sm:$0xf]
    %v5108 = vld [vmem:[%s5097 + $0x28] sm:$0xf]
    %v5109 = vld [vmem:[%s5097 + $0x2c] sm:$0xf]
    %v5110 = vld [vmem:[%s5097 + $0x30] sm:$0xf]
    %v5111 = vld [vmem:[%s5097 + $0x34] sm:$0xf]
    %v5112 = vld [vmem:[%s5097 + $0x38] sm:$0xf]
    %v5113 = vld [vmem:[%s5097 + $0x3c] sm:$0xf]
    %v5130 = vunpack.c.l.b16 %v5098
    %v5131 = vunpack.c.l.b16 %v5099
    %v5132 = vunpack.c.l.b16 %v5100
    %v5133 = vunpack.c.l.b16 %v5101
    %v5134 = vunpack.c.l.b16 %v5102
    %v5135 = vunpack.c.l.b16 %v5103
    %v5136 = vunpack.c.l.b16 %v5104
    %v5137 = vunpack.c.l.b16 %v5105
    %v5138 = vunpack.c.l.b16 %v5106
    %v5139 = vunpack.c.l.b16 %v5107
    %v5140 = vunpack.c.l.b16 %v5108
    %v5141 = vunpack.c.l.b16 %v5109
    %v5142 = vunpack.c.l.b16 %v5110
    %v5143 = vunpack.c.l.b16 %v5111
    %v5144 = vunpack.c.l.b16 %v5112
    %v5145 = vunpack.c.l.b16 %v5113
    %v5146 = vpack.c.b16 %v5131, %v5130
    %v5147 = vpack.c.b16 %v5133, %v5132
    %v5148 = vpack.c.b16 %v5135, %v5134
    %v5149 = vpack.c.b16 %v5137, %v5136
    %v5150 = vpack.c.b16 %v5139, %v5138
    %v5151 = vpack.c.b16 %v5141, %v5140
    %v5152 = vpack.c.b16 %v5143, %v5142
    %v5153 = vpack.c.b16 %v5145, %v5144
    %5162 = vmatpush.bf16.msra.mxu0 %v5153
    %5163 = vmatpush.bf16.msra.mxu0 %v5152
    %5164 = vmatpush.bf16.msra.mxu0 %v5151
    %5165 = vmatpush.bf16.msra.mxu0 %v5150
    %5166 = vmatpush.bf16.msra.mxu0 %v5149
    %5167 = vmatpush.bf16.msra.mxu0 %v5148
    %5168 = vmatpush.bf16.msra.mxu0 %v5147
    %5169 = vmatpush.bf16.msra.mxu0 %v5146
    %5170 = vmatmul.bf16.gmra.mxu0 %v4993
    %v5171 = vpop.f32.mrf.mxu0
    %v5172 = vadd.f32 0.0, %v5171
    %v5173 = vpop.f32.mrf.mxu0
    %5174 = vdwg.mxu0
    %v5175 = vadd.f32 %v5096, %v5172
    %s5176 = scalar_lea.vmem [#allocation28], 4
    %v5177 = vld [vmem:[%s5176] sm:$0x3]
    %v5179 = vsel %vm4994, %v5177, 0
    %5181 = vmatpush.bf16.msra.mxu0 0
    %5182 = vmatpush.bf16.msra.mxu0 0
    %5183 = vmatpush.bf16.msra.mxu0 0
    %5184 = vmatpush.bf16.msra.mxu0 0
    %5185 = vmatpush.bf16.msra.mxu0 0
    %5186 = vmatpush.bf16.msra.mxu0 0
    %5187 = vmatpush.bf16.msra.mxu0 0
    %5188 = vmatpush.bf16.msra.mxu0 %v5000
    %5189 = vmatmul.bf16.gmra.mxu0 %v5179
    %v5190 = vpop.f32.mrf.mxu0
    %v5191 = vadd.f32 0.0, %v5190
    %v5192 = vpop.f32.mrf.mxu0
    %5193 = vdwg.mxu0
    %s5194 = scalar_lea.vmem [#allocation29], 128
    %v5195 = vld [vmem:[%s5194] sm:$0xf]
    %v5196 = vld [vmem:[%s5194 + $0x4] sm:$0xf]
    %v5197 = vld [vmem:[%s5194 + $0x8] sm:$0xf]
    %v5198 = vld [vmem:[%s5194 + $0xc] sm:$0xf]
    %v5199 = vld [vmem:[%s5194 + $0x10] sm:$0xf]
    %v5200 = vld [vmem:[%s5194 + $0x14] sm:$0xf]
    %v5201 = vld [vmem:[%s5194 + $0x18] sm:$0xf]
    %v5202 = vld [vmem:[%s5194 + $0x1c] sm:$0xf]
    %v5203 = vld [vmem:[%s5194 + $0x20] sm:$0xf]
    %v5204 = vld [vmem:[%s5194 + $0x24] sm:$0xf]
    %v5205 = vld [vmem:[%s5194 + $0x28] sm:$0xf]
    %v5206 = vld [vmem:[%s5194 + $0x2c] sm:$0xf]
    %v5207 = vld [vmem:[%s5194 + $0x30] sm:$0xf]
    %v5208 = vld [vmem:[%s5194 + $0x34] sm:$0xf]
    %v5209 = vld [vmem:[%s5194 + $0x38] sm:$0xf]
    %v5210 = vld [vmem:[%s5194 + $0x3c] sm:$0xf]
    %v5211 = vpack.c.bf16 %v5191, %v5191
    %v5228 = vunpack.c.l.b16 %v5195
    %v5229 = vunpack.c.l.b16 %v5196
    %v5230 = vunpack.c.l.b16 %v5197
    %v5231 = vunpack.c.l.b16 %v5198
    %v5232 = vunpack.c.l.b16 %v5199
    %v5233 = vunpack.c.l.b16 %v5200
    %v5234 = vunpack.c.l.b16 %v5201
    %v5235 = vunpack.c.l.b16 %v5202
    %v5236 = vunpack.c.l.b16 %v5203
    %v5237 = vunpack.c.l.b16 %v5204
    %v5238 = vunpack.c.l.b16 %v5205
    %v5239 = vunpack.c.l.b16 %v5206
    %v5240 = vunpack.c.l.b16 %v5207
    %v5241 = vunpack.c.l.b16 %v5208
    %v5242 = vunpack.c.l.b16 %v5209
    %v5243 = vunpack.c.l.b16 %v5210
    %v5244 = vpack.c.b16 %v5229, %v5228
    %v5245 = vpack.c.b16 %v5231, %v5230
    %v5246 = vpack.c.b16 %v5233, %v5232
    %v5247 = vpack.c.b16 %v5235, %v5234
    %v5248 = vpack.c.b16 %v5237, %v5236
    %v5249 = vpack.c.b16 %v5239, %v5238
    %v5250 = vpack.c.b16 %v5241, %v5240
    %v5251 = vpack.c.b16 %v5243, %v5242
    %5260 = vmatpush.bf16.msra.mxu0 %v5251
    %5261 = vmatpush.bf16.msra.mxu0 %v5250
    %5262 = vmatpush.bf16.msra.mxu0 %v5249
    %5263 = vmatpush.bf16.msra.mxu0 %v5248
    %5264 = vmatpush.bf16.msra.mxu0 %v5247
    %5265 = vmatpush.bf16.msra.mxu0 %v5246
    %5266 = vmatpush.bf16.msra.mxu0 %v5245
    %5267 = vmatpush.bf16.msra.mxu0 %v5244
    %5268 = vmatmul.bf16.gmra.mxu0 %v5211
    %v5269 = vpop.f32.mrf.mxu0
    %v5270 = vadd.f32 0.0, %v5269
    %v5271 = vpop.f32.mrf.mxu0
    %5272 = vdwg.mxu0
    %v5273 = vadd.f32 %v5175, %v5270
    %v5274 = vadd.f32 %v5273, %v4990
    %v5275 = vmax.f32 %v5274, 0.0
    %v5276 = vld [vmem:[#allocation35] sm:$0x1]
    %v5277 = vld [vmem:[#allocation32] sm:$0x3]
    %v5278 = vpack.c.bf16 %v5275, %v5275
    %v5280 = vsel %vm4994, %v5277, 0
    %v5283 = vsel %vm4998, %v5278, 0
    %5285 = vmatpush.bf16.msra.mxu0 0
    %5286 = vmatpush.bf16.msra.mxu0 0
    %5287 = vmatpush.bf16.msra.mxu0 0
    %5288 = vmatpush.bf16.msra.mxu0 0
    %5289 = vmatpush.bf16.msra.mxu0 0
    %5290 = vmatpush.bf16.msra.mxu0 0
    %5291 = vmatpush.bf16.msra.mxu0 0
    %5292 = vmatpush.bf16.msra.mxu0 %v5283
    %5293 = vmatmul.bf16.gmra.mxu0 %v5280
    %v5294 = vpop.f32.mrf.mxu0
    %v5295 = vadd.f32 0.0, %v5294
    %v5296 = vpop.f32.mrf.mxu0
    %5297 = vdwg.mxu0
    %v5298 = vld [vmem:[#allocation34] sm:$0xf]
    %v5299 = vld [vmem:[#allocation34 + $0x4] sm:$0xf]
    %v5300 = vld [vmem:[#allocation34 + $0x8] sm:$0xf]
    %v5301 = vld [vmem:[#allocation34 + $0xc] sm:$0xf]
    %v5302 = vld [vmem:[#allocation34 + $0x10] sm:$0xf]
    %v5303 = vld [vmem:[#allocation34 + $0x14] sm:$0xf]
    %v5304 = vld [vmem:[#allocation34 + $0x18] sm:$0xf]
    %v5305 = vld [vmem:[#allocation34 + $0x1c] sm:$0xf]
    %v5306 = vld [vmem:[#allocation34 + $0x20] sm:$0xf]
    %v5307 = vld [vmem:[#allocation34 + $0x24] sm:$0xf]
    %v5308 = vld [vmem:[#allocation34 + $0x28] sm:$0xf]
    %v5309 = vld [vmem:[#allocation34 + $0x2c] sm:$0xf]
    %v5310 = vld [vmem:[#allocation34 + $0x30] sm:$0xf]
    %v5311 = vld [vmem:[#allocation34 + $0x34] sm:$0xf]
    %v5312 = vld [vmem:[#allocation34 + $0x38] sm:$0xf]
    %v5313 = vld [vmem:[#allocation34 + $0x3c] sm:$0xf]
    %v5314 = vpack.c.bf16 %v5295, %v5295
    %v5331 = vunpack.c.l.b16 %v5298
    %v5332 = vunpack.c.l.b16 %v5299
    %v5333 = vunpack.c.l.b16 %v5300
    %v5334 = vunpack.c.l.b16 %v5301
    %v5335 = vunpack.c.l.b16 %v5302
    %v5336 = vunpack.c.l.b16 %v5303
    %v5337 = vunpack.c.l.b16 %v5304
    %v5338 = vunpack.c.l.b16 %v5305
    %v5339 = vunpack.c.l.b16 %v5306
    %v5340 = vunpack.c.l.b16 %v5307
    %v5341 = vunpack.c.l.b16 %v5308
    %v5342 = vunpack.c.l.b16 %v5309
    %v5343 = vunpack.c.l.b16 %v5310
    %v5344 = vunpack.c.l.b16 %v5311
    %v5345 = vunpack.c.l.b16 %v5312
    %v5346 = vunpack.c.l.b16 %v5313
    %v5347 = vpack.c.b16 %v5332, %v5331
    %v5348 = vpack.c.b16 %v5334, %v5333
    %v5349 = vpack.c.b16 %v5336, %v5335
    %v5350 = vpack.c.b16 %v5338, %v5337
    %v5351 = vpack.c.b16 %v5340, %v5339
    %v5352 = vpack.c.b16 %v5342, %v5341
    %v5353 = vpack.c.b16 %v5344, %v5343
    %v5354 = vpack.c.b16 %v5346, %v5345
    %5363 = vmatpush.bf16.msra.mxu0 %v5354
    %5364 = vmatpush.bf16.msra.mxu0 %v5353
    %5365 = vmatpush.bf16.msra.mxu0 %v5352
    %5366 = vmatpush.bf16.msra.mxu0 %v5351
    %5367 = vmatpush.bf16.msra.mxu0 %v5350
    %5368 = vmatpush.bf16.msra.mxu0 %v5349
    %5369 = vmatpush.bf16.msra.mxu0 %v5348
    %5370 = vmatpush.bf16.msra.mxu0 %v5347
    %5371 = vmatmul.bf16.gmra.mxu0 %v5314
    %v5372 = vpop.f32.mrf.mxu0
    %v5373 = vadd.f32 0.0, %v5372
    %v5374 = vpop.f32.mrf.mxu0
    %5375 = vdwg.mxu0
    %v5377 = vperm.slane %v5276, 0
    %v5379 = vadd.f32 %v5377, %v5373
    %s5380 = scalar_lea.vmem [#allocation34], 64
    %v5381 = vld [vmem:[%s5380] sm:$0xf]
    %v5382 = vld [vmem:[%s5380 + $0x4] sm:$0xf]
    %v5383 = vld [vmem:[%s5380 + $0x8] sm:$0xf]
    %v5384 = vld [vmem:[%s5380 + $0xc] sm:$0xf]
    %v5385 = vld [vmem:[%s5380 + $0x10] sm:$0xf]
    %v5386 = vld [vmem:[%s5380 + $0x14] sm:$0xf]
    %v5387 = vld [vmem:[%s5380 + $0x18] sm:$0xf]
    %v5388 = vld [vmem:[%s5380 + $0x1c] sm:$0xf]
    %v5389 = vld [vmem:[%s5380 + $0x20] sm:$0xf]
    %v5390 = vld [vmem:[%s5380 + $0x24] sm:$0xf]
    %v5391 = vld [vmem:[%s5380 + $0x28] sm:$0xf]
    %v5392 = vld [vmem:[%s5380 + $0x2c] sm:$0xf]
    %v5393 = vld [vmem:[%s5380 + $0x30] sm:$0xf]
    %v5394 = vld [vmem:[%s5380 + $0x34] sm:$0xf]
    %v5395 = vld [vmem:[%s5380 + $0x38] sm:$0xf]
    %v5396 = vld [vmem:[%s5380 + $0x3c] sm:$0xf]
    %v5413 = vunpack.c.l.b16 %v5381
    %v5414 = vunpack.c.l.b16 %v5382
    %v5415 = vunpack.c.l.b16 %v5383
    %v5416 = vunpack.c.l.b16 %v5384
    %v5417 = vunpack.c.l.b16 %v5385
    %v5418 = vunpack.c.l.b16 %v5386
    %v5419 = vunpack.c.l.b16 %v5387
    %v5420 = vunpack.c.l.b16 %v5388
    %v5421 = vunpack.c.l.b16 %v5389
    %v5422 = vunpack.c.l.b16 %v5390
    %v5423 = vunpack.c.l.b16 %v5391
    %v5424 = vunpack.c.l.b16 %v5392
    %v5425 = vunpack.c.l.b16 %v5393
    %v5426 = vunpack.c.l.b16 %v5394
    %v5427 = vunpack.c.l.b16 %v5395
    %v5428 = vunpack.c.l.b16 %v5396
    %v5429 = vpack.c.b16 %v5414, %v5413
    %v5430 = vpack.c.b16 %v5416, %v5415
    %v5431 = vpack.c.b16 %v5418, %v5417
    %v5432 = vpack.c.b16 %v5420, %v5419
    %v5433 = vpack.c.b16 %v5422, %v5421
    %v5434 = vpack.c.b16 %v5424, %v5423
    %v5435 = vpack.c.b16 %v5426, %v5425
    %v5436 = vpack.c.b16 %v5428, %v5427
    %5445 = vmatpush.bf16.msra.mxu0 %v5436
    %5446 = vmatpush.bf16.msra.mxu0 %v5435
    %5447 = vmatpush.bf16.msra.mxu0 %v5434
    %5448 = vmatpush.bf16.msra.mxu0 %v5433
    %5449 = vmatpush.bf16.msra.mxu0 %v5432
    %5450 = vmatpush.bf16.msra.mxu0 %v5431
    %5451 = vmatpush.bf16.msra.mxu0 %v5430
    %5452 = vmatpush.bf16.msra.mxu0 %v5429
    %5453 = vmatmul.bf16.gmra.mxu0 %v5278
    %v5454 = vpop.f32.mrf.mxu0
    %v5455 = vadd.f32 0.0, %v5454
    %v5456 = vpop.f32.mrf.mxu0
    %5457 = vdwg.mxu0
    %v5458 = vadd.f32 %v5379, %v5455
    %s5459 = scalar_lea.vmem [#allocation32], 4
    %v5460 = vld [vmem:[%s5459] sm:$0x3]
    %v5462 = vsel %vm4994, %v5460, 0
    %5464 = vmatpush.bf16.msra.mxu0 0
    %5465 = vmatpush.bf16.msra.mxu0 0
    %5466 = vmatpush.bf16.msra.mxu0 0
    %5467 = vmatpush.bf16.msra.mxu0 0
    %5468 = vmatpush.bf16.msra.mxu0 0
    %5469 = vmatpush.bf16.msra.mxu0 0
    %5470 = vmatpush.bf16.msra.mxu0 0
    %5471 = vmatpush.bf16.msra.mxu0 %v5283
    %5472 = vmatmul.bf16.gmra.mxu0 %v5462
    %v5473 = vpop.f32.mrf.mxu0
    %v5474 = vadd.f32 0.0, %v5473
    %v5475 = vpop.f32.mrf.mxu0
    %5476 = vdwg.mxu0
    %s5477 = scalar_lea.vmem [#allocation34], 128
    %v5478 = vld [vmem:[%s5477] sm:$0xf]
    %v5479 = vld [vmem:[%s5477 + $0x4] sm:$0xf]
    %v5480 = vld [vmem:[%s5477 + $0x8] sm:$0xf]
    %v5481 = vld [vmem:[%s5477 + $0xc] sm:$0xf]
    %v5482 = vld [vmem:[%s5477 + $0x10] sm:$0xf]
    %v5483 = vld [vmem:[%s5477 + $0x14] sm:$0xf]
    %v5484 = vld [vmem:[%s5477 + $0x18] sm:$0xf]
    %v5485 = vld [vmem:[%s5477 + $0x1c] sm:$0xf]
    %v5486 = vld [vmem:[%s5477 + $0x20] sm:$0xf]
    %v5487 = vld [vmem:[%s5477 + $0x24] sm:$0xf]
    %v5488 = vld [vmem:[%s5477 + $0x28] sm:$0xf]
    %v5489 = vld [vmem:[%s5477 + $0x2c] sm:$0xf]
    %v5490 = vld [vmem:[%s5477 + $0x30] sm:$0xf]
    %v5491 = vld [vmem:[%s5477 + $0x34] sm:$0xf]
    %v5492 = vld [vmem:[%s5477 + $0x38] sm:$0xf]
    %v5493 = vld [vmem:[%s5477 + $0x3c] sm:$0xf]
    %v5494 = vpack.c.bf16 %v5474, %v5474
    %v5511 = vunpack.c.l.b16 %v5478
    %v5512 = vunpack.c.l.b16 %v5479
    %v5513 = vunpack.c.l.b16 %v5480
    %v5514 = vunpack.c.l.b16 %v5481
    %v5515 = vunpack.c.l.b16 %v5482
    %v5516 = vunpack.c.l.b16 %v5483
    %v5517 = vunpack.c.l.b16 %v5484
    %v5518 = vunpack.c.l.b16 %v5485
    %v5519 = vunpack.c.l.b16 %v5486
    %v5520 = vunpack.c.l.b16 %v5487
    %v5521 = vunpack.c.l.b16 %v5488
    %v5522 = vunpack.c.l.b16 %v5489
    %v5523 = vunpack.c.l.b16 %v5490
    %v5524 = vunpack.c.l.b16 %v5491
    %v5525 = vunpack.c.l.b16 %v5492
    %v5526 = vunpack.c.l.b16 %v5493
    %v5527 = vpack.c.b16 %v5512, %v5511
    %v5528 = vpack.c.b16 %v5514, %v5513
    %v5529 = vpack.c.b16 %v5516, %v5515
    %v5530 = vpack.c.b16 %v5518, %v5517
    %v5531 = vpack.c.b16 %v5520, %v5519
    %v5532 = vpack.c.b16 %v5522, %v5521
    %v5533 = vpack.c.b16 %v5524, %v5523
    %v5534 = vpack.c.b16 %v5526, %v5525
    %5543 = vmatpush.bf16.msra.mxu0 %v5534
    %5544 = vmatpush.bf16.msra.mxu0 %v5533
    %5545 = vmatpush.bf16.msra.mxu0 %v5532
    %5546 = vmatpush.bf16.msra.mxu0 %v5531
    %5547 = vmatpush.bf16.msra.mxu0 %v5530
    %5548 = vmatpush.bf16.msra.mxu0 %v5529
    %5549 = vmatpush.bf16.msra.mxu0 %v5528
    %5550 = vmatpush.bf16.msra.mxu0 %v5527
    %5551 = vmatmul.bf16.gmra.mxu0 %v5494
    %v5552 = vpop.f32.mrf.mxu0
    %v5553 = vadd.f32 0.0, %v5552
    %v5554 = vpop.f32.mrf.mxu0
    %5555 = vdwg.mxu0
    %v5556 = vadd.f32 %v5458, %v5553
    %v5557 = vmax.f32 %v5556, 0.0
    %v5558 = vld [vmem:[#allocation40] sm:$0x1]
    %v5559 = vld [vmem:[#allocation37] sm:$0x3]
    %v5560 = vpack.c.bf16 %v5557, %v5557
    %v5562 = vsel %vm4994, %v5559, 0
    %v5565 = vsel %vm4998, %v5560, 0
    %5567 = vmatpush.bf16.msra.mxu0 0
    %5568 = vmatpush.bf16.msra.mxu0 0
    %5569 = vmatpush.bf16.msra.mxu0 0
    %5570 = vmatpush.bf16.msra.mxu0 0
    %5571 = vmatpush.bf16.msra.mxu0 0
    %5572 = vmatpush.bf16.msra.mxu0 0
    %5573 = vmatpush.bf16.msra.mxu0 0
    %5574 = vmatpush.bf16.msra.mxu0 %v5565
    %5575 = vmatmul.bf16.gmra.mxu0 %v5562
    %v5576 = vpop.f32.mrf.mxu0
    %v5577 = vadd.f32 0.0, %v5576
    %v5578 = vpop.f32.mrf.mxu0
    %5579 = vdwg.mxu0
    %v5580 = vld [vmem:[#allocation38] sm:$0xf]
    %v5581 = vld [vmem:[#allocation38 + $0x4] sm:$0xf]
    %v5582 = vld [vmem:[#allocation38 + $0x8] sm:$0xf]
    %v5583 = vld [vmem:[#allocation38 + $0xc] sm:$0xf]
    %v5584 = vld [vmem:[#allocation38 + $0x10] sm:$0xf]
    %v5585 = vld [vmem:[#allocation38 + $0x14] sm:$0xf]
    %v5586 = vld [vmem:[#allocation38 + $0x18] sm:$0xf]
    %v5587 = vld [vmem:[#allocation38 + $0x1c] sm:$0xf]
    %v5588 = vld [vmem:[#allocation38 + $0x20] sm:$0xf]
    %v5589 = vld [vmem:[#allocation38 + $0x24] sm:$0xf]
    %v5590 = vld [vmem:[#allocation38 + $0x28] sm:$0xf]
    %v5591 = vld [vmem:[#allocation38 + $0x2c] sm:$0xf]
    %v5592 = vld [vmem:[#allocation38 + $0x30] sm:$0xf]
    %v5593 = vld [vmem:[#allocation38 + $0x34] sm:$0xf]
    %v5594 = vld [vmem:[#allocation38 + $0x38] sm:$0xf]
    %v5595 = vld [vmem:[#allocation38 + $0x3c] sm:$0xf]
    %v5596 = vpack.c.bf16 %v5577, %v5577
    %v5613 = vunpack.c.l.b16 %v5580
    %v5614 = vunpack.c.l.b16 %v5581
    %v5615 = vunpack.c.l.b16 %v5582
    %v5616 = vunpack.c.l.b16 %v5583
    %v5617 = vunpack.c.l.b16 %v5584
    %v5618 = vunpack.c.l.b16 %v5585
    %v5619 = vunpack.c.l.b16 %v5586
    %v5620 = vunpack.c.l.b16 %v5587
    %v5621 = vunpack.c.l.b16 %v5588
    %v5622 = vunpack.c.l.b16 %v5589
    %v5623 = vunpack.c.l.b16 %v5590
    %v5624 = vunpack.c.l.b16 %v5591
    %v5625 = vunpack.c.l.b16 %v5592
    %v5626 = vunpack.c.l.b16 %v5593
    %v5627 = vunpack.c.l.b16 %v5594
    %v5628 = vunpack.c.l.b16 %v5595
    %v5629 = vpack.c.b16 %v5614, %v5613
    %v5630 = vpack.c.b16 %v5616, %v5615
    %v5631 = vpack.c.b16 %v5618, %v5617
    %v5632 = vpack.c.b16 %v5620, %v5619
    %v5633 = vpack.c.b16 %v5622, %v5621
    %v5634 = vpack.c.b16 %v5624, %v5623
    %v5635 = vpack.c.b16 %v5626, %v5625
    %v5636 = vpack.c.b16 %v5628, %v5627
    %5645 = vmatpush.bf16.msra.mxu0 %v5636
    %5646 = vmatpush.bf16.msra.mxu0 %v5635
    %5647 = vmatpush.bf16.msra.mxu0 %v5634
    %5648 = vmatpush.bf16.msra.mxu0 %v5633
    %5649 = vmatpush.bf16.msra.mxu0 %v5632
    %5650 = vmatpush.bf16.msra.mxu0 %v5631
    %5651 = vmatpush.bf16.msra.mxu0 %v5630
    %5652 = vmatpush.bf16.msra.mxu0 %v5629
    %5653 = vmatmul.bf16.gmra.mxu0 %v5596
    %v5654 = vpop.f32.mrf.mxu0
    %v5655 = vadd.f32 0.0, %v5654
    %v5656 = vpop.f32.mrf.mxu0
    %5657 = vdwg.mxu0
    %v5659 = vperm.slane %v5558, 0
    %v5661 = vadd.f32 %v5659, %v5655
    %s5662 = scalar_lea.vmem [#allocation38], 64
    %v5663 = vld [vmem:[%s5662] sm:$0xf]
    %v5664 = vld [vmem:[%s5662 + $0x4] sm:$0xf]
    %v5665 = vld [vmem:[%s5662 + $0x8] sm:$0xf]
    %v5666 = vld [vmem:[%s5662 + $0xc] sm:$0xf]
    %v5667 = vld [vmem:[%s5662 + $0x10] sm:$0xf]
    %v5668 = vld [vmem:[%s5662 + $0x14] sm:$0xf]
    %v5669 = vld [vmem:[%s5662 + $0x18] sm:$0xf]
    %v5670 = vld [vmem:[%s5662 + $0x1c] sm:$0xf]
    %v5671 = vld [vmem:[%s5662 + $0x20] sm:$0xf]
    %v5672 = vld [vmem:[%s5662 + $0x24] sm:$0xf]
    %v5673 = vld [vmem:[%s5662 + $0x28] sm:$0xf]
    %v5674 = vld [vmem:[%s5662 + $0x2c] sm:$0xf]
    %v5675 = vld [vmem:[%s5662 + $0x30] sm:$0xf]
    %v5676 = vld [vmem:[%s5662 + $0x34] sm:$0xf]
    %v5677 = vld [vmem:[%s5662 + $0x38] sm:$0xf]
    %v5678 = vld [vmem:[%s5662 + $0x3c] sm:$0xf]
    %v5695 = vunpack.c.l.b16 %v5663
    %v5696 = vunpack.c.l.b16 %v5664
    %v5697 = vunpack.c.l.b16 %v5665
    %v5698 = vunpack.c.l.b16 %v5666
    %v5699 = vunpack.c.l.b16 %v5667
    %v5700 = vunpack.c.l.b16 %v5668
    %v5701 = vunpack.c.l.b16 %v5669
    %v5702 = vunpack.c.l.b16 %v5670
    %v5703 = vunpack.c.l.b16 %v5671
    %v5704 = vunpack.c.l.b16 %v5672
    %v5705 = vunpack.c.l.b16 %v5673
    %v5706 = vunpack.c.l.b16 %v5674
    %v5707 = vunpack.c.l.b16 %v5675
    %v5708 = vunpack.c.l.b16 %v5676
    %v5709 = vunpack.c.l.b16 %v5677
    %v5710 = vunpack.c.l.b16 %v5678
    %v5711 = vpack.c.b16 %v5696, %v5695
    %v5712 = vpack.c.b16 %v5698, %v5697
    %v5713 = vpack.c.b16 %v5700, %v5699
    %v5714 = vpack.c.b16 %v5702, %v5701
    %v5715 = vpack.c.b16 %v5704, %v5703
    %v5716 = vpack.c.b16 %v5706, %v5705
    %v5717 = vpack.c.b16 %v5708, %v5707
    %v5718 = vpack.c.b16 %v5710, %v5709
    %5727 = vmatpush.bf16.msra.mxu0 %v5718
    %5728 = vmatpush.bf16.msra.mxu0 %v5717
    %5729 = vmatpush.bf16.msra.mxu0 %v5716
    %5730 = vmatpush.bf16.msra.mxu0 %v5715
    %5731 = vmatpush.bf16.msra.mxu0 %v5714
    %5732 = vmatpush.bf16.msra.mxu0 %v5713
    %5733 = vmatpush.bf16.msra.mxu0 %v5712
    %5734 = vmatpush.bf16.msra.mxu0 %v5711
    %5735 = vmatmul.bf16.gmra.mxu0 %v5560
    %v5736 = vpop.f32.mrf.mxu0
    %v5737 = vadd.f32 0.0, %v5736
    %v5738 = vpop.f32.mrf.mxu0
    %5739 = vdwg.mxu0
    %v5740 = vadd.f32 %v5661, %v5737
    %s5741 = scalar_lea.vmem [#allocation37], 4
    %v5742 = vld [vmem:[%s5741] sm:$0x3]
    %v5744 = vsel %vm4994, %v5742, 0
    %5746 = vmatpush.bf16.msra.mxu0 0
    %5747 = vmatpush.bf16.msra.mxu0 0
    %5748 = vmatpush.bf16.msra.mxu0 0
    %5749 = vmatpush.bf16.msra.mxu0 0
    %5750 = vmatpush.bf16.msra.mxu0 0
    %5751 = vmatpush.bf16.msra.mxu0 0
    %5752 = vmatpush.bf16.msra.mxu0 0
    %5753 = vmatpush.bf16.msra.mxu0 %v5565
    %5754 = vmatmul.bf16.gmra.mxu0 %v5744
    %v5755 = vpop.f32.mrf.mxu0
    %v5756 = vadd.f32 0.0, %v5755
    %v5757 = vpop.f32.mrf.mxu0
    %5758 = vdwg.mxu0
    %s5759 = scalar_lea.vmem [#allocation38], 128
    %v5760 = vld [vmem:[%s5759] sm:$0xf]
    %v5761 = vld [vmem:[%s5759 + $0x4] sm:$0xf]
    %v5762 = vld [vmem:[%s5759 + $0x8] sm:$0xf]
    %v5763 = vld [vmem:[%s5759 + $0xc] sm:$0xf]
    %v5764 = vld [vmem:[%s5759 + $0x10] sm:$0xf]
    %v5765 = vld [vmem:[%s5759 + $0x14] sm:$0xf]
    %v5766 = vld [vmem:[%s5759 + $0x18] sm:$0xf]
    %v5767 = vld [vmem:[%s5759 + $0x1c] sm:$0xf]
    %v5768 = vld [vmem:[%s5759 + $0x20] sm:$0xf]
    %v5769 = vld [vmem:[%s5759 + $0x24] sm:$0xf]
    %v5770 = vld [vmem:[%s5759 + $0x28] sm:$0xf]
    %v5771 = vld [vmem:[%s5759 + $0x2c] sm:$0xf]
    %v5772 = vld [vmem:[%s5759 + $0x30] sm:$0xf]
    %v5773 = vld [vmem:[%s5759 + $0x34] sm:$0xf]
    %v5774 = vld [vmem:[%s5759 + $0x38] sm:$0xf]
    %v5775 = vld [vmem:[%s5759 + $0x3c] sm:$0xf]
    %v5776 = vpack.c.bf16 %v5756, %v5756
    %v5793 = vunpack.c.l.b16 %v5760
    %v5794 = vunpack.c.l.b16 %v5761
    %v5795 = vunpack.c.l.b16 %v5762
    %v5796 = vunpack.c.l.b16 %v5763
    %v5797 = vunpack.c.l.b16 %v5764
    %v5798 = vunpack.c.l.b16 %v5765
    %v5799 = vunpack.c.l.b16 %v5766
    %v5800 = vunpack.c.l.b16 %v5767
    %v5801 = vunpack.c.l.b16 %v5768
    %v5802 = vunpack.c.l.b16 %v5769
    %v5803 = vunpack.c.l.b16 %v5770
    %v5804 = vunpack.c.l.b16 %v5771
    %v5805 = vunpack.c.l.b16 %v5772
    %v5806 = vunpack.c.l.b16 %v5773
    %v5807 = vunpack.c.l.b16 %v5774
    %v5808 = vunpack.c.l.b16 %v5775
    %v5809 = vpack.c.b16 %v5794, %v5793
    %v5810 = vpack.c.b16 %v5796, %v5795
    %v5811 = vpack.c.b16 %v5798, %v5797
    %v5812 = vpack.c.b16 %v5800, %v5799
    %v5813 = vpack.c.b16 %v5802, %v5801
    %v5814 = vpack.c.b16 %v5804, %v5803
    %v5815 = vpack.c.b16 %v5806, %v5805
    %v5816 = vpack.c.b16 %v5808, %v5807
    %5825 = vmatpush.bf16.msra.mxu0 %v5816
    %5826 = vmatpush.bf16.msra.mxu0 %v5815
    %5827 = vmatpush.bf16.msra.mxu0 %v5814
    %5828 = vmatpush.bf16.msra.mxu0 %v5813
    %5829 = vmatpush.bf16.msra.mxu0 %v5812
    %5830 = vmatpush.bf16.msra.mxu0 %v5811
    %5831 = vmatpush.bf16.msra.mxu0 %v5810
    %5832 = vmatpush.bf16.msra.mxu0 %v5809
    %5833 = vmatmul.bf16.gmra.mxu0 %v5776
    %v5834 = vpop.f32.mrf.mxu0
    %v5835 = vadd.f32 0.0, %v5834
    %v5836 = vpop.f32.mrf.mxu0
    %5837 = vdwg.mxu0
    %v5838 = vadd.f32 %v5740, %v5835
    %v5839 = vadd.f32 %v5838, %v5275
    %v5840 = vmax.f32 %v5839, 0.0
    %v5841 = vld [vmem:[#allocation44] sm:$0x1]
    %v5842 = vld [vmem:[#allocation41] sm:$0x1]
    %v5843 = vpack.c.bf16 %v5840, %v5840
    %v5845 = vsel %vm4994, %v5842, 0
    %v5848 = vsel %vm4998, %v5843, 0
    %5850 = vmatpush.bf16.msra.mxu0 0
    %5851 = vmatpush.bf16.msra.mxu0 0
    %5852 = vmatpush.bf16.msra.mxu0 0
    %5853 = vmatpush.bf16.msra.mxu0 0
    %5854 = vmatpush.bf16.msra.mxu0 0
    %5855 = vmatpush.bf16.msra.mxu0 0
    %5856 = vmatpush.bf16.msra.mxu0 0
    %5857 = vmatpush.bf16.msra.mxu0 %v5848
    %5858 = vmatmul.bf16.gmra.mxu0 %v5845
    %v5859 = vpop.f32.mrf.mxu0
    %v5860 = vadd.f32 0.0, %v5859
    %v5861 = vpop.f32.mrf.mxu0
    %5862 = vdwg.mxu0
    %v5863 = vld [vmem:[#allocation43] sm:$0xf]
    %v5864 = vld [vmem:[#allocation43 + $0x4] sm:$0xf]
    %v5865 = vld [vmem:[#allocation43 + $0x8] sm:$0xf]
    %v5866 = vld [vmem:[#allocation43 + $0xc] sm:$0xf]
    %v5867 = vld [vmem:[#allocation43 + $0x10] sm:$0xf]
    %v5868 = vld [vmem:[#allocation43 + $0x14] sm:$0xf]
    %v5869 = vld [vmem:[#allocation43 + $0x18] sm:$0xf]
    %v5870 = vld [vmem:[#allocation43 + $0x1c] sm:$0xf]
    %v5871 = vld [vmem:[#allocation43 + $0x20] sm:$0xf]
    %v5872 = vld [vmem:[#allocation43 + $0x24] sm:$0xf]
    %v5873 = vld [vmem:[#allocation43 + $0x28] sm:$0xf]
    %v5874 = vld [vmem:[#allocation43 + $0x2c] sm:$0xf]
    %v5875 = vld [vmem:[#allocation43 + $0x30] sm:$0xf]
    %v5876 = vld [vmem:[#allocation43 + $0x34] sm:$0xf]
    %v5877 = vld [vmem:[#allocation43 + $0x38] sm:$0xf]
    %v5878 = vld [vmem:[#allocation43 + $0x3c] sm:$0xf]
    %v5879 = vpack.c.bf16 %v5860, %v5860
    %v5896 = vunpack.c.l.b16 %v5863
    %v5897 = vunpack.c.l.b16 %v5864
    %v5898 = vunpack.c.l.b16 %v5865
    %v5899 = vunpack.c.l.b16 %v5866
    %v5900 = vunpack.c.l.b16 %v5867
    %v5901 = vunpack.c.l.b16 %v5868
    %v5902 = vunpack.c.l.b16 %v5869
    %v5903 = vunpack.c.l.b16 %v5870
    %v5904 = vunpack.c.l.b16 %v5871
    %v5905 = vunpack.c.l.b16 %v5872
    %v5906 = vunpack.c.l.b16 %v5873
    %v5907 = vunpack.c.l.b16 %v5874
    %v5908 = vunpack.c.l.b16 %v5875
    %v5909 = vunpack.c.l.b16 %v5876
    %v5910 = vunpack.c.l.b16 %v5877
    %v5911 = vunpack.c.l.b16 %v5878
    %v5912 = vpack.c.b16 %v5897, %v5896
    %v5913 = vpack.c.b16 %v5899, %v5898
    %v5914 = vpack.c.b16 %v5901, %v5900
    %v5915 = vpack.c.b16 %v5903, %v5902
    %v5916 = vpack.c.b16 %v5905, %v5904
    %v5917 = vpack.c.b16 %v5907, %v5906
    %v5918 = vpack.c.b16 %v5909, %v5908
    %v5919 = vpack.c.b16 %v5911, %v5910
    %5928 = vmatpush.bf16.msra.mxu0 %v5919
    %5929 = vmatpush.bf16.msra.mxu0 %v5918
    %5930 = vmatpush.bf16.msra.mxu0 %v5917
    %5931 = vmatpush.bf16.msra.mxu0 %v5916
    %5932 = vmatpush.bf16.msra.mxu0 %v5915
    %5933 = vmatpush.bf16.msra.mxu0 %v5914
    %5934 = vmatpush.bf16.msra.mxu0 %v5913
    %5935 = vmatpush.bf16.msra.mxu0 %v5912
    %5936 = vmatmul.bf16.gmra.mxu0 %v5879
    %v5937 = vpop.f32.mrf.mxu0
    %v5938 = vadd.f32 0.0, %v5937
    %v5939 = vpop.f32.mrf.mxu0
    %5940 = vdwg.mxu0
    %v5942 = vperm.slane %v5841, 0
    %v5944 = vadd.f32 %v5942, %v5938
    %s5945 = scalar_lea.vmem [#allocation41], 1
    %v5946 = vld [vmem:[%s5945] sm:$0x1]
    %v5948 = vsel %vm4994, %v5946, 0
    %5950 = vmatpush.bf16.msra.mxu0 0
    %5951 = vmatpush.bf16.msra.mxu0 0
    %5952 = vmatpush.bf16.msra.mxu0 0
    %5953 = vmatpush.bf16.msra.mxu0 0
    %5954 = vmatpush.bf16.msra.mxu0 0
    %5955 = vmatpush.bf16.msra.mxu0 0
    %5956 = vmatpush.bf16.msra.mxu0 0
    %5957 = vmatpush.bf16.msra.mxu0 %v5848
    %5958 = vmatmul.bf16.gmra.mxu0 %v5948
    %v5959 = vpop.f32.mrf.mxu0
    %v5960 = vadd.f32 0.0, %v5959
    %v5961 = vpop.f32.mrf.mxu0
    %5962 = vdwg.mxu0
    %s5963 = scalar_lea.vmem [#allocation43], 64
    %v5964 = vld [vmem:[%s5963] sm:$0xf]
    %v5965 = vld [vmem:[%s5963 + $0x4] sm:$0xf]
    %v5966 = vld [vmem:[%s5963 + $0x8] sm:$0xf]
    %v5967 = vld [vmem:[%s5963 + $0xc] sm:$0xf]
    %v5968 = vld [vmem:[%s5963 + $0x10] sm:$0xf]
    %v5969 = vld [vmem:[%s5963 + $0x14] sm:$0xf]
    %v5970 = vld [vmem:[%s5963 + $0x18] sm:$0xf]
    %v5971 = vld [vmem:[%s5963 + $0x1c] sm:$0xf]
    %v5972 = vld [vmem:[%s5963 + $0x20] sm:$0xf]
    %v5973 = vld [vmem:[%s5963 + $0x24] sm:$0xf]
    %v5974 = vld [vmem:[%s5963 + $0x28] sm:$0xf]
    %v5975 = vld [vmem:[%s5963 + $0x2c] sm:$0xf]
    %v5976 = vld [vmem:[%s5963 + $0x30] sm:$0xf]
    %v5977 = vld [vmem:[%s5963 + $0x34] sm:$0xf]
    %v5978 = vld [vmem:[%s5963 + $0x38] sm:$0xf]
    %v5979 = vld [vmem:[%s5963 + $0x3c] sm:$0xf]
    %v5980 = vpack.c.bf16 %v5960, %v5960
    %v5997 = vunpack.c.l.b16 %v5964
    %v5998 = vunpack.c.l.b16 %v5965
    %v5999 = vunpack.c.l.b16 %v5966
    %v6000 = vunpack.c.l.b16 %v5967
    %v6001 = vunpack.c.l.b16 %v5968
    %v6002 = vunpack.c.l.b16 %v5969
    %v6003 = vunpack.c.l.b16 %v5970
    %v6004 = vunpack.c.l.b16 %v5971
    %v6005 = vunpack.c.l.b16 %v5972
    %v6006 = vunpack.c.l.b16 %v5973
    %v6007 = vunpack.c.l.b16 %v5974
    %v6008 = vunpack.c.l.b16 %v5975
    %v6009 = vunpack.c.l.b16 %v5976
    %v6010 = vunpack.c.l.b16 %v5977
    %v6011 = vunpack.c.l.b16 %v5978
    %v6012 = vunpack.c.l.b16 %v5979
    %v6013 = vpack.c.b16 %v5998, %v5997
    %v6014 = vpack.c.b16 %v6000, %v5999
    %v6015 = vpack.c.b16 %v6002, %v6001
    %v6016 = vpack.c.b16 %v6004, %v6003
    %v6017 = vpack.c.b16 %v6006, %v6005
    %v6018 = vpack.c.b16 %v6008, %v6007
    %v6019 = vpack.c.b16 %v6010, %v6009
    %v6020 = vpack.c.b16 %v6012, %v6011
    %6029 = vmatpush.bf16.msra.mxu0 %v6020
    %6030 = vmatpush.bf16.msra.mxu0 %v6019
    %6031 = vmatpush.bf16.msra.mxu0 %v6018
    %6032 = vmatpush.bf16.msra.mxu0 %v6017
    %6033 = vmatpush.bf16.msra.mxu0 %v6016
    %6034 = vmatpush.bf16.msra.mxu0 %v6015
    %6035 = vmatpush.bf16.msra.mxu0 %v6014
    %6036 = vmatpush.bf16.msra.mxu0 %v6013
    %6037 = vmatmul.bf16.gmra.mxu0 %v5980
    %v6038 = vpop.f32.mrf.mxu0
    %v6039 = vadd.f32 0.0, %v6038
    %v6040 = vpop.f32.mrf.mxu0
    %6041 = vdwg.mxu0
    %v6042 = vadd.f32 %v5944, %v6039
    %s6043 = scalar_lea.vmem [#allocation41], 2
    %v6044 = vld [vmem:[%s6043] sm:$0x1]
    %v6046 = vsel %vm4994, %v6044, 0
    %6048 = vmatpush.bf16.msra.mxu0 0
    %6049 = vmatpush.bf16.msra.mxu0 0
    %6050 = vmatpush.bf16.msra.mxu0 0
    %6051 = vmatpush.bf16.msra.mxu0 0
    %6052 = vmatpush.bf16.msra.mxu0 0
    %6053 = vmatpush.bf16.msra.mxu0 0
    %6054 = vmatpush.bf16.msra.mxu0 0
    %6055 = vmatpush.bf16.msra.mxu0 %v5848
    %6056 = vmatmul.bf16.gmra.mxu0 %v6046
    %v6057 = vpop.f32.mrf.mxu0
    %v6058 = vadd.f32 0.0, %v6057
    %v6059 = vpop.f32.mrf.mxu0
    %6060 = vdwg.mxu0
    %s6061 = scalar_lea.vmem [#allocation43], 128
    %v6062 = vld [vmem:[%s6061] sm:$0xf]
    %v6063 = vld [vmem:[%s6061 + $0x4] sm:$0xf]
    %v6064 = vld [vmem:[%s6061 + $0x8] sm:$0xf]
    %v6065 = vld [vmem:[%s6061 + $0xc] sm:$0xf]
    %v6066 = vld [vmem:[%s6061 + $0x10] sm:$0xf]
    %v6067 = vld [vmem:[%s6061 + $0x14] sm:$0xf]
    %v6068 = vld [vmem:[%s6061 + $0x18] sm:$0xf]
    %v6069 = vld [vmem:[%s6061 + $0x1c] sm:$0xf]
    %v6070 = vld [vmem:[%s6061 + $0x20] sm:$0xf]
    %v6071 = vld [vmem:[%s6061 + $0x24] sm:$0xf]
    %v6072 = vld [vmem:[%s6061 + $0x28] sm:$0xf]
    %v6073 = vld [vmem:[%s6061 + $0x2c] sm:$0xf]
    %v6074 = vld [vmem:[%s6061 + $0x30] sm:$0xf]
    %v6075 = vld [vmem:[%s6061 + $0x34] sm:$0xf]
    %v6076 = vld [vmem:[%s6061 + $0x38] sm:$0xf]
    %v6077 = vld [vmem:[%s6061 + $0x3c] sm:$0xf]
    %v6078 = vpack.c.bf16 %v6058, %v6058
    %v6095 = vunpack.c.l.b16 %v6062
    %v6096 = vunpack.c.l.b16 %v6063
    %v6097 = vunpack.c.l.b16 %v6064
    %v6098 = vunpack.c.l.b16 %v6065
    %v6099 = vunpack.c.l.b16 %v6066
    %v6100 = vunpack.c.l.b16 %v6067
    %v6101 = vunpack.c.l.b16 %v6068
    %v6102 = vunpack.c.l.b16 %v6069
    %v6103 = vunpack.c.l.b16 %v6070
    %v6104 = vunpack.c.l.b16 %v6071
    %v6105 = vunpack.c.l.b16 %v6072
    %v6106 = vunpack.c.l.b16 %v6073
    %v6107 = vunpack.c.l.b16 %v6074
    %v6108 = vunpack.c.l.b16 %v6075
    %v6109 = vunpack.c.l.b16 %v6076
    %v6110 = vunpack.c.l.b16 %v6077
    %v6111 = vpack.c.b16 %v6096, %v6095
    %v6112 = vpack.c.b16 %v6098, %v6097
    %v6113 = vpack.c.b16 %v6100, %v6099
    %v6114 = vpack.c.b16 %v6102, %v6101
    %v6115 = vpack.c.b16 %v6104, %v6103
    %v6116 = vpack.c.b16 %v6106, %v6105
    %v6117 = vpack.c.b16 %v6108, %v6107
    %v6118 = vpack.c.b16 %v6110, %v6109
    %6127 = vmatpush.bf16.msra.mxu0 %v6118
    %6128 = vmatpush.bf16.msra.mxu0 %v6117
    %6129 = vmatpush.bf16.msra.mxu0 %v6116
    %6130 = vmatpush.bf16.msra.mxu0 %v6115
    %6131 = vmatpush.bf16.msra.mxu0 %v6114
    %6132 = vmatpush.bf16.msra.mxu0 %v6113
    %6133 = vmatpush.bf16.msra.mxu0 %v6112
    %6134 = vmatpush.bf16.msra.mxu0 %v6111
    %6135 = vmatmul.bf16.gmra.mxu0 %v6078
    %v6136 = vpop.f32.mrf.mxu0
    %v6137 = vadd.f32 0.0, %v6136
    %v6138 = vpop.f32.mrf.mxu0
    %6139 = vdwg.mxu0
    %v6140 = vadd.f32 %v6042, %v6137
    %v6141 = vmax.f32 %v6140, 0.0
    %v6142 = vld [vmem:[#allocation49] sm:$0x1]
    %v6143 = vld [vmem:[#allocation46] sm:$0x1]
    %v6145 = vsel %vm4994, %v6143, 0
    %6147 = vmatpush.bf16.msra.mxu0 0
    %6148 = vmatpush.bf16.msra.mxu0 0
    %6149 = vmatpush.bf16.msra.mxu0 0
    %6150 = vmatpush.bf16.msra.mxu0 0
    %6151 = vmatpush.bf16.msra.mxu0 0
    %6152 = vmatpush.bf16.msra.mxu0 0
    %6153 = vmatpush.bf16.msra.mxu0 0
    %6154 = vmatpush.bf16.msra.mxu0 %v5848
    %6155 = vmatmul.bf16.gmra.mxu0 %v6145
    %v6156 = vpop.f32.mrf.mxu0
    %v6157 = vadd.f32 0.0, %v6156
    %v6158 = vpop.f32.mrf.mxu0
    %6159 = vdwg.mxu0
    %v6160 = vld [vmem:[#allocation47] sm:$0xf]
    %v6161 = vld [vmem:[#allocation47 + $0x4] sm:$0xf]
    %v6162 = vld [vmem:[#allocation47 + $0x8] sm:$0xf]
    %v6163 = vld [vmem:[#allocation47 + $0xc] sm:$0xf]
    %v6164 = vld [vmem:[#allocation47 + $0x10] sm:$0xf]
    %v6165 = vld [vmem:[#allocation47 + $0x14] sm:$0xf]
    %v6166 = vld [vmem:[#allocation47 + $0x18] sm:$0xf]
    %v6167 = vld [vmem:[#allocation47 + $0x1c] sm:$0xf]
    %v6168 = vld [vmem:[#allocation47 + $0x20] sm:$0xf]
    %v6169 = vld [vmem:[#allocation47 + $0x24] sm:$0xf]
    %v6170 = vld [vmem:[#allocation47 + $0x28] sm:$0xf]
    %v6171 = vld [vmem:[#allocation47 + $0x2c] sm:$0xf]
    %v6172 = vld [vmem:[#allocation47 + $0x30] sm:$0xf]
    %v6173 = vld [vmem:[#allocation47 + $0x34] sm:$0xf]
    %v6174 = vld [vmem:[#allocation47 + $0x38] sm:$0xf]
    %v6175 = vld [vmem:[#allocation47 + $0x3c] sm:$0xf]
    %v6176 = vpack.c.bf16 %v6157, %v6157
    %v6193 = vunpack.c.l.b16 %v6160
    %v6194 = vunpack.c.l.b16 %v6161
    %v6195 = vunpack.c.l.b16 %v6162
    %v6196 = vunpack.c.l.b16 %v6163
    %v6197 = vunpack.c.l.b16 %v6164
    %v6198 = vunpack.c.l.b16 %v6165
    %v6199 = vunpack.c.l.b16 %v6166
    %v6200 = vunpack.c.l.b16 %v6167
    %v6201 = vunpack.c.l.b16 %v6168
    %v6202 = vunpack.c.l.b16 %v6169
    %v6203 = vunpack.c.l.b16 %v6170
    %v6204 = vunpack.c.l.b16 %v6171
    %v6205 = vunpack.c.l.b16 %v6172
    %v6206 = vunpack.c.l.b16 %v6173
    %v6207 = vunpack.c.l.b16 %v6174
    %v6208 = vunpack.c.l.b16 %v6175
    %v6209 = vpack.c.b16 %v6194, %v6193
    %v6210 = vpack.c.b16 %v6196, %v6195
    %v6211 = vpack.c.b16 %v6198, %v6197
    %v6212 = vpack.c.b16 %v6200, %v6199
    %v6213 = vpack.c.b16 %v6202, %v6201
    %v6214 = vpack.c.b16 %v6204, %v6203
    %v6215 = vpack.c.b16 %v6206, %v6205
    %v6216 = vpack.c.b16 %v6208, %v6207
    %6225 = vmatpush.bf16.msra.mxu0 %v6216
    %6226 = vmatpush.bf16.msra.mxu0 %v6215
    %6227 = vmatpush.bf16.msra.mxu0 %v6214
    %6228 = vmatpush.bf16.msra.mxu0 %v6213
    %6229 = vmatpush.bf16.msra.mxu0 %v6212
    %6230 = vmatpush.bf16.msra.mxu0 %v6211
    %6231 = vmatpush.bf16.msra.mxu0 %v6210
    %6232 = vmatpush.bf16.msra.mxu0 %v6209
    %6233 = vmatmul.bf16.gmra.mxu0 %v6176
    %v6234 = vpop.f32.mrf.mxu0
    %v6235 = vadd.f32 0.0, %v6234
    %v6236 = vpop.f32.mrf.mxu0
    %6237 = vdwg.mxu0
    %v6239 = vperm.slane %v6142, 0
    %v6241 = vadd.f32 %v6239, %v6235
    %v6242 = vld [vmem:[#allocation52] sm:$0x1]
    %v6243 = vld [vmem:[%s79] sm:$0x1]
    %v6244 = vpack.c.bf16 %v6141, %v6141
    %vm6245 = vcmask 15360
    %v6247 = vsel %vm6245, %v6243, 0
    %vm6249 = vcmask 1040384
    %v6251 = vsel %vm6249, %v6244, 0
    %6253 = vmatpush.bf16.msra.mxu0 0
    %6254 = vmatpush.bf16.msra.mxu0 0
    %6255 = vmatpush.bf16.msra.mxu0 0
    %6256 = vmatpush.bf16.msra.mxu0 0
    %6257 = vmatpush.bf16.msra.mxu0 0
    %6258 = vmatpush.bf16.msra.mxu0 0
    %6259 = vmatpush.bf16.msra.mxu0 0
    %6260 = vmatpush.bf16.msra.mxu0 %v6251
    %6261 = vmatmul.bf16.gmra.mxu0 %v6247
    %v6262 = vpop.f32.mrf.mxu0
    %v6263 = vadd.f32 0.0, %v6262
    %v6264 = vpop.f32.mrf.mxu0
    %6265 = vdwg.mxu0
    %v6266 = vld [vmem:[#allocation50] sm:$0xf]
    %v6267 = vld [vmem:[#allocation50 + $0x4] sm:$0xf]
    %v6268 = vld [vmem:[#allocation50 + $0x8] sm:$0xf]
    %v6269 = vld [vmem:[#allocation50 + $0xc] sm:$0xf]
    %v6270 = vld [vmem:[#allocation50 + $0x10] sm:$0xf]
    %v6271 = vld [vmem:[#allocation50 + $0x14] sm:$0xf]
    %v6272 = vld [vmem:[#allocation50 + $0x18] sm:$0xf]
    %v6273 = vld [vmem:[#allocation50 + $0x1c] sm:$0xf]
    %v6274 = vld [vmem:[#allocation50 + $0x20] sm:$0xf]
    %v6275 = vld [vmem:[#allocation50 + $0x24] sm:$0xf]
    %v6276 = vld [vmem:[#allocation50 + $0x28] sm:$0xf]
    %v6277 = vld [vmem:[#allocation50 + $0x2c] sm:$0xf]
    %v6278 = vld [vmem:[#allocation50 + $0x30] sm:$0xf]
    %v6279 = vld [vmem:[#allocation50 + $0x34] sm:$0xf]
    %v6280 = vld [vmem:[#allocation50 + $0x38] sm:$0xf]
    %v6281 = vld [vmem:[#allocation50 + $0x3c] sm:$0xf]
    %v6282 = vpack.c.bf16 %v6263, %v6263
    %v6299 = vunpack.c.l.b16 %v6266
    %v6300 = vunpack.c.l.b16 %v6267
    %v6301 = vunpack.c.l.b16 %v6268
    %v6302 = vunpack.c.l.b16 %v6269
    %v6303 = vunpack.c.l.b16 %v6270
    %v6304 = vunpack.c.l.b16 %v6271
    %v6305 = vunpack.c.l.b16 %v6272
    %v6306 = vunpack.c.l.b16 %v6273
    %v6307 = vunpack.c.l.b16 %v6274
    %v6308 = vunpack.c.l.b16 %v6275
    %v6309 = vunpack.c.l.b16 %v6276
    %v6310 = vunpack.c.l.b16 %v6277
    %v6311 = vunpack.c.l.b16 %v6278
    %v6312 = vunpack.c.l.b16 %v6279
    %v6313 = vunpack.c.l.b16 %v6280
    %v6314 = vunpack.c.l.b16 %v6281
    %v6315 = vpack.c.b16 %v6300, %v6299
    %v6316 = vpack.c.b16 %v6302, %v6301
    %v6317 = vpack.c.b16 %v6304, %v6303
    %v6318 = vpack.c.b16 %v6306, %v6305
    %v6319 = vpack.c.b16 %v6308, %v6307
    %v6320 = vpack.c.b16 %v6310, %v6309
    %v6321 = vpack.c.b16 %v6312, %v6311
    %v6322 = vpack.c.b16 %v6314, %v6313
    %6331 = vmatpush.bf16.msra.mxu0 %v6322
    %6332 = vmatpush.bf16.msra.mxu0 %v6321
    %6333 = vmatpush.bf16.msra.mxu0 %v6320
    %6334 = vmatpush.bf16.msra.mxu0 %v6319
    %6335 = vmatpush.bf16.msra.mxu0 %v6318
    %6336 = vmatpush.bf16.msra.mxu0 %v6317
    %6337 = vmatpush.bf16.msra.mxu0 %v6316
    %6338 = vmatpush.bf16.msra.mxu0 %v6315
    %6339 = vmatmul.bf16.gmra.mxu0 %v6282
    %v6340 = vpop.f32.mrf.mxu0
    %v6341 = vadd.f32 0.0, %v6340
    %v6342 = vpop.f32.mrf.mxu0
    %6343 = vdwg.mxu0
    %v6345 = vperm.slane %v6242, 0
    %v6347 = vadd.f32 %v6345, %v6341
    %s6348 = scalar_lea.vmem [#allocation50], 64
    %v6349 = vld [vmem:[%s6348] sm:$0xf]
    %v6350 = vld [vmem:[%s6348 + $0x4] sm:$0xf]
    %v6351 = vld [vmem:[%s6348 + $0x8] sm:$0xf]
    %v6352 = vld [vmem:[%s6348 + $0xc] sm:$0xf]
    %v6353 = vld [vmem:[%s6348 + $0x10] sm:$0xf]
    %v6354 = vld [vmem:[%s6348 + $0x14] sm:$0xf]
    %v6355 = vld [vmem:[%s6348 + $0x18] sm:$0xf]
    %v6356 = vld [vmem:[%s6348 + $0x1c] sm:$0xf]
    %v6357 = vld [vmem:[%s6348 + $0x20] sm:$0xf]
    %v6358 = vld [vmem:[%s6348 + $0x24] sm:$0xf]
    %v6359 = vld [vmem:[%s6348 + $0x28] sm:$0xf]
    %v6360 = vld [vmem:[%s6348 + $0x2c] sm:$0xf]
    %v6361 = vld [vmem:[%s6348 + $0x30] sm:$0xf]
    %v6362 = vld [vmem:[%s6348 + $0x34] sm:$0xf]
    %v6363 = vld [vmem:[%s6348 + $0x38] sm:$0xf]
    %v6364 = vld [vmem:[%s6348 + $0x3c] sm:$0xf]
    %v6381 = vunpack.c.l.b16 %v6349
    %v6382 = vunpack.c.l.b16 %v6350
    %v6383 = vunpack.c.l.b16 %v6351
    %v6384 = vunpack.c.l.b16 %v6352
    %v6385 = vunpack.c.l.b16 %v6353
    %v6386 = vunpack.c.l.b16 %v6354
    %v6387 = vunpack.c.l.b16 %v6355
    %v6388 = vunpack.c.l.b16 %v6356
    %v6389 = vunpack.c.l.b16 %v6357
    %v6390 = vunpack.c.l.b16 %v6358
    %v6391 = vunpack.c.l.b16 %v6359
    %v6392 = vunpack.c.l.b16 %v6360
    %v6393 = vunpack.c.l.b16 %v6361
    %v6394 = vunpack.c.l.b16 %v6362
    %v6395 = vunpack.c.l.b16 %v6363
    %v6396 = vunpack.c.l.b16 %v6364
    %v6397 = vpack.c.b16 %v6382, %v6381
    %v6398 = vpack.c.b16 %v6384, %v6383
    %v6399 = vpack.c.b16 %v6386, %v6385
    %v6400 = vpack.c.b16 %v6388, %v6387
    %v6401 = vpack.c.b16 %v6390, %v6389
    %v6402 = vpack.c.b16 %v6392, %v6391
    %v6403 = vpack.c.b16 %v6394, %v6393
    %v6404 = vpack.c.b16 %v6396, %v6395
    %6413 = vmatpush.bf16.msra.mxu0 %v6404
    %6414 = vmatpush.bf16.msra.mxu0 %v6403
    %6415 = vmatpush.bf16.msra.mxu0 %v6402
    %6416 = vmatpush.bf16.msra.mxu0 %v6401
    %6417 = vmatpush.bf16.msra.mxu0 %v6400
    %6418 = vmatpush.bf16.msra.mxu0 %v6399
    %6419 = vmatpush.bf16.msra.mxu0 %v6398
    %6420 = vmatpush.bf16.msra.mxu0 %v6397
    %6421 = vmatmul.bf16.gmra.mxu0 %v6244
    %v6422 = vpop.f32.mrf.mxu0
    %v6423 = vadd.f32 0.0, %v6422
    %v6424 = vpop.f32.mrf.mxu0
    %6425 = vdwg.mxu0
    %v6426 = vadd.f32 %v6347, %v6423
    %s6427 = scalar_lea.vmem %s79, 2
    %v6428 = vld [vmem:[%s6427] sm:$0x1]
    %v6430 = vsel %vm6245, %v6428, 0
    %6432 = vmatpush.bf16.msra.mxu0 0
    %6433 = vmatpush.bf16.msra.mxu0 0
    %6434 = vmatpush.bf16.msra.mxu0 0
    %6435 = vmatpush.bf16.msra.mxu0 0
    %6436 = vmatpush.bf16.msra.mxu0 0
    %6437 = vmatpush.bf16.msra.mxu0 0
    %6438 = vmatpush.bf16.msra.mxu0 0
    %6439 = vmatpush.bf16.msra.mxu0 %v6251
    %6440 = vmatmul.bf16.gmra.mxu0 %v6430
    %v6441 = vpop.f32.mrf.mxu0
    %v6442 = vadd.f32 0.0, %v6441
    %v6443 = vpop.f32.mrf.mxu0
    %6444 = vdwg.mxu0
    %s6445 = scalar_lea.vmem [#allocation50], 128
    %v6446 = vld [vmem:[%s6445] sm:$0xf]
    %v6447 = vld [vmem:[%s6445 + $0x4] sm:$0xf]
    %v6448 = vld [vmem:[%s6445 + $0x8] sm:$0xf]
    %v6449 = vld [vmem:[%s6445 + $0xc] sm:$0xf]
    %v6450 = vld [vmem:[%s6445 + $0x10] sm:$0xf]
    %v6451 = vld [vmem:[%s6445 + $0x14] sm:$0xf]
    %v6452 = vld [vmem:[%s6445 + $0x18] sm:$0xf]
    %v6453 = vld [vmem:[%s6445 + $0x1c] sm:$0xf]
    %v6454 = vld [vmem:[%s6445 + $0x20] sm:$0xf]
    %v6455 = vld [vmem:[%s6445 + $0x24] sm:$0xf]
    %v6456 = vld [vmem:[%s6445 + $0x28] sm:$0xf]
    %v6457 = vld [vmem:[%s6445 + $0x2c] sm:$0xf]
    %v6458 = vld [vmem:[%s6445 + $0x30] sm:$0xf]
    %v6459 = vld [vmem:[%s6445 + $0x34] sm:$0xf]
    %v6460 = vld [vmem:[%s6445 + $0x38] sm:$0xf]
    %v6461 = vld [vmem:[%s6445 + $0x3c] sm:$0xf]
    %v6462 = vpack.c.bf16 %v6442, %v6442
    %v6479 = vunpack.c.l.b16 %v6446
    %v6480 = vunpack.c.l.b16 %v6447
    %v6481 = vunpack.c.l.b16 %v6448
    %v6482 = vunpack.c.l.b16 %v6449
    %v6483 = vunpack.c.l.b16 %v6450
    %v6484 = vunpack.c.l.b16 %v6451
    %v6485 = vunpack.c.l.b16 %v6452
    %v6486 = vunpack.c.l.b16 %v6453
    %v6487 = vunpack.c.l.b16 %v6454
    %v6488 = vunpack.c.l.b16 %v6455
    %v6489 = vunpack.c.l.b16 %v6456
    %v6490 = vunpack.c.l.b16 %v6457
    %v6491 = vunpack.c.l.b16 %v6458
    %v6492 = vunpack.c.l.b16 %v6459
    %v6493 = vunpack.c.l.b16 %v6460
    %v6494 = vunpack.c.l.b16 %v6461
    %v6495 = vpack.c.b16 %v6480, %v6479
    %v6496 = vpack.c.b16 %v6482, %v6481
    %v6497 = vpack.c.b16 %v6484, %v6483
    %v6498 = vpack.c.b16 %v6486, %v6485
    %v6499 = vpack.c.b16 %v6488, %v6487
    %v6500 = vpack.c.b16 %v6490, %v6489
    %v6501 = vpack.c.b16 %v6492, %v6491
    %v6502 = vpack.c.b16 %v6494, %v6493
    %6511 = vmatpush.bf16.msra.mxu0 %v6502
    %6512 = vmatpush.bf16.msra.mxu0 %v6501
    %6513 = vmatpush.bf16.msra.mxu0 %v6500
    %6514 = vmatpush.bf16.msra.mxu0 %v6499
    %6515 = vmatpush.bf16.msra.mxu0 %v6498
    %6516 = vmatpush.bf16.msra.mxu0 %v6497
    %6517 = vmatpush.bf16.msra.mxu0 %v6496
    %6518 = vmatpush.bf16.msra.mxu0 %v6495
    %6519 = vmatmul.bf16.gmra.mxu0 %v6462
    %v6520 = vpop.f32.mrf.mxu0
    %v6521 = vadd.f32 0.0, %v6520
    %v6522 = vpop.f32.mrf.mxu0
    %6523 = vdwg.mxu0
    %v6524 = vadd.f32 %v6426, %v6521
    %v6525 = vadd.f32 %v6524, %v6241
    %v6526 = vmax.f32 %v6525, 0.0
    %v6527 = vld [vmem:[#allocation55] sm:$0x1]
    %v6528 = vld [vmem:[%s85] sm:$0x1]
    %v6529 = vpack.c.bf16 %v6526, %v6526
    %v6531 = vsel %vm6245, %v6528, 0
    %v6534 = vsel %vm6249, %v6529, 0
    %6536 = vmatpush.bf16.msra.mxu0 0
    %6537 = vmatpush.bf16.msra.mxu0 0
    %6538 = vmatpush.bf16.msra.mxu0 0
    %6539 = vmatpush.bf16.msra.mxu0 0
    %6540 = vmatpush.bf16.msra.mxu0 0
    %6541 = vmatpush.bf16.msra.mxu0 0
    %6542 = vmatpush.bf16.msra.mxu0 0
    %6543 = vmatpush.bf16.msra.mxu0 %v6534
    %6544 = vmatmul.bf16.gmra.mxu0 %v6531
    %v6545 = vpop.f32.mrf.mxu0
    %v6546 = vadd.f32 0.0, %v6545
    %v6547 = vpop.f32.mrf.mxu0
    %6548 = vdwg.mxu0
    %v6549 = vld [vmem:[#allocation53] sm:$0xf]
    %v6550 = vld [vmem:[#allocation53 + $0x4] sm:$0xf]
    %v6551 = vld [vmem:[#allocation53 + $0x8] sm:$0xf]
    %v6552 = vld [vmem:[#allocation53 + $0xc] sm:$0xf]
    %v6553 = vld [vmem:[#allocation53 + $0x10] sm:$0xf]
    %v6554 = vld [vmem:[#allocation53 + $0x14] sm:$0xf]
    %v6555 = vld [vmem:[#allocation53 + $0x18] sm:$0xf]
    %v6556 = vld [vmem:[#allocation53 + $0x1c] sm:$0xf]
    %v6557 = vld [vmem:[#allocation53 + $0x20] sm:$0xf]
    %v6558 = vld [vmem:[#allocation53 + $0x24] sm:$0xf]
    %v6559 = vld [vmem:[#allocation53 + $0x28] sm:$0xf]
    %v6560 = vld [vmem:[#allocation53 + $0x2c] sm:$0xf]
    %v6561 = vld [vmem:[#allocation53 + $0x30] sm:$0xf]
    %v6562 = vld [vmem:[#allocation53 + $0x34] sm:$0xf]
    %v6563 = vld [vmem:[#allocation53 + $0x38] sm:$0xf]
    %v6564 = vld [vmem:[#allocation53 + $0x3c] sm:$0xf]
    %v6565 = vpack.c.bf16 %v6546, %v6546
    %v6582 = vunpack.c.l.b16 %v6549
    %v6583 = vunpack.c.l.b16 %v6550
    %v6584 = vunpack.c.l.b16 %v6551
    %v6585 = vunpack.c.l.b16 %v6552
    %v6586 = vunpack.c.l.b16 %v6553
    %v6587 = vunpack.c.l.b16 %v6554
    %v6588 = vunpack.c.l.b16 %v6555
    %v6589 = vunpack.c.l.b16 %v6556
    %v6590 = vunpack.c.l.b16 %v6557
    %v6591 = vunpack.c.l.b16 %v6558
    %v6592 = vunpack.c.l.b16 %v6559
    %v6593 = vunpack.c.l.b16 %v6560
    %v6594 = vunpack.c.l.b16 %v6561
    %v6595 = vunpack.c.l.b16 %v6562
    %v6596 = vunpack.c.l.b16 %v6563
    %v6597 = vunpack.c.l.b16 %v6564
    %v6598 = vpack.c.b16 %v6583, %v6582
    %v6599 = vpack.c.b16 %v6585, %v6584
    %v6600 = vpack.c.b16 %v6587, %v6586
    %v6601 = vpack.c.b16 %v6589, %v6588
    %v6602 = vpack.c.b16 %v6591, %v6590
    %v6603 = vpack.c.b16 %v6593, %v6592
    %v6604 = vpack.c.b16 %v6595, %v6594
    %v6605 = vpack.c.b16 %v6597, %v6596
    %6614 = vmatpush.bf16.msra.mxu0 %v6605
    %6615 = vmatpush.bf16.msra.mxu0 %v6604
    %6616 = vmatpush.bf16.msra.mxu0 %v6603
    %6617 = vmatpush.bf16.msra.mxu0 %v6602
    %6618 = vmatpush.bf16.msra.mxu0 %v6601
    %6619 = vmatpush.bf16.msra.mxu0 %v6600
    %6620 = vmatpush.bf16.msra.mxu0 %v6599
    %6621 = vmatpush.bf16.msra.mxu0 %v6598
    %6622 = vmatmul.bf16.gmra.mxu0 %v6565
    %v6623 = vpop.f32.mrf.mxu0
    %v6624 = vadd.f32 0.0, %v6623
    %v6625 = vpop.f32.mrf.mxu0
    %6626 = vdwg.mxu0
    %v6628 = vperm.slane %v6527, 0
    %v6630 = vadd.f32 %v6628, %v6624
    %s6631 = scalar_lea.vmem [#allocation53], 64
    %v6632 = vld [vmem:[%s6631] sm:$0xf]
    %v6633 = vld [vmem:[%s6631 + $0x4] sm:$0xf]
    %v6634 = vld [vmem:[%s6631 + $0x8] sm:$0xf]
    %v6635 = vld [vmem:[%s6631 + $0xc] sm:$0xf]
    %v6636 = vld [vmem:[%s6631 + $0x10] sm:$0xf]
    %v6637 = vld [vmem:[%s6631 + $0x14] sm:$0xf]
    %v6638 = vld [vmem:[%s6631 + $0x18] sm:$0xf]
    %v6639 = vld [vmem:[%s6631 + $0x1c] sm:$0xf]
    %v6640 = vld [vmem:[%s6631 + $0x20] sm:$0xf]
    %v6641 = vld [vmem:[%s6631 + $0x24] sm:$0xf]
    %v6642 = vld [vmem:[%s6631 + $0x28] sm:$0xf]
    %v6643 = vld [vmem:[%s6631 + $0x2c] sm:$0xf]
    %v6644 = vld [vmem:[%s6631 + $0x30] sm:$0xf]
    %v6645 = vld [vmem:[%s6631 + $0x34] sm:$0xf]
    %v6646 = vld [vmem:[%s6631 + $0x38] sm:$0xf]
    %v6647 = vld [vmem:[%s6631 + $0x3c] sm:$0xf]
    %v6664 = vunpack.c.l.b16 %v6632
    %v6665 = vunpack.c.l.b16 %v6633
    %v6666 = vunpack.c.l.b16 %v6634
    %v6667 = vunpack.c.l.b16 %v6635
    %v6668 = vunpack.c.l.b16 %v6636
    %v6669 = vunpack.c.l.b16 %v6637
    %v6670 = vunpack.c.l.b16 %v6638
    %v6671 = vunpack.c.l.b16 %v6639
    %v6672 = vunpack.c.l.b16 %v6640
    %v6673 = vunpack.c.l.b16 %v6641
    %v6674 = vunpack.c.l.b16 %v6642
    %v6675 = vunpack.c.l.b16 %v6643
    %v6676 = vunpack.c.l.b16 %v6644
    %v6677 = vunpack.c.l.b16 %v6645
    %v6678 = vunpack.c.l.b16 %v6646
    %v6679 = vunpack.c.l.b16 %v6647
    %v6680 = vpack.c.b16 %v6665, %v6664
    %v6681 = vpack.c.b16 %v6667, %v6666
    %v6682 = vpack.c.b16 %v6669, %v6668
    %v6683 = vpack.c.b16 %v6671, %v6670
    %v6684 = vpack.c.b16 %v6673, %v6672
    %v6685 = vpack.c.b16 %v6675, %v6674
    %v6686 = vpack.c.b16 %v6677, %v6676
    %v6687 = vpack.c.b16 %v6679, %v6678
    %6696 = vmatpush.bf16.msra.mxu0 %v6687
    %6697 = vmatpush.bf16.msra.mxu0 %v6686
    %6698 = vmatpush.bf16.msra.mxu0 %v6685
    %6699 = vmatpush.bf16.msra.mxu0 %v6684
    %6700 = vmatpush.bf16.msra.mxu0 %v6683
    %6701 = vmatpush.bf16.msra.mxu0 %v6682
    %6702 = vmatpush.bf16.msra.mxu0 %v6681
    %6703 = vmatpush.bf16.msra.mxu0 %v6680
    %6704 = vmatmul.bf16.gmra.mxu0 %v6529
    %v6705 = vpop.f32.mrf.mxu0
    %v6706 = vadd.f32 0.0, %v6705
    %v6707 = vpop.f32.mrf.mxu0
    %6708 = vdwg.mxu0
    %v6709 = vadd.f32 %v6630, %v6706
    %s6710 = scalar_lea.vmem %s85, 2
    %v6711 = vld [vmem:[%s6710] sm:$0x1]
    %v6713 = vsel %vm6245, %v6711, 0
    %6715 = vmatpush.bf16.msra.mxu0 0
    %6716 = vmatpush.bf16.msra.mxu0 0
    %6717 = vmatpush.bf16.msra.mxu0 0
    %6718 = vmatpush.bf16.msra.mxu0 0
    %6719 = vmatpush.bf16.msra.mxu0 0
    %6720 = vmatpush.bf16.msra.mxu0 0
    %6721 = vmatpush.bf16.msra.mxu0 0
    %6722 = vmatpush.bf16.msra.mxu0 %v6534
    %6723 = vmatmul.bf16.gmra.mxu0 %v6713
    %v6724 = vpop.f32.mrf.mxu0
    %v6725 = vadd.f32 0.0, %v6724
    %v6726 = vpop.f32.mrf.mxu0
    %6727 = vdwg.mxu0
    %s6728 = scalar_lea.vmem [#allocation53], 128
    %v6729 = vld [vmem:[%s6728] sm:$0xf]
    %v6730 = vld [vmem:[%s6728 + $0x4] sm:$0xf]
    %v6731 = vld [vmem:[%s6728 + $0x8] sm:$0xf]
    %v6732 = vld [vmem:[%s6728 + $0xc] sm:$0xf]
    %v6733 = vld [vmem:[%s6728 + $0x10] sm:$0xf]
    %v6734 = vld [vmem:[%s6728 + $0x14] sm:$0xf]
    %v6735 = vld [vmem:[%s6728 + $0x18] sm:$0xf]
    %v6736 = vld [vmem:[%s6728 + $0x1c] sm:$0xf]
    %v6737 = vld [vmem:[%s6728 + $0x20] sm:$0xf]
    %v6738 = vld [vmem:[%s6728 + $0x24] sm:$0xf]
    %v6739 = vld [vmem:[%s6728 + $0x28] sm:$0xf]
    %v6740 = vld [vmem:[%s6728 + $0x2c] sm:$0xf]
    %v6741 = vld [vmem:[%s6728 + $0x30] sm:$0xf]
    %v6742 = vld [vmem:[%s6728 + $0x34] sm:$0xf]
    %v6743 = vld [vmem:[%s6728 + $0x38] sm:$0xf]
    %v6744 = vld [vmem:[%s6728 + $0x3c] sm:$0xf]
    %v6745 = vpack.c.bf16 %v6725, %v6725
    %v6762 = vunpack.c.l.b16 %v6729
    %v6763 = vunpack.c.l.b16 %v6730
    %v6764 = vunpack.c.l.b16 %v6731
    %v6765 = vunpack.c.l.b16 %v6732
    %v6766 = vunpack.c.l.b16 %v6733
    %v6767 = vunpack.c.l.b16 %v6734
    %v6768 = vunpack.c.l.b16 %v6735
    %v6769 = vunpack.c.l.b16 %v6736
    %v6770 = vunpack.c.l.b16 %v6737
    %v6771 = vunpack.c.l.b16 %v6738
    %v6772 = vunpack.c.l.b16 %v6739
    %v6773 = vunpack.c.l.b16 %v6740
    %v6774 = vunpack.c.l.b16 %v6741
    %v6775 = vunpack.c.l.b16 %v6742
    %v6776 = vunpack.c.l.b16 %v6743
    %v6777 = vunpack.c.l.b16 %v6744
    %v6778 = vpack.c.b16 %v6763, %v6762
    %v6779 = vpack.c.b16 %v6765, %v6764
    %v6780 = vpack.c.b16 %v6767, %v6766
    %v6781 = vpack.c.b16 %v6769, %v6768
    %v6782 = vpack.c.b16 %v6771, %v6770
    %v6783 = vpack.c.b16 %v6773, %v6772
    %v6784 = vpack.c.b16 %v6775, %v6774
    %v6785 = vpack.c.b16 %v6777, %v6776
    %6794 = vmatpush.bf16.msra.mxu0 %v6785
    %6795 = vmatpush.bf16.msra.mxu0 %v6784
    %6796 = vmatpush.bf16.msra.mxu0 %v6783
    %6797 = vmatpush.bf16.msra.mxu0 %v6782
    %6798 = vmatpush.bf16.msra.mxu0 %v6781
    %6799 = vmatpush.bf16.msra.mxu0 %v6780
    %6800 = vmatpush.bf16.msra.mxu0 %v6779
    %6801 = vmatpush.bf16.msra.mxu0 %v6778
    %6802 = vmatmul.bf16.gmra.mxu0 %v6745
    %v6803 = vpop.f32.mrf.mxu0
    %v6804 = vadd.f32 0.0, %v6803
    %v6805 = vpop.f32.mrf.mxu0
    %6806 = vdwg.mxu0
    %v6807 = vadd.f32 %v6709, %v6804
    %v6808 = vmax.f32 %v6807, 0.0
    %v6809 = vld [vmem:[#allocation58] sm:$0x1]
    %v6810 = vld [vmem:[%s91] sm:$0x1]
    %v6811 = vpack.c.bf16 %v6808, %v6808
    %v6813 = vsel %vm6245, %v6810, 0
    %v6816 = vsel %vm6249, %v6811, 0
    %6818 = vmatpush.bf16.msra.mxu0 0
    %6819 = vmatpush.bf16.msra.mxu0 0
    %6820 = vmatpush.bf16.msra.mxu0 0
    %6821 = vmatpush.bf16.msra.mxu0 0
    %6822 = vmatpush.bf16.msra.mxu0 0
    %6823 = vmatpush.bf16.msra.mxu0 0
    %6824 = vmatpush.bf16.msra.mxu0 0
    %6825 = vmatpush.bf16.msra.mxu0 %v6816
    %6826 = vmatmul.bf16.gmra.mxu0 %v6813
    %v6827 = vpop.f32.mrf.mxu0
    %v6828 = vadd.f32 0.0, %v6827
    %v6829 = vpop.f32.mrf.mxu0
    %6830 = vdwg.mxu0
    %v6831 = vld [vmem:[#allocation56] sm:$0xf]
    %v6832 = vld [vmem:[#allocation56 + $0x4] sm:$0xf]
    %v6833 = vld [vmem:[#allocation56 + $0x8] sm:$0xf]
    %v6834 = vld [vmem:[#allocation56 + $0xc] sm:$0xf]
    %v6835 = vld [vmem:[#allocation56 + $0x10] sm:$0xf]
    %v6836 = vld [vmem:[#allocation56 + $0x14] sm:$0xf]
    %v6837 = vld [vmem:[#allocation56 + $0x18] sm:$0xf]
    %v6838 = vld [vmem:[#allocation56 + $0x1c] sm:$0xf]
    %v6839 = vld [vmem:[#allocation56 + $0x20] sm:$0xf]
    %v6840 = vld [vmem:[#allocation56 + $0x24] sm:$0xf]
    %v6841 = vld [vmem:[#allocation56 + $0x28] sm:$0xf]
    %v6842 = vld [vmem:[#allocation56 + $0x2c] sm:$0xf]
    %v6843 = vld [vmem:[#allocation56 + $0x30] sm:$0xf]
    %v6844 = vld [vmem:[#allocation56 + $0x34] sm:$0xf]
    %v6845 = vld [vmem:[#allocation56 + $0x38] sm:$0xf]
    %v6846 = vld [vmem:[#allocation56 + $0x3c] sm:$0xf]
    %v6847 = vpack.c.bf16 %v6828, %v6828
    %v6864 = vunpack.c.l.b16 %v6831
    %v6865 = vunpack.c.l.b16 %v6832
    %v6866 = vunpack.c.l.b16 %v6833
    %v6867 = vunpack.c.l.b16 %v6834
    %v6868 = vunpack.c.l.b16 %v6835
    %v6869 = vunpack.c.l.b16 %v6836
    %v6870 = vunpack.c.l.b16 %v6837
    %v6871 = vunpack.c.l.b16 %v6838
    %v6872 = vunpack.c.l.b16 %v6839
    %v6873 = vunpack.c.l.b16 %v6840
    %v6874 = vunpack.c.l.b16 %v6841
    %v6875 = vunpack.c.l.b16 %v6842
    %v6876 = vunpack.c.l.b16 %v6843
    %v6877 = vunpack.c.l.b16 %v6844
    %v6878 = vunpack.c.l.b16 %v6845
    %v6879 = vunpack.c.l.b16 %v6846
    %v6880 = vpack.c.b16 %v6865, %v6864
    %v6881 = vpack.c.b16 %v6867, %v6866
    %v6882 = vpack.c.b16 %v6869, %v6868
    %v6883 = vpack.c.b16 %v6871, %v6870
    %v6884 = vpack.c.b16 %v6873, %v6872
    %v6885 = vpack.c.b16 %v6875, %v6874
    %v6886 = vpack.c.b16 %v6877, %v6876
    %v6887 = vpack.c.b16 %v6879, %v6878
    %6896 = vmatpush.bf16.msra.mxu0 %v6887
    %6897 = vmatpush.bf16.msra.mxu0 %v6886
    %6898 = vmatpush.bf16.msra.mxu0 %v6885
    %6899 = vmatpush.bf16.msra.mxu0 %v6884
    %6900 = vmatpush.bf16.msra.mxu0 %v6883
    %6901 = vmatpush.bf16.msra.mxu0 %v6882
    %6902 = vmatpush.bf16.msra.mxu0 %v6881
    %6903 = vmatpush.bf16.msra.mxu0 %v6880
    %6904 = vmatmul.bf16.gmra.mxu0 %v6847
    %v6905 = vpop.f32.mrf.mxu0
    %v6906 = vadd.f32 0.0, %v6905
    %v6907 = vpop.f32.mrf.mxu0
    %6908 = vdwg.mxu0
    %v6910 = vperm.slane %v6809, 0
    %v6912 = vadd.f32 %v6910, %v6906
    %s6913 = scalar_lea.vmem [#allocation56], 64
    %v6914 = vld [vmem:[%s6913] sm:$0xf]
    %v6915 = vld [vmem:[%s6913 + $0x4] sm:$0xf]
    %v6916 = vld [vmem:[%s6913 + $0x8] sm:$0xf]
    %v6917 = vld [vmem:[%s6913 + $0xc] sm:$0xf]
    %v6918 = vld [vmem:[%s6913 + $0x10] sm:$0xf]
    %v6919 = vld [vmem:[%s6913 + $0x14] sm:$0xf]
    %v6920 = vld [vmem:[%s6913 + $0x18] sm:$0xf]
    %v6921 = vld [vmem:[%s6913 + $0x1c] sm:$0xf]
    %v6922 = vld [vmem:[%s6913 + $0x20] sm:$0xf]
    %v6923 = vld [vmem:[%s6913 + $0x24] sm:$0xf]
    %v6924 = vld [vmem:[%s6913 + $0x28] sm:$0xf]
    %v6925 = vld [vmem:[%s6913 + $0x2c] sm:$0xf]
    %v6926 = vld [vmem:[%s6913 + $0x30] sm:$0xf]
    %v6927 = vld [vmem:[%s6913 + $0x34] sm:$0xf]
    %v6928 = vld [vmem:[%s6913 + $0x38] sm:$0xf]
    %v6929 = vld [vmem:[%s6913 + $0x3c] sm:$0xf]
    %v6946 = vunpack.c.l.b16 %v6914
    %v6947 = vunpack.c.l.b16 %v6915
    %v6948 = vunpack.c.l.b16 %v6916
    %v6949 = vunpack.c.l.b16 %v6917
    %v6950 = vunpack.c.l.b16 %v6918
    %v6951 = vunpack.c.l.b16 %v6919
    %v6952 = vunpack.c.l.b16 %v6920
    %v6953 = vunpack.c.l.b16 %v6921
    %v6954 = vunpack.c.l.b16 %v6922
    %v6955 = vunpack.c.l.b16 %v6923
    %v6956 = vunpack.c.l.b16 %v6924
    %v6957 = vunpack.c.l.b16 %v6925
    %v6958 = vunpack.c.l.b16 %v6926
    %v6959 = vunpack.c.l.b16 %v6927
    %v6960 = vunpack.c.l.b16 %v6928
    %v6961 = vunpack.c.l.b16 %v6929
    %v6962 = vpack.c.b16 %v6947, %v6946
    %v6963 = vpack.c.b16 %v6949, %v6948
    %v6964 = vpack.c.b16 %v6951, %v6950
    %v6965 = vpack.c.b16 %v6953, %v6952
    %v6966 = vpack.c.b16 %v6955, %v6954
    %v6967 = vpack.c.b16 %v6957, %v6956
    %v6968 = vpack.c.b16 %v6959, %v6958
    %v6969 = vpack.c.b16 %v6961, %v6960
    %6978 = vmatpush.bf16.msra.mxu0 %v6969
    %6979 = vmatpush.bf16.msra.mxu0 %v6968
    %6980 = vmatpush.bf16.msra.mxu0 %v6967
    %6981 = vmatpush.bf16.msra.mxu0 %v6966
    %6982 = vmatpush.bf16.msra.mxu0 %v6965
    %6983 = vmatpush.bf16.msra.mxu0 %v6964
    %6984 = vmatpush.bf16.msra.mxu0 %v6963
    %6985 = vmatpush.bf16.msra.mxu0 %v6962
    %6986 = vmatmul.bf16.gmra.mxu0 %v6811
    %v6987 = vpop.f32.mrf.mxu0
    %v6988 = vadd.f32 0.0, %v6987
    %v6989 = vpop.f32.mrf.mxu0
    %6990 = vdwg.mxu0
    %v6991 = vadd.f32 %v6912, %v6988
    %s6992 = scalar_lea.vmem %s91, 2
    %v6993 = vld [vmem:[%s6992] sm:$0x1]
    %v6995 = vsel %vm6245, %v6993, 0
    %6997 = vmatpush.bf16.msra.mxu0 0
    %6998 = vmatpush.bf16.msra.mxu0 0
    %6999 = vmatpush.bf16.msra.mxu0 0
    %7000 = vmatpush.bf16.msra.mxu0 0
    %7001 = vmatpush.bf16.msra.mxu0 0
    %7002 = vmatpush.bf16.msra.mxu0 0
    %7003 = vmatpush.bf16.msra.mxu0 0
    %7004 = vmatpush.bf16.msra.mxu0 %v6816
    %7005 = vmatmul.bf16.gmra.mxu0 %v6995
    %v7006 = vpop.f32.mrf.mxu0
    %v7007 = vadd.f32 0.0, %v7006
    %v7008 = vpop.f32.mrf.mxu0
    %7009 = vdwg.mxu0
    %s7010 = scalar_lea.vmem [#allocation56], 128
    %v7011 = vld [vmem:[%s7010] sm:$0xf]
    %v7012 = vld [vmem:[%s7010 + $0x4] sm:$0xf]
    %v7013 = vld [vmem:[%s7010 + $0x8] sm:$0xf]
    %v7014 = vld [vmem:[%s7010 + $0xc] sm:$0xf]
    %v7015 = vld [vmem:[%s7010 + $0x10] sm:$0xf]
    %v7016 = vld [vmem:[%s7010 + $0x14] sm:$0xf]
    %v7017 = vld [vmem:[%s7010 + $0x18] sm:$0xf]
    %v7018 = vld [vmem:[%s7010 + $0x1c] sm:$0xf]
    %v7019 = vld [vmem:[%s7010 + $0x20] sm:$0xf]
    %v7020 = vld [vmem:[%s7010 + $0x24] sm:$0xf]
    %v7021 = vld [vmem:[%s7010 + $0x28] sm:$0xf]
    %v7022 = vld [vmem:[%s7010 + $0x2c] sm:$0xf]
    %v7023 = vld [vmem:[%s7010 + $0x30] sm:$0xf]
    %v7024 = vld [vmem:[%s7010 + $0x34] sm:$0xf]
    %v7025 = vld [vmem:[%s7010 + $0x38] sm:$0xf]
    %v7026 = vld [vmem:[%s7010 + $0x3c] sm:$0xf]
    %v7027 = vpack.c.bf16 %v7007, %v7007
    %v7044 = vunpack.c.l.b16 %v7011
    %v7045 = vunpack.c.l.b16 %v7012
    %v7046 = vunpack.c.l.b16 %v7013
    %v7047 = vunpack.c.l.b16 %v7014
    %v7048 = vunpack.c.l.b16 %v7015
    %v7049 = vunpack.c.l.b16 %v7016
    %v7050 = vunpack.c.l.b16 %v7017
    %v7051 = vunpack.c.l.b16 %v7018
    %v7052 = vunpack.c.l.b16 %v7019
    %v7053 = vunpack.c.l.b16 %v7020
    %v7054 = vunpack.c.l.b16 %v7021
    %v7055 = vunpack.c.l.b16 %v7022
    %v7056 = vunpack.c.l.b16 %v7023
    %v7057 = vunpack.c.l.b16 %v7024
    %v7058 = vunpack.c.l.b16 %v7025
    %v7059 = vunpack.c.l.b16 %v7026
    %v7060 = vpack.c.b16 %v7045, %v7044
    %v7061 = vpack.c.b16 %v7047, %v7046
    %v7062 = vpack.c.b16 %v7049, %v7048
    %v7063 = vpack.c.b16 %v7051, %v7050
    %v7064 = vpack.c.b16 %v7053, %v7052
    %v7065 = vpack.c.b16 %v7055, %v7054
    %v7066 = vpack.c.b16 %v7057, %v7056
    %v7067 = vpack.c.b16 %v7059, %v7058
    %7076 = vmatpush.bf16.msra.mxu0 %v7067
    %7077 = vmatpush.bf16.msra.mxu0 %v7066
    %7078 = vmatpush.bf16.msra.mxu0 %v7065
    %7079 = vmatpush.bf16.msra.mxu0 %v7064
    %7080 = vmatpush.bf16.msra.mxu0 %v7063
    %7081 = vmatpush.bf16.msra.mxu0 %v7062
    %7082 = vmatpush.bf16.msra.mxu0 %v7061
    %7083 = vmatpush.bf16.msra.mxu0 %v7060
    %7084 = vmatmul.bf16.gmra.mxu0 %v7027
    %v7085 = vpop.f32.mrf.mxu0
    %v7086 = vadd.f32 0.0, %v7085
    %v7087 = vpop.f32.mrf.mxu0
    %7088 = vdwg.mxu0
    %v7089 = vadd.f32 %v6991, %v7086
    %v7090 = vadd.f32 %v7089, %v6526
    %v7091 = vmax.f32 %v7090, 0.0
    %v7092 = vld [vmem:[#allocation61] sm:$0x1]
    %v7093 = vld [vmem:[%s97] sm:$0x1]
    %v7094 = vpack.c.bf16 %v7091, %v7091
    %v7096 = vsel %vm6245, %v7093, 0
    %v7099 = vsel %vm6249, %v7094, 0
    %7101 = vmatpush.bf16.msra.mxu0 0
    %7102 = vmatpush.bf16.msra.mxu0 0
    %7103 = vmatpush.bf16.msra.mxu0 0
    %7104 = vmatpush.bf16.msra.mxu0 0
    %7105 = vmatpush.bf16.msra.mxu0 0
    %7106 = vmatpush.bf16.msra.mxu0 0
    %7107 = vmatpush.bf16.msra.mxu0 0
    %7108 = vmatpush.bf16.msra.mxu0 %v7099
    %7109 = vmatmul.bf16.gmra.mxu0 %v7096
    %v7110 = vpop.f32.mrf.mxu0
    %v7111 = vadd.f32 0.0, %v7110
    %v7112 = vpop.f32.mrf.mxu0
    %7113 = vdwg.mxu0
    %v7114 = vld [vmem:[#allocation59] sm:$0xf]
    %v7115 = vld [vmem:[#allocation59 + $0x4] sm:$0xf]
    %v7116 = vld [vmem:[#allocation59 + $0x8] sm:$0xf]
    %v7117 = vld [vmem:[#allocation59 + $0xc] sm:$0xf]
    %v7118 = vld [vmem:[#allocation59 + $0x10] sm:$0xf]
    %v7119 = vld [vmem:[#allocation59 + $0x14] sm:$0xf]
    %v7120 = vld [vmem:[#allocation59 + $0x18] sm:$0xf]
    %v7121 = vld [vmem:[#allocation59 + $0x1c] sm:$0xf]
    %v7122 = vld [vmem:[#allocation59 + $0x20] sm:$0xf]
    %v7123 = vld [vmem:[#allocation59 + $0x24] sm:$0xf]
    %v7124 = vld [vmem:[#allocation59 + $0x28] sm:$0xf]
    %v7125 = vld [vmem:[#allocation59 + $0x2c] sm:$0xf]
    %v7126 = vld [vmem:[#allocation59 + $0x30] sm:$0xf]
    %v7127 = vld [vmem:[#allocation59 + $0x34] sm:$0xf]
    %v7128 = vld [vmem:[#allocation59 + $0x38] sm:$0xf]
    %v7129 = vld [vmem:[#allocation59 + $0x3c] sm:$0xf]
    %v7130 = vpack.c.bf16 %v7111, %v7111
    %v7147 = vunpack.c.l.b16 %v7114
    %v7148 = vunpack.c.l.b16 %v7115
    %v7149 = vunpack.c.l.b16 %v7116
    %v7150 = vunpack.c.l.b16 %v7117
    %v7151 = vunpack.c.l.b16 %v7118
    %v7152 = vunpack.c.l.b16 %v7119
    %v7153 = vunpack.c.l.b16 %v7120
    %v7154 = vunpack.c.l.b16 %v7121
    %v7155 = vunpack.c.l.b16 %v7122
    %v7156 = vunpack.c.l.b16 %v7123
    %v7157 = vunpack.c.l.b16 %v7124
    %v7158 = vunpack.c.l.b16 %v7125
    %v7159 = vunpack.c.l.b16 %v7126
    %v7160 = vunpack.c.l.b16 %v7127
    %v7161 = vunpack.c.l.b16 %v7128
    %v7162 = vunpack.c.l.b16 %v7129
    %v7163 = vpack.c.b16 %v7148, %v7147
    %v7164 = vpack.c.b16 %v7150, %v7149
    %v7165 = vpack.c.b16 %v7152, %v7151
    %v7166 = vpack.c.b16 %v7154, %v7153
    %v7167 = vpack.c.b16 %v7156, %v7155
    %v7168 = vpack.c.b16 %v7158, %v7157
    %v7169 = vpack.c.b16 %v7160, %v7159
    %v7170 = vpack.c.b16 %v7162, %v7161
    %7179 = vmatpush.bf16.msra.mxu0 %v7170
    %7180 = vmatpush.bf16.msra.mxu0 %v7169
    %7181 = vmatpush.bf16.msra.mxu0 %v7168
    %7182 = vmatpush.bf16.msra.mxu0 %v7167
    %7183 = vmatpush.bf16.msra.mxu0 %v7166
    %7184 = vmatpush.bf16.msra.mxu0 %v7165
    %7185 = vmatpush.bf16.msra.mxu0 %v7164
    %7186 = vmatpush.bf16.msra.mxu0 %v7163
    %7187 = vmatmul.bf16.gmra.mxu0 %v7130
    %v7188 = vpop.f32.mrf.mxu0
    %v7189 = vadd.f32 0.0, %v7188
    %v7190 = vpop.f32.mrf.mxu0
    %7191 = vdwg.mxu0
    %v7192 = vadd.f32 %v7092, %v7189
    %s7193 = scalar_lea.vmem %s97, 1
    %v7194 = vld [vmem:[%s7193] sm:$0x1]
    %v7196 = vsel %vm6245, %v7194, 0
    %7198 = vmatpush.bf16.msra.mxu0 0
    %7199 = vmatpush.bf16.msra.mxu0 0
    %7200 = vmatpush.bf16.msra.mxu0 0
    %7201 = vmatpush.bf16.msra.mxu0 0
    %7202 = vmatpush.bf16.msra.mxu0 0
    %7203 = vmatpush.bf16.msra.mxu0 0
    %7204 = vmatpush.bf16.msra.mxu0 0
    %7205 = vmatpush.bf16.msra.mxu0 %v7099
    %7206 = vmatmul.bf16.gmra.mxu0 %v7196
    %v7207 = vpop.f32.mrf.mxu0
    %v7208 = vadd.f32 0.0, %v7207
    %v7209 = vpop.f32.mrf.mxu0
    %7210 = vdwg.mxu0
    %s7211 = scalar_lea.vmem [#allocation59], 64
    %v7212 = vld [vmem:[%s7211] sm:$0xf]
    %v7213 = vld [vmem:[%s7211 + $0x4] sm:$0xf]
    %v7214 = vld [vmem:[%s7211 + $0x8] sm:$0xf]
    %v7215 = vld [vmem:[%s7211 + $0xc] sm:$0xf]
    %v7216 = vld [vmem:[%s7211 + $0x10] sm:$0xf]
    %v7217 = vld [vmem:[%s7211 + $0x14] sm:$0xf]
    %v7218 = vld [vmem:[%s7211 + $0x18] sm:$0xf]
    %v7219 = vld [vmem:[%s7211 + $0x1c] sm:$0xf]
    %v7220 = vld [vmem:[%s7211 + $0x20] sm:$0xf]
    %v7221 = vld [vmem:[%s7211 + $0x24] sm:$0xf]
    %v7222 = vld [vmem:[%s7211 + $0x28] sm:$0xf]
    %v7223 = vld [vmem:[%s7211 + $0x2c] sm:$0xf]
    %v7224 = vld [vmem:[%s7211 + $0x30] sm:$0xf]
    %v7225 = vld [vmem:[%s7211 + $0x34] sm:$0xf]
    %v7226 = vld [vmem:[%s7211 + $0x38] sm:$0xf]
    %v7227 = vld [vmem:[%s7211 + $0x3c] sm:$0xf]
    %v7228 = vpack.c.bf16 %v7208, %v7208
    %v7245 = vunpack.c.l.b16 %v7212
    %v7246 = vunpack.c.l.b16 %v7213
    %v7247 = vunpack.c.l.b16 %v7214
    %v7248 = vunpack.c.l.b16 %v7215
    %v7249 = vunpack.c.l.b16 %v7216
    %v7250 = vunpack.c.l.b16 %v7217
    %v7251 = vunpack.c.l.b16 %v7218
    %v7252 = vunpack.c.l.b16 %v7219
    %v7253 = vunpack.c.l.b16 %v7220
    %v7254 = vunpack.c.l.b16 %v7221
    %v7255 = vunpack.c.l.b16 %v7222
    %v7256 = vunpack.c.l.b16 %v7223
    %v7257 = vunpack.c.l.b16 %v7224
    %v7258 = vunpack.c.l.b16 %v7225
    %v7259 = vunpack.c.l.b16 %v7226
    %v7260 = vunpack.c.l.b16 %v7227
    %v7261 = vpack.c.b16 %v7246, %v7245
    %v7262 = vpack.c.b16 %v7248, %v7247
    %v7263 = vpack.c.b16 %v7250, %v7249
    %v7264 = vpack.c.b16 %v7252, %v7251
    %v7265 = vpack.c.b16 %v7254, %v7253
    %v7266 = vpack.c.b16 %v7256, %v7255
    %v7267 = vpack.c.b16 %v7258, %v7257
    %v7268 = vpack.c.b16 %v7260, %v7259
    %7277 = vmatpush.bf16.msra.mxu0 %v7268
    %7278 = vmatpush.bf16.msra.mxu0 %v7267
    %7279 = vmatpush.bf16.msra.mxu0 %v7266
    %7280 = vmatpush.bf16.msra.mxu0 %v7265
    %7281 = vmatpush.bf16.msra.mxu0 %v7264
    %7282 = vmatpush.bf16.msra.mxu0 %v7263
    %7283 = vmatpush.bf16.msra.mxu0 %v7262
    %7284 = vmatpush.bf16.msra.mxu0 %v7261
    %7285 = vmatmul.bf16.gmra.mxu0 %v7228
    %v7286 = vpop.f32.mrf.mxu0
    %v7287 = vadd.f32 0.0, %v7286
    %v7288 = vpop.f32.mrf.mxu0
    %7289 = vdwg.mxu0
    %v7290 = vadd.f32 %v7192, %v7287
    %v7291 = vmax.f32 %v7290, 0.0
    %v7292 = vld [vmem:[#allocation65] sm:$0x1]
    %v7293 = vld [vmem:[#allocation62] sm:$0x1]
    %v7295 = vsel %vm6245, %v7293, 0
    %7297 = vmatpush.bf16.msra.mxu0 0
    %7298 = vmatpush.bf16.msra.mxu0 0
    %7299 = vmatpush.bf16.msra.mxu0 0
    %7300 = vmatpush.bf16.msra.mxu0 0
    %7301 = vmatpush.bf16.msra.mxu0 0
    %7302 = vmatpush.bf16.msra.mxu0 0
    %7303 = vmatpush.bf16.msra.mxu0 0
    %7304 = vmatpush.bf16.msra.mxu0 %v7099
    %7305 = vmatmul.bf16.gmra.mxu0 %v7295
    %v7306 = vpop.f32.mrf.mxu0
    %v7307 = vadd.f32 0.0, %v7306
    %v7308 = vpop.f32.mrf.mxu0
    %7309 = vdwg.mxu0
    %v7310 = vld [vmem:[#allocation64] sm:$0xf]
    %v7311 = vld [vmem:[#allocation64 + $0x4] sm:$0xf]
    %v7312 = vld [vmem:[#allocation64 + $0x8] sm:$0xf]
    %v7313 = vld [vmem:[#allocation64 + $0xc] sm:$0xf]
    %v7314 = vld [vmem:[#allocation64 + $0x10] sm:$0xf]
    %v7315 = vld [vmem:[#allocation64 + $0x14] sm:$0xf]
    %v7316 = vld [vmem:[#allocation64 + $0x18] sm:$0xf]
    %v7317 = vld [vmem:[#allocation64 + $0x1c] sm:$0xf]
    %v7318 = vld [vmem:[#allocation64 + $0x20] sm:$0xf]
    %v7319 = vld [vmem:[#allocation64 + $0x24] sm:$0xf]
    %v7320 = vld [vmem:[#allocation64 + $0x28] sm:$0xf]
    %v7321 = vld [vmem:[#allocation64 + $0x2c] sm:$0xf]
    %v7322 = vld [vmem:[#allocation64 + $0x30] sm:$0xf]
    %v7323 = vld [vmem:[#allocation64 + $0x34] sm:$0xf]
    %v7324 = vld [vmem:[#allocation64 + $0x38] sm:$0xf]
    %v7325 = vld [vmem:[#allocation64 + $0x3c] sm:$0xf]
    %v7326 = vpack.c.bf16 %v7307, %v7307
    %v7343 = vunpack.c.l.b16 %v7310
    %v7344 = vunpack.c.l.b16 %v7311
    %v7345 = vunpack.c.l.b16 %v7312
    %v7346 = vunpack.c.l.b16 %v7313
    %v7347 = vunpack.c.l.b16 %v7314
    %v7348 = vunpack.c.l.b16 %v7315
    %v7349 = vunpack.c.l.b16 %v7316
    %v7350 = vunpack.c.l.b16 %v7317
    %v7351 = vunpack.c.l.b16 %v7318
    %v7352 = vunpack.c.l.b16 %v7319
    %v7353 = vunpack.c.l.b16 %v7320
    %v7354 = vunpack.c.l.b16 %v7321
    %v7355 = vunpack.c.l.b16 %v7322
    %v7356 = vunpack.c.l.b16 %v7323
    %v7357 = vunpack.c.l.b16 %v7324
    %v7358 = vunpack.c.l.b16 %v7325
    %v7359 = vpack.c.b16 %v7344, %v7343
    %v7360 = vpack.c.b16 %v7346, %v7345
    %v7361 = vpack.c.b16 %v7348, %v7347
    %v7362 = vpack.c.b16 %v7350, %v7349
    %v7363 = vpack.c.b16 %v7352, %v7351
    %v7364 = vpack.c.b16 %v7354, %v7353
    %v7365 = vpack.c.b16 %v7356, %v7355
    %v7366 = vpack.c.b16 %v7358, %v7357
    %7375 = vmatpush.bf16.msra.mxu0 %v7366
    %7376 = vmatpush.bf16.msra.mxu0 %v7365
    %7377 = vmatpush.bf16.msra.mxu0 %v7364
    %7378 = vmatpush.bf16.msra.mxu0 %v7363
    %7379 = vmatpush.bf16.msra.mxu0 %v7362
    %7380 = vmatpush.bf16.msra.mxu0 %v7361
    %7381 = vmatpush.bf16.msra.mxu0 %v7360
    %7382 = vmatpush.bf16.msra.mxu0 %v7359
    %7383 = vmatmul.bf16.gmra.mxu0 %v7326
    %v7384 = vpop.f32.mrf.mxu0
    %v7385 = vadd.f32 0.0, %v7384
    %v7386 = vpop.f32.mrf.mxu0
    %7387 = vdwg.mxu0
    %v7388 = vadd.f32 %v7292, %v7385
    %v7389 = vld [vmem:[#allocation68] sm:$0x1]
    %v7390 = vld [vmem:[#allocation67] sm:$0xf]
    %v7391 = vld [vmem:[#allocation67 + $0x4] sm:$0xf]
    %v7392 = vld [vmem:[#allocation67 + $0x8] sm:$0xf]
    %v7393 = vld [vmem:[#allocation67 + $0xc] sm:$0xf]
    %v7394 = vld [vmem:[#allocation67 + $0x10] sm:$0xf]
    %v7395 = vld [vmem:[#allocation67 + $0x14] sm:$0xf]
    %v7396 = vld [vmem:[#allocation67 + $0x18] sm:$0xf]
    %v7397 = vld [vmem:[#allocation67 + $0x1c] sm:$0xf]
    %v7398 = vld [vmem:[#allocation67 + $0x20] sm:$0xf]
    %v7399 = vld [vmem:[#allocation67 + $0x24] sm:$0xf]
    %v7400 = vld [vmem:[#allocation67 + $0x28] sm:$0xf]
    %v7401 = vld [vmem:[#allocation67 + $0x2c] sm:$0xf]
    %v7402 = vld [vmem:[#allocation67 + $0x30] sm:$0xf]
    %v7403 = vld [vmem:[#allocation67 + $0x34] sm:$0xf]
    %v7404 = vld [vmem:[#allocation67 + $0x38] sm:$0xf]
    %v7405 = vld [vmem:[#allocation67 + $0x3c] sm:$0xf]
    %v7406 = vpack.c.bf16 %v7291, %v7291
    %v7423 = vunpack.c.l.b16 %v7390
    %v7424 = vunpack.c.l.b16 %v7391
    %v7425 = vunpack.c.l.b16 %v7392
    %v7426 = vunpack.c.l.b16 %v7393
    %v7427 = vunpack.c.l.b16 %v7394
    %v7428 = vunpack.c.l.b16 %v7395
    %v7429 = vunpack.c.l.b16 %v7396
    %v7430 = vunpack.c.l.b16 %v7397
    %v7431 = vunpack.c.l.b16 %v7398
    %v7432 = vunpack.c.l.b16 %v7399
    %v7433 = vunpack.c.l.b16 %v7400
    %v7434 = vunpack.c.l.b16 %v7401
    %v7435 = vunpack.c.l.b16 %v7402
    %v7436 = vunpack.c.l.b16 %v7403
    %v7437 = vunpack.c.l.b16 %v7404
    %v7438 = vunpack.c.l.b16 %v7405
    %v7439 = vpack.c.b16 %v7424, %v7423
    %v7440 = vpack.c.b16 %v7426, %v7425
    %v7441 = vpack.c.b16 %v7428, %v7427
    %v7442 = vpack.c.b16 %v7430, %v7429
    %v7443 = vpack.c.b16 %v7432, %v7431
    %v7444 = vpack.c.b16 %v7434, %v7433
    %v7445 = vpack.c.b16 %v7436, %v7435
    %v7446 = vpack.c.b16 %v7438, %v7437
    %7455 = vmatpush.bf16.msra.mxu0 %v7446
    %7456 = vmatpush.bf16.msra.mxu0 %v7445
    %7457 = vmatpush.bf16.msra.mxu0 %v7444
    %7458 = vmatpush.bf16.msra.mxu0 %v7443
    %7459 = vmatpush.bf16.msra.mxu0 %v7442
    %7460 = vmatpush.bf16.msra.mxu0 %v7441
    %7461 = vmatpush.bf16.msra.mxu0 %v7440
    %7462 = vmatpush.bf16.msra.mxu0 %v7439
    %7463 = vmatmul.bf16.gmra.mxu0 %v7406
    %v7464 = vpop.f32.mrf.mxu0
    %v7465 = vadd.f32 0.0, %v7464
    %v7466 = vpop.f32.mrf.mxu0
    %7467 = vdwg.mxu0
    %v7468 = vadd.f32 %v7389, %v7465
    %v7469 = vadd.f32 %v7468, %v7388
    %v7470 = vmax.f32 %v7469, 0.0
    %v7471 = vld [vmem:[#allocation71] sm:$0x1]
    %v7472 = vld [vmem:[#allocation70] sm:$0xf]
    %v7473 = vld [vmem:[#allocation70 + $0x4] sm:$0xf]
    %v7474 = vld [vmem:[#allocation70 + $0x8] sm:$0xf]
    %v7475 = vld [vmem:[#allocation70 + $0xc] sm:$0xf]
    %v7476 = vld [vmem:[#allocation70 + $0x10] sm:$0xf]
    %v7477 = vld [vmem:[#allocation70 + $0x14] sm:$0xf]
    %v7478 = vld [vmem:[#allocation70 + $0x18] sm:$0xf]
    %v7479 = vld [vmem:[#allocation70 + $0x1c] sm:$0xf]
    %v7480 = vld [vmem:[#allocation70 + $0x20] sm:$0xf]
    %v7481 = vld [vmem:[#allocation70 + $0x24] sm:$0xf]
    %v7482 = vld [vmem:[#allocation70 + $0x28] sm:$0xf]
    %v7483 = vld [vmem:[#allocation70 + $0x2c] sm:$0xf]
    %v7484 = vld [vmem:[#allocation70 + $0x30] sm:$0xf]
    %v7485 = vld [vmem:[#allocation70 + $0x34] sm:$0xf]
    %v7486 = vld [vmem:[#allocation70 + $0x38] sm:$0xf]
    %v7487 = vld [vmem:[#allocation70 + $0x3c] sm:$0xf]
    %v7488 = vpack.c.bf16 %v7470, %v7470
    %v7505 = vunpack.c.l.b16 %v7472
    %v7506 = vunpack.c.l.b16 %v7473
    %v7507 = vunpack.c.l.b16 %v7474
    %v7508 = vunpack.c.l.b16 %v7475
    %v7509 = vunpack.c.l.b16 %v7476
    %v7510 = vunpack.c.l.b16 %v7477
    %v7511 = vunpack.c.l.b16 %v7478
    %v7512 = vunpack.c.l.b16 %v7479
    %v7513 = vunpack.c.l.b16 %v7480
    %v7514 = vunpack.c.l.b16 %v7481
    %v7515 = vunpack.c.l.b16 %v7482
    %v7516 = vunpack.c.l.b16 %v7483
    %v7517 = vunpack.c.l.b16 %v7484
    %v7518 = vunpack.c.l.b16 %v7485
    %v7519 = vunpack.c.l.b16 %v7486
    %v7520 = vunpack.c.l.b16 %v7487
    %v7521 = vpack.c.b16 %v7506, %v7505
    %v7522 = vpack.c.b16 %v7508, %v7507
    %v7523 = vpack.c.b16 %v7510, %v7509
    %v7524 = vpack.c.b16 %v7512, %v7511
    %v7525 = vpack.c.b16 %v7514, %v7513
    %v7526 = vpack.c.b16 %v7516, %v7515
    %v7527 = vpack.c.b16 %v7518, %v7517
    %v7528 = vpack.c.b16 %v7520, %v7519
    %7537 = vmatpush.bf16.msra.mxu0 %v7528
    %7538 = vmatpush.bf16.msra.mxu0 %v7527
    %7539 = vmatpush.bf16.msra.mxu0 %v7526
    %7540 = vmatpush.bf16.msra.mxu0 %v7525
    %7541 = vmatpush.bf16.msra.mxu0 %v7524
    %7542 = vmatpush.bf16.msra.mxu0 %v7523
    %7543 = vmatpush.bf16.msra.mxu0 %v7522
    %7544 = vmatpush.bf16.msra.mxu0 %v7521
    %7545 = vmatmul.bf16.gmra.mxu0 %v7488
    %v7546 = vpop.f32.mrf.mxu0
    %v7547 = vadd.f32 0.0, %v7546
    %v7548 = vpop.f32.mrf.mxu0
    %7549 = vdwg.mxu0
    %v7550 = vadd.f32 %v7471, %v7547
    %v7551 = vmax.f32 %v7550, 0.0
    %v7552 = vld [vmem:[#allocation74] sm:$0x1]
    %v7553 = vld [vmem:[#allocation73] sm:$0xf]
    %v7554 = vld [vmem:[#allocation73 + $0x4] sm:$0xf]
    %v7555 = vld [vmem:[#allocation73 + $0x8] sm:$0xf]
    %v7556 = vld [vmem:[#allocation73 + $0xc] sm:$0xf]
    %v7557 = vld [vmem:[#allocation73 + $0x10] sm:$0xf]
    %v7558 = vld [vmem:[#allocation73 + $0x14] sm:$0xf]
    %v7559 = vld [vmem:[#allocation73 + $0x18] sm:$0xf]
    %v7560 = vld [vmem:[#allocation73 + $0x1c] sm:$0xf]
    %v7561 = vld [vmem:[#allocation73 + $0x20] sm:$0xf]
    %v7562 = vld [vmem:[#allocation73 + $0x24] sm:$0xf]
    %v7563 = vld [vmem:[#allocation73 + $0x28] sm:$0xf]
    %v7564 = vld [vmem:[#allocation73 + $0x2c] sm:$0xf]
    %v7565 = vld [vmem:[#allocation73 + $0x30] sm:$0xf]
    %v7566 = vld [vmem:[#allocation73 + $0x34] sm:$0xf]
    %v7567 = vld [vmem:[#allocation73 + $0x38] sm:$0xf]
    %v7568 = vld [vmem:[#allocation73 + $0x3c] sm:$0xf]
    %v7569 = vpack.c.bf16 %v7551, %v7551
    %v7586 = vunpack.c.l.b16 %v7553
    %v7587 = vunpack.c.l.b16 %v7554
    %v7588 = vunpack.c.l.b16 %v7555
    %v7589 = vunpack.c.l.b16 %v7556
    %v7590 = vunpack.c.l.b16 %v7557
    %v7591 = vunpack.c.l.b16 %v7558
    %v7592 = vunpack.c.l.b16 %v7559
    %v7593 = vunpack.c.l.b16 %v7560
    %v7594 = vunpack.c.l.b16 %v7561
    %v7595 = vunpack.c.l.b16 %v7562
    %v7596 = vunpack.c.l.b16 %v7563
    %v7597 = vunpack.c.l.b16 %v7564
    %v7598 = vunpack.c.l.b16 %v7565
    %v7599 = vunpack.c.l.b16 %v7566
    %v7600 = vunpack.c.l.b16 %v7567
    %v7601 = vunpack.c.l.b16 %v7568
    %v7602 = vpack.c.b16 %v7587, %v7586
    %v7603 = vpack.c.b16 %v7589, %v7588
    %v7604 = vpack.c.b16 %v7591, %v7590
    %v7605 = vpack.c.b16 %v7593, %v7592
    %v7606 = vpack.c.b16 %v7595, %v7594
    %v7607 = vpack.c.b16 %v7597, %v7596
    %v7608 = vpack.c.b16 %v7599, %v7598
    %v7609 = vpack.c.b16 %v7601, %v7600
    %7618 = vmatpush.bf16.msra.mxu0 %v7609
    %7619 = vmatpush.bf16.msra.mxu0 %v7608
    %7620 = vmatpush.bf16.msra.mxu0 %v7607
    %7621 = vmatpush.bf16.msra.mxu0 %v7606
    %7622 = vmatpush.bf16.msra.mxu0 %v7605
    %7623 = vmatpush.bf16.msra.mxu0 %v7604
    %7624 = vmatpush.bf16.msra.mxu0 %v7603
    %7625 = vmatpush.bf16.msra.mxu0 %v7602
    %7626 = vmatmul.bf16.gmra.mxu0 %v7569
    %v7627 = vpop.f32.mrf.mxu0
    %v7628 = vadd.f32 0.0, %v7627
    %v7629 = vpop.f32.mrf.mxu0
    %7630 = vdwg.mxu0
    %v7631 = vadd.f32 %v7552, %v7628
    %v7632 = vadd.f32 %v7631, %v7470
    %v7633 = vmax.f32 %v7632, 0.0
    %7634 = vst [vmem:[%s131] sm:$0x1] %v7633
    // Predicated region
    $region450: #{_forward.1} parent=1 // pred_check
      _
    $region451: #{_forward.1} parent=1 // pred_check_branch
      %7636 = sbr.rel (0) target = $region453
    $region452: #{_forward.1} parent=1 // pred_region
      _
    $region453: #{_forward.1} parent=1 // pred_fallthru
      _
    // Predicated region
    $region454: #{_forward.1} parent=1 // pred_check
      _
    $region455: #{_forward.1} parent=1 // pred_check_branch
      %7638 = sbr.rel (0) target = $region457
    $region456: #{_forward.1} parent=1 // pred_region
      _
    $region457: #{_forward.1} parent=1 // pred_fallthru
      _
    %7639 = vsyncpa [#allocation7], 1
    %7640 = vsyncpa [#allocation9], 1
    %7641 = vsyncpa [#allocation12], 1
    %7642 = vsyncpa [#allocation15], 1
    %7643 = vsyncpa [#allocation18], 1
    %7644 = vsyncpa [#allocation21], 1
    %7645 = vsyncpa [#allocation24], 1
    %7646 = vsyncpa [#allocation27], 1
    %7647 = vsyncpa [#allocation30], 1
    %7648 = vsyncpa [#allocation33], 1
    %7649 = vsyncpa [#allocation36], 1
    %7650 = vsyncpa [#allocation39], 1
    %7651 = vsyncpa [#allocation42], 1
    %7652 = vsyncpa [#allocation45], 1
    %7653 = vsyncpa [#allocation48], 1
    %7654 = vsyncpa [#allocation51], 1
    %7655 = vsyncpa [#allocation54], 1
    %7656 = vsyncpa [#allocation57], 1
    %7657 = vsyncpa [#allocation60], 1
    %7658 = vsyncpa [#allocation63], 1
    %7659 = vsyncpa [#allocation66], 1
    %7660 = vsyncpa [#allocation69], 1
    %7661 = vsyncpa [#allocation72], 1
    %7662 = vsyncpa [#allocation75], 1

</llo_original>
